<compile_context>
chip_gen: v7x
topology: tpu7x:2x2x1
jax: 0.10.0
libtpu: 0.0.40
codegen_flags: <defaults>
</compile_context>

<pallas_src>
import jax
import jax.numpy as jnp
from jax import lax
from jax.experimental import pallas as pl
from jax.experimental.pallas import tpu as pltpu

VISUAL_FEATURES = 16
N_DOF_ROBOT = 7
IN_FEATURES = VISUAL_FEATURES + N_DOF_ROBOT      # 23
HIDDEN = 128                                     # 2048 in the original module
PLAN_FEATURES = 64                               # 256 in the original module
NUM_LAYERS = 2


def _softplus(y):
    # F.softplus(beta=1): log(1 + exp(y)), numerically stable.
    return jnp.maximum(y, 0.0) + jnp.log1p(jnp.exp(-jnp.abs(y)))


def _sigmoid(y):
    return 1.0 / (1.0 + jnp.exp(-y))


# ---------------------------------------------------------------------------
# Fused kernel: 2-layer bidirectional LSTM + last-timestep mean/variance heads.
# Everything lives in VMEM; the only output is the (B, 2*P) head slab.
# ---------------------------------------------------------------------------
def _make_kernel(T, B, H, P):
    def kernel(x_ref,
               w0f_ih_ref, w0f_hh_ref, b0f_ref,
               w0b_ih_ref, w0b_hh_ref, b0b_ref,
               w1f_ihf_ref, w1f_ihb_ref, w1f_hh_ref, b1f_ref,
               w1b_ihf_ref, w1b_ihb_ref, b1b_ref,
               whf_ref, whb_ref, bh_ref,
               out_ref,
               p0f_s, p0b_s, p1f_s, out0f_s, out0b_s):
        f32 = jnp.float32

        def cell(gates, c_prev):
            # PyTorch gate order: i, f, g, o   (H=128 -> vreg-aligned lane slices)
            i = _sigmoid(gates[:, 0 * H:1 * H])
            f = _sigmoid(gates[:, 1 * H:2 * H])
            g = jnp.tanh(gates[:, 2 * H:3 * H])
            o = _sigmoid(gates[:, 3 * H:4 * H])
            c = f * c_prev + i * g
            h = o * jnp.tanh(c)
            return h, c

        def rows(ref, t):                          # timestep t's (B, ...) rows
            return ref[t * B:(t + 1) * B, :]

        x = x_ref[...]                             # (T*B, F), time-major

        # ---- layer 0: hoisted input projections (one matmul per direction) ----
        p0f_s[...] = jnp.dot(x, w0f_ih_ref[...], preferred_element_type=f32) + b0f_ref[...]
        p0b_s[...] = jnp.dot(x, w0b_ih_ref[...], preferred_element_type=f32) + b0b_ref[...]
        w0f_hh = w0f_hh_ref[...]
        w0b_hh = w0b_hh_ref[...]

        # layer-0 forward recurrence (fully unrolled, serial by nature)
        h = jnp.zeros((B, H), f32)
        c = jnp.zeros((B, H), f32)
        for t in range(T):
            gates = rows(p0f_s, t) + jnp.dot(h, w0f_hh, preferred_element_type=f32)
            h, c = cell(gates, c)
            out0f_s[t * B:(t + 1) * B, :] = h
        h0f_last = h                               # layer-0 fwd output at t = T-1

        # layer-0 reverse recurrence
        h = jnp.zeros((B, H), f32)
        c = jnp.zeros((B, H), f32)
        h0b_last = None
        for j in range(T):
            t = T - 1 - j
            gates = rows(p0b_s, t) + jnp.dot(h, w0b_hh, preferred_element_type=f32)
            h, c = cell(gates, c)
            out0b_s[t * B:(t + 1) * B, :] = h
            if j == 0:
                h0b_last = h                       # layer-0 bwd output at t = T-1

        # ---- layer 1 forward: hoisted projection of the full layer-0 output ----
        # (split weights over the [fwd, bwd] halves -> no in-kernel concat)
        p1f_s[...] = (jnp.dot(out0f_s[...], w1f_ihf_ref[...], preferred_element_type=f32)
                      + jnp.dot(out0b_s[...], w1f_ihb_ref[...], preferred_element_type=f32)
                      + b1f_ref[...])
        w1f_hh = w1f_hh_ref[...]
        h = jnp.zeros((B, H), f32)
        c = jnp.zeros((B, H), f32)
        for t in range(T):
            gates = rows(p1f_s, t) + jnp.dot(h, w1f_hh, preferred_element_type=f32)
            h, c = cell(gates, c)
        h1f = h                                    # layer-1 fwd output at t = T-1

        # ---- layer 1 reverse: output[:, -1] only needs the FIRST reverse step
        # (hidden after consuming timestep T-1 from a zero state; W_hh term == 0).
        gates_b = (jnp.dot(h0f_last, w1b_ihf_ref[...], preferred_element_type=f32)
                   + jnp.dot(h0b_last, w1b_ihb_ref[...], preferred_element_type=f32)
                   + b1b_ref[...])
        h1b, _ = cell(gates_b, jnp.zeros((B, H), f32))

        # ---- fused mean/variance head: one matmul family, one lane-dense store ----
        y = (jnp.dot(h1f, whf_ref[...], preferred_element_type=f32)
             + jnp.dot(h1b, whb_ref[...], preferred_element_type=f32)
             + bh_ref[...])                        # (B, 2P): [:, :P]=mean, [:, P:]=variance
        col = lax.broadcasted_iota(jnp.int32, (B, 2 * P), 1)
        out_ref[...] = jnp.where(col < P, y, _softplus(y))

    return kernel


# ---------------------------------------------------------------------------
# Public forward: x (B, T, IN_FEATURES) -> (mean, variance), each (B, PLAN_FEATURES)
# ---------------------------------------------------------------------------
def plan_recognition_forward(x, params):
    B, T, F = x.shape
    H, P = HIDDEN, PLAN_FEATURES
    x_flat = jnp.transpose(x, (1, 0, 2)).reshape(T * B, F).astype(jnp.float32)

    def direction(name):
        return (params[f"weight_ih_{name}"].T,                                   # (Fin, 4H)
                params[f"weight_hh_{name}"].T,                                   # (H, 4H)
                (params[f"bias_ih_{name}"] + params[f"bias_hh_{name}"])[None, :])

    w0f_ih, w0f_hh, b0f = direction("l0")
    w0b_ih, w0b_hh, b0b = direction("l0_reverse")
    w1f_ih, w1f_hh, b1f = direction("l1")
    w1b_ih, _w1b_hh_unused, b1b = direction("l1_reverse")   # hh unused: zero initial state
    w1f_ihf, w1f_ihb = w1f_ih[:H], w1f_ih[H:]
    w1b_ihf, w1b_ihb = w1b_ih[:H], w1b_ih[H:]

    # fuse mean_fc / variance_fc into one (2H, 2P) weight; split over [fwd, bwd] halves
    w_head = jnp.concatenate([params["mean_fc_w"], params["variance_fc_w"]], axis=0).T
    b_head = jnp.concatenate([params["mean_fc_b"], params["variance_fc_b"]])[None, :]
    whf, whb = w_head[:H], w_head[H:]

    inputs = (x_flat,
              w0f_ih, w0f_hh, b0f,
              w0b_ih, w0b_hh, b0b,
              w1f_ihf, w1f_ihb, w1f_hh, b1f,
              w1b_ihf, w1b_ihb, b1b,
              whf, whb, b_head)

    out = pl.pallas_call(
        _make_kernel(T, B, H, P),
        out_shape=jax.ShapeDtypeStruct((B, 2 * P), jnp.float32),
        in_specs=[pl.BlockSpec(memory_space=pltpu.MemorySpace.VMEM)] * len(inputs),
        out_specs=pl.BlockSpec(memory_space=pltpu.MemorySpace.VMEM),
        scratch_shapes=[pltpu.VMEM((T * B, 4 * H), jnp.float32),   # p0f
                        pltpu.VMEM((T * B, 4 * H), jnp.float32),   # p0b
                        pltpu.VMEM((T * B, 4 * H), jnp.float32),   # p1f
                        pltpu.VMEM((T * B, H), jnp.float32),       # layer-0 fwd outputs
                        pltpu.VMEM((T * B, H), jnp.float32)],      # layer-0 bwd outputs
        compiler_params=pltpu.CompilerParams(vmem_limit_bytes=64 * 1024 * 1024),
    )(*inputs)

    return out[:, :P], out[:, P:]


# ---------------------------------------------------------------------------
# Parameter init (deterministic, PyTorch-style U(-1/sqrt(fan), 1/sqrt(fan)))
# ---------------------------------------------------------------------------
def init_params(key):
    keys = iter(jax.random.split(key, 32))
    bound = 1.0 / (HIDDEN ** 0.5)

    def uni(shape, b=bound):
        return jax.random.uniform(next(keys), shape, jnp.float32, -b, b)

    p = {}
    in_sizes = [IN_FEATURES, 2 * HIDDEN]
    for l in range(NUM_LAYERS):
        for sfx in ("", "_reverse"):
            p[f"weight_ih_l{l}{sfx}"] = uni((4 * HIDDEN, in_sizes[l]))
            p[f"weight_hh_l{l}{sfx}"] = uni((4 * HIDDEN, HIDDEN))
            p[f"bias_ih_l{l}{sfx}"] = uni((4 * HIDDEN,))
            p[f"bias_hh_l{l}{sfx}"] = uni((4 * HIDDEN,))
    fc_bound = 1.0 / ((2 * HIDDEN) ** 0.5)
    p["mean_fc_w"] = uni((PLAN_FEATURES, 2 * HIDDEN), fc_bound)
    p["mean_fc_b"] = uni((PLAN_FEATURES,), fc_bound)
    p["variance_fc_w"] = uni((PLAN_FEATURES, 2 * HIDDEN), fc_bound)
    p["variance_fc_b"] = uni((PLAN_FEATURES,), fc_bound)
    return p


# ---------------------------------------------------------------------------
# Plain-JAX reference (mirrors torch.nn.LSTM bidirectional semantics)
# ---------------------------------------------------------------------------
def reference_forward(x, params):
    B, T, _ = x.shape
    H = HIDDEN

    def run_direction(inp_tbf, w_ih, w_hh, b, reverse):
        def step(carry, x_t):
            h, c = carry
            gates = x_t @ w_ih.T + h @ w_hh.T + b
            i, f, g, o = jnp.split(gates, 4, axis=-1)
            i, f, o = _sigmoid(i), _sigmoid(f), _sigmoid(o)
            g = jnp.tanh(g)
            c = f * c + i * g
            h = o * jnp.tanh(c)
            return (h, c), h

        seq = inp_tbf[::-1] if reverse else inp_tbf
        init = (jnp.zeros((B, H), jnp.float32), jnp.zeros((B, H), jnp.float32))
        _, hs = lax.scan(step, init, seq)
        return hs[::-1] if reverse else hs

    inp = jnp.transpose(x, (1, 0, 2)).astype(jnp.float32)       # (T, B, Fin)
    for l in range(NUM_LAYERS):
        outs = []
        for sfx, rev in (("", False), ("_reverse", True)):
            w_ih = params[f"weight_ih_l{l}{sfx}"]
            w_hh = params[f"weight_hh_l{l}{sfx}"]
            b = params[f"bias_ih_l{l}{sfx}"] + params[f"bias_hh_l{l}{sfx}"]
            outs.append(run_direction(inp, w_ih, w_hh, b, rev))
        inp = jnp.concatenate(outs, axis=-1)                    # (T, B, 2H)

    feat = inp[T - 1]                                           # == output[:, -1] (batch_first)
    mean = feat @ params["mean_fc_w"].T + params["mean_fc_b"]
    variance = jax.nn.softplus(feat @ params["variance_fc_w"].T + params["variance_fc_b"])
    return mean, variance


if __name__ == "__main__":
    key = jax.random.PRNGKey(0)
    pkey, xkey = jax.random.split(key)
    params = init_params(pkey)

    B, T = 2, 8
    x = jax.random.normal(xkey, (B, T, IN_FEATURES), jnp.float32)

    mean, variance = jax.jit(plan_recognition_forward)(x, params)
    jax.block_until_ready((mean, variance))

    ref_mean, ref_var = reference_forward(x, params)
    assert mean.shape == (B, PLAN_FEATURES)
    assert variance.shape == (B, PLAN_FEATURES)
    assert jnp.allclose(mean, ref_mean, atol=2e-4, rtol=2e-4)
    assert jnp.allclose(variance, ref_var, atol=2e-4, rtol=2e-4)

    print("KERNEL_OK")
</pallas_src>

<mosaic_0001>
module attributes {stable_mosaic.version = 11 : i64} {
  func.func @kernel(%arg0: memref<16x23xf32, #tpu.memory_space<vmem>>, %arg1: memref<23x512xf32, #tpu.memory_space<vmem>>, %arg2: memref<128x512xf32, #tpu.memory_space<vmem>>, %arg3: memref<1x512xf32, #tpu.memory_space<vmem>>, %arg4: memref<23x512xf32, #tpu.memory_space<vmem>>, %arg5: memref<128x512xf32, #tpu.memory_space<vmem>>, %arg6: memref<1x512xf32, #tpu.memory_space<vmem>>, %arg7: memref<128x512xf32, #tpu.memory_space<vmem>>, %arg8: memref<128x512xf32, #tpu.memory_space<vmem>>, %arg9: memref<128x512xf32, #tpu.memory_space<vmem>>, %arg10: memref<1x512xf32, #tpu.memory_space<vmem>>, %arg11: memref<128x512xf32, #tpu.memory_space<vmem>>, %arg12: memref<128x512xf32, #tpu.memory_space<vmem>>, %arg13: memref<1x512xf32, #tpu.memory_space<vmem>>, %arg14: memref<128x128xf32, #tpu.memory_space<vmem>>, %arg15: memref<128x128xf32, #tpu.memory_space<vmem>>, %arg16: memref<1x128xf32, #tpu.memory_space<vmem>>, %arg17: memref<2x128xf32, #tpu.memory_space<vmem>>, %arg18: memref<16x512xf32, #tpu.memory_space<vmem>>, %arg19: memref<16x512xf32, #tpu.memory_space<vmem>>, %arg20: memref<16x512xf32, #tpu.memory_space<vmem>>, %arg21: memref<16x128xf32, #tpu.memory_space<vmem>>, %arg22: memref<16x128xf32, #tpu.memory_space<vmem>>) attributes {dimension_semantics = [], scalar_prefetch = 0 : i64, scratch_operands = 5 : i64, tpu.core_type = #tpu.core_type<tc>} {
    %c0 = arith.constant 0 : index
    %c0_0 = arith.constant 0 : index
    %0 = vector.load %arg0[%c0, %c0_0] : memref<16x23xf32, #tpu.memory_space<vmem>>, vector<16x23xf32>
    %c0_1 = arith.constant 0 : index
    %c0_2 = arith.constant 0 : index
    %1 = vector.load %arg1[%c0_1, %c0_2] : memref<23x512xf32, #tpu.memory_space<vmem>>, vector<23x512xf32>
    %cst = arith.constant dense<0.000000e+00> : vector<16x512xf32>
    %2 = tpu.matmul %0, %1, %cst {dimension_numbers = #tpu.dot_dimension_numbers<[1], [0], [0], [1], [0, 0, 1, 1], [], []>} : vector<16x23xf32>, vector<23x512xf32>, vector<16x512xf32> -> vector<16x512xf32>
    %c0_3 = arith.constant 0 : index
    %c0_4 = arith.constant 0 : index
    %3 = vector.load %arg3[%c0_3, %c0_4] : memref<1x512xf32, #tpu.memory_space<vmem>>, vector<1x512xf32>
    %4 = vector.broadcast %3 : vector<1x512xf32> to vector<16x512xf32>
    %5 = arith.addf %2, %4 : vector<16x512xf32>
    %c0_5 = arith.constant 0 : index
    %c0_6 = arith.constant 0 : index
    %6 = vector.load %arg18[%c0_5, %c0_6] : memref<16x512xf32, #tpu.memory_space<vmem>>, vector<16x512xf32>
    tpu.vector_store %arg18[%c0_5, %c0_6], %5 {strides = array<i32>} : memref<16x512xf32, #tpu.memory_space<vmem>>, vector<16x512xf32>,
    %c0_7 = arith.constant 0 : index
    %c0_8 = arith.constant 0 : index
    %7 = vector.load %arg4[%c0_7, %c0_8] : memref<23x512xf32, #tpu.memory_space<vmem>>, vector<23x512xf32>
    %cst_9 = arith.constant dense<0.000000e+00> : vector<16x512xf32>
    %8 = tpu.matmul %0, %7, %cst_9 {dimension_numbers = #tpu.dot_dimension_numbers<[1], [0], [0], [1], [0, 0, 1, 1], [], []>} : vector<16x23xf32>, vector<23x512xf32>, vector<16x512xf32> -> vector<16x512xf32>
    %c0_10 = arith.constant 0 : index
    %c0_11 = arith.constant 0 : index
    %9 = vector.load %arg6[%c0_10, %c0_11] : memref<1x512xf32, #tpu.memory_space<vmem>>, vector<1x512xf32>
    %10 = vector.broadcast %9 : vector<1x512xf32> to vector<16x512xf32>
    %11 = arith.addf %8, %10 : vector<16x512xf32>
    %c0_12 = arith.constant 0 : index
    %c0_13 = arith.constant 0 : index
    %12 = vector.load %arg19[%c0_12, %c0_13] : memref<16x512xf32, #tpu.memory_space<vmem>>, vector<16x512xf32>
    tpu.vector_store %arg19[%c0_12, %c0_13], %11 {strides = array<i32>} : memref<16x512xf32, #tpu.memory_space<vmem>>, vector<16x512xf32>,
    %c0_14 = arith.constant 0 : index
    %c0_15 = arith.constant 0 : index
    %13 = vector.load %arg2[%c0_14, %c0_15] : memref<128x512xf32, #tpu.memory_space<vmem>>, vector<128x512xf32>
    %c0_16 = arith.constant 0 : index
    %c0_17 = arith.constant 0 : index
    %14 = vector.load %arg5[%c0_16, %c0_17] : memref<128x512xf32, #tpu.memory_space<vmem>>, vector<128x512xf32>
    %cst_18 = arith.constant 0.000000e+00 : f32
    %15 = vector.broadcast %cst_18 : f32 to vector<2x128xf32>
    %cst_19 = arith.constant 0.000000e+00 : f32
    %16 = vector.broadcast %cst_19 : f32 to vector<2x128xf32>
    %c0_20 = arith.constant 0 : index
    %c0_21 = arith.constant 0 : index
    %17 = vector.load %arg18[%c0_20, %c0_21] : memref<16x512xf32, #tpu.memory_space<vmem>>, vector<2x512xf32>
    %cst_22 = arith.constant dense<0.000000e+00> : vector<2x512xf32>
    %18 = tpu.matmul %15, %13, %cst_22 {dimension_numbers = #tpu.dot_dimension_numbers<[1], [0], [0], [1], [0, 0, 1, 1], [], []>} : vector<2x128xf32>, vector<128x512xf32>, vector<2x512xf32> -> vector<2x512xf32>
    %19 = arith.addf %17, %18 : vector<2x512xf32>
    %20 = vector.extract_strided_slice %19 {offsets = [0, 0], sizes = [2, 128], strides = [1, 1]} : vector<2x512xf32> to vector<2x128xf32>
    %cst_23 = arith.constant 0.000000e+00 : f32
    %21 = vector.broadcast %cst_23 : f32 to vector<2x128xf32>
    %22 = arith.subf %21, %20 : vector<2x128xf32>
    %23 = math.exp %22 : vector<2x128xf32>
    %cst_24 = arith.constant 1.000000e+00 : f32
    %24 = vector.broadcast %cst_24 : f32 to vector<2x128xf32>
    %25 = arith.addf %24, %23 : vector<2x128xf32>
    %cst_25 = arith.constant 1.000000e+00 : f32
    %26 = vector.broadcast %cst_25 : f32 to vector<2x128xf32>
    %27 = arith.divf %26, %25 : vector<2x128xf32>
    %28 = vector.extract_strided_slice %19 {offsets = [0, 128], sizes = [2, 128], strides = [1, 1]} : vector<2x512xf32> to vector<2x128xf32>
    %cst_26 = arith.constant 0.000000e+00 : f32
    %29 = vector.broadcast %cst_26 : f32 to vector<2x128xf32>
    %30 = arith.subf %29, %28 : vector<2x128xf32>
    %31 = math.exp %30 : vector<2x128xf32>
    %cst_27 = arith.constant 1.000000e+00 : f32
    %32 = vector.broadcast %cst_27 : f32 to vector<2x128xf32>
    %33 = arith.addf %32, %31 : vector<2x128xf32>
    %cst_28 = arith.constant 1.000000e+00 : f32
    %34 = vector.broadcast %cst_28 : f32 to vector<2x128xf32>
    %35 = arith.divf %34, %33 : vector<2x128xf32>
    %36 = vector.extract_strided_slice %19 {offsets = [0, 256], sizes = [2, 128], strides = [1, 1]} : vector<2x512xf32> to vector<2x128xf32>
    %37 = math.tanh %36 : vector<2x128xf32>
    %38 = vector.extract_strided_slice %19 {offsets = [0, 384], sizes = [2, 128], strides = [1, 1]} : vector<2x512xf32> to vector<2x128xf32>
    %cst_29 = arith.constant 0.000000e+00 : f32
    %39 = vector.broadcast %cst_29 : f32 to vector<2x128xf32>
    %40 = arith.subf %39, %38 : vector<2x128xf32>
    %41 = math.exp %40 : vector<2x128xf32>
    %cst_30 = arith.constant 1.000000e+00 : f32
    %42 = vector.broadcast %cst_30 : f32 to vector<2x128xf32>
    %43 = arith.addf %42, %41 : vector<2x128xf32>
    %cst_31 = arith.constant 1.000000e+00 : f32
    %44 = vector.broadcast %cst_31 : f32 to vector<2x128xf32>
    %45 = arith.divf %44, %43 : vector<2x128xf32>
    %46 = arith.mulf %35, %16 : vector<2x128xf32>
    %47 = arith.mulf %27, %37 : vector<2x128xf32>
    %48 = arith.addf %46, %47 : vector<2x128xf32>
    %49 = math.tanh %48 : vector<2x128xf32>
    %50 = arith.mulf %45, %49 : vector<2x128xf32>
    %c0_32 = arith.constant 0 : index
    %c0_33 = arith.constant 0 : index
    %51 = vector.load %arg21[%c0_32, %c0_33] : memref<16x128xf32, #tpu.memory_space<vmem>>, vector<2x128xf32>
    tpu.vector_store %arg21[%c0_32, %c0_33], %50 {strides = array<i32>} : memref<16x128xf32, #tpu.memory_space<vmem>>, vector<2x128xf32>,
    %c2 = arith.constant 2 : index
    %c0_34 = arith.constant 0 : index
    %52 = vector.load %arg18[%c2, %c0_34] : memref<16x512xf32, #tpu.memory_space<vmem>>, vector<2x512xf32>
    %cst_35 = arith.constant dense<0.000000e+00> : vector<2x512xf32>
    %53 = tpu.matmul %50, %13, %cst_35 {dimension_numbers = #tpu.dot_dimension_numbers<[1], [0], [0], [1], [0, 0, 1, 1], [], []>} : vector<2x128xf32>, vector<128x512xf32>, vector<2x512xf32> -> vector<2x512xf32>
    %54 = arith.addf %52, %53 : vector<2x512xf32>
    %55 = vector.extract_strided_slice %54 {offsets = [0, 0], sizes = [2, 128], strides = [1, 1]} : vector<2x512xf32> to vector<2x128xf32>
    %cst_36 = arith.constant 0.000000e+00 : f32
    %56 = vector.broadcast %cst_36 : f32 to vector<2x128xf32>
    %57 = arith.subf %56, %55 : vector<2x128xf32>
    %58 = math.exp %57 : vector<2x128xf32>
    %cst_37 = arith.constant 1.000000e+00 : f32
    %59 = vector.broadcast %cst_37 : f32 to vector<2x128xf32>
    %60 = arith.addf %59, %58 : vector<2x128xf32>
    %cst_38 = arith.constant 1.000000e+00 : f32
    %61 = vector.broadcast %cst_38 : f32 to vector<2x128xf32>
    %62 = arith.divf %61, %60 : vector<2x128xf32>
    %63 = vector.extract_strided_slice %54 {offsets = [0, 128], sizes = [2, 128], strides = [1, 1]} : vector<2x512xf32> to vector<2x128xf32>
    %cst_39 = arith.constant 0.000000e+00 : f32
    %64 = vector.broadcast %cst_39 : f32 to vector<2x128xf32>
    %65 = arith.subf %64, %63 : vector<2x128xf32>
    %66 = math.exp %65 : vector<2x128xf32>
    %cst_40 = arith.constant 1.000000e+00 : f32
    %67 = vector.broadcast %cst_40 : f32 to vector<2x128xf32>
    %68 = arith.addf %67, %66 : vector<2x128xf32>
    %cst_41 = arith.constant 1.000000e+00 : f32
    %69 = vector.broadcast %cst_41 : f32 to vector<2x128xf32>
    %70 = arith.divf %69, %68 : vector<2x128xf32>
    %71 = vector.extract_strided_slice %54 {offsets = [0, 256], sizes = [2, 128], strides = [1, 1]} : vector<2x512xf32> to vector<2x128xf32>
    %72 = math.tanh %71 : vector<2x128xf32>
    %73 = vector.extract_strided_slice %54 {offsets = [0, 384], sizes = [2, 128], strides = [1, 1]} : vector<2x512xf32> to vector<2x128xf32>
    %cst_42 = arith.constant 0.000000e+00 : f32
    %74 = vector.broadcast %cst_42 : f32 to vector<2x128xf32>
    %75 = arith.subf %74, %73 : vector<2x128xf32>
    %76 = math.exp %75 : vector<2x128xf32>
    %cst_43 = arith.constant 1.000000e+00 : f32
    %77 = vector.broadcast %cst_43 : f32 to vector<2x128xf32>
    %78 = arith.addf %77, %76 : vector<2x128xf32>
    %cst_44 = arith.constant 1.000000e+00 : f32
    %79 = vector.broadcast %cst_44 : f32 to vector<2x128xf32>
    %80 = arith.divf %79, %78 : vector<2x128xf32>
    %81 = arith.mulf %70, %48 : vector<2x128xf32>
    %82 = arith.mulf %62, %72 : vector<2x128xf32>
    %83 = arith.addf %81, %82 : vector<2x128xf32>
    %84 = math.tanh %83 : vector<2x128xf32>
    %85 = arith.mulf %80, %84 : vector<2x128xf32>
    %c2_45 = arith.constant 2 : index
    %c0_46 = arith.constant 0 : index
    %86 = vector.load %arg21[%c2_45, %c0_46] : memref<16x128xf32, #tpu.memory_space<vmem>>, vector<2x128xf32>
    tpu.vector_store %arg21[%c2_45, %c0_46], %85 {strides = array<i32>} : memref<16x128xf32, #tpu.memory_space<vmem>>, vector<2x128xf32>,
    %c4 = arith.constant 4 : index
    %c0_47 = arith.constant 0 : index
    %87 = vector.load %arg18[%c4, %c0_47] : memref<16x512xf32, #tpu.memory_space<vmem>>, vector<2x512xf32>
    %cst_48 = arith.constant dense<0.000000e+00> : vector<2x512xf32>
    %88 = tpu.matmul %85, %13, %cst_48 {dimension_numbers = #tpu.dot_dimension_numbers<[1], [0], [0], [1], [0, 0, 1, 1], [], []>} : vector<2x128xf32>, vector<128x512xf32>, vector<2x512xf32> -> vector<2x512xf32>
    %89 = arith.addf %87, %88 : vector<2x512xf32>
    %90 = vector.extract_strided_slice %89 {offsets = [0, 0], sizes = [2, 128], strides = [1, 1]} : vector<2x512xf32> to vector<2x128xf32>
    %cst_49 = arith.constant 0.000000e+00 : f32
    %91 = vector.broadcast %cst_49 : f32 to vector<2x128xf32>
    %92 = arith.subf %91, %90 : vector<2x128xf32>
    %93 = math.exp %92 : vector<2x128xf32>
    %cst_50 = arith.constant 1.000000e+00 : f32
    %94 = vector.broadcast %cst_50 : f32 to vector<2x128xf32>
    %95 = arith.addf %94, %93 : vector<2x128xf32>
    %cst_51 = arith.constant 1.000000e+00 : f32
    %96 = vector.broadcast %cst_51 : f32 to vector<2x128xf32>
    %97 = arith.divf %96, %95 : vector<2x128xf32>
    %98 = vector.extract_strided_slice %89 {offsets = [0, 128], sizes = [2, 128], strides = [1, 1]} : vector<2x512xf32> to vector<2x128xf32>
    %cst_52 = arith.constant 0.000000e+00 : f32
    %99 = vector.broadcast %cst_52 : f32 to vector<2x128xf32>
    %100 = arith.subf %99, %98 : vector<2x128xf32>
    %101 = math.exp %100 : vector<2x128xf32>
    %cst_53 = arith.constant 1.000000e+00 : f32
    %102 = vector.broadcast %cst_53 : f32 to vector<2x128xf32>
    %103 = arith.addf %102, %101 : vector<2x128xf32>
    %cst_54 = arith.constant 1.000000e+00 : f32
    %104 = vector.broadcast %cst_54 : f32 to vector<2x128xf32>
    %105 = arith.divf %104, %103 : vector<2x128xf32>
    %106 = vector.extract_strided_slice %89 {offsets = [0, 256], sizes = [2, 128], strides = [1, 1]} : vector<2x512xf32> to vector<2x128xf32>
    %107 = math.tanh %106 : vector<2x128xf32>
    %108 = vector.extract_strided_slice %89 {offsets = [0, 384], sizes = [2, 128], strides = [1, 1]} : vector<2x512xf32> to vector<2x128xf32>
    %cst_55 = arith.constant 0.000000e+00 : f32
    %109 = vector.broadcast %cst_55 : f32 to vector<2x128xf32>
    %110 = arith.subf %109, %108 : vector<2x128xf32>
    %111 = math.exp %110 : vector<2x128xf32>
    %cst_56 = arith.constant 1.000000e+00 : f32
    %112 = vector.broadcast %cst_56 : f32 to vector<2x128xf32>
    %113 = arith.addf %112, %111 : vector<2x128xf32>
    %cst_57 = arith.constant 1.000000e+00 : f32
    %114 = vector.broadcast %cst_57 : f32 to vector<2x128xf32>
    %115 = arith.divf %114, %113 : vector<2x128xf32>
    %116 = arith.mulf %105, %83 : vector<2x128xf32>
    %117 = arith.mulf %97, %107 : vector<2x128xf32>
    %118 = arith.addf %116, %117 : vector<2x128xf32>
    %119 = math.tanh %118 : vector<2x128xf32>
    %120 = arith.mulf %115, %119 : vector<2x128xf32>
    %c4_58 = arith.constant 4 : index
    %c0_59 = arith.constant 0 : index
    %121 = vector.load %arg21[%c4_58, %c0_59] : memref<16x128xf32, #tpu.memory_space<vmem>>, vector<2x128xf32>
    tpu.vector_store %arg21[%c4_58, %c0_59], %120 {strides = array<i32>} : memref<16x128xf32, #tpu.memory_space<vmem>>, vector<2x128xf32>,
    %c6 = arith.constant 6 : index
    %c0_60 = arith.constant 0 : index
    %122 = vector.load %arg18[%c6, %c0_60] : memref<16x512xf32, #tpu.memory_space<vmem>>, vector<2x512xf32>
    %cst_61 = arith.constant dense<0.000000e+00> : vector<2x512xf32>
    %123 = tpu.matmul %120, %13, %cst_61 {dimension_numbers = #tpu.dot_dimension_numbers<[1], [0], [0], [1], [0, 0, 1, 1], [], []>} : vector<2x128xf32>, vector<128x512xf32>, vector<2x512xf32> -> vector<2x512xf32>
    %124 = arith.addf %122, %123 : vector<2x512xf32>
    %125 = vector.extract_strided_slice %124 {offsets = [0, 0], sizes = [2, 128], strides = [1, 1]} : vector<2x512xf32> to vector<2x128xf32>
    %cst_62 = arith.constant 0.000000e+00 : f32
    %126 = vector.broadcast %cst_62 : f32 to vector<2x128xf32>
    %127 = arith.subf %126, %125 : vector<2x128xf32>
    %128 = math.exp %127 : vector<2x128xf32>
    %cst_63 = arith.constant 1.000000e+00 : f32
    %129 = vector.broadcast %cst_63 : f32 to vector<2x128xf32>
    %130 = arith.addf %129, %128 : vector<2x128xf32>
    %cst_64 = arith.constant 1.000000e+00 : f32
    %131 = vector.broadcast %cst_64 : f32 to vector<2x128xf32>
    %132 = arith.divf %131, %130 : vector<2x128xf32>
    %133 = vector.extract_strided_slice %124 {offsets = [0, 128], sizes = [2, 128], strides = [1, 1]} : vector<2x512xf32> to vector<2x128xf32>
    %cst_65 = arith.constant 0.000000e+00 : f32
    %134 = vector.broadcast %cst_65 : f32 to vector<2x128xf32>
    %135 = arith.subf %134, %133 : vector<2x128xf32>
    %136 = math.exp %135 : vector<2x128xf32>
    %cst_66 = arith.constant 1.000000e+00 : f32
    %137 = vector.broadcast %cst_66 : f32 to vector<2x128xf32>
    %138 = arith.addf %137, %136 : vector<2x128xf32>
    %cst_67 = arith.constant 1.000000e+00 : f32
    %139 = vector.broadcast %cst_67 : f32 to vector<2x128xf32>
    %140 = arith.divf %139, %138 : vector<2x128xf32>
    %141 = vector.extract_strided_slice %124 {offsets = [0, 256], sizes = [2, 128], strides = [1, 1]} : vector<2x512xf32> to vector<2x128xf32>
    %142 = math.tanh %141 : vector<2x128xf32>
    %143 = vector.extract_strided_slice %124 {offsets = [0, 384], sizes = [2, 128], strides = [1, 1]} : vector<2x512xf32> to vector<2x128xf32>
    %cst_68 = arith.constant 0.000000e+00 : f32
    %144 = vector.broadcast %cst_68 : f32 to vector<2x128xf32>
    %145 = arith.subf %144, %143 : vector<2x128xf32>
    %146 = math.exp %145 : vector<2x128xf32>
    %cst_69 = arith.constant 1.000000e+00 : f32
    %147 = vector.broadcast %cst_69 : f32 to vector<2x128xf32>
    %148 = arith.addf %147, %146 : vector<2x128xf32>
    %cst_70 = arith.constant 1.000000e+00 : f32
    %149 = vector.broadcast %cst_70 : f32 to vector<2x128xf32>
    %150 = arith.divf %149, %148 : vector<2x128xf32>
    %151 = arith.mulf %140, %118 : vector<2x128xf32>
    %152 = arith.mulf %132, %142 : vector<2x128xf32>
    %153 = arith.addf %151, %152 : vector<2x128xf32>
    %154 = math.tanh %153 : vector<2x128xf32>
    %155 = arith.mulf %150, %154 : vector<2x128xf32>
    %c6_71 = arith.constant 6 : index
    %c0_72 = arith.constant 0 : index
    %156 = vector.load %arg21[%c6_71, %c0_72] : memref<16x128xf32, #tpu.memory_space<vmem>>, vector<2x128xf32>
    tpu.vector_store %arg21[%c6_71, %c0_72], %155 {strides = array<i32>} : memref<16x128xf32, #tpu.memory_space<vmem>>, vector<2x128xf32>,
    %c8 = arith.constant 8 : index
    %c0_73 = arith.constant 0 : index
    %157 = vector.load %arg18[%c8, %c0_73] : memref<16x512xf32, #tpu.memory_space<vmem>>, vector<2x512xf32>
    %cst_74 = arith.constant dense<0.000000e+00> : vector<2x512xf32>
    %158 = tpu.matmul %155, %13, %cst_74 {dimension_numbers = #tpu.dot_dimension_numbers<[1], [0], [0], [1], [0, 0, 1, 1], [], []>} : vector<2x128xf32>, vector<128x512xf32>, vector<2x512xf32> -> vector<2x512xf32>
    %159 = arith.addf %157, %158 : vector<2x512xf32>
    %160 = vector.extract_strided_slice %159 {offsets = [0, 0], sizes = [2, 128], strides = [1, 1]} : vector<2x512xf32> to vector<2x128xf32>
    %cst_75 = arith.constant 0.000000e+00 : f32
    %161 = vector.broadcast %cst_75 : f32 to vector<2x128xf32>
    %162 = arith.subf %161, %160 : vector<2x128xf32>
    %163 = math.exp %162 : vector<2x128xf32>
    %cst_76 = arith.constant 1.000000e+00 : f32
    %164 = vector.broadcast %cst_76 : f32 to vector<2x128xf32>
    %165 = arith.addf %164, %163 : vector<2x128xf32>
    %cst_77 = arith.constant 1.000000e+00 : f32
    %166 = vector.broadcast %cst_77 : f32 to vector<2x128xf32>
    %167 = arith.divf %166, %165 : vector<2x128xf32>
    %168 = vector.extract_strided_slice %159 {offsets = [0, 128], sizes = [2, 128], strides = [1, 1]} : vector<2x512xf32> to vector<2x128xf32>
    %cst_78 = arith.constant 0.000000e+00 : f32
    %169 = vector.broadcast %cst_78 : f32 to vector<2x128xf32>
    %170 = arith.subf %169, %168 : vector<2x128xf32>
    %171 = math.exp %170 : vector<2x128xf32>
    %cst_79 = arith.constant 1.000000e+00 : f32
    %172 = vector.broadcast %cst_79 : f32 to vector<2x128xf32>
    %173 = arith.addf %172, %171 : vector<2x128xf32>
    %cst_80 = arith.constant 1.000000e+00 : f32
    %174 = vector.broadcast %cst_80 : f32 to vector<2x128xf32>
    %175 = arith.divf %174, %173 : vector<2x128xf32>
    %176 = vector.extract_strided_slice %159 {offsets = [0, 256], sizes = [2, 128], strides = [1, 1]} : vector<2x512xf32> to vector<2x128xf32>
    %177 = math.tanh %176 : vector<2x128xf32>
    %178 = vector.extract_strided_slice %159 {offsets = [0, 384], sizes = [2, 128], strides = [1, 1]} : vector<2x512xf32> to vector<2x128xf32>
    %cst_81 = arith.constant 0.000000e+00 : f32
    %179 = vector.broadcast %cst_81 : f32 to vector<2x128xf32>
    %180 = arith.subf %179, %178 : vector<2x128xf32>
    %181 = math.exp %180 : vector<2x128xf32>
    %cst_82 = arith.constant 1.000000e+00 : f32
    %182 = vector.broadcast %cst_82 : f32 to vector<2x128xf32>
    %183 = arith.addf %182, %181 : vector<2x128xf32>
    %cst_83 = arith.constant 1.000000e+00 : f32
    %184 = vector.broadcast %cst_83 : f32 to vector<2x128xf32>
    %185 = arith.divf %184, %183 : vector<2x128xf32>
    %186 = arith.mulf %175, %153 : vector<2x128xf32>
    %187 = arith.mulf %167, %177 : vector<2x128xf32>
    %188 = arith.addf %186, %187 : vector<2x128xf32>
    %189 = math.tanh %188 : vector<2x128xf32>
    %190 = arith.mulf %185, %189 : vector<2x128xf32>
    %c8_84 = arith.constant 8 : index
    %c0_85 = arith.constant 0 : index
    %191 = vector.load %arg21[%c8_84, %c0_85] : memref<16x128xf32, #tpu.memory_space<vmem>>, vector<2x128xf32>
    tpu.vector_store %arg21[%c8_84, %c0_85], %190 {strides = array<i32>} : memref<16x128xf32, #tpu.memory_space<vmem>>, vector<2x128xf32>,
    %c10 = arith.constant 10 : index
    %c0_86 = arith.constant 0 : index
    %192 = vector.load %arg18[%c10, %c0_86] : memref<16x512xf32, #tpu.memory_space<vmem>>, vector<2x512xf32>
    %cst_87 = arith.constant dense<0.000000e+00> : vector<2x512xf32>
    %193 = tpu.matmul %190, %13, %cst_87 {dimension_numbers = #tpu.dot_dimension_numbers<[1], [0], [0], [1], [0, 0, 1, 1], [], []>} : vector<2x128xf32>, vector<128x512xf32>, vector<2x512xf32> -> vector<2x512xf32>
    %194 = arith.addf %192, %193 : vector<2x512xf32>
    %195 = vector.extract_strided_slice %194 {offsets = [0, 0], sizes = [2, 128], strides = [1, 1]} : vector<2x512xf32> to vector<2x128xf32>
    %cst_88 = arith.constant 0.000000e+00 : f32
    %196 = vector.broadcast %cst_88 : f32 to vector<2x128xf32>
    %197 = arith.subf %196, %195 : vector<2x128xf32>
    %198 = math.exp %197 : vector<2x128xf32>
    %cst_89 = arith.constant 1.000000e+00 : f32
    %199 = vector.broadcast %cst_89 : f32 to vector<2x128xf32>
    %200 = arith.addf %199, %198 : vector<2x128xf32>
    %cst_90 = arith.constant 1.000000e+00 : f32
    %201 = vector.broadcast %cst_90 : f32 to vector<2x128xf32>
    %202 = arith.divf %201, %200 : vector<2x128xf32>
    %203 = vector.extract_strided_slice %194 {offsets = [0, 128], sizes = [2, 128], strides = [1, 1]} : vector<2x512xf32> to vector<2x128xf32>
    %cst_91 = arith.constant 0.000000e+00 : f32
    %204 = vector.broadcast %cst_91 : f32 to vector<2x128xf32>
    %205 = arith.subf %204, %203 : vector<2x128xf32>
    %206 = math.exp %205 : vector<2x128xf32>
    %cst_92 = arith.constant 1.000000e+00 : f32
    %207 = vector.broadcast %cst_92 : f32 to vector<2x128xf32>
    %208 = arith.addf %207, %206 : vector<2x128xf32>
    %cst_93 = arith.constant 1.000000e+00 : f32
    %209 = vector.broadcast %cst_93 : f32 to vector<2x128xf32>
    %210 = arith.divf %209, %208 : vector<2x128xf32>
    %211 = vector.extract_strided_slice %194 {offsets = [0, 256], sizes = [2, 128], strides = [1, 1]} : vector<2x512xf32> to vector<2x128xf32>
    %212 = math.tanh %211 : vector<2x128xf32>
    %213 = vector.extract_strided_slice %194 {offsets = [0, 384], sizes = [2, 128], strides = [1, 1]} : vector<2x512xf32> to vector<2x128xf32>
    %cst_94 = arith.constant 0.000000e+00 : f32
    %214 = vector.broadcast %cst_94 : f32 to vector<2x128xf32>
    %215 = arith.subf %214, %213 : vector<2x128xf32>
    %216 = math.exp %215 : vector<2x128xf32>
    %cst_95 = arith.constant 1.000000e+00 : f32
    %217 = vector.broadcast %cst_95 : f32 to vector<2x128xf32>
    %218 = arith.addf %217, %216 : vector<2x128xf32>
    %cst_96 = arith.constant 1.000000e+00 : f32
    %219 = vector.broadcast %cst_96 : f32 to vector<2x128xf32>
    %220 = arith.divf %219, %218 : vector<2x128xf32>
    %221 = arith.mulf %210, %188 : vector<2x128xf32>
    %222 = arith.mulf %202, %212 : vector<2x128xf32>
    %223 = arith.addf %221, %222 : vector<2x128xf32>
    %224 = math.tanh %223 : vector<2x128xf32>
    %225 = arith.mulf %220, %224 : vector<2x128xf32>
    %c10_97 = arith.constant 10 : index
    %c0_98 = arith.constant 0 : index
    %226 = vector.load %arg21[%c10_97, %c0_98] : memref<16x128xf32, #tpu.memory_space<vmem>>, vector<2x128xf32>
    tpu.vector_store %arg21[%c10_97, %c0_98], %225 {strides = array<i32>} : memref<16x128xf32, #tpu.memory_space<vmem>>, vector<2x128xf32>,
    %c12 = arith.constant 12 : index
    %c0_99 = arith.constant 0 : index
    %227 = vector.load %arg18[%c12, %c0_99] : memref<16x512xf32, #tpu.memory_space<vmem>>, vector<2x512xf32>
    %cst_100 = arith.constant dense<0.000000e+00> : vector<2x512xf32>
    %228 = tpu.matmul %225, %13, %cst_100 {dimension_numbers = #tpu.dot_dimension_numbers<[1], [0], [0], [1], [0, 0, 1, 1], [], []>} : vector<2x128xf32>, vector<128x512xf32>, vector<2x512xf32> -> vector<2x512xf32>
    %229 = arith.addf %227, %228 : vector<2x512xf32>
    %230 = vector.extract_strided_slice %229 {offsets = [0, 0], sizes = [2, 128], strides = [1, 1]} : vector<2x512xf32> to vector<2x128xf32>
    %cst_101 = arith.constant 0.000000e+00 : f32
    %231 = vector.broadcast %cst_101 : f32 to vector<2x128xf32>
    %232 = arith.subf %231, %230 : vector<2x128xf32>
    %233 = math.exp %232 : vector<2x128xf32>
    %cst_102 = arith.constant 1.000000e+00 : f32
    %234 = vector.broadcast %cst_102 : f32 to vector<2x128xf32>
    %235 = arith.addf %234, %233 : vector<2x128xf32>
    %cst_103 = arith.constant 1.000000e+00 : f32
    %236 = vector.broadcast %cst_103 : f32 to vector<2x128xf32>
    %237 = arith.divf %236, %235 : vector<2x128xf32>
    %238 = vector.extract_strided_slice %229 {offsets = [0, 128], sizes = [2, 128], strides = [1, 1]} : vector<2x512xf32> to vector<2x128xf32>
    %cst_104 = arith.constant 0.000000e+00 : f32
    %239 = vector.broadcast %cst_104 : f32 to vector<2x128xf32>
    %240 = arith.subf %239, %238 : vector<2x128xf32>
    %241 = math.exp %240 : vector<2x128xf32>
    %cst_105 = arith.constant 1.000000e+00 : f32
    %242 = vector.broadcast %cst_105 : f32 to vector<2x128xf32>
    %243 = arith.addf %242, %241 : vector<2x128xf32>
    %cst_106 = arith.constant 1.000000e+00 : f32
    %244 = vector.broadcast %cst_106 : f32 to vector<2x128xf32>
    %245 = arith.divf %244, %243 : vector<2x128xf32>
    %246 = vector.extract_strided_slice %229 {offsets = [0, 256], sizes = [2, 128], strides = [1, 1]} : vector<2x512xf32> to vector<2x128xf32>
    %247 = math.tanh %246 : vector<2x128xf32>
    %248 = vector.extract_strided_slice %229 {offsets = [0, 384], sizes = [2, 128], strides = [1, 1]} : vector<2x512xf32> to vector<2x128xf32>
    %cst_107 = arith.constant 0.000000e+00 : f32
    %249 = vector.broadcast %cst_107 : f32 to vector<2x128xf32>
    %250 = arith.subf %249, %248 : vector<2x128xf32>
    %251 = math.exp %250 : vector<2x128xf32>
    %cst_108 = arith.constant 1.000000e+00 : f32
    %252 = vector.broadcast %cst_108 : f32 to vector<2x128xf32>
    %253 = arith.addf %252, %251 : vector<2x128xf32>
    %cst_109 = arith.constant 1.000000e+00 : f32
    %254 = vector.broadcast %cst_109 : f32 to vector<2x128xf32>
    %255 = arith.divf %254, %253 : vector<2x128xf32>
    %256 = arith.mulf %245, %223 : vector<2x128xf32>
    %257 = arith.mulf %237, %247 : vector<2x128xf32>
    %258 = arith.addf %256, %257 : vector<2x128xf32>
    %259 = math.tanh %258 : vector<2x128xf32>
    %260 = arith.mulf %255, %259 : vector<2x128xf32>
    %c12_110 = arith.constant 12 : index
    %c0_111 = arith.constant 0 : index
    %261 = vector.load %arg21[%c12_110, %c0_111] : memref<16x128xf32, #tpu.memory_space<vmem>>, vector<2x128xf32>
    tpu.vector_store %arg21[%c12_110, %c0_111], %260 {strides = array<i32>} : memref<16x128xf32, #tpu.memory_space<vmem>>, vector<2x128xf32>,
    %c14 = arith.constant 14 : index
    %c0_112 = arith.constant 0 : index
    %262 = vector.load %arg18[%c14, %c0_112] : memref<16x512xf32, #tpu.memory_space<vmem>>, vector<2x512xf32>
    %cst_113 = arith.constant dense<0.000000e+00> : vector<2x512xf32>
    %263 = tpu.matmul %260, %13, %cst_113 {dimension_numbers = #tpu.dot_dimension_numbers<[1], [0], [0], [1], [0, 0, 1, 1], [], []>} : vector<2x128xf32>, vector<128x512xf32>, vector<2x512xf32> -> vector<2x512xf32>
    %264 = arith.addf %262, %263 : vector<2x512xf32>
    %265 = vector.extract_strided_slice %264 {offsets = [0, 0], sizes = [2, 128], strides = [1, 1]} : vector<2x512xf32> to vector<2x128xf32>
    %cst_114 = arith.constant 0.000000e+00 : f32
    %266 = vector.broadcast %cst_114 : f32 to vector<2x128xf32>
    %267 = arith.subf %266, %265 : vector<2x128xf32>
    %268 = math.exp %267 : vector<2x128xf32>
    %cst_115 = arith.constant 1.000000e+00 : f32
    %269 = vector.broadcast %cst_115 : f32 to vector<2x128xf32>
    %270 = arith.addf %269, %268 : vector<2x128xf32>
    %cst_116 = arith.constant 1.000000e+00 : f32
    %271 = vector.broadcast %cst_116 : f32 to vector<2x128xf32>
    %272 = arith.divf %271, %270 : vector<2x128xf32>
    %273 = vector.extract_strided_slice %264 {offsets = [0, 128], sizes = [2, 128], strides = [1, 1]} : vector<2x512xf32> to vector<2x128xf32>
    %cst_117 = arith.constant 0.000000e+00 : f32
    %274 = vector.broadcast %cst_117 : f32 to vector<2x128xf32>
    %275 = arith.subf %274, %273 : vector<2x128xf32>
    %276 = math.exp %275 : vector<2x128xf32>
    %cst_118 = arith.constant 1.000000e+00 : f32
    %277 = vector.broadcast %cst_118 : f32 to vector<2x128xf32>
    %278 = arith.addf %277, %276 : vector<2x128xf32>
    %cst_119 = arith.constant 1.000000e+00 : f32
    %279 = vector.broadcast %cst_119 : f32 to vector<2x128xf32>
    %280 = arith.divf %279, %278 : vector<2x128xf32>
    %281 = vector.extract_strided_slice %264 {offsets = [0, 256], sizes = [2, 128], strides = [1, 1]} : vector<2x512xf32> to vector<2x128xf32>
    %282 = math.tanh %281 : vector<2x128xf32>
    %283 = vector.extract_strided_slice %264 {offsets = [0, 384], sizes = [2, 128], strides = [1, 1]} : vector<2x512xf32> to vector<2x128xf32>
    %cst_120 = arith.constant 0.000000e+00 : f32
    %284 = vector.broadcast %cst_120 : f32 to vector<2x128xf32>
    %285 = arith.subf %284, %283 : vector<2x128xf32>
    %286 = math.exp %285 : vector<2x128xf32>
    %cst_121 = arith.constant 1.000000e+00 : f32
    %287 = vector.broadcast %cst_121 : f32 to vector<2x128xf32>
    %288 = arith.addf %287, %286 : vector<2x128xf32>
    %cst_122 = arith.constant 1.000000e+00 : f32
    %289 = vector.broadcast %cst_122 : f32 to vector<2x128xf32>
    %290 = arith.divf %289, %288 : vector<2x128xf32>
    %291 = arith.mulf %280, %258 : vector<2x128xf32>
    %292 = arith.mulf %272, %282 : vector<2x128xf32>
    %293 = arith.addf %291, %292 : vector<2x128xf32>
    %294 = math.tanh %293 : vector<2x128xf32>
    %295 = arith.mulf %290, %294 : vector<2x128xf32>
    %c14_123 = arith.constant 14 : index
    %c0_124 = arith.constant 0 : index
    %296 = vector.load %arg21[%c14_123, %c0_124] : memref<16x128xf32, #tpu.memory_space<vmem>>, vector<2x128xf32>
    tpu.vector_store %arg21[%c14_123, %c0_124], %295 {strides = array<i32>} : memref<16x128xf32, #tpu.memory_space<vmem>>, vector<2x128xf32>,
    %cst_125 = arith.constant 0.000000e+00 : f32
    %297 = vector.broadcast %cst_125 : f32 to vector<2x128xf32>
    %cst_126 = arith.constant 0.000000e+00 : f32
    %298 = vector.broadcast %cst_126 : f32 to vector<2x128xf32>
    %c14_127 = arith.constant 14 : index
    %c0_128 = arith.constant 0 : index
    %299 = vector.load %arg19[%c14_127, %c0_128] : memref<16x512xf32, #tpu.memory_space<vmem>>, vector<2x512xf32>
    %cst_129 = arith.constant dense<0.000000e+00> : vector<2x512xf32>
    %300 = tpu.matmul %297, %14, %cst_129 {dimension_numbers = #tpu.dot_dimension_numbers<[1], [0], [0], [1], [0, 0, 1, 1], [], []>} : vector<2x128xf32>, vector<128x512xf32>, vector<2x512xf32> -> vector<2x512xf32>
    %301 = arith.addf %299, %300 : vector<2x512xf32>
    %302 = vector.extract_strided_slice %301 {offsets = [0, 0], sizes = [2, 128], strides = [1, 1]} : vector<2x512xf32> to vector<2x128xf32>
    %cst_130 = arith.constant 0.000000e+00 : f32
    %303 = vector.broadcast %cst_130 : f32 to vector<2x128xf32>
    %304 = arith.subf %303, %302 : vector<2x128xf32>
    %305 = math.exp %304 : vector<2x128xf32>
    %cst_131 = arith.constant 1.000000e+00 : f32
    %306 = vector.broadcast %cst_131 : f32 to vector<2x128xf32>
    %307 = arith.addf %306, %305 : vector<2x128xf32>
    %cst_132 = arith.constant 1.000000e+00 : f32
    %308 = vector.broadcast %cst_132 : f32 to vector<2x128xf32>
    %309 = arith.divf %308, %307 : vector<2x128xf32>
    %310 = vector.extract_strided_slice %301 {offsets = [0, 128], sizes = [2, 128], strides = [1, 1]} : vector<2x512xf32> to vector<2x128xf32>
    %cst_133 = arith.constant 0.000000e+00 : f32
    %311 = vector.broadcast %cst_133 : f32 to vector<2x128xf32>
    %312 = arith.subf %311, %310 : vector<2x128xf32>
    %313 = math.exp %312 : vector<2x128xf32>
    %cst_134 = arith.constant 1.000000e+00 : f32
    %314 = vector.broadcast %cst_134 : f32 to vector<2x128xf32>
    %315 = arith.addf %314, %313 : vector<2x128xf32>
    %cst_135 = arith.constant 1.000000e+00 : f32
    %316 = vector.broadcast %cst_135 : f32 to vector<2x128xf32>
    %317 = arith.divf %316, %315 : vector<2x128xf32>
    %318 = vector.extract_strided_slice %301 {offsets = [0, 256], sizes = [2, 128], strides = [1, 1]} : vector<2x512xf32> to vector<2x128xf32>
    %319 = math.tanh %318 : vector<2x128xf32>
    %320 = vector.extract_strided_slice %301 {offsets = [0, 384], sizes = [2, 128], strides = [1, 1]} : vector<2x512xf32> to vector<2x128xf32>
    %cst_136 = arith.constant 0.000000e+00 : f32
    %321 = vector.broadcast %cst_136 : f32 to vector<2x128xf32>
    %322 = arith.subf %321, %320 : vector<2x128xf32>
    %323 = math.exp %322 : vector<2x128xf32>
    %cst_137 = arith.constant 1.000000e+00 : f32
    %324 = vector.broadcast %cst_137 : f32 to vector<2x128xf32>
    %325 = arith.addf %324, %323 : vector<2x128xf32>
    %cst_138 = arith.constant 1.000000e+00 : f32
    %326 = vector.broadcast %cst_138 : f32 to vector<2x128xf32>
    %327 = arith.divf %326, %325 : vector<2x128xf32>
    %328 = arith.mulf %317, %298 : vector<2x128xf32>
    %329 = arith.mulf %309, %319 : vector<2x128xf32>
    %330 = arith.addf %328, %329 : vector<2x128xf32>
    %331 = math.tanh %330 : vector<2x128xf32>
    %332 = arith.mulf %327, %331 : vector<2x128xf32>
    %c14_139 = arith.constant 14 : index
    %c0_140 = arith.constant 0 : index
    %333 = vector.load %arg22[%c14_139, %c0_140] : memref<16x128xf32, #tpu.memory_space<vmem>>, vector<2x128xf32>
    tpu.vector_store %arg22[%c14_139, %c0_140], %332 {strides = array<i32>} : memref<16x128xf32, #tpu.memory_space<vmem>>, vector<2x128xf32>,
    %c12_141 = arith.constant 12 : index
    %c0_142 = arith.constant 0 : index
    %334 = vector.load %arg19[%c12_141, %c0_142] : memref<16x512xf32, #tpu.memory_space<vmem>>, vector<2x512xf32>
    %cst_143 = arith.constant dense<0.000000e+00> : vector<2x512xf32>
    %335 = tpu.matmul %332, %14, %cst_143 {dimension_numbers = #tpu.dot_dimension_numbers<[1], [0], [0], [1], [0, 0, 1, 1], [], []>} : vector<2x128xf32>, vector<128x512xf32>, vector<2x512xf32> -> vector<2x512xf32>
    %336 = arith.addf %334, %335 : vector<2x512xf32>
    %337 = vector.extract_strided_slice %336 {offsets = [0, 0], sizes = [2, 128], strides = [1, 1]} : vector<2x512xf32> to vector<2x128xf32>
    %cst_144 = arith.constant 0.000000e+00 : f32
    %338 = vector.broadcast %cst_144 : f32 to vector<2x128xf32>
    %339 = arith.subf %338, %337 : vector<2x128xf32>
    %340 = math.exp %339 : vector<2x128xf32>
    %cst_145 = arith.constant 1.000000e+00 : f32
    %341 = vector.broadcast %cst_145 : f32 to vector<2x128xf32>
    %342 = arith.addf %341, %340 : vector<2x128xf32>
    %cst_146 = arith.constant 1.000000e+00 : f32
    %343 = vector.broadcast %cst_146 : f32 to vector<2x128xf32>
    %344 = arith.divf %343, %342 : vector<2x128xf32>
    %345 = vector.extract_strided_slice %336 {offsets = [0, 128], sizes = [2, 128], strides = [1, 1]} : vector<2x512xf32> to vector<2x128xf32>
    %cst_147 = arith.constant 0.000000e+00 : f32
    %346 = vector.broadcast %cst_147 : f32 to vector<2x128xf32>
    %347 = arith.subf %346, %345 : vector<2x128xf32>
    %348 = math.exp %347 : vector<2x128xf32>
    %cst_148 = arith.constant 1.000000e+00 : f32
    %349 = vector.broadcast %cst_148 : f32 to vector<2x128xf32>
    %350 = arith.addf %349, %348 : vector<2x128xf32>
    %cst_149 = arith.constant 1.000000e+00 : f32
    %351 = vector.broadcast %cst_149 : f32 to vector<2x128xf32>
    %352 = arith.divf %351, %350 : vector<2x128xf32>
    %353 = vector.extract_strided_slice %336 {offsets = [0, 256], sizes = [2, 128], strides = [1, 1]} : vector<2x512xf32> to vector<2x128xf32>
    %354 = math.tanh %353 : vector<2x128xf32>
    %355 = vector.extract_strided_slice %336 {offsets = [0, 384], sizes = [2, 128], strides = [1, 1]} : vector<2x512xf32> to vector<2x128xf32>
    %cst_150 = arith.constant 0.000000e+00 : f32
    %356 = vector.broadcast %cst_150 : f32 to vector<2x128xf32>
    %357 = arith.subf %356, %355 : vector<2x128xf32>
    %358 = math.exp %357 : vector<2x128xf32>
    %cst_151 = arith.constant 1.000000e+00 : f32
    %359 = vector.broadcast %cst_151 : f32 to vector<2x128xf32>
    %360 = arith.addf %359, %358 : vector<2x128xf32>
    %cst_152 = arith.constant 1.000000e+00 : f32
    %361 = vector.broadcast %cst_152 : f32 to vector<2x128xf32>
    %362 = arith.divf %361, %360 : vector<2x128xf32>
    %363 = arith.mulf %352, %330 : vector<2x128xf32>
    %364 = arith.mulf %344, %354 : vector<2x128xf32>
    %365 = arith.addf %363, %364 : vector<2x128xf32>
    %366 = math.tanh %365 : vector<2x128xf32>
    %367 = arith.mulf %362, %366 : vector<2x128xf32>
    %c12_153 = arith.constant 12 : index
    %c0_154 = arith.constant 0 : index
    %368 = vector.load %arg22[%c12_153, %c0_154] : memref<16x128xf32, #tpu.memory_space<vmem>>, vector<2x128xf32>
    tpu.vector_store %arg22[%c12_153, %c0_154], %367 {strides = array<i32>} : memref<16x128xf32, #tpu.memory_space<vmem>>, vector<2x128xf32>,
    %c10_155 = arith.constant 10 : index
    %c0_156 = arith.constant 0 : index
    %369 = vector.load %arg19[%c10_155, %c0_156] : memref<16x512xf32, #tpu.memory_space<vmem>>, vector<2x512xf32>
    %cst_157 = arith.constant dense<0.000000e+00> : vector<2x512xf32>
    %370 = tpu.matmul %367, %14, %cst_157 {dimension_numbers = #tpu.dot_dimension_numbers<[1], [0], [0], [1], [0, 0, 1, 1], [], []>} : vector<2x128xf32>, vector<128x512xf32>, vector<2x512xf32> -> vector<2x512xf32>
    %371 = arith.addf %369, %370 : vector<2x512xf32>
    %372 = vector.extract_strided_slice %371 {offsets = [0, 0], sizes = [2, 128], strides = [1, 1]} : vector<2x512xf32> to vector<2x128xf32>
    %cst_158 = arith.constant 0.000000e+00 : f32
    %373 = vector.broadcast %cst_158 : f32 to vector<2x128xf32>
    %374 = arith.subf %373, %372 : vector<2x128xf32>
    %375 = math.exp %374 : vector<2x128xf32>
    %cst_159 = arith.constant 1.000000e+00 : f32
    %376 = vector.broadcast %cst_159 : f32 to vector<2x128xf32>
    %377 = arith.addf %376, %375 : vector<2x128xf32>
    %cst_160 = arith.constant 1.000000e+00 : f32
    %378 = vector.broadcast %cst_160 : f32 to vector<2x128xf32>
    %379 = arith.divf %378, %377 : vector<2x128xf32>
    %380 = vector.extract_strided_slice %371 {offsets = [0, 128], sizes = [2, 128], strides = [1, 1]} : vector<2x512xf32> to vector<2x128xf32>
    %cst_161 = arith.constant 0.000000e+00 : f32
    %381 = vector.broadcast %cst_161 : f32 to vector<2x128xf32>
    %382 = arith.subf %381, %380 : vector<2x128xf32>
    %383 = math.exp %382 : vector<2x128xf32>
    %cst_162 = arith.constant 1.000000e+00 : f32
    %384 = vector.broadcast %cst_162 : f32 to vector<2x128xf32>
    %385 = arith.addf %384, %383 : vector<2x128xf32>
    %cst_163 = arith.constant 1.000000e+00 : f32
    %386 = vector.broadcast %cst_163 : f32 to vector<2x128xf32>
    %387 = arith.divf %386, %385 : vector<2x128xf32>
    %388 = vector.extract_strided_slice %371 {offsets = [0, 256], sizes = [2, 128], strides = [1, 1]} : vector<2x512xf32> to vector<2x128xf32>
    %389 = math.tanh %388 : vector<2x128xf32>
    %390 = vector.extract_strided_slice %371 {offsets = [0, 384], sizes = [2, 128], strides = [1, 1]} : vector<2x512xf32> to vector<2x128xf32>
    %cst_164 = arith.constant 0.000000e+00 : f32
    %391 = vector.broadcast %cst_164 : f32 to vector<2x128xf32>
    %392 = arith.subf %391, %390 : vector<2x128xf32>
    %393 = math.exp %392 : vector<2x128xf32>
    %cst_165 = arith.constant 1.000000e+00 : f32
    %394 = vector.broadcast %cst_165 : f32 to vector<2x128xf32>
    %395 = arith.addf %394, %393 : vector<2x128xf32>
    %cst_166 = arith.constant 1.000000e+00 : f32
    %396 = vector.broadcast %cst_166 : f32 to vector<2x128xf32>
    %397 = arith.divf %396, %395 : vector<2x128xf32>
    %398 = arith.mulf %387, %365 : vector<2x128xf32>
    %399 = arith.mulf %379, %389 : vector<2x128xf32>
    %400 = arith.addf %398, %399 : vector<2x128xf32>
    %401 = math.tanh %400 : vector<2x128xf32>
    %402 = arith.mulf %397, %401 : vector<2x128xf32>
    %c10_167 = arith.constant 10 : index
    %c0_168 = arith.constant 0 : index
    %403 = vector.load %arg22[%c10_167, %c0_168] : memref<16x128xf32, #tpu.memory_space<vmem>>, vector<2x128xf32>
    tpu.vector_store %arg22[%c10_167, %c0_168], %402 {strides = array<i32>} : memref<16x128xf32, #tpu.memory_space<vmem>>, vector<2x128xf32>,
    %c8_169 = arith.constant 8 : index
    %c0_170 = arith.constant 0 : index
    %404 = vector.load %arg19[%c8_169, %c0_170] : memref<16x512xf32, #tpu.memory_space<vmem>>, vector<2x512xf32>
    %cst_171 = arith.constant dense<0.000000e+00> : vector<2x512xf32>
    %405 = tpu.matmul %402, %14, %cst_171 {dimension_numbers = #tpu.dot_dimension_numbers<[1], [0], [0], [1], [0, 0, 1, 1], [], []>} : vector<2x128xf32>, vector<128x512xf32>, vector<2x512xf32> -> vector<2x512xf32>
    %406 = arith.addf %404, %405 : vector<2x512xf32>
    %407 = vector.extract_strided_slice %406 {offsets = [0, 0], sizes = [2, 128], strides = [1, 1]} : vector<2x512xf32> to vector<2x128xf32>
    %cst_172 = arith.constant 0.000000e+00 : f32
    %408 = vector.broadcast %cst_172 : f32 to vector<2x128xf32>
    %409 = arith.subf %408, %407 : vector<2x128xf32>
    %410 = math.exp %409 : vector<2x128xf32>
    %cst_173 = arith.constant 1.000000e+00 : f32
    %411 = vector.broadcast %cst_173 : f32 to vector<2x128xf32>
    %412 = arith.addf %411, %410 : vector<2x128xf32>
    %cst_174 = arith.constant 1.000000e+00 : f32
    %413 = vector.broadcast %cst_174 : f32 to vector<2x128xf32>
    %414 = arith.divf %413, %412 : vector<2x128xf32>
    %415 = vector.extract_strided_slice %406 {offsets = [0, 128], sizes = [2, 128], strides = [1, 1]} : vector<2x512xf32> to vector<2x128xf32>
    %cst_175 = arith.constant 0.000000e+00 : f32
    %416 = vector.broadcast %cst_175 : f32 to vector<2x128xf32>
    %417 = arith.subf %416, %415 : vector<2x128xf32>
    %418 = math.exp %417 : vector<2x128xf32>
    %cst_176 = arith.constant 1.000000e+00 : f32
    %419 = vector.broadcast %cst_176 : f32 to vector<2x128xf32>
    %420 = arith.addf %419, %418 : vector<2x128xf32>
    %cst_177 = arith.constant 1.000000e+00 : f32
    %421 = vector.broadcast %cst_177 : f32 to vector<2x128xf32>
    %422 = arith.divf %421, %420 : vector<2x128xf32>
    %423 = vector.extract_strided_slice %406 {offsets = [0, 256], sizes = [2, 128], strides = [1, 1]} : vector<2x512xf32> to vector<2x128xf32>
    %424 = math.tanh %423 : vector<2x128xf32>
    %425 = vector.extract_strided_slice %406 {offsets = [0, 384], sizes = [2, 128], strides = [1, 1]} : vector<2x512xf32> to vector<2x128xf32>
    %cst_178 = arith.constant 0.000000e+00 : f32
    %426 = vector.broadcast %cst_178 : f32 to vector<2x128xf32>
    %427 = arith.subf %426, %425 : vector<2x128xf32>
    %428 = math.exp %427 : vector<2x128xf32>
    %cst_179 = arith.constant 1.000000e+00 : f32
    %429 = vector.broadcast %cst_179 : f32 to vector<2x128xf32>
    %430 = arith.addf %429, %428 : vector<2x128xf32>
    %cst_180 = arith.constant 1.000000e+00 : f32
    %431 = vector.broadcast %cst_180 : f32 to vector<2x128xf32>
    %432 = arith.divf %431, %430 : vector<2x128xf32>
    %433 = arith.mulf %422, %400 : vector<2x128xf32>
    %434 = arith.mulf %414, %424 : vector<2x128xf32>
    %435 = arith.addf %433, %434 : vector<2x128xf32>
    %436 = math.tanh %435 : vector<2x128xf32>
    %437 = arith.mulf %432, %436 : vector<2x128xf32>
    %c8_181 = arith.constant 8 : index
    %c0_182 = arith.constant 0 : index
    %438 = vector.load %arg22[%c8_181, %c0_182] : memref<16x128xf32, #tpu.memory_space<vmem>>, vector<2x128xf32>
    tpu.vector_store %arg22[%c8_181, %c0_182], %437 {strides = array<i32>} : memref<16x128xf32, #tpu.memory_space<vmem>>, vector<2x128xf32>,
    %c6_183 = arith.constant 6 : index
    %c0_184 = arith.constant 0 : index
    %439 = vector.load %arg19[%c6_183, %c0_184] : memref<16x512xf32, #tpu.memory_space<vmem>>, vector<2x512xf32>
    %cst_185 = arith.constant dense<0.000000e+00> : vector<2x512xf32>
    %440 = tpu.matmul %437, %14, %cst_185 {dimension_numbers = #tpu.dot_dimension_numbers<[1], [0], [0], [1], [0, 0, 1, 1], [], []>} : vector<2x128xf32>, vector<128x512xf32>, vector<2x512xf32> -> vector<2x512xf32>
    %441 = arith.addf %439, %440 : vector<2x512xf32>
    %442 = vector.extract_strided_slice %441 {offsets = [0, 0], sizes = [2, 128], strides = [1, 1]} : vector<2x512xf32> to vector<2x128xf32>
    %cst_186 = arith.constant 0.000000e+00 : f32
    %443 = vector.broadcast %cst_186 : f32 to vector<2x128xf32>
    %444 = arith.subf %443, %442 : vector<2x128xf32>
    %445 = math.exp %444 : vector<2x128xf32>
    %cst_187 = arith.constant 1.000000e+00 : f32
    %446 = vector.broadcast %cst_187 : f32 to vector<2x128xf32>
    %447 = arith.addf %446, %445 : vector<2x128xf32>
    %cst_188 = arith.constant 1.000000e+00 : f32
    %448 = vector.broadcast %cst_188 : f32 to vector<2x128xf32>
    %449 = arith.divf %448, %447 : vector<2x128xf32>
    %450 = vector.extract_strided_slice %441 {offsets = [0, 128], sizes = [2, 128], strides = [1, 1]} : vector<2x512xf32> to vector<2x128xf32>
    %cst_189 = arith.constant 0.000000e+00 : f32
    %451 = vector.broadcast %cst_189 : f32 to vector<2x128xf32>
    %452 = arith.subf %451, %450 : vector<2x128xf32>
    %453 = math.exp %452 : vector<2x128xf32>
    %cst_190 = arith.constant 1.000000e+00 : f32
    %454 = vector.broadcast %cst_190 : f32 to vector<2x128xf32>
    %455 = arith.addf %454, %453 : vector<2x128xf32>
    %cst_191 = arith.constant 1.000000e+00 : f32
    %456 = vector.broadcast %cst_191 : f32 to vector<2x128xf32>
    %457 = arith.divf %456, %455 : vector<2x128xf32>
    %458 = vector.extract_strided_slice %441 {offsets = [0, 256], sizes = [2, 128], strides = [1, 1]} : vector<2x512xf32> to vector<2x128xf32>
    %459 = math.tanh %458 : vector<2x128xf32>
    %460 = vector.extract_strided_slice %441 {offsets = [0, 384], sizes = [2, 128], strides = [1, 1]} : vector<2x512xf32> to vector<2x128xf32>
    %cst_192 = arith.constant 0.000000e+00 : f32
    %461 = vector.broadcast %cst_192 : f32 to vector<2x128xf32>
    %462 = arith.subf %461, %460 : vector<2x128xf32>
    %463 = math.exp %462 : vector<2x128xf32>
    %cst_193 = arith.constant 1.000000e+00 : f32
    %464 = vector.broadcast %cst_193 : f32 to vector<2x128xf32>
    %465 = arith.addf %464, %463 : vector<2x128xf32>
    %cst_194 = arith.constant 1.000000e+00 : f32
    %466 = vector.broadcast %cst_194 : f32 to vector<2x128xf32>
    %467 = arith.divf %466, %465 : vector<2x128xf32>
    %468 = arith.mulf %457, %435 : vector<2x128xf32>
    %469 = arith.mulf %449, %459 : vector<2x128xf32>
    %470 = arith.addf %468, %469 : vector<2x128xf32>
    %471 = math.tanh %470 : vector<2x128xf32>
    %472 = arith.mulf %467, %471 : vector<2x128xf32>
    %c6_195 = arith.constant 6 : index
    %c0_196 = arith.constant 0 : index
    %473 = vector.load %arg22[%c6_195, %c0_196] : memref<16x128xf32, #tpu.memory_space<vmem>>, vector<2x128xf32>
    tpu.vector_store %arg22[%c6_195, %c0_196], %472 {strides = array<i32>} : memref<16x128xf32, #tpu.memory_space<vmem>>, vector<2x128xf32>,
    %c4_197 = arith.constant 4 : index
    %c0_198 = arith.constant 0 : index
    %474 = vector.load %arg19[%c4_197, %c0_198] : memref<16x512xf32, #tpu.memory_space<vmem>>, vector<2x512xf32>
    %cst_199 = arith.constant dense<0.000000e+00> : vector<2x512xf32>
    %475 = tpu.matmul %472, %14, %cst_199 {dimension_numbers = #tpu.dot_dimension_numbers<[1], [0], [0], [1], [0, 0, 1, 1], [], []>} : vector<2x128xf32>, vector<128x512xf32>, vector<2x512xf32> -> vector<2x512xf32>
    %476 = arith.addf %474, %475 : vector<2x512xf32>
    %477 = vector.extract_strided_slice %476 {offsets = [0, 0], sizes = [2, 128], strides = [1, 1]} : vector<2x512xf32> to vector<2x128xf32>
    %cst_200 = arith.constant 0.000000e+00 : f32
    %478 = vector.broadcast %cst_200 : f32 to vector<2x128xf32>
    %479 = arith.subf %478, %477 : vector<2x128xf32>
    %480 = math.exp %479 : vector<2x128xf32>
    %cst_201 = arith.constant 1.000000e+00 : f32
    %481 = vector.broadcast %cst_201 : f32 to vector<2x128xf32>
    %482 = arith.addf %481, %480 : vector<2x128xf32>
    %cst_202 = arith.constant 1.000000e+00 : f32
    %483 = vector.broadcast %cst_202 : f32 to vector<2x128xf32>
    %484 = arith.divf %483, %482 : vector<2x128xf32>
    %485 = vector.extract_strided_slice %476 {offsets = [0, 128], sizes = [2, 128], strides = [1, 1]} : vector<2x512xf32> to vector<2x128xf32>
    %cst_203 = arith.constant 0.000000e+00 : f32
    %486 = vector.broadcast %cst_203 : f32 to vector<2x128xf32>
    %487 = arith.subf %486, %485 : vector<2x128xf32>
    %488 = math.exp %487 : vector<2x128xf32>
    %cst_204 = arith.constant 1.000000e+00 : f32
    %489 = vector.broadcast %cst_204 : f32 to vector<2x128xf32>
    %490 = arith.addf %489, %488 : vector<2x128xf32>
    %cst_205 = arith.constant 1.000000e+00 : f32
    %491 = vector.broadcast %cst_205 : f32 to vector<2x128xf32>
    %492 = arith.divf %491, %490 : vector<2x128xf32>
    %493 = vector.extract_strided_slice %476 {offsets = [0, 256], sizes = [2, 128], strides = [1, 1]} : vector<2x512xf32> to vector<2x128xf32>
    %494 = math.tanh %493 : vector<2x128xf32>
    %495 = vector.extract_strided_slice %476 {offsets = [0, 384], sizes = [2, 128], strides = [1, 1]} : vector<2x512xf32> to vector<2x128xf32>
    %cst_206 = arith.constant 0.000000e+00 : f32
    %496 = vector.broadcast %cst_206 : f32 to vector<2x128xf32>
    %497 = arith.subf %496, %495 : vector<2x128xf32>
    %498 = math.exp %497 : vector<2x128xf32>
    %cst_207 = arith.constant 1.000000e+00 : f32
    %499 = vector.broadcast %cst_207 : f32 to vector<2x128xf32>
    %500 = arith.addf %499, %498 : vector<2x128xf32>
    %cst_208 = arith.constant 1.000000e+00 : f32
    %501 = vector.broadcast %cst_208 : f32 to vector<2x128xf32>
    %502 = arith.divf %501, %500 : vector<2x128xf32>
    %503 = arith.mulf %492, %470 : vector<2x128xf32>
    %504 = arith.mulf %484, %494 : vector<2x128xf32>
    %505 = arith.addf %503, %504 : vector<2x128xf32>
    %506 = math.tanh %505 : vector<2x128xf32>
    %507 = arith.mulf %502, %506 : vector<2x128xf32>
    %c4_209 = arith.constant 4 : index
    %c0_210 = arith.constant 0 : index
    %508 = vector.load %arg22[%c4_209, %c0_210] : memref<16x128xf32, #tpu.memory_space<vmem>>, vector<2x128xf32>
    tpu.vector_store %arg22[%c4_209, %c0_210], %507 {strides = array<i32>} : memref<16x128xf32, #tpu.memory_space<vmem>>, vector<2x128xf32>,
    %c2_211 = arith.constant 2 : index
    %c0_212 = arith.constant 0 : index
    %509 = vector.load %arg19[%c2_211, %c0_212] : memref<16x512xf32, #tpu.memory_space<vmem>>, vector<2x512xf32>
    %cst_213 = arith.constant dense<0.000000e+00> : vector<2x512xf32>
    %510 = tpu.matmul %507, %14, %cst_213 {dimension_numbers = #tpu.dot_dimension_numbers<[1], [0], [0], [1], [0, 0, 1, 1], [], []>} : vector<2x128xf32>, vector<128x512xf32>, vector<2x512xf32> -> vector<2x512xf32>
    %511 = arith.addf %509, %510 : vector<2x512xf32>
    %512 = vector.extract_strided_slice %511 {offsets = [0, 0], sizes = [2, 128], strides = [1, 1]} : vector<2x512xf32> to vector<2x128xf32>
    %cst_214 = arith.constant 0.000000e+00 : f32
    %513 = vector.broadcast %cst_214 : f32 to vector<2x128xf32>
    %514 = arith.subf %513, %512 : vector<2x128xf32>
    %515 = math.exp %514 : vector<2x128xf32>
    %cst_215 = arith.constant 1.000000e+00 : f32
    %516 = vector.broadcast %cst_215 : f32 to vector<2x128xf32>
    %517 = arith.addf %516, %515 : vector<2x128xf32>
    %cst_216 = arith.constant 1.000000e+00 : f32
    %518 = vector.broadcast %cst_216 : f32 to vector<2x128xf32>
    %519 = arith.divf %518, %517 : vector<2x128xf32>
    %520 = vector.extract_strided_slice %511 {offsets = [0, 128], sizes = [2, 128], strides = [1, 1]} : vector<2x512xf32> to vector<2x128xf32>
    %cst_217 = arith.constant 0.000000e+00 : f32
    %521 = vector.broadcast %cst_217 : f32 to vector<2x128xf32>
    %522 = arith.subf %521, %520 : vector<2x128xf32>
    %523 = math.exp %522 : vector<2x128xf32>
    %cst_218 = arith.constant 1.000000e+00 : f32
    %524 = vector.broadcast %cst_218 : f32 to vector<2x128xf32>
    %525 = arith.addf %524, %523 : vector<2x128xf32>
    %cst_219 = arith.constant 1.000000e+00 : f32
    %526 = vector.broadcast %cst_219 : f32 to vector<2x128xf32>
    %527 = arith.divf %526, %525 : vector<2x128xf32>
    %528 = vector.extract_strided_slice %511 {offsets = [0, 256], sizes = [2, 128], strides = [1, 1]} : vector<2x512xf32> to vector<2x128xf32>
    %529 = math.tanh %528 : vector<2x128xf32>
    %530 = vector.extract_strided_slice %511 {offsets = [0, 384], sizes = [2, 128], strides = [1, 1]} : vector<2x512xf32> to vector<2x128xf32>
    %cst_220 = arith.constant 0.000000e+00 : f32
    %531 = vector.broadcast %cst_220 : f32 to vector<2x128xf32>
    %532 = arith.subf %531, %530 : vector<2x128xf32>
    %533 = math.exp %532 : vector<2x128xf32>
    %cst_221 = arith.constant 1.000000e+00 : f32
    %534 = vector.broadcast %cst_221 : f32 to vector<2x128xf32>
    %535 = arith.addf %534, %533 : vector<2x128xf32>
    %cst_222 = arith.constant 1.000000e+00 : f32
    %536 = vector.broadcast %cst_222 : f32 to vector<2x128xf32>
    %537 = arith.divf %536, %535 : vector<2x128xf32>
    %538 = arith.mulf %527, %505 : vector<2x128xf32>
    %539 = arith.mulf %519, %529 : vector<2x128xf32>
    %540 = arith.addf %538, %539 : vector<2x128xf32>
    %541 = math.tanh %540 : vector<2x128xf32>
    %542 = arith.mulf %537, %541 : vector<2x128xf32>
    %c2_223 = arith.constant 2 : index
    %c0_224 = arith.constant 0 : index
    %543 = vector.load %arg22[%c2_223, %c0_224] : memref<16x128xf32, #tpu.memory_space<vmem>>, vector<2x128xf32>
    tpu.vector_store %arg22[%c2_223, %c0_224], %542 {strides = array<i32>} : memref<16x128xf32, #tpu.memory_space<vmem>>, vector<2x128xf32>,
    %c0_225 = arith.constant 0 : index
    %c0_226 = arith.constant 0 : index
    %544 = vector.load %arg19[%c0_225, %c0_226] : memref<16x512xf32, #tpu.memory_space<vmem>>, vector<2x512xf32>
    %cst_227 = arith.constant dense<0.000000e+00> : vector<2x512xf32>
    %545 = tpu.matmul %542, %14, %cst_227 {dimension_numbers = #tpu.dot_dimension_numbers<[1], [0], [0], [1], [0, 0, 1, 1], [], []>} : vector<2x128xf32>, vector<128x512xf32>, vector<2x512xf32> -> vector<2x512xf32>
    %546 = arith.addf %544, %545 : vector<2x512xf32>
    %547 = vector.extract_strided_slice %546 {offsets = [0, 0], sizes = [2, 128], strides = [1, 1]} : vector<2x512xf32> to vector<2x128xf32>
    %cst_228 = arith.constant 0.000000e+00 : f32
    %548 = vector.broadcast %cst_228 : f32 to vector<2x128xf32>
    %549 = arith.subf %548, %547 : vector<2x128xf32>
    %550 = math.exp %549 : vector<2x128xf32>
    %cst_229 = arith.constant 1.000000e+00 : f32
    %551 = vector.broadcast %cst_229 : f32 to vector<2x128xf32>
    %552 = arith.addf %551, %550 : vector<2x128xf32>
    %cst_230 = arith.constant 1.000000e+00 : f32
    %553 = vector.broadcast %cst_230 : f32 to vector<2x128xf32>
    %554 = arith.divf %553, %552 : vector<2x128xf32>
    %555 = vector.extract_strided_slice %546 {offsets = [0, 128], sizes = [2, 128], strides = [1, 1]} : vector<2x512xf32> to vector<2x128xf32>
    %cst_231 = arith.constant 0.000000e+00 : f32
    %556 = vector.broadcast %cst_231 : f32 to vector<2x128xf32>
    %557 = arith.subf %556, %555 : vector<2x128xf32>
    %558 = math.exp %557 : vector<2x128xf32>
    %cst_232 = arith.constant 1.000000e+00 : f32
    %559 = vector.broadcast %cst_232 : f32 to vector<2x128xf32>
    %560 = arith.addf %559, %558 : vector<2x128xf32>
    %cst_233 = arith.constant 1.000000e+00 : f32
    %561 = vector.broadcast %cst_233 : f32 to vector<2x128xf32>
    %562 = arith.divf %561, %560 : vector<2x128xf32>
    %563 = vector.extract_strided_slice %546 {offsets = [0, 256], sizes = [2, 128], strides = [1, 1]} : vector<2x512xf32> to vector<2x128xf32>
    %564 = math.tanh %563 : vector<2x128xf32>
    %565 = vector.extract_strided_slice %546 {offsets = [0, 384], sizes = [2, 128], strides = [1, 1]} : vector<2x512xf32> to vector<2x128xf32>
    %cst_234 = arith.constant 0.000000e+00 : f32
    %566 = vector.broadcast %cst_234 : f32 to vector<2x128xf32>
    %567 = arith.subf %566, %565 : vector<2x128xf32>
    %568 = math.exp %567 : vector<2x128xf32>
    %cst_235 = arith.constant 1.000000e+00 : f32
    %569 = vector.broadcast %cst_235 : f32 to vector<2x128xf32>
    %570 = arith.addf %569, %568 : vector<2x128xf32>
    %cst_236 = arith.constant 1.000000e+00 : f32
    %571 = vector.broadcast %cst_236 : f32 to vector<2x128xf32>
    %572 = arith.divf %571, %570 : vector<2x128xf32>
    %573 = arith.mulf %562, %540 : vector<2x128xf32>
    %574 = arith.mulf %554, %564 : vector<2x128xf32>
    %575 = arith.addf %573, %574 : vector<2x128xf32>
    %576 = math.tanh %575 : vector<2x128xf32>
    %577 = arith.mulf %572, %576 : vector<2x128xf32>
    %c0_237 = arith.constant 0 : index
    %c0_238 = arith.constant 0 : index
    %578 = vector.load %arg22[%c0_237, %c0_238] : memref<16x128xf32, #tpu.memory_space<vmem>>, vector<2x128xf32>
    tpu.vector_store %arg22[%c0_237, %c0_238], %577 {strides = array<i32>} : memref<16x128xf32, #tpu.memory_space<vmem>>, vector<2x128xf32>,
    %c0_239 = arith.constant 0 : index
    %c0_240 = arith.constant 0 : index
    %579 = vector.load %arg21[%c0_239, %c0_240] : memref<16x128xf32, #tpu.memory_space<vmem>>, vector<16x128xf32>
    %c0_241 = arith.constant 0 : index
    %c0_242 = arith.constant 0 : index
    %580 = vector.load %arg7[%c0_241, %c0_242] : memref<128x512xf32, #tpu.memory_space<vmem>>, vector<128x512xf32>
    %cst_243 = arith.constant dense<0.000000e+00> : vector<16x512xf32>
    %581 = tpu.matmul %579, %580, %cst_243 {dimension_numbers = #tpu.dot_dimension_numbers<[1], [0], [0], [1], [0, 0, 1, 1], [], []>} : vector<16x128xf32>, vector<128x512xf32>, vector<16x512xf32> -> vector<16x512xf32>
    %c0_244 = arith.constant 0 : index
    %c0_245 = arith.constant 0 : index
    %582 = vector.load %arg22[%c0_244, %c0_245] : memref<16x128xf32, #tpu.memory_space<vmem>>, vector<16x128xf32>
    %c0_246 = arith.constant 0 : index
    %c0_247 = arith.constant 0 : index
    %583 = vector.load %arg8[%c0_246, %c0_247] : memref<128x512xf32, #tpu.memory_space<vmem>>, vector<128x512xf32>
    %cst_248 = arith.constant dense<0.000000e+00> : vector<16x512xf32>
    %584 = tpu.matmul %582, %583, %cst_248 {dimension_numbers = #tpu.dot_dimension_numbers<[1], [0], [0], [1], [0, 0, 1, 1], [], []>} : vector<16x128xf32>, vector<128x512xf32>, vector<16x512xf32> -> vector<16x512xf32>
    %585 = arith.addf %581, %584 : vector<16x512xf32>
    %c0_249 = arith.constant 0 : index
    %c0_250 = arith.constant 0 : index
    %586 = vector.load %arg10[%c0_249, %c0_250] : memref<1x512xf32, #tpu.memory_space<vmem>>, vector<1x512xf32>
    %587 = vector.broadcast %586 : vector<1x512xf32> to vector<16x512xf32>
    %588 = arith.addf %585, %587 : vector<16x512xf32>
    %c0_251 = arith.constant 0 : index
    %c0_252 = arith.constant 0 : index
    %589 = vector.load %arg20[%c0_251, %c0_252] : memref<16x512xf32, #tpu.memory_space<vmem>>, vector<16x512xf32>
    tpu.vector_store %arg20[%c0_251, %c0_252], %588 {strides = array<i32>} : memref<16x512xf32, #tpu.memory_space<vmem>>, vector<16x512xf32>,
    %c0_253 = arith.constant 0 : index
    %c0_254 = arith.constant 0 : index
    %590 = vector.load %arg9[%c0_253, %c0_254] : memref<128x512xf32, #tpu.memory_space<vmem>>, vector<128x512xf32>
    %cst_255 = arith.constant 0.000000e+00 : f32
    %591 = vector.broadcast %cst_255 : f32 to vector<2x128xf32>
    %cst_256 = arith.constant 0.000000e+00 : f32
    %592 = vector.broadcast %cst_256 : f32 to vector<2x128xf32>
    %c0_257 = arith.constant 0 : index
    %c0_258 = arith.constant 0 : index
    %593 = vector.load %arg20[%c0_257, %c0_258] : memref<16x512xf32, #tpu.memory_space<vmem>>, vector<2x512xf32>
    %cst_259 = arith.constant dense<0.000000e+00> : vector<2x512xf32>
    %594 = tpu.matmul %591, %590, %cst_259 {dimension_numbers = #tpu.dot_dimension_numbers<[1], [0], [0], [1], [0, 0, 1, 1], [], []>} : vector<2x128xf32>, vector<128x512xf32>, vector<2x512xf32> -> vector<2x512xf32>
    %595 = arith.addf %593, %594 : vector<2x512xf32>
    %596 = vector.extract_strided_slice %595 {offsets = [0, 0], sizes = [2, 128], strides = [1, 1]} : vector<2x512xf32> to vector<2x128xf32>
    %cst_260 = arith.constant 0.000000e+00 : f32
    %597 = vector.broadcast %cst_260 : f32 to vector<2x128xf32>
    %598 = arith.subf %597, %596 : vector<2x128xf32>
    %599 = math.exp %598 : vector<2x128xf32>
    %cst_261 = arith.constant 1.000000e+00 : f32
    %600 = vector.broadcast %cst_261 : f32 to vector<2x128xf32>
    %601 = arith.addf %600, %599 : vector<2x128xf32>
    %cst_262 = arith.constant 1.000000e+00 : f32
    %602 = vector.broadcast %cst_262 : f32 to vector<2x128xf32>
    %603 = arith.divf %602, %601 : vector<2x128xf32>
    %604 = vector.extract_strided_slice %595 {offsets = [0, 128], sizes = [2, 128], strides = [1, 1]} : vector<2x512xf32> to vector<2x128xf32>
    %cst_263 = arith.constant 0.000000e+00 : f32
    %605 = vector.broadcast %cst_263 : f32 to vector<2x128xf32>
    %606 = arith.subf %605, %604 : vector<2x128xf32>
    %607 = math.exp %606 : vector<2x128xf32>
    %cst_264 = arith.constant 1.000000e+00 : f32
    %608 = vector.broadcast %cst_264 : f32 to vector<2x128xf32>
    %609 = arith.addf %608, %607 : vector<2x128xf32>
    %cst_265 = arith.constant 1.000000e+00 : f32
    %610 = vector.broadcast %cst_265 : f32 to vector<2x128xf32>
    %611 = arith.divf %610, %609 : vector<2x128xf32>
    %612 = vector.extract_strided_slice %595 {offsets = [0, 256], sizes = [2, 128], strides = [1, 1]} : vector<2x512xf32> to vector<2x128xf32>
    %613 = math.tanh %612 : vector<2x128xf32>
    %614 = vector.extract_strided_slice %595 {offsets = [0, 384], sizes = [2, 128], strides = [1, 1]} : vector<2x512xf32> to vector<2x128xf32>
    %cst_266 = arith.constant 0.000000e+00 : f32
    %615 = vector.broadcast %cst_266 : f32 to vector<2x128xf32>
    %616 = arith.subf %615, %614 : vector<2x128xf32>
    %617 = math.exp %616 : vector<2x128xf32>
    %cst_267 = arith.constant 1.000000e+00 : f32
    %618 = vector.broadcast %cst_267 : f32 to vector<2x128xf32>
    %619 = arith.addf %618, %617 : vector<2x128xf32>
    %cst_268 = arith.constant 1.000000e+00 : f32
    %620 = vector.broadcast %cst_268 : f32 to vector<2x128xf32>
    %621 = arith.divf %620, %619 : vector<2x128xf32>
    %622 = arith.mulf %611, %592 : vector<2x128xf32>
    %623 = arith.mulf %603, %613 : vector<2x128xf32>
    %624 = arith.addf %622, %623 : vector<2x128xf32>
    %625 = math.tanh %624 : vector<2x128xf32>
    %626 = arith.mulf %621, %625 : vector<2x128xf32>
    %c2_269 = arith.constant 2 : index
    %c0_270 = arith.constant 0 : index
    %627 = vector.load %arg20[%c2_269, %c0_270] : memref<16x512xf32, #tpu.memory_space<vmem>>, vector<2x512xf32>
    %cst_271 = arith.constant dense<0.000000e+00> : vector<2x512xf32>
    %628 = tpu.matmul %626, %590, %cst_271 {dimension_numbers = #tpu.dot_dimension_numbers<[1], [0], [0], [1], [0, 0, 1, 1], [], []>} : vector<2x128xf32>, vector<128x512xf32>, vector<2x512xf32> -> vector<2x512xf32>
    %629 = arith.addf %627, %628 : vector<2x512xf32>
    %630 = vector.extract_strided_slice %629 {offsets = [0, 0], sizes = [2, 128], strides = [1, 1]} : vector<2x512xf32> to vector<2x128xf32>
    %cst_272 = arith.constant 0.000000e+00 : f32
    %631 = vector.broadcast %cst_272 : f32 to vector<2x128xf32>
    %632 = arith.subf %631, %630 : vector<2x128xf32>
    %633 = math.exp %632 : vector<2x128xf32>
    %cst_273 = arith.constant 1.000000e+00 : f32
    %634 = vector.broadcast %cst_273 : f32 to vector<2x128xf32>
    %635 = arith.addf %634, %633 : vector<2x128xf32>
    %cst_274 = arith.constant 1.000000e+00 : f32
    %636 = vector.broadcast %cst_274 : f32 to vector<2x128xf32>
    %637 = arith.divf %636, %635 : vector<2x128xf32>
    %638 = vector.extract_strided_slice %629 {offsets = [0, 128], sizes = [2, 128], strides = [1, 1]} : vector<2x512xf32> to vector<2x128xf32>
    %cst_275 = arith.constant 0.000000e+00 : f32
    %639 = vector.broadcast %cst_275 : f32 to vector<2x128xf32>
    %640 = arith.subf %639, %638 : vector<2x128xf32>
    %641 = math.exp %640 : vector<2x128xf32>
    %cst_276 = arith.constant 1.000000e+00 : f32
    %642 = vector.broadcast %cst_276 : f32 to vector<2x128xf32>
    %643 = arith.addf %642, %641 : vector<2x128xf32>
    %cst_277 = arith.constant 1.000000e+00 : f32
    %644 = vector.broadcast %cst_277 : f32 to vector<2x128xf32>
    %645 = arith.divf %644, %643 : vector<2x128xf32>
    %646 = vector.extract_strided_slice %629 {offsets = [0, 256], sizes = [2, 128], strides = [1, 1]} : vector<2x512xf32> to vector<2x128xf32>
    %647 = math.tanh %646 : vector<2x128xf32>
    %648 = vector.extract_strided_slice %629 {offsets = [0, 384], sizes = [2, 128], strides = [1, 1]} : vector<2x512xf32> to vector<2x128xf32>
    %cst_278 = arith.constant 0.000000e+00 : f32
    %649 = vector.broadcast %cst_278 : f32 to vector<2x128xf32>
    %650 = arith.subf %649, %648 : vector<2x128xf32>
    %651 = math.exp %650 : vector<2x128xf32>
    %cst_279 = arith.constant 1.000000e+00 : f32
    %652 = vector.broadcast %cst_279 : f32 to vector<2x128xf32>
    %653 = arith.addf %652, %651 : vector<2x128xf32>
    %cst_280 = arith.constant 1.000000e+00 : f32
    %654 = vector.broadcast %cst_280 : f32 to vector<2x128xf32>
    %655 = arith.divf %654, %653 : vector<2x128xf32>
    %656 = arith.mulf %645, %624 : vector<2x128xf32>
    %657 = arith.mulf %637, %647 : vector<2x128xf32>
    %658 = arith.addf %656, %657 : vector<2x128xf32>
    %659 = math.tanh %658 : vector<2x128xf32>
    %660 = arith.mulf %655, %659 : vector<2x128xf32>
    %c4_281 = arith.constant 4 : index
    %c0_282 = arith.constant 0 : index
    %661 = vector.load %arg20[%c4_281, %c0_282] : memref<16x512xf32, #tpu.memory_space<vmem>>, vector<2x512xf32>
    %cst_283 = arith.constant dense<0.000000e+00> : vector<2x512xf32>
    %662 = tpu.matmul %660, %590, %cst_283 {dimension_numbers = #tpu.dot_dimension_numbers<[1], [0], [0], [1], [0, 0, 1, 1], [], []>} : vector<2x128xf32>, vector<128x512xf32>, vector<2x512xf32> -> vector<2x512xf32>
    %663 = arith.addf %661, %662 : vector<2x512xf32>
    %664 = vector.extract_strided_slice %663 {offsets = [0, 0], sizes = [2, 128], strides = [1, 1]} : vector<2x512xf32> to vector<2x128xf32>
    %cst_284 = arith.constant 0.000000e+00 : f32
    %665 = vector.broadcast %cst_284 : f32 to vector<2x128xf32>
    %666 = arith.subf %665, %664 : vector<2x128xf32>
    %667 = math.exp %666 : vector<2x128xf32>
    %cst_285 = arith.constant 1.000000e+00 : f32
    %668 = vector.broadcast %cst_285 : f32 to vector<2x128xf32>
    %669 = arith.addf %668, %667 : vector<2x128xf32>
    %cst_286 = arith.constant 1.000000e+00 : f32
    %670 = vector.broadcast %cst_286 : f32 to vector<2x128xf32>
    %671 = arith.divf %670, %669 : vector<2x128xf32>
    %672 = vector.extract_strided_slice %663 {offsets = [0, 128], sizes = [2, 128], strides = [1, 1]} : vector<2x512xf32> to vector<2x128xf32>
    %cst_287 = arith.constant 0.000000e+00 : f32
    %673 = vector.broadcast %cst_287 : f32 to vector<2x128xf32>
    %674 = arith.subf %673, %672 : vector<2x128xf32>
    %675 = math.exp %674 : vector<2x128xf32>
    %cst_288 = arith.constant 1.000000e+00 : f32
    %676 = vector.broadcast %cst_288 : f32 to vector<2x128xf32>
    %677 = arith.addf %676, %675 : vector<2x128xf32>
    %cst_289 = arith.constant 1.000000e+00 : f32
    %678 = vector.broadcast %cst_289 : f32 to vector<2x128xf32>
    %679 = arith.divf %678, %677 : vector<2x128xf32>
    %680 = vector.extract_strided_slice %663 {offsets = [0, 256], sizes = [2, 128], strides = [1, 1]} : vector<2x512xf32> to vector<2x128xf32>
    %681 = math.tanh %680 : vector<2x128xf32>
    %682 = vector.extract_strided_slice %663 {offsets = [0, 384], sizes = [2, 128], strides = [1, 1]} : vector<2x512xf32> to vector<2x128xf32>
    %cst_290 = arith.constant 0.000000e+00 : f32
    %683 = vector.broadcast %cst_290 : f32 to vector<2x128xf32>
    %684 = arith.subf %683, %682 : vector<2x128xf32>
    %685 = math.exp %684 : vector<2x128xf32>
    %cst_291 = arith.constant 1.000000e+00 : f32
    %686 = vector.broadcast %cst_291 : f32 to vector<2x128xf32>
    %687 = arith.addf %686, %685 : vector<2x128xf32>
    %cst_292 = arith.constant 1.000000e+00 : f32
    %688 = vector.broadcast %cst_292 : f32 to vector<2x128xf32>
    %689 = arith.divf %688, %687 : vector<2x128xf32>
    %690 = arith.mulf %679, %658 : vector<2x128xf32>
    %691 = arith.mulf %671, %681 : vector<2x128xf32>
    %692 = arith.addf %690, %691 : vector<2x128xf32>
    %693 = math.tanh %692 : vector<2x128xf32>
    %694 = arith.mulf %689, %693 : vector<2x128xf32>
    %c6_293 = arith.constant 6 : index
    %c0_294 = arith.constant 0 : index
    %695 = vector.load %arg20[%c6_293, %c0_294] : memref<16x512xf32, #tpu.memory_space<vmem>>, vector<2x512xf32>
    %cst_295 = arith.constant dense<0.000000e+00> : vector<2x512xf32>
    %696 = tpu.matmul %694, %590, %cst_295 {dimension_numbers = #tpu.dot_dimension_numbers<[1], [0], [0], [1], [0, 0, 1, 1], [], []>} : vector<2x128xf32>, vector<128x512xf32>, vector<2x512xf32> -> vector<2x512xf32>
    %697 = arith.addf %695, %696 : vector<2x512xf32>
    %698 = vector.extract_strided_slice %697 {offsets = [0, 0], sizes = [2, 128], strides = [1, 1]} : vector<2x512xf32> to vector<2x128xf32>
    %cst_296 = arith.constant 0.000000e+00 : f32
    %699 = vector.broadcast %cst_296 : f32 to vector<2x128xf32>
    %700 = arith.subf %699, %698 : vector<2x128xf32>
    %701 = math.exp %700 : vector<2x128xf32>
    %cst_297 = arith.constant 1.000000e+00 : f32
    %702 = vector.broadcast %cst_297 : f32 to vector<2x128xf32>
    %703 = arith.addf %702, %701 : vector<2x128xf32>
    %cst_298 = arith.constant 1.000000e+00 : f32
    %704 = vector.broadcast %cst_298 : f32 to vector<2x128xf32>
    %705 = arith.divf %704, %703 : vector<2x128xf32>
    %706 = vector.extract_strided_slice %697 {offsets = [0, 128], sizes = [2, 128], strides = [1, 1]} : vector<2x512xf32> to vector<2x128xf32>
    %cst_299 = arith.constant 0.000000e+00 : f32
    %707 = vector.broadcast %cst_299 : f32 to vector<2x128xf32>
    %708 = arith.subf %707, %706 : vector<2x128xf32>
    %709 = math.exp %708 : vector<2x128xf32>
    %cst_300 = arith.constant 1.000000e+00 : f32
    %710 = vector.broadcast %cst_300 : f32 to vector<2x128xf32>
    %711 = arith.addf %710, %709 : vector<2x128xf32>
    %cst_301 = arith.constant 1.000000e+00 : f32
    %712 = vector.broadcast %cst_301 : f32 to vector<2x128xf32>
    %713 = arith.divf %712, %711 : vector<2x128xf32>
    %714 = vector.extract_strided_slice %697 {offsets = [0, 256], sizes = [2, 128], strides = [1, 1]} : vector<2x512xf32> to vector<2x128xf32>
    %715 = math.tanh %714 : vector<2x128xf32>
    %716 = vector.extract_strided_slice %697 {offsets = [0, 384], sizes = [2, 128], strides = [1, 1]} : vector<2x512xf32> to vector<2x128xf32>
    %cst_302 = arith.constant 0.000000e+00 : f32
    %717 = vector.broadcast %cst_302 : f32 to vector<2x128xf32>
    %718 = arith.subf %717, %716 : vector<2x128xf32>
    %719 = math.exp %718 : vector<2x128xf32>
    %cst_303 = arith.constant 1.000000e+00 : f32
    %720 = vector.broadcast %cst_303 : f32 to vector<2x128xf32>
    %721 = arith.addf %720, %719 : vector<2x128xf32>
    %cst_304 = arith.constant 1.000000e+00 : f32
    %722 = vector.broadcast %cst_304 : f32 to vector<2x128xf32>
    %723 = arith.divf %722, %721 : vector<2x128xf32>
    %724 = arith.mulf %713, %692 : vector<2x128xf32>
    %725 = arith.mulf %705, %715 : vector<2x128xf32>
    %726 = arith.addf %724, %725 : vector<2x128xf32>
    %727 = math.tanh %726 : vector<2x128xf32>
    %728 = arith.mulf %723, %727 : vector<2x128xf32>
    %c8_305 = arith.constant 8 : index
    %c0_306 = arith.constant 0 : index
    %729 = vector.load %arg20[%c8_305, %c0_306] : memref<16x512xf32, #tpu.memory_space<vmem>>, vector<2x512xf32>
    %cst_307 = arith.constant dense<0.000000e+00> : vector<2x512xf32>
    %730 = tpu.matmul %728, %590, %cst_307 {dimension_numbers = #tpu.dot_dimension_numbers<[1], [0], [0], [1], [0, 0, 1, 1], [], []>} : vector<2x128xf32>, vector<128x512xf32>, vector<2x512xf32> -> vector<2x512xf32>
    %731 = arith.addf %729, %730 : vector<2x512xf32>
    %732 = vector.extract_strided_slice %731 {offsets = [0, 0], sizes = [2, 128], strides = [1, 1]} : vector<2x512xf32> to vector<2x128xf32>
    %cst_308 = arith.constant 0.000000e+00 : f32
    %733 = vector.broadcast %cst_308 : f32 to vector<2x128xf32>
    %734 = arith.subf %733, %732 : vector<2x128xf32>
    %735 = math.exp %734 : vector<2x128xf32>
    %cst_309 = arith.constant 1.000000e+00 : f32
    %736 = vector.broadcast %cst_309 : f32 to vector<2x128xf32>
    %737 = arith.addf %736, %735 : vector<2x128xf32>
    %cst_310 = arith.constant 1.000000e+00 : f32
    %738 = vector.broadcast %cst_310 : f32 to vector<2x128xf32>
    %739 = arith.divf %738, %737 : vector<2x128xf32>
    %740 = vector.extract_strided_slice %731 {offsets = [0, 128], sizes = [2, 128], strides = [1, 1]} : vector<2x512xf32> to vector<2x128xf32>
    %cst_311 = arith.constant 0.000000e+00 : f32
    %741 = vector.broadcast %cst_311 : f32 to vector<2x128xf32>
    %742 = arith.subf %741, %740 : vector<2x128xf32>
    %743 = math.exp %742 : vector<2x128xf32>
    %cst_312 = arith.constant 1.000000e+00 : f32
    %744 = vector.broadcast %cst_312 : f32 to vector<2x128xf32>
    %745 = arith.addf %744, %743 : vector<2x128xf32>
    %cst_313 = arith.constant 1.000000e+00 : f32
    %746 = vector.broadcast %cst_313 : f32 to vector<2x128xf32>
    %747 = arith.divf %746, %745 : vector<2x128xf32>
    %748 = vector.extract_strided_slice %731 {offsets = [0, 256], sizes = [2, 128], strides = [1, 1]} : vector<2x512xf32> to vector<2x128xf32>
    %749 = math.tanh %748 : vector<2x128xf32>
    %750 = vector.extract_strided_slice %731 {offsets = [0, 384], sizes = [2, 128], strides = [1, 1]} : vector<2x512xf32> to vector<2x128xf32>
    %cst_314 = arith.constant 0.000000e+00 : f32
    %751 = vector.broadcast %cst_314 : f32 to vector<2x128xf32>
    %752 = arith.subf %751, %750 : vector<2x128xf32>
    %753 = math.exp %752 : vector<2x128xf32>
    %cst_315 = arith.constant 1.000000e+00 : f32
    %754 = vector.broadcast %cst_315 : f32 to vector<2x128xf32>
    %755 = arith.addf %754, %753 : vector<2x128xf32>
    %cst_316 = arith.constant 1.000000e+00 : f32
    %756 = vector.broadcast %cst_316 : f32 to vector<2x128xf32>
    %757 = arith.divf %756, %755 : vector<2x128xf32>
    %758 = arith.mulf %747, %726 : vector<2x128xf32>
    %759 = arith.mulf %739, %749 : vector<2x128xf32>
    %760 = arith.addf %758, %759 : vector<2x128xf32>
    %761 = math.tanh %760 : vector<2x128xf32>
    %762 = arith.mulf %757, %761 : vector<2x128xf32>
    %c10_317 = arith.constant 10 : index
    %c0_318 = arith.constant 0 : index
    %763 = vector.load %arg20[%c10_317, %c0_318] : memref<16x512xf32, #tpu.memory_space<vmem>>, vector<2x512xf32>
    %cst_319 = arith.constant dense<0.000000e+00> : vector<2x512xf32>
    %764 = tpu.matmul %762, %590, %cst_319 {dimension_numbers = #tpu.dot_dimension_numbers<[1], [0], [0], [1], [0, 0, 1, 1], [], []>} : vector<2x128xf32>, vector<128x512xf32>, vector<2x512xf32> -> vector<2x512xf32>
    %765 = arith.addf %763, %764 : vector<2x512xf32>
    %766 = vector.extract_strided_slice %765 {offsets = [0, 0], sizes = [2, 128], strides = [1, 1]} : vector<2x512xf32> to vector<2x128xf32>
    %cst_320 = arith.constant 0.000000e+00 : f32
    %767 = vector.broadcast %cst_320 : f32 to vector<2x128xf32>
    %768 = arith.subf %767, %766 : vector<2x128xf32>
    %769 = math.exp %768 : vector<2x128xf32>
    %cst_321 = arith.constant 1.000000e+00 : f32
    %770 = vector.broadcast %cst_321 : f32 to vector<2x128xf32>
    %771 = arith.addf %770, %769 : vector<2x128xf32>
    %cst_322 = arith.constant 1.000000e+00 : f32
    %772 = vector.broadcast %cst_322 : f32 to vector<2x128xf32>
    %773 = arith.divf %772, %771 : vector<2x128xf32>
    %774 = vector.extract_strided_slice %765 {offsets = [0, 128], sizes = [2, 128], strides = [1, 1]} : vector<2x512xf32> to vector<2x128xf32>
    %cst_323 = arith.constant 0.000000e+00 : f32
    %775 = vector.broadcast %cst_323 : f32 to vector<2x128xf32>
    %776 = arith.subf %775, %774 : vector<2x128xf32>
    %777 = math.exp %776 : vector<2x128xf32>
    %cst_324 = arith.constant 1.000000e+00 : f32
    %778 = vector.broadcast %cst_324 : f32 to vector<2x128xf32>
    %779 = arith.addf %778, %777 : vector<2x128xf32>
    %cst_325 = arith.constant 1.000000e+00 : f32
    %780 = vector.broadcast %cst_325 : f32 to vector<2x128xf32>
    %781 = arith.divf %780, %779 : vector<2x128xf32>
    %782 = vector.extract_strided_slice %765 {offsets = [0, 256], sizes = [2, 128], strides = [1, 1]} : vector<2x512xf32> to vector<2x128xf32>
    %783 = math.tanh %782 : vector<2x128xf32>
    %784 = vector.extract_strided_slice %765 {offsets = [0, 384], sizes = [2, 128], strides = [1, 1]} : vector<2x512xf32> to vector<2x128xf32>
    %cst_326 = arith.constant 0.000000e+00 : f32
    %785 = vector.broadcast %cst_326 : f32 to vector<2x128xf32>
    %786 = arith.subf %785, %784 : vector<2x128xf32>
    %787 = math.exp %786 : vector<2x128xf32>
    %cst_327 = arith.constant 1.000000e+00 : f32
    %788 = vector.broadcast %cst_327 : f32 to vector<2x128xf32>
    %789 = arith.addf %788, %787 : vector<2x128xf32>
    %cst_328 = arith.constant 1.000000e+00 : f32
    %790 = vector.broadcast %cst_328 : f32 to vector<2x128xf32>
    %791 = arith.divf %790, %789 : vector<2x128xf32>
    %792 = arith.mulf %781, %760 : vector<2x128xf32>
    %793 = arith.mulf %773, %783 : vector<2x128xf32>
    %794 = arith.addf %792, %793 : vector<2x128xf32>
    %795 = math.tanh %794 : vector<2x128xf32>
    %796 = arith.mulf %791, %795 : vector<2x128xf32>
    %c12_329 = arith.constant 12 : index
    %c0_330 = arith.constant 0 : index
    %797 = vector.load %arg20[%c12_329, %c0_330] : memref<16x512xf32, #tpu.memory_space<vmem>>, vector<2x512xf32>
    %cst_331 = arith.constant dense<0.000000e+00> : vector<2x512xf32>
    %798 = tpu.matmul %796, %590, %cst_331 {dimension_numbers = #tpu.dot_dimension_numbers<[1], [0], [0], [1], [0, 0, 1, 1], [], []>} : vector<2x128xf32>, vector<128x512xf32>, vector<2x512xf32> -> vector<2x512xf32>
    %799 = arith.addf %797, %798 : vector<2x512xf32>
    %800 = vector.extract_strided_slice %799 {offsets = [0, 0], sizes = [2, 128], strides = [1, 1]} : vector<2x512xf32> to vector<2x128xf32>
    %cst_332 = arith.constant 0.000000e+00 : f32
    %801 = vector.broadcast %cst_332 : f32 to vector<2x128xf32>
    %802 = arith.subf %801, %800 : vector<2x128xf32>
    %803 = math.exp %802 : vector<2x128xf32>
    %cst_333 = arith.constant 1.000000e+00 : f32
    %804 = vector.broadcast %cst_333 : f32 to vector<2x128xf32>
    %805 = arith.addf %804, %803 : vector<2x128xf32>
    %cst_334 = arith.constant 1.000000e+00 : f32
    %806 = vector.broadcast %cst_334 : f32 to vector<2x128xf32>
    %807 = arith.divf %806, %805 : vector<2x128xf32>
    %808 = vector.extract_strided_slice %799 {offsets = [0, 128], sizes = [2, 128], strides = [1, 1]} : vector<2x512xf32> to vector<2x128xf32>
    %cst_335 = arith.constant 0.000000e+00 : f32
    %809 = vector.broadcast %cst_335 : f32 to vector<2x128xf32>
    %810 = arith.subf %809, %808 : vector<2x128xf32>
    %811 = math.exp %810 : vector<2x128xf32>
    %cst_336 = arith.constant 1.000000e+00 : f32
    %812 = vector.broadcast %cst_336 : f32 to vector<2x128xf32>
    %813 = arith.addf %812, %811 : vector<2x128xf32>
    %cst_337 = arith.constant 1.000000e+00 : f32
    %814 = vector.broadcast %cst_337 : f32 to vector<2x128xf32>
    %815 = arith.divf %814, %813 : vector<2x128xf32>
    %816 = vector.extract_strided_slice %799 {offsets = [0, 256], sizes = [2, 128], strides = [1, 1]} : vector<2x512xf32> to vector<2x128xf32>
    %817 = math.tanh %816 : vector<2x128xf32>
    %818 = vector.extract_strided_slice %799 {offsets = [0, 384], sizes = [2, 128], strides = [1, 1]} : vector<2x512xf32> to vector<2x128xf32>
    %cst_338 = arith.constant 0.000000e+00 : f32
    %819 = vector.broadcast %cst_338 : f32 to vector<2x128xf32>
    %820 = arith.subf %819, %818 : vector<2x128xf32>
    %821 = math.exp %820 : vector<2x128xf32>
    %cst_339 = arith.constant 1.000000e+00 : f32
    %822 = vector.broadcast %cst_339 : f32 to vector<2x128xf32>
    %823 = arith.addf %822, %821 : vector<2x128xf32>
    %cst_340 = arith.constant 1.000000e+00 : f32
    %824 = vector.broadcast %cst_340 : f32 to vector<2x128xf32>
    %825 = arith.divf %824, %823 : vector<2x128xf32>
    %826 = arith.mulf %815, %794 : vector<2x128xf32>
    %827 = arith.mulf %807, %817 : vector<2x128xf32>
    %828 = arith.addf %826, %827 : vector<2x128xf32>
    %829 = math.tanh %828 : vector<2x128xf32>
    %830 = arith.mulf %825, %829 : vector<2x128xf32>
    %c14_341 = arith.constant 14 : index
    %c0_342 = arith.constant 0 : index
    %831 = vector.load %arg20[%c14_341, %c0_342] : memref<16x512xf32, #tpu.memory_space<vmem>>, vector<2x512xf32>
    %cst_343 = arith.constant dense<0.000000e+00> : vector<2x512xf32>
    %832 = tpu.matmul %830, %590, %cst_343 {dimension_numbers = #tpu.dot_dimension_numbers<[1], [0], [0], [1], [0, 0, 1, 1], [], []>} : vector<2x128xf32>, vector<128x512xf32>, vector<2x512xf32> -> vector<2x512xf32>
    %833 = arith.addf %831, %832 : vector<2x512xf32>
    %834 = vector.extract_strided_slice %833 {offsets = [0, 0], sizes = [2, 128], strides = [1, 1]} : vector<2x512xf32> to vector<2x128xf32>
    %cst_344 = arith.constant 0.000000e+00 : f32
    %835 = vector.broadcast %cst_344 : f32 to vector<2x128xf32>
    %836 = arith.subf %835, %834 : vector<2x128xf32>
    %837 = math.exp %836 : vector<2x128xf32>
    %cst_345 = arith.constant 1.000000e+00 : f32
    %838 = vector.broadcast %cst_345 : f32 to vector<2x128xf32>
    %839 = arith.addf %838, %837 : vector<2x128xf32>
    %cst_346 = arith.constant 1.000000e+00 : f32
    %840 = vector.broadcast %cst_346 : f32 to vector<2x128xf32>
    %841 = arith.divf %840, %839 : vector<2x128xf32>
    %842 = vector.extract_strided_slice %833 {offsets = [0, 128], sizes = [2, 128], strides = [1, 1]} : vector<2x512xf32> to vector<2x128xf32>
    %cst_347 = arith.constant 0.000000e+00 : f32
    %843 = vector.broadcast %cst_347 : f32 to vector<2x128xf32>
    %844 = arith.subf %843, %842 : vector<2x128xf32>
    %845 = math.exp %844 : vector<2x128xf32>
    %cst_348 = arith.constant 1.000000e+00 : f32
    %846 = vector.broadcast %cst_348 : f32 to vector<2x128xf32>
    %847 = arith.addf %846, %845 : vector<2x128xf32>
    %cst_349 = arith.constant 1.000000e+00 : f32
    %848 = vector.broadcast %cst_349 : f32 to vector<2x128xf32>
    %849 = arith.divf %848, %847 : vector<2x128xf32>
    %850 = vector.extract_strided_slice %833 {offsets = [0, 256], sizes = [2, 128], strides = [1, 1]} : vector<2x512xf32> to vector<2x128xf32>
    %851 = math.tanh %850 : vector<2x128xf32>
    %852 = vector.extract_strided_slice %833 {offsets = [0, 384], sizes = [2, 128], strides = [1, 1]} : vector<2x512xf32> to vector<2x128xf32>
    %cst_350 = arith.constant 0.000000e+00 : f32
    %853 = vector.broadcast %cst_350 : f32 to vector<2x128xf32>
    %854 = arith.subf %853, %852 : vector<2x128xf32>
    %855 = math.exp %854 : vector<2x128xf32>
    %cst_351 = arith.constant 1.000000e+00 : f32
    %856 = vector.broadcast %cst_351 : f32 to vector<2x128xf32>
    %857 = arith.addf %856, %855 : vector<2x128xf32>
    %cst_352 = arith.constant 1.000000e+00 : f32
    %858 = vector.broadcast %cst_352 : f32 to vector<2x128xf32>
    %859 = arith.divf %858, %857 : vector<2x128xf32>
    %860 = arith.mulf %849, %828 : vector<2x128xf32>
    %861 = arith.mulf %841, %851 : vector<2x128xf32>
    %862 = arith.addf %860, %861 : vector<2x128xf32>
    %863 = math.tanh %862 : vector<2x128xf32>
    %864 = arith.mulf %859, %863 : vector<2x128xf32>
    %c0_353 = arith.constant 0 : index
    %c0_354 = arith.constant 0 : index
    %865 = vector.load %arg11[%c0_353, %c0_354] : memref<128x512xf32, #tpu.memory_space<vmem>>, vector<128x512xf32>
    %cst_355 = arith.constant dense<0.000000e+00> : vector<2x512xf32>
    %866 = tpu.matmul %295, %865, %cst_355 {dimension_numbers = #tpu.dot_dimension_numbers<[1], [0], [0], [1], [0, 0, 1, 1], [], []>} : vector<2x128xf32>, vector<128x512xf32>, vector<2x512xf32> -> vector<2x512xf32>
    %c0_356 = arith.constant 0 : index
    %c0_357 = arith.constant 0 : index
    %867 = vector.load %arg12[%c0_356, %c0_357] : memref<128x512xf32, #tpu.memory_space<vmem>>, vector<128x512xf32>
    %cst_358 = arith.constant dense<0.000000e+00> : vector<2x512xf32>
    %868 = tpu.matmul %332, %867, %cst_358 {dimension_numbers = #tpu.dot_dimension_numbers<[1], [0], [0], [1], [0, 0, 1, 1], [], []>} : vector<2x128xf32>, vector<128x512xf32>, vector<2x512xf32> -> vector<2x512xf32>
    %869 = arith.addf %866, %868 : vector<2x512xf32>
    %c0_359 = arith.constant 0 : index
    %c0_360 = arith.constant 0 : index
    %870 = vector.load %arg13[%c0_359, %c0_360] : memref<1x512xf32, #tpu.memory_space<vmem>>, vector<1x512xf32>
    %871 = vector.broadcast %870 : vector<1x512xf32> to vector<2x512xf32>
    %872 = arith.addf %869, %871 : vector<2x512xf32>
    %cst_361 = arith.constant 0.000000e+00 : f32
    %873 = vector.broadcast %cst_361 : f32 to vector<2x128xf32>
    %874 = vector.extract_strided_slice %872 {offsets = [0, 0], sizes = [2, 128], strides = [1, 1]} : vector<2x512xf32> to vector<2x128xf32>
    %cst_362 = arith.constant 0.000000e+00 : f32
    %875 = vector.broadcast %cst_362 : f32 to vector<2x128xf32>
    %876 = arith.subf %875, %874 : vector<2x128xf32>
    %877 = math.exp %876 : vector<2x128xf32>
    %cst_363 = arith.constant 1.000000e+00 : f32
    %878 = vector.broadcast %cst_363 : f32 to vector<2x128xf32>
    %879 = arith.addf %878, %877 : vector<2x128xf32>
    %cst_364 = arith.constant 1.000000e+00 : f32
    %880 = vector.broadcast %cst_364 : f32 to vector<2x128xf32>
    %881 = arith.divf %880, %879 : vector<2x128xf32>
    %882 = vector.extract_strided_slice %872 {offsets = [0, 128], sizes = [2, 128], strides = [1, 1]} : vector<2x512xf32> to vector<2x128xf32>
    %cst_365 = arith.constant 0.000000e+00 : f32
    %883 = vector.broadcast %cst_365 : f32 to vector<2x128xf32>
    %884 = arith.subf %883, %882 : vector<2x128xf32>
    %885 = math.exp %884 : vector<2x128xf32>
    %cst_366 = arith.constant 1.000000e+00 : f32
    %886 = vector.broadcast %cst_366 : f32 to vector<2x128xf32>
    %887 = arith.addf %886, %885 : vector<2x128xf32>
    %cst_367 = arith.constant 1.000000e+00 : f32
    %888 = vector.broadcast %cst_367 : f32 to vector<2x128xf32>
    %889 = arith.divf %888, %887 : vector<2x128xf32>
    %890 = vector.extract_strided_slice %872 {offsets = [0, 256], sizes = [2, 128], strides = [1, 1]} : vector<2x512xf32> to vector<2x128xf32>
    %891 = math.tanh %890 : vector<2x128xf32>
    %892 = vector.extract_strided_slice %872 {offsets = [0, 384], sizes = [2, 128], strides = [1, 1]} : vector<2x512xf32> to vector<2x128xf32>
    %cst_368 = arith.constant 0.000000e+00 : f32
    %893 = vector.broadcast %cst_368 : f32 to vector<2x128xf32>
    %894 = arith.subf %893, %892 : vector<2x128xf32>
    %895 = math.exp %894 : vector<2x128xf32>
    %cst_369 = arith.constant 1.000000e+00 : f32
    %896 = vector.broadcast %cst_369 : f32 to vector<2x128xf32>
    %897 = arith.addf %896, %895 : vector<2x128xf32>
    %cst_370 = arith.constant 1.000000e+00 : f32
    %898 = vector.broadcast %cst_370 : f32 to vector<2x128xf32>
    %899 = arith.divf %898, %897 : vector<2x128xf32>
    %900 = arith.mulf %889, %873 : vector<2x128xf32>
    %901 = arith.mulf %881, %891 : vector<2x128xf32>
    %902 = arith.addf %900, %901 : vector<2x128xf32>
    %903 = math.tanh %902 : vector<2x128xf32>
    %904 = arith.mulf %899, %903 : vector<2x128xf32>
    %c0_371 = arith.constant 0 : index
    %c0_372 = arith.constant 0 : index
    %905 = vector.load %arg14[%c0_371, %c0_372] : memref<128x128xf32, #tpu.memory_space<vmem>>, vector<128x128xf32>
    %cst_373 = arith.constant dense<0.000000e+00> : vector<2x128xf32>
    %906 = tpu.matmul %864, %905, %cst_373 {dimension_numbers = #tpu.dot_dimension_numbers<[1], [0], [0], [1], [0, 0, 1, 1], [], []>} : vector<2x128xf32>, vector<128x128xf32>, vector<2x128xf32> -> vector<2x128xf32>
    %c0_374 = arith.constant 0 : index
    %c0_375 = arith.constant 0 : index
    %907 = vector.load %arg15[%c0_374, %c0_375] : memref<128x128xf32, #tpu.memory_space<vmem>>, vector<128x128xf32>
    %cst_376 = arith.constant dense<0.000000e+00> : vector<2x128xf32>
    %908 = tpu.matmul %904, %907, %cst_376 {dimension_numbers = #tpu.dot_dimension_numbers<[1], [0], [0], [1], [0, 0, 1, 1], [], []>} : vector<2x128xf32>, vector<128x128xf32>, vector<2x128xf32> -> vector<2x128xf32>
    %909 = arith.addf %906, %908 : vector<2x128xf32>
    %c0_377 = arith.constant 0 : index
    %c0_378 = arith.constant 0 : index
    %910 = vector.load %arg16[%c0_377, %c0_378] : memref<1x128xf32, #tpu.memory_space<vmem>>, vector<1x128xf32>
    %911 = vector.broadcast %910 : vector<1x128xf32> to vector<2x128xf32>
    %912 = arith.addf %909, %911 : vector<2x128xf32>
    %913 = tpu.iota {dimensions = array<i32: 1>} : vector<2x128xi32>
    %c64_i32 = arith.constant 64 : i32
    %914 = vector.broadcast %c64_i32 : i32 to vector<2x128xi32>
    %915 = arith.cmpi slt, %913, %914 : vector<2x128xi32>
    %cst_379 = arith.constant 0.000000e+00 : f32
    %916 = vector.broadcast %cst_379 : f32 to vector<2x128xf32>
    %917 = arith.maximumf %912, %916 : vector<2x128xf32>
    %918 = math.absf %912 : vector<2x128xf32>
    %cst_380 = arith.constant 0.000000e+00 : f32
    %919 = vector.broadcast %cst_380 : f32 to vector<2x128xf32>
    %920 = arith.subf %919, %918 : vector<2x128xf32>
    %921 = math.exp %920 : vector<2x128xf32>
    %922 = math.log1p %921 : vector<2x128xf32>
    %923 = arith.addf %917, %922 : vector<2x128xf32>
    %924 = arith.select %915, %912, %923 : vector<2x128xi1>, vector<2x128xf32>
    %c0_381 = arith.constant 0 : index
    %c0_382 = arith.constant 0 : index
    %925 = vector.load %arg17[%c0_381, %c0_382] : memref<2x128xf32, #tpu.memory_space<vmem>>, vector<2x128xf32>
    tpu.vector_store %arg17[%c0_381, %c0_382], %924 {strides = array<i32>} : memref<2x128xf32, #tpu.memory_space<vmem>>, vector<2x128xf32>,
    return
  }
}

</mosaic_0001>

<llo_original>
// kernel: plan_recognition_forward.1
$region0: #{plan_recognition_forward.1}
  #allocation0 [shape = 'u32[]', space=smem, size = 0x4, offset = 0x4, fixed_abs, tag = 'smem constant byte address 0x4 - core index']
  #allocation1 [shape = 'u32[144,128]{1,0:T(1,128)}', space=vmem, size = 0x12000, scoped, tag = 'internal scratch']
  #allocation2 [shape = 'f32[16,512]{1,0:T(8,128)}', space=vmem, size = 0x8000, scoped, tag = 'scratch operand']
  #allocation3 [shape = 'f32[16,512]{1,0:T(8,128)}', space=vmem, size = 0x8000, scoped, tag = 'scratch operand']
  #allocation4 [shape = 'f32[16,512]{1,0:T(8,128)}', space=vmem, size = 0x8000, scoped, tag = 'scratch operand']
  #allocation5 [shape = 'f32[16,128]{1,0:T(8,128)}', space=vmem, size = 0x2000, scoped, tag = 'scratch operand']
  #allocation6 [shape = 'f32[16,128]{1,0:T(8,128)}', space=vmem, size = 0x2000, scoped, tag = 'scratch operand']
  %s0 = inlined_call_operand.hbm [shape: f32[16,23], index: 0, kind: input, shape index: {}]
  %s1 = inlined_call_operand.hbm [shape: f32[23,512], index: 1, kind: input, shape index: {}]
  %s2 = inlined_call_operand.hbm [shape: f32[128,512], index: 2, kind: input, shape index: {}]
  %s3 = inlined_call_operand.hbm [shape: f32[1,512], index: 3, kind: input, shape index: {}]
  %s4 = inlined_call_operand.hbm [shape: f32[23,512], index: 4, kind: input, shape index: {}]
  %s5 = inlined_call_operand.hbm [shape: f32[128,512], index: 5, kind: input, shape index: {}]
  %s6 = inlined_call_operand.hbm [shape: f32[1,512], index: 6, kind: input, shape index: {}]
  %s7 = inlined_call_operand.hbm [shape: f32[128,512], index: 7, kind: input, shape index: {}]
  %s8 = inlined_call_operand.hbm [shape: f32[128,512], index: 8, kind: input, shape index: {}]
  %s9 = inlined_call_operand.hbm [shape: f32[128,512], index: 9, kind: input, shape index: {}]
  %s10 = inlined_call_operand.hbm [shape: f32[1,512], index: 10, kind: input, shape index: {}]
  %s11 = inlined_call_operand.hbm [shape: f32[128,512], index: 11, kind: input, shape index: {}]
  %s12 = inlined_call_operand.hbm [shape: f32[128,512], index: 12, kind: input, shape index: {}]
  %s13 = inlined_call_operand.hbm [shape: f32[1,512], index: 13, kind: input, shape index: {}]
  %s14 = inlined_call_operand.hbm [shape: f32[128,128], index: 14, kind: input, shape index: {}]
  %s15 = inlined_call_operand.hbm [shape: f32[128,128], index: 15, kind: input, shape index: {}]
  %s16 = inlined_call_operand.hbm [shape: f32[1,128], index: 16, kind: input, shape index: {}]
  %s17 = inlined_call_operand.hbm [shape: f32[2,128], index: 17, kind: output, shape index: {}]
  %s18 = sld [smem:[#allocation0]]
  $region146: #{plan_recognition_forward.1} parent=0
    _
  %s20 = ssub.s32 1, %s18
  %s21 = scalar_select 0, %s20, %s18
  $region1: #{plan_recognition_forward.1} parent=0
    #allocation7 [shape = 'u8[8192]{0}', space=vmem, size = 0x2000, scoped, tag = 'input window, operand 0, single buffered']
    #allocation8 [shape = 's32[1]{0}', space=sflag, size = 0x4, scoped, tag = 'scoped memory for plan_recognition_forward.1']
    #allocation9 [shape = 's32[1]{0}', space=sflag, size = 0x4, scoped, tag = 'scoped memory for plan_recognition_forward.1']
    #allocation10 [shape = 'u8[49152]{0}', space=vmem, size = 0xc000, scoped, tag = 'input window, operand 1, single buffered']
    #allocation11 [shape = 's32[1]{0}', space=sflag, size = 0x4, scoped, tag = 'scoped memory for plan_recognition_forward.1']
    #allocation12 [shape = 'u8[262144]{0}', space=vmem, size = 0x40000, scoped, tag = 'input window, operand 2, single buffered']
    #allocation13 [shape = 'u8[2048]{0}', space=vmem, size = 0x800, scoped, tag = 'input window, operand 3, single buffered']
    #allocation14 [shape = 's32[1]{0}', space=sflag, size = 0x4, scoped, tag = 'scoped memory for plan_recognition_forward.1']
    #allocation15 [shape = 'u8[49152]{0}', space=vmem, size = 0xc000, scoped, tag = 'input window, operand 4, single buffered']
    #allocation16 [shape = 'u8[262144]{0}', space=vmem, size = 0x40000, scoped, tag = 'input window, operand 5, single buffered']
    #allocation17 [shape = 's32[1]{0}', space=sflag, size = 0x4, scoped, tag = 'scoped memory for plan_recognition_forward.1']
    #allocation18 [shape = 'u8[2048]{0}', space=vmem, size = 0x800, scoped, tag = 'input window, operand 6, single buffered']
    #allocation19 [shape = 'u8[262144]{0}', space=vmem, size = 0x40000, scoped, tag = 'input window, operand 7, single buffered']
    #allocation20 [shape = 's32[1]{0}', space=sflag, size = 0x4, scoped, tag = 'scoped memory for plan_recognition_forward.1']
    #allocation21 [shape = 'u8[262144]{0}', space=vmem, size = 0x40000, scoped, tag = 'input window, operand 8, single buffered']
    #allocation22 [shape = 'u8[262144]{0}', space=vmem, size = 0x40000, scoped, tag = 'input window, operand 9, single buffered']
    #allocation23 [shape = 's32[1]{0}', space=sflag, size = 0x4, scoped, tag = 'scoped memory for plan_recognition_forward.1']
    #allocation24 [shape = 'u8[2048]{0}', space=vmem, size = 0x800, scoped, tag = 'input window, operand 10, single buffered']
    #allocation25 [shape = 'u8[262144]{0}', space=vmem, size = 0x40000, scoped, tag = 'input window, operand 11, single buffered']
    #allocation26 [shape = 's32[1]{0}', space=sflag, size = 0x4, scoped, tag = 'scoped memory for plan_recognition_forward.1']
    #allocation27 [shape = 'u8[262144]{0}', space=vmem, size = 0x40000, scoped, tag = 'input window, operand 12, single buffered']
    #allocation28 [shape = 'u8[2048]{0}', space=vmem, size = 0x800, scoped, tag = 'input window, operand 13, single buffered']
    #allocation29 [shape = 's32[1]{0}', space=sflag, size = 0x4, scoped, tag = 'scoped memory for plan_recognition_forward.1']
    #allocation30 [shape = 'u8[65536]{0}', space=vmem, size = 0x10000, scoped, tag = 'input window, operand 14, single buffered']
    #allocation31 [shape = 'u8[65536]{0}', space=vmem, size = 0x10000, scoped, tag = 'input window, operand 15, single buffered']
    #allocation32 [shape = 's32[1]{0}', space=sflag, size = 0x4, scoped, tag = 'scoped memory for plan_recognition_forward.1']
    #allocation33 [shape = 'u8[512]{0}', space=vmem, size = 0x400, scoped, tag = 'input window, operand 16, single buffered']
    #allocation34 [shape = 'u8[1024]{0}', space=vmem, size = 0x400, scoped, tag = 'output window, operand 0, single buffered']
    %22 = vsyncpa [#allocation8], 0
    %23 = vsyncpa [#allocation11], 0
    %24 = vsyncpa [#allocation14], 0
    %25 = vsyncpa [#allocation17], 0
    %26 = vsyncpa [#allocation20], 0
    %27 = vsyncpa [#allocation23], 0
    %28 = vsyncpa [#allocation26], 0
    %29 = vsyncpa [#allocation29], 0
    %30 = vsyncpa [#allocation32], 0
    %31 = vsyncpa [#allocation9], 0
    // Predicated region
    $region2: #{plan_recognition_forward.1} parent=1 // pred_check
      _
    $region3: #{plan_recognition_forward.1} parent=1 // pred_check_branch
      %33 = sbr.rel (0) target = $region5
    $region4: #{plan_recognition_forward.1} parent=1 // pred_region
      %s35 = ssub.s32 256, 256
      %36 = vsyncadd [#allocation8], %s35
      %s37 = sshll.u32 [#allocation7], 4
      %s38 = int_to_ptr.vmem [resolvable:$true] %s37
      %43 = dma.hbm_to_vmem [thread:$0]  %s0, 256, %s38, [#allocation8], 128, 128, 8
    $region5: #{plan_recognition_forward.1} parent=1 // pred_fallthru
      _
    // Predicated region
    $region6: #{plan_recognition_forward.1} parent=1 // pred_check
      _
    $region7: #{plan_recognition_forward.1} parent=1 // pred_check_branch
      %45 = sbr.rel (0) target = $region9
    $region8: #{plan_recognition_forward.1} parent=1 // pred_region
      %s47 = ssub.s32 1536, 1536
      %48 = vsyncadd [#allocation11], %s47
      %s49 = sshll.u32 [#allocation10], 4
      %s50 = int_to_ptr.vmem [resolvable:$true] %s49
      %55 = dma.hbm_to_vmem [thread:$0]  %s1, 1536, %s50, [#allocation11], 512, 512, 32
    $region9: #{plan_recognition_forward.1} parent=1 // pred_fallthru
      _
    // Predicated region
    $region10: #{plan_recognition_forward.1} parent=1 // pred_check
      _
    $region11: #{plan_recognition_forward.1} parent=1 // pred_check_branch
      %57 = sbr.rel (0) target = $region13
    $region12: #{plan_recognition_forward.1} parent=1 // pred_region
      %s59 = ssub.s32 8192, 8192
      %60 = vsyncadd [#allocation11], %s59
      %s61 = sshll.u32 [#allocation12], 4
      %s62 = int_to_ptr.vmem [resolvable:$true] %s61
      %67 = dma.hbm_to_vmem [thread:$0]  %s2, 8192, %s62, [#allocation11], 512, 512, 32
    $region13: #{plan_recognition_forward.1} parent=1 // pred_fallthru
      _
    // Predicated region
    $region14: #{plan_recognition_forward.1} parent=1 // pred_check
      _
    $region15: #{plan_recognition_forward.1} parent=1 // pred_check_branch
      %69 = sbr.rel (0) target = $region17
    $region16: #{plan_recognition_forward.1} parent=1 // pred_region
      %s71 = ssub.s32 64, 64
      %72 = vsyncadd [#allocation14], %s71
      %s74 = sshll.u32 [#allocation13], 4
      %s75 = int_to_ptr.vmem [resolvable:$true] %s74
      %77 = dma.hbm_to_vmem [thread:$0]  %s3, 64, %s75, [#allocation14]
    $region17: #{plan_recognition_forward.1} parent=1 // pred_fallthru
      _
    // Predicated region
    $region18: #{plan_recognition_forward.1} parent=1 // pred_check
      _
    $region19: #{plan_recognition_forward.1} parent=1 // pred_check_branch
      %79 = sbr.rel (0) target = $region21
    $region20: #{plan_recognition_forward.1} parent=1 // pred_region
      %s81 = ssub.s32 1536, 1536
      %82 = vsyncadd [#allocation14], %s81
      %s83 = sshll.u32 [#allocation15], 4
      %s84 = int_to_ptr.vmem [resolvable:$true] %s83
      %89 = dma.hbm_to_vmem [thread:$0]  %s4, 1536, %s84, [#allocation14], 512, 512, 32
    $region21: #{plan_recognition_forward.1} parent=1 // pred_fallthru
      _
    // Predicated region
    $region22: #{plan_recognition_forward.1} parent=1 // pred_check
      _
    $region23: #{plan_recognition_forward.1} parent=1 // pred_check_branch
      %91 = sbr.rel (0) target = $region25
    $region24: #{plan_recognition_forward.1} parent=1 // pred_region
      %s93 = ssub.s32 8192, 8192
      %94 = vsyncadd [#allocation17], %s93
      %s95 = sshll.u32 [#allocation16], 4
      %s96 = int_to_ptr.vmem [resolvable:$true] %s95
      %101 = dma.hbm_to_vmem [thread:$0]  %s5, 8192, %s96, [#allocation17], 512, 512, 32
    $region25: #{plan_recognition_forward.1} parent=1 // pred_fallthru
      _
    // Predicated region
    $region26: #{plan_recognition_forward.1} parent=1 // pred_check
      _
    $region27: #{plan_recognition_forward.1} parent=1 // pred_check_branch
      %103 = sbr.rel (0) target = $region29
    $region28: #{plan_recognition_forward.1} parent=1 // pred_region
      %s105 = ssub.s32 64, 64
      %106 = vsyncadd [#allocation17], %s105
      %s108 = sshll.u32 [#allocation18], 4
      %s109 = int_to_ptr.vmem [resolvable:$true] %s108
      %111 = dma.hbm_to_vmem [thread:$0]  %s6, 64, %s109, [#allocation17]
    $region29: #{plan_recognition_forward.1} parent=1 // pred_fallthru
      _
    // Predicated region
    $region30: #{plan_recognition_forward.1} parent=1 // pred_check
      _
    $region31: #{plan_recognition_forward.1} parent=1 // pred_check_branch
      %113 = sbr.rel (0) target = $region33
    $region32: #{plan_recognition_forward.1} parent=1 // pred_region
      %s115 = ssub.s32 8192, 8192
      %116 = vsyncadd [#allocation20], %s115
      %s117 = sshll.u32 [#allocation19], 4
      %s118 = int_to_ptr.vmem [resolvable:$true] %s117
      %123 = dma.hbm_to_vmem [thread:$0]  %s7, 8192, %s118, [#allocation20], 512, 512, 32
    $region33: #{plan_recognition_forward.1} parent=1 // pred_fallthru
      _
    // Predicated region
    $region34: #{plan_recognition_forward.1} parent=1 // pred_check
      _
    $region35: #{plan_recognition_forward.1} parent=1 // pred_check_branch
      %125 = sbr.rel (0) target = $region37
    $region36: #{plan_recognition_forward.1} parent=1 // pred_region
      %s127 = ssub.s32 8192, 8192
      %128 = vsyncadd [#allocation20], %s127
      %s129 = sshll.u32 [#allocation21], 4
      %s130 = int_to_ptr.vmem [resolvable:$true] %s129
      %135 = dma.hbm_to_vmem [thread:$0]  %s8, 8192, %s130, [#allocation20], 512, 512, 32
    $region37: #{plan_recognition_forward.1} parent=1 // pred_fallthru
      _
    // Predicated region
    $region38: #{plan_recognition_forward.1} parent=1 // pred_check
      _
    $region39: #{plan_recognition_forward.1} parent=1 // pred_check_branch
      %137 = sbr.rel (0) target = $region41
    $region40: #{plan_recognition_forward.1} parent=1 // pred_region
      %s139 = ssub.s32 8192, 8192
      %140 = vsyncadd [#allocation23], %s139
      %s141 = sshll.u32 [#allocation22], 4
      %s142 = int_to_ptr.vmem [resolvable:$true] %s141
      %147 = dma.hbm_to_vmem [thread:$0]  %s9, 8192, %s142, [#allocation23], 512, 512, 32
    $region41: #{plan_recognition_forward.1} parent=1 // pred_fallthru
      _
    // Predicated region
    $region42: #{plan_recognition_forward.1} parent=1 // pred_check
      _
    $region43: #{plan_recognition_forward.1} parent=1 // pred_check_branch
      %149 = sbr.rel (0) target = $region45
    $region44: #{plan_recognition_forward.1} parent=1 // pred_region
      %s151 = ssub.s32 64, 64
      %152 = vsyncadd [#allocation23], %s151
      %s154 = sshll.u32 [#allocation24], 4
      %s155 = int_to_ptr.vmem [resolvable:$true] %s154
      %157 = dma.hbm_to_vmem [thread:$0]  %s10, 64, %s155, [#allocation23]
    $region45: #{plan_recognition_forward.1} parent=1 // pred_fallthru
      _
    // Predicated region
    $region46: #{plan_recognition_forward.1} parent=1 // pred_check
      _
    $region47: #{plan_recognition_forward.1} parent=1 // pred_check_branch
      %159 = sbr.rel (0) target = $region49
    $region48: #{plan_recognition_forward.1} parent=1 // pred_region
      %s161 = ssub.s32 8192, 8192
      %162 = vsyncadd [#allocation26], %s161
      %s163 = sshll.u32 [#allocation25], 4
      %s164 = int_to_ptr.vmem [resolvable:$true] %s163
      %169 = dma.hbm_to_vmem [thread:$0]  %s11, 8192, %s164, [#allocation26], 512, 512, 32
    $region49: #{plan_recognition_forward.1} parent=1 // pred_fallthru
      _
    // Predicated region
    $region50: #{plan_recognition_forward.1} parent=1 // pred_check
      _
    $region51: #{plan_recognition_forward.1} parent=1 // pred_check_branch
      %171 = sbr.rel (0) target = $region53
    $region52: #{plan_recognition_forward.1} parent=1 // pred_region
      %s173 = ssub.s32 8192, 8192
      %174 = vsyncadd [#allocation26], %s173
      %s175 = sshll.u32 [#allocation27], 4
      %s176 = int_to_ptr.vmem [resolvable:$true] %s175
      %181 = dma.hbm_to_vmem [thread:$0]  %s12, 8192, %s176, [#allocation26], 512, 512, 32
    $region53: #{plan_recognition_forward.1} parent=1 // pred_fallthru
      _
    // Predicated region
    $region54: #{plan_recognition_forward.1} parent=1 // pred_check
      _
    $region55: #{plan_recognition_forward.1} parent=1 // pred_check_branch
      %183 = sbr.rel (0) target = $region57
    $region56: #{plan_recognition_forward.1} parent=1 // pred_region
      %s185 = ssub.s32 64, 64
      %186 = vsyncadd [#allocation29], %s185
      %s188 = sshll.u32 [#allocation28], 4
      %s189 = int_to_ptr.vmem [resolvable:$true] %s188
      %191 = dma.hbm_to_vmem [thread:$0]  %s13, 64, %s189, [#allocation29]
    $region57: #{plan_recognition_forward.1} parent=1 // pred_fallthru
      _
    // Predicated region
    $region58: #{plan_recognition_forward.1} parent=1 // pred_check
      _
    $region59: #{plan_recognition_forward.1} parent=1 // pred_check_branch
      %193 = sbr.rel (0) target = $region61
    $region60: #{plan_recognition_forward.1} parent=1 // pred_region
      %s195 = ssub.s32 2048, 2048
      %196 = vsyncadd [#allocation29], %s195
      %s197 = sshll.u32 [#allocation30], 4
      %s198 = int_to_ptr.vmem [resolvable:$true] %s197
      %203 = dma.hbm_to_vmem [thread:$0]  %s14, 2048, %s198, [#allocation29], 128, 128, 8
    $region61: #{plan_recognition_forward.1} parent=1 // pred_fallthru
      _
    // Predicated region
    $region62: #{plan_recognition_forward.1} parent=1 // pred_check
      _
    $region63: #{plan_recognition_forward.1} parent=1 // pred_check_branch
      %205 = sbr.rel (0) target = $region65
    $region64: #{plan_recognition_forward.1} parent=1 // pred_region
      %s207 = ssub.s32 2048, 2048
      %208 = vsyncadd [#allocation32], %s207
      %s209 = sshll.u32 [#allocation31], 4
      %s210 = int_to_ptr.vmem [resolvable:$true] %s209
      %215 = dma.hbm_to_vmem [thread:$0]  %s15, 2048, %s210, [#allocation32], 128, 128, 8
    $region65: #{plan_recognition_forward.1} parent=1 // pred_fallthru
      _
    // Predicated region
    $region66: #{plan_recognition_forward.1} parent=1 // pred_check
      _
    $region67: #{plan_recognition_forward.1} parent=1 // pred_check_branch
      %217 = sbr.rel (0) target = $region69
    $region68: #{plan_recognition_forward.1} parent=1 // pred_region
      %s219 = ssub.s32 16, 16
      %220 = vsyncadd [#allocation32], %s219
      %s222 = sshll.u32 [#allocation33], 4
      %s223 = int_to_ptr.vmem [resolvable:$true] %s222
      %225 = dma.hbm_to_vmem [thread:$0]  %s16, 16, %s223, [#allocation32]
    $region69: #{plan_recognition_forward.1} parent=1 // pred_fallthru
      _
    // Predicated region
    $region70: #{plan_recognition_forward.1} parent=1 // pred_check
      _
    $region71: #{plan_recognition_forward.1} parent=1 // pred_check_branch
      %227 = sbr.rel (0) target = $region73
    $region72: #{plan_recognition_forward.1} parent=1 // pred_region
      %228 = dma.done [#allocation8], 256
    $region73: #{plan_recognition_forward.1} parent=1 // pred_fallthru
      _
    // Predicated region
    $region74: #{plan_recognition_forward.1} parent=1 // pred_check
      _
    $region75: #{plan_recognition_forward.1} parent=1 // pred_check_branch
      %230 = sbr.rel (0) target = $region77
    $region76: #{plan_recognition_forward.1} parent=1 // pred_region
      %231 = dma.done [#allocation11], 1536
    $region77: #{plan_recognition_forward.1} parent=1 // pred_fallthru
      _
    // Predicated region
    $region78: #{plan_recognition_forward.1} parent=1 // pred_check
      _
    $region79: #{plan_recognition_forward.1} parent=1 // pred_check_branch
      %233 = sbr.rel (0) target = $region81
    $region80: #{plan_recognition_forward.1} parent=1 // pred_region
      %234 = dma.done [#allocation11], 8192
    $region81: #{plan_recognition_forward.1} parent=1 // pred_fallthru
      _
    // Predicated region
    $region82: #{plan_recognition_forward.1} parent=1 // pred_check
      _
    $region83: #{plan_recognition_forward.1} parent=1 // pred_check_branch
      %236 = sbr.rel (0) target = $region85
    $region84: #{plan_recognition_forward.1} parent=1 // pred_region
      %237 = dma.done [#allocation14], 64
    $region85: #{plan_recognition_forward.1} parent=1 // pred_fallthru
      _
    // Predicated region
    $region86: #{plan_recognition_forward.1} parent=1 // pred_check
      _
    $region87: #{plan_recognition_forward.1} parent=1 // pred_check_branch
      %239 = sbr.rel (0) target = $region89
    $region88: #{plan_recognition_forward.1} parent=1 // pred_region
      %240 = dma.done [#allocation14], 1536
    $region89: #{plan_recognition_forward.1} parent=1 // pred_fallthru
      _
    // Predicated region
    $region90: #{plan_recognition_forward.1} parent=1 // pred_check
      _
    $region91: #{plan_recognition_forward.1} parent=1 // pred_check_branch
      %242 = sbr.rel (0) target = $region93
    $region92: #{plan_recognition_forward.1} parent=1 // pred_region
      %243 = dma.done [#allocation17], 8192
    $region93: #{plan_recognition_forward.1} parent=1 // pred_fallthru
      _
    // Predicated region
    $region94: #{plan_recognition_forward.1} parent=1 // pred_check
      _
    $region95: #{plan_recognition_forward.1} parent=1 // pred_check_branch
      %245 = sbr.rel (0) target = $region97
    $region96: #{plan_recognition_forward.1} parent=1 // pred_region
      %246 = dma.done [#allocation17], 64
    $region97: #{plan_recognition_forward.1} parent=1 // pred_fallthru
      _
    // Predicated region
    $region98: #{plan_recognition_forward.1} parent=1 // pred_check
      _
    $region99: #{plan_recognition_forward.1} parent=1 // pred_check_branch
      %248 = sbr.rel (0) target = $region101
    $region100: #{plan_recognition_forward.1} parent=1 // pred_region
      %249 = dma.done [#allocation20], 8192
    $region101: #{plan_recognition_forward.1} parent=1 // pred_fallthru
      _
    // Predicated region
    $region102: #{plan_recognition_forward.1} parent=1 // pred_check
      _
    $region103: #{plan_recognition_forward.1} parent=1 // pred_check_branch
      %251 = sbr.rel (0) target = $region105
    $region104: #{plan_recognition_forward.1} parent=1 // pred_region
      %252 = dma.done [#allocation20], 8192
    $region105: #{plan_recognition_forward.1} parent=1 // pred_fallthru
      _
    // Predicated region
    $region106: #{plan_recognition_forward.1} parent=1 // pred_check
      _
    $region107: #{plan_recognition_forward.1} parent=1 // pred_check_branch
      %254 = sbr.rel (0) target = $region109
    $region108: #{plan_recognition_forward.1} parent=1 // pred_region
      %255 = dma.done [#allocation23], 8192
    $region109: #{plan_recognition_forward.1} parent=1 // pred_fallthru
      _
    // Predicated region
    $region110: #{plan_recognition_forward.1} parent=1 // pred_check
      _
    $region111: #{plan_recognition_forward.1} parent=1 // pred_check_branch
      %257 = sbr.rel (0) target = $region113
    $region112: #{plan_recognition_forward.1} parent=1 // pred_region
      %258 = dma.done [#allocation23], 64
    $region113: #{plan_recognition_forward.1} parent=1 // pred_fallthru
      _
    // Predicated region
    $region114: #{plan_recognition_forward.1} parent=1 // pred_check
      _
    $region115: #{plan_recognition_forward.1} parent=1 // pred_check_branch
      %260 = sbr.rel (0) target = $region117
    $region116: #{plan_recognition_forward.1} parent=1 // pred_region
      %261 = dma.done [#allocation26], 8192
    $region117: #{plan_recognition_forward.1} parent=1 // pred_fallthru
      _
    // Predicated region
    $region118: #{plan_recognition_forward.1} parent=1 // pred_check
      _
    $region119: #{plan_recognition_forward.1} parent=1 // pred_check_branch
      %263 = sbr.rel (0) target = $region121
    $region120: #{plan_recognition_forward.1} parent=1 // pred_region
      %264 = dma.done [#allocation26], 8192
    $region121: #{plan_recognition_forward.1} parent=1 // pred_fallthru
      _
    // Predicated region
    $region122: #{plan_recognition_forward.1} parent=1 // pred_check
      _
    $region123: #{plan_recognition_forward.1} parent=1 // pred_check_branch
      %266 = sbr.rel (0) target = $region125
    $region124: #{plan_recognition_forward.1} parent=1 // pred_region
      %267 = dma.done [#allocation29], 64
    $region125: #{plan_recognition_forward.1} parent=1 // pred_fallthru
      _
    // Predicated region
    $region126: #{plan_recognition_forward.1} parent=1 // pred_check
      _
    $region127: #{plan_recognition_forward.1} parent=1 // pred_check_branch
      %269 = sbr.rel (0) target = $region129
    $region128: #{plan_recognition_forward.1} parent=1 // pred_region
      %270 = dma.done [#allocation29], 2048
    $region129: #{plan_recognition_forward.1} parent=1 // pred_fallthru
      _
    // Predicated region
    $region130: #{plan_recognition_forward.1} parent=1 // pred_check
      _
    $region131: #{plan_recognition_forward.1} parent=1 // pred_check_branch
      %272 = sbr.rel (0) target = $region133
    $region132: #{plan_recognition_forward.1} parent=1 // pred_region
      %273 = dma.done [#allocation32], 2048
    $region133: #{plan_recognition_forward.1} parent=1 // pred_fallthru
      _
    // Predicated region
    $region134: #{plan_recognition_forward.1} parent=1 // pred_check
      _
    $region135: #{plan_recognition_forward.1} parent=1 // pred_check_branch
      %275 = sbr.rel (0) target = $region137
    $region136: #{plan_recognition_forward.1} parent=1 // pred_region
      %276 = dma.done [#allocation32], 16
    $region137: #{plan_recognition_forward.1} parent=1 // pred_fallthru
      _
    %v277 = vld [vmem:[#allocation7] sm:$0xff]
    %v278 = vld [vmem:[#allocation7 + $0x8] sm:$0xff]
    %v279 = vld [vmem:[#allocation10] sm:$0xff]
    %v280 = vld [vmem:[#allocation10 + $0x8] sm:$0xff]
    %v281 = vld [vmem:[#allocation10 + $0x10] sm:$0xff]
    %v282 = vld [vmem:[#allocation10 + $0x18] sm:$0xff]
    %v283 = vld [vmem:[#allocation10 + $0x20] sm:$0xff]
    %v284 = vld [vmem:[#allocation10 + $0x28] sm:$0xff]
    %v285 = vld [vmem:[#allocation10 + $0x30] sm:$0xff]
    %v286 = vld [vmem:[#allocation10 + $0x38] sm:$0xff]
    %v287 = vld [vmem:[#allocation10 + $0x40] sm:$0x7f]
    %v288 = vld [vmem:[#allocation10 + $0x48] sm:$0x7f]
    %v289 = vld [vmem:[#allocation10 + $0x50] sm:$0x7f]
    %v290 = vld [vmem:[#allocation10 + $0x58] sm:$0x7f]
    %v291 = vld [vmem:[#allocation13] sm:$0xf]
    %v293 = vlaneseq
    %v294 = vshrl.u32 %v293, 7
    %v295 = vsub.s32 0, %v294
    %v296 = vrot.slane %v291, %v295
    %v297 = vlaneseq
    %v298 = vshrl.u32 %v297, 7
    %v299 = vsub.s32 1, %v298
    %v300 = vrot.slane %v291, %v299
    %v301 = vlaneseq
    %v302 = vshrl.u32 %v301, 7
    %v303 = vsub.s32 2, %v302
    %v304 = vrot.slane %v291, %v303
    %v305 = vlaneseq
    %v306 = vshrl.u32 %v305, 7
    %v307 = vsub.s32 3, %v306
    %v308 = vrot.slane %v291, %v307
    %vm313 = vcmask 187392
    %v315 = vsel %vm313, %v277, 0
    %v318 = vsel %vm313, %v278, 0
    %vm320 = vcmask 1046528
    %v322 = vsel %vm320, %v287, 0
    %v325 = vsel %vm320, %v288, 0
    %v328 = vsel %vm320, %v289, 0
    %v331 = vsel %vm320, %v290, 0
    %333 = vmatprep.subr.mxu0 %v280
    %334 = vmatpush1.msra.mxu0 %v279
    %335 = vmatprep.subr.mxu0 %v284
    %336 = vmatpush1.msra.mxu0 %v283
    %337 = vmatprep.subr.mxu0 %v325
    %338 = vmatpush1.msra.mxu0 %v322
    %339 = vmatprep.subr.mxu0 0.0
    %340 = vmatpush1.msra.mxu0 0.0
    %341 = vmatprep.subr.mxu0 0.0
    %342 = vmatpush1.msra.mxu0 0.0
    %343 = vmatprep.subr.mxu0 0.0
    %344 = vmatpush1.msra.mxu0 0.0
    %345 = vmatprep.subr.mxu0 0.0
    %346 = vmatpush1.msra.mxu0 0.0
    %347 = vmatprep.subr.mxu0 0.0
    %348 = vmatpush1.msra.mxu0 0.0
    %349 = vmatprep.subr.mxu0 0.0
    %350 = vmatpush1.msra.mxu0 0.0
    %351 = vmatprep.subr.mxu0 0.0
    %352 = vmatpush1.msra.mxu0 0.0
    %353 = vmatprep.subr.mxu0 0.0
    %354 = vmatpush1.msra.mxu0 0.0
    %355 = vmatprep.subr.mxu0 0.0
    %356 = vmatpush1.msra.mxu0 0.0
    %357 = vmatprep.subr.mxu0 0.0
    %358 = vmatpush1.msra.mxu0 0.0
    %359 = vmatprep.subr.mxu0 0.0
    %360 = vmatpush1.msra.mxu0 0.0
    %361 = vmatprep.subr.mxu0 0.0
    %362 = vmatpush1.msra.mxu0 0.0
    %363 = vmatprep.subr.mxu0 0.0
    %364 = vmatpush1.msra.mxu0 0.0
    %365 = vmatprep.subr.mxu0 0.0
    %366 = vmatpush1.msra.mxu0 0.0
    %367 = vmatprep.subr.mxu0 0.0
    %368 = vmatpush1.msra.mxu0 0.0
    %369 = vmatprep.subr.mxu0 0.0
    %370 = vmatpush1.msra.mxu0 0.0
    %371 = vmatprep.subr.mxu0 0.0
    %372 = vmatpush1.msra.mxu0 0.0
    %373 = vmatprep.subr.mxu0 0.0
    %374 = vmatpush1.msra.mxu0 0.0
    %375 = vmatprep.subr.mxu0 0.0
    %376 = vmatpush1.msra.mxu0 0.0
    %377 = vmatprep.subr.mxu0 0.0
    %378 = vmatpush1.msra.mxu0 0.0
    %379 = vmatprep.subr.mxu0 0.0
    %380 = vmatpush1.msra.mxu0 0.0
    %381 = vmatprep.subr.mxu0 0.0
    %382 = vmatpush1.msra.mxu0 0.0
    %383 = vmatprep.subr.mxu0 0.0
    %384 = vmatpush1.msra.mxu0 0.0
    %385 = vmatprep.subr.mxu0 0.0
    %386 = vmatpush1.msra.mxu0 0.0
    %387 = vmatprep.subr.mxu0 0.0
    %388 = vmatpush1.msra.mxu0 0.0
    %389 = vmatprep.subr.mxu0 0.0
    %390 = vmatpush1.msra.mxu0 0.0
    %391 = vmatprep.subr.mxu0 0.0
    %392 = vmatpush1.msra.mxu0 0.0
    %393 = vmatprep.subr.mxu0 0.0
    %394 = vmatpush1.msra.mxu0 0.0
    %395 = vmatprep.subr.mxu0 0.0
    %396 = vmatpush1.msra.mxu0 0.0
    %397 = vmatprep.mubr.f32.mxu0 0.0
    %398 = vmatmul.mubr.f32.gmra.mrb[0].mxu0 %v315
    %v399 = vpop.f32.mrb[0].mxu0
    %v400 = vadd.f32 %v296, %v399
    %v401 = vpop.f32.mrb[0].mxu0
    %v402 = vadd.f32 %v300, %v401
    %403 = vmatprep.mubr.f32.mxu0 0.0
    %404 = vmatmul.mubr.f32.gmra.mrb[0].mxu0 %v318
    %v405 = vpop.f32.mrb[0].mxu0
    %v406 = vadd.f32 %v296, %v405
    %v407 = vpop.f32.mrb[0].mxu0
    %v408 = vadd.f32 %v300, %v407
    %409 = vdwg.mxu0
    %410 = vmatprep.subr.mxu0 %v282
    %411 = vmatpush1.msra.mxu0 %v281
    %412 = vmatprep.subr.mxu0 %v286
    %413 = vmatpush1.msra.mxu0 %v285
    %414 = vmatprep.subr.mxu0 %v331
    %415 = vmatpush1.msra.mxu0 %v328
    %416 = vmatprep.subr.mxu0 0.0
    %417 = vmatpush1.msra.mxu0 0.0
    %418 = vmatprep.subr.mxu0 0.0
    %419 = vmatpush1.msra.mxu0 0.0
    %420 = vmatprep.subr.mxu0 0.0
    %421 = vmatpush1.msra.mxu0 0.0
    %422 = vmatprep.subr.mxu0 0.0
    %423 = vmatpush1.msra.mxu0 0.0
    %424 = vmatprep.subr.mxu0 0.0
    %425 = vmatpush1.msra.mxu0 0.0
    %426 = vmatprep.subr.mxu0 0.0
    %427 = vmatpush1.msra.mxu0 0.0
    %428 = vmatprep.subr.mxu0 0.0
    %429 = vmatpush1.msra.mxu0 0.0
    %430 = vmatprep.subr.mxu0 0.0
    %431 = vmatpush1.msra.mxu0 0.0
    %432 = vmatprep.subr.mxu0 0.0
    %433 = vmatpush1.msra.mxu0 0.0
    %434 = vmatprep.subr.mxu0 0.0
    %435 = vmatpush1.msra.mxu0 0.0
    %436 = vmatprep.subr.mxu0 0.0
    %437 = vmatpush1.msra.mxu0 0.0
    %438 = vmatprep.subr.mxu0 0.0
    %439 = vmatpush1.msra.mxu0 0.0
    %440 = vmatprep.subr.mxu0 0.0
    %441 = vmatpush1.msra.mxu0 0.0
    %442 = vmatprep.subr.mxu0 0.0
    %443 = vmatpush1.msra.mxu0 0.0
    %444 = vmatprep.subr.mxu0 0.0
    %445 = vmatpush1.msra.mxu0 0.0
    %446 = vmatprep.subr.mxu0 0.0
    %447 = vmatpush1.msra.mxu0 0.0
    %448 = vmatprep.subr.mxu0 0.0
    %449 = vmatpush1.msra.mxu0 0.0
    %450 = vmatprep.subr.mxu0 0.0
    %451 = vmatpush1.msra.mxu0 0.0
    %452 = vmatprep.subr.mxu0 0.0
    %453 = vmatpush1.msra.mxu0 0.0
    %454 = vmatprep.subr.mxu0 0.0
    %455 = vmatpush1.msra.mxu0 0.0
    %456 = vmatprep.subr.mxu0 0.0
    %457 = vmatpush1.msra.mxu0 0.0
    %458 = vmatprep.subr.mxu0 0.0
    %459 = vmatpush1.msra.mxu0 0.0
    %460 = vmatprep.subr.mxu0 0.0
    %461 = vmatpush1.msra.mxu0 0.0
    %462 = vmatprep.subr.mxu0 0.0
    %463 = vmatpush1.msra.mxu0 0.0
    %464 = vmatprep.subr.mxu0 0.0
    %465 = vmatpush1.msra.mxu0 0.0
    %466 = vmatprep.subr.mxu0 0.0
    %467 = vmatpush1.msra.mxu0 0.0
    %468 = vmatprep.subr.mxu0 0.0
    %469 = vmatpush1.msra.mxu0 0.0
    %470 = vmatprep.subr.mxu0 0.0
    %471 = vmatpush1.msra.mxu0 0.0
    %472 = vmatprep.subr.mxu0 0.0
    %473 = vmatpush1.msra.mxu0 0.0
    %474 = vmatprep.mubr.f32.mxu0 0.0
    %475 = vmatmul.mubr.f32.gmra.mrb[0].mxu0 %v315
    %v476 = vpop.f32.mrb[0].mxu0
    %v477 = vadd.f32 %v304, %v476
    %v478 = vpop.f32.mrb[0].mxu0
    %v479 = vadd.f32 %v308, %v478
    %480 = vmatprep.mubr.f32.mxu0 0.0
    %481 = vmatmul.mubr.f32.gmra.mrb[0].mxu0 %v318
    %v482 = vpop.f32.mrb[0].mxu0
    %v483 = vadd.f32 %v304, %v482
    %v484 = vpop.f32.mrb[0].mxu0
    %v485 = vadd.f32 %v308, %v484
    %486 = vdwg.mxu0
    %487 = vst [vmem:[#allocation2] sm:$0xff] %v400
    %488 = vst [vmem:[#allocation2 + $0x8] sm:$0xff] %v402
    %489 = vst [vmem:[#allocation2 + $0x10] sm:$0xff] %v477
    %490 = vst [vmem:[#allocation2 + $0x18] sm:$0xff] %v479
    %491 = vst [vmem:[#allocation2 + $0x20] sm:$0xff] %v406
    %492 = vst [vmem:[#allocation2 + $0x28] sm:$0xff] %v408
    %493 = vst [vmem:[#allocation2 + $0x30] sm:$0xff] %v483
    %494 = vst [vmem:[#allocation2 + $0x38] sm:$0xff] %v485
    %v495 = vld [vmem:[#allocation15] sm:$0xff]
    %v496 = vld [vmem:[#allocation15 + $0x8] sm:$0xff]
    %v497 = vld [vmem:[#allocation15 + $0x10] sm:$0xff]
    %v498 = vld [vmem:[#allocation15 + $0x18] sm:$0xff]
    %v499 = vld [vmem:[#allocation15 + $0x20] sm:$0xff]
    %v500 = vld [vmem:[#allocation15 + $0x28] sm:$0xff]
    %v501 = vld [vmem:[#allocation15 + $0x30] sm:$0xff]
    %v502 = vld [vmem:[#allocation15 + $0x38] sm:$0xff]
    %v503 = vld [vmem:[#allocation15 + $0x40] sm:$0x7f]
    %v504 = vld [vmem:[#allocation15 + $0x48] sm:$0x7f]
    %v505 = vld [vmem:[#allocation15 + $0x50] sm:$0x7f]
    %v506 = vld [vmem:[#allocation15 + $0x58] sm:$0x7f]
    %v507 = vld [vmem:[#allocation18] sm:$0xf]
    %v509 = vlaneseq
    %v510 = vshrl.u32 %v509, 7
    %v511 = vsub.s32 0, %v510
    %v512 = vrot.slane %v507, %v511
    %v513 = vlaneseq
    %v514 = vshrl.u32 %v513, 7
    %v515 = vsub.s32 1, %v514
    %v516 = vrot.slane %v507, %v515
    %v517 = vlaneseq
    %v518 = vshrl.u32 %v517, 7
    %v519 = vsub.s32 2, %v518
    %v520 = vrot.slane %v507, %v519
    %v521 = vlaneseq
    %v522 = vshrl.u32 %v521, 7
    %v523 = vsub.s32 3, %v522
    %v524 = vrot.slane %v507, %v523
    %v530 = vsel %vm320, %v503, 0
    %v533 = vsel %vm320, %v504, 0
    %v536 = vsel %vm320, %v505, 0
    %v539 = vsel %vm320, %v506, 0
    %541 = vmatprep.subr.mxu0 %v496
    %542 = vmatpush1.msra.mxu0 %v495
    %543 = vmatprep.subr.mxu0 %v500
    %544 = vmatpush1.msra.mxu0 %v499
    %545 = vmatprep.subr.mxu0 %v533
    %546 = vmatpush1.msra.mxu0 %v530
    %547 = vmatprep.subr.mxu0 0.0
    %548 = vmatpush1.msra.mxu0 0.0
    %549 = vmatprep.subr.mxu0 0.0
    %550 = vmatpush1.msra.mxu0 0.0
    %551 = vmatprep.subr.mxu0 0.0
    %552 = vmatpush1.msra.mxu0 0.0
    %553 = vmatprep.subr.mxu0 0.0
    %554 = vmatpush1.msra.mxu0 0.0
    %555 = vmatprep.subr.mxu0 0.0
    %556 = vmatpush1.msra.mxu0 0.0
    %557 = vmatprep.subr.mxu0 0.0
    %558 = vmatpush1.msra.mxu0 0.0
    %559 = vmatprep.subr.mxu0 0.0
    %560 = vmatpush1.msra.mxu0 0.0
    %561 = vmatprep.subr.mxu0 0.0
    %562 = vmatpush1.msra.mxu0 0.0
    %563 = vmatprep.subr.mxu0 0.0
    %564 = vmatpush1.msra.mxu0 0.0
    %565 = vmatprep.subr.mxu0 0.0
    %566 = vmatpush1.msra.mxu0 0.0
    %567 = vmatprep.subr.mxu0 0.0
    %568 = vmatpush1.msra.mxu0 0.0
    %569 = vmatprep.subr.mxu0 0.0
    %570 = vmatpush1.msra.mxu0 0.0
    %571 = vmatprep.subr.mxu0 0.0
    %572 = vmatpush1.msra.mxu0 0.0
    %573 = vmatprep.subr.mxu0 0.0
    %574 = vmatpush1.msra.mxu0 0.0
    %575 = vmatprep.subr.mxu0 0.0
    %576 = vmatpush1.msra.mxu0 0.0
    %577 = vmatprep.subr.mxu0 0.0
    %578 = vmatpush1.msra.mxu0 0.0
    %579 = vmatprep.subr.mxu0 0.0
    %580 = vmatpush1.msra.mxu0 0.0
    %581 = vmatprep.subr.mxu0 0.0
    %582 = vmatpush1.msra.mxu0 0.0
    %583 = vmatprep.subr.mxu0 0.0
    %584 = vmatpush1.msra.mxu0 0.0
    %585 = vmatprep.subr.mxu0 0.0
    %586 = vmatpush1.msra.mxu0 0.0
    %587 = vmatprep.subr.mxu0 0.0
    %588 = vmatpush1.msra.mxu0 0.0
    %589 = vmatprep.subr.mxu0 0.0
    %590 = vmatpush1.msra.mxu0 0.0
    %591 = vmatprep.subr.mxu0 0.0
    %592 = vmatpush1.msra.mxu0 0.0
    %593 = vmatprep.subr.mxu0 0.0
    %594 = vmatpush1.msra.mxu0 0.0
    %595 = vmatprep.subr.mxu0 0.0
    %596 = vmatpush1.msra.mxu0 0.0
    %597 = vmatprep.subr.mxu0 0.0
    %598 = vmatpush1.msra.mxu0 0.0
    %599 = vmatprep.subr.mxu0 0.0
    %600 = vmatpush1.msra.mxu0 0.0
    %601 = vmatprep.subr.mxu0 0.0
    %602 = vmatpush1.msra.mxu0 0.0
    %603 = vmatprep.subr.mxu0 0.0
    %604 = vmatpush1.msra.mxu0 0.0
    %605 = vmatprep.mubr.f32.mxu0 0.0
    %606 = vmatmul.mubr.f32.gmra.mrb[0].mxu0 %v315
    %v607 = vpop.f32.mrb[0].mxu0
    %v608 = vadd.f32 %v512, %v607
    %v609 = vpop.f32.mrb[0].mxu0
    %v610 = vadd.f32 %v516, %v609
    %611 = vmatprep.mubr.f32.mxu0 0.0
    %612 = vmatmul.mubr.f32.gmra.mrb[0].mxu0 %v318
    %v613 = vpop.f32.mrb[0].mxu0
    %v614 = vadd.f32 %v512, %v613
    %v615 = vpop.f32.mrb[0].mxu0
    %v616 = vadd.f32 %v516, %v615
    %617 = vdwg.mxu0
    %618 = vmatprep.subr.mxu0 %v498
    %619 = vmatpush1.msra.mxu0 %v497
    %620 = vmatprep.subr.mxu0 %v502
    %621 = vmatpush1.msra.mxu0 %v501
    %622 = vmatprep.subr.mxu0 %v539
    %623 = vmatpush1.msra.mxu0 %v536
    %624 = vmatprep.subr.mxu0 0.0
    %625 = vmatpush1.msra.mxu0 0.0
    %626 = vmatprep.subr.mxu0 0.0
    %627 = vmatpush1.msra.mxu0 0.0
    %628 = vmatprep.subr.mxu0 0.0
    %629 = vmatpush1.msra.mxu0 0.0
    %630 = vmatprep.subr.mxu0 0.0
    %631 = vmatpush1.msra.mxu0 0.0
    %632 = vmatprep.subr.mxu0 0.0
    %633 = vmatpush1.msra.mxu0 0.0
    %634 = vmatprep.subr.mxu0 0.0
    %635 = vmatpush1.msra.mxu0 0.0
    %636 = vmatprep.subr.mxu0 0.0
    %637 = vmatpush1.msra.mxu0 0.0
    %638 = vmatprep.subr.mxu0 0.0
    %639 = vmatpush1.msra.mxu0 0.0
    %640 = vmatprep.subr.mxu0 0.0
    %641 = vmatpush1.msra.mxu0 0.0
    %642 = vmatprep.subr.mxu0 0.0
    %643 = vmatpush1.msra.mxu0 0.0
    %644 = vmatprep.subr.mxu0 0.0
    %645 = vmatpush1.msra.mxu0 0.0
    %646 = vmatprep.subr.mxu0 0.0
    %647 = vmatpush1.msra.mxu0 0.0
    %648 = vmatprep.subr.mxu0 0.0
    %649 = vmatpush1.msra.mxu0 0.0
    %650 = vmatprep.subr.mxu0 0.0
    %651 = vmatpush1.msra.mxu0 0.0
    %652 = vmatprep.subr.mxu0 0.0
    %653 = vmatpush1.msra.mxu0 0.0
    %654 = vmatprep.subr.mxu0 0.0
    %655 = vmatpush1.msra.mxu0 0.0
    %656 = vmatprep.subr.mxu0 0.0
    %657 = vmatpush1.msra.mxu0 0.0
    %658 = vmatprep.subr.mxu0 0.0
    %659 = vmatpush1.msra.mxu0 0.0
    %660 = vmatprep.subr.mxu0 0.0
    %661 = vmatpush1.msra.mxu0 0.0
    %662 = vmatprep.subr.mxu0 0.0
    %663 = vmatpush1.msra.mxu0 0.0
    %664 = vmatprep.subr.mxu0 0.0
    %665 = vmatpush1.msra.mxu0 0.0
    %666 = vmatprep.subr.mxu0 0.0
    %667 = vmatpush1.msra.mxu0 0.0
    %668 = vmatprep.subr.mxu0 0.0
    %669 = vmatpush1.msra.mxu0 0.0
    %670 = vmatprep.subr.mxu0 0.0
    %671 = vmatpush1.msra.mxu0 0.0
    %672 = vmatprep.subr.mxu0 0.0
    %673 = vmatpush1.msra.mxu0 0.0
    %674 = vmatprep.subr.mxu0 0.0
    %675 = vmatpush1.msra.mxu0 0.0
    %676 = vmatprep.subr.mxu0 0.0
    %677 = vmatpush1.msra.mxu0 0.0
    %678 = vmatprep.subr.mxu0 0.0
    %679 = vmatpush1.msra.mxu0 0.0
    %680 = vmatprep.subr.mxu0 0.0
    %681 = vmatpush1.msra.mxu0 0.0
    %682 = vmatprep.mubr.f32.mxu0 0.0
    %683 = vmatmul.mubr.f32.gmra.mrb[0].mxu0 %v315
    %v684 = vpop.f32.mrb[0].mxu0
    %v685 = vadd.f32 %v520, %v684
    %v686 = vpop.f32.mrb[0].mxu0
    %v687 = vadd.f32 %v524, %v686
    %688 = vmatprep.mubr.f32.mxu0 0.0
    %689 = vmatmul.mubr.f32.gmra.mrb[0].mxu0 %v318
    %v690 = vpop.f32.mrb[0].mxu0
    %v691 = vadd.f32 %v520, %v690
    %v692 = vpop.f32.mrb[0].mxu0
    %v693 = vadd.f32 %v524, %v692
    %694 = vdwg.mxu0
    %695 = vst [vmem:[#allocation3] sm:$0xff] %v608
    %696 = vst [vmem:[#allocation3 + $0x8] sm:$0xff] %v610
    %697 = vst [vmem:[#allocation3 + $0x10] sm:$0xff] %v685
    %698 = vst [vmem:[#allocation3 + $0x18] sm:$0xff] %v687
    %699 = vst [vmem:[#allocation3 + $0x20] sm:$0xff] %v614
    %700 = vst [vmem:[#allocation3 + $0x28] sm:$0xff] %v616
    %701 = vst [vmem:[#allocation3 + $0x30] sm:$0xff] %v691
    %702 = vst [vmem:[#allocation3 + $0x38] sm:$0xff] %v693
    %v703 = vld [vmem:[#allocation12] sm:$0xff]
    %v704 = vld [vmem:[#allocation12 + $0x8] sm:$0xff]
    %v705 = vld [vmem:[#allocation12 + $0x10] sm:$0xff]
    %v706 = vld [vmem:[#allocation12 + $0x18] sm:$0xff]
    %v707 = vld [vmem:[#allocation12 + $0x20] sm:$0xff]
    %v708 = vld [vmem:[#allocation12 + $0x28] sm:$0xff]
    %v709 = vld [vmem:[#allocation12 + $0x30] sm:$0xff]
    %v710 = vld [vmem:[#allocation12 + $0x38] sm:$0xff]
    %v711 = vld [vmem:[#allocation12 + $0x40] sm:$0xff]
    %v712 = vld [vmem:[#allocation12 + $0x48] sm:$0xff]
    %v713 = vld [vmem:[#allocation12 + $0x50] sm:$0xff]
    %v714 = vld [vmem:[#allocation12 + $0x58] sm:$0xff]
    %v715 = vld [vmem:[#allocation12 + $0x60] sm:$0xff]
    %v716 = vld [vmem:[#allocation12 + $0x68] sm:$0xff]
    %v717 = vld [vmem:[#allocation12 + $0x70] sm:$0xff]
    %v718 = vld [vmem:[#allocation12 + $0x78] sm:$0xff]
    %v719 = vld [vmem:[#allocation12 + $0x80] sm:$0xff]
    %v720 = vld [vmem:[#allocation12 + $0x88] sm:$0xff]
    %v721 = vld [vmem:[#allocation12 + $0x90] sm:$0xff]
    %v722 = vld [vmem:[#allocation12 + $0x98] sm:$0xff]
    %v723 = vld [vmem:[#allocation12 + $0xa0] sm:$0xff]
    %v724 = vld [vmem:[#allocation12 + $0xa8] sm:$0xff]
    %v725 = vld [vmem:[#allocation12 + $0xb0] sm:$0xff]
    %v726 = vld [vmem:[#allocation12 + $0xb8] sm:$0xff]
    %v727 = vld [vmem:[#allocation12 + $0xc0] sm:$0xff]
    %v728 = vld [vmem:[#allocation12 + $0xc8] sm:$0xff]
    %v729 = vld [vmem:[#allocation12 + $0xd0] sm:$0xff]
    %v730 = vld [vmem:[#allocation12 + $0xd8] sm:$0xff]
    %v731 = vld [vmem:[#allocation12 + $0xe0] sm:$0xff]
    %v732 = vld [vmem:[#allocation12 + $0xe8] sm:$0xff]
    %v733 = vld [vmem:[#allocation12 + $0xf0] sm:$0xff]
    %v734 = vld [vmem:[#allocation12 + $0xf8] sm:$0xff]
    %v735 = vld [vmem:[#allocation12 + $0x100] sm:$0xff]
    %v736 = vld [vmem:[#allocation12 + $0x108] sm:$0xff]
    %v737 = vld [vmem:[#allocation12 + $0x110] sm:$0xff]
    %v738 = vld [vmem:[#allocation12 + $0x118] sm:$0xff]
    %v739 = vld [vmem:[#allocation12 + $0x120] sm:$0xff]
    %v740 = vld [vmem:[#allocation12 + $0x128] sm:$0xff]
    %v741 = vld [vmem:[#allocation12 + $0x130] sm:$0xff]
    %v742 = vld [vmem:[#allocation12 + $0x138] sm:$0xff]
    %v743 = vld [vmem:[#allocation12 + $0x140] sm:$0xff]
    %v744 = vld [vmem:[#allocation12 + $0x148] sm:$0xff]
    %v745 = vld [vmem:[#allocation12 + $0x150] sm:$0xff]
    %v746 = vld [vmem:[#allocation12 + $0x158] sm:$0xff]
    %v747 = vld [vmem:[#allocation12 + $0x160] sm:$0xff]
    %v748 = vld [vmem:[#allocation12 + $0x168] sm:$0xff]
    %v749 = vld [vmem:[#allocation12 + $0x170] sm:$0xff]
    %v750 = vld [vmem:[#allocation12 + $0x178] sm:$0xff]
    %v751 = vld [vmem:[#allocation12 + $0x180] sm:$0xff]
    %v752 = vld [vmem:[#allocation12 + $0x188] sm:$0xff]
    %v753 = vld [vmem:[#allocation12 + $0x190] sm:$0xff]
    %v754 = vld [vmem:[#allocation12 + $0x198] sm:$0xff]
    %v755 = vld [vmem:[#allocation12 + $0x1a0] sm:$0xff]
    %v756 = vld [vmem:[#allocation12 + $0x1a8] sm:$0xff]
    %v757 = vld [vmem:[#allocation12 + $0x1b0] sm:$0xff]
    %v758 = vld [vmem:[#allocation12 + $0x1b8] sm:$0xff]
    %v759 = vld [vmem:[#allocation12 + $0x1c0] sm:$0xff]
    %v760 = vld [vmem:[#allocation12 + $0x1c8] sm:$0xff]
    %v761 = vld [vmem:[#allocation12 + $0x1d0] sm:$0xff]
    %v762 = vld [vmem:[#allocation12 + $0x1d8] sm:$0xff]
    %v763 = vld [vmem:[#allocation12 + $0x1e0] sm:$0xff]
    %v764 = vld [vmem:[#allocation12 + $0x1e8] sm:$0xff]
    %v765 = vld [vmem:[#allocation12 + $0x1f0] sm:$0xff]
    %v766 = vld [vmem:[#allocation12 + $0x1f8] sm:$0xff]
    %v767 = vld [vmem:[#allocation16] sm:$0xff]
    %v768 = vld [vmem:[#allocation16 + $0x8] sm:$0xff]
    %v769 = vld [vmem:[#allocation16 + $0x10] sm:$0xff]
    %v770 = vld [vmem:[#allocation16 + $0x18] sm:$0xff]
    %v771 = vld [vmem:[#allocation16 + $0x20] sm:$0xff]
    %v772 = vld [vmem:[#allocation16 + $0x28] sm:$0xff]
    %v773 = vld [vmem:[#allocation16 + $0x30] sm:$0xff]
    %v774 = vld [vmem:[#allocation16 + $0x38] sm:$0xff]
    %v775 = vld [vmem:[#allocation16 + $0x40] sm:$0xff]
    %v776 = vld [vmem:[#allocation16 + $0x48] sm:$0xff]
    %v777 = vld [vmem:[#allocation16 + $0x50] sm:$0xff]
    %v778 = vld [vmem:[#allocation16 + $0x58] sm:$0xff]
    %v779 = vld [vmem:[#allocation16 + $0x60] sm:$0xff]
    %v780 = vld [vmem:[#allocation16 + $0x68] sm:$0xff]
    %v781 = vld [vmem:[#allocation16 + $0x70] sm:$0xff]
    %v782 = vld [vmem:[#allocation16 + $0x78] sm:$0xff]
    %v783 = vld [vmem:[#allocation16 + $0x80] sm:$0xff]
    %v784 = vld [vmem:[#allocation16 + $0x88] sm:$0xff]
    %v785 = vld [vmem:[#allocation16 + $0x90] sm:$0xff]
    %v786 = vld [vmem:[#allocation16 + $0x98] sm:$0xff]
    %v787 = vld [vmem:[#allocation16 + $0xa0] sm:$0xff]
    %v788 = vld [vmem:[#allocation16 + $0xa8] sm:$0xff]
    %v789 = vld [vmem:[#allocation16 + $0xb0] sm:$0xff]
    %v790 = vld [vmem:[#allocation16 + $0xb8] sm:$0xff]
    %v791 = vld [vmem:[#allocation16 + $0xc0] sm:$0xff]
    %v792 = vld [vmem:[#allocation16 + $0xc8] sm:$0xff]
    %v793 = vld [vmem:[#allocation16 + $0xd0] sm:$0xff]
    %v794 = vld [vmem:[#allocation16 + $0xd8] sm:$0xff]
    %v795 = vld [vmem:[#allocation16 + $0xe0] sm:$0xff]
    %v796 = vld [vmem:[#allocation16 + $0xe8] sm:$0xff]
    %v797 = vld [vmem:[#allocation16 + $0xf0] sm:$0xff]
    %v798 = vld [vmem:[#allocation16 + $0xf8] sm:$0xff]
    %v799 = vld [vmem:[#allocation16 + $0x100] sm:$0xff]
    %v800 = vld [vmem:[#allocation16 + $0x108] sm:$0xff]
    %v801 = vld [vmem:[#allocation16 + $0x110] sm:$0xff]
    %v802 = vld [vmem:[#allocation16 + $0x118] sm:$0xff]
    %v803 = vld [vmem:[#allocation16 + $0x120] sm:$0xff]
    %v804 = vld [vmem:[#allocation16 + $0x128] sm:$0xff]
    %v805 = vld [vmem:[#allocation16 + $0x130] sm:$0xff]
    %v806 = vld [vmem:[#allocation16 + $0x138] sm:$0xff]
    %v807 = vld [vmem:[#allocation16 + $0x140] sm:$0xff]
    %v808 = vld [vmem:[#allocation16 + $0x148] sm:$0xff]
    %v809 = vld [vmem:[#allocation16 + $0x150] sm:$0xff]
    %v810 = vld [vmem:[#allocation16 + $0x158] sm:$0xff]
    %v811 = vld [vmem:[#allocation16 + $0x160] sm:$0xff]
    %v812 = vld [vmem:[#allocation16 + $0x168] sm:$0xff]
    %v813 = vld [vmem:[#allocation16 + $0x170] sm:$0xff]
    %v814 = vld [vmem:[#allocation16 + $0x178] sm:$0xff]
    %v815 = vld [vmem:[#allocation16 + $0x180] sm:$0xff]
    %v816 = vld [vmem:[#allocation16 + $0x188] sm:$0xff]
    %v817 = vld [vmem:[#allocation16 + $0x190] sm:$0xff]
    %v818 = vld [vmem:[#allocation16 + $0x198] sm:$0xff]
    %v819 = vld [vmem:[#allocation16 + $0x1a0] sm:$0xff]
    %v820 = vld [vmem:[#allocation16 + $0x1a8] sm:$0xff]
    %v821 = vld [vmem:[#allocation16 + $0x1b0] sm:$0xff]
    %v822 = vld [vmem:[#allocation16 + $0x1b8] sm:$0xff]
    %v823 = vld [vmem:[#allocation16 + $0x1c0] sm:$0xff]
    %v824 = vld [vmem:[#allocation16 + $0x1c8] sm:$0xff]
    %v825 = vld [vmem:[#allocation16 + $0x1d0] sm:$0xff]
    %v826 = vld [vmem:[#allocation16 + $0x1d8] sm:$0xff]
    %v827 = vld [vmem:[#allocation16 + $0x1e0] sm:$0xff]
    %v828 = vld [vmem:[#allocation16 + $0x1e8] sm:$0xff]
    %v829 = vld [vmem:[#allocation16 + $0x1f0] sm:$0xff]
    %v830 = vld [vmem:[#allocation16 + $0x1f8] sm:$0xff]
    %v831 = vld [vmem:[#allocation2] sm:$0x3]
    %v832 = vld [vmem:[#allocation2 + $0x8] sm:$0x3]
    %v833 = vld [vmem:[#allocation2 + $0x10] sm:$0x3]
    %v834 = vld [vmem:[#allocation2 + $0x18] sm:$0x3]
    %835 = vmatprep.subr.mxu0 %v704
    %836 = vmatpush1.msra.mxu0 %v703
    %837 = vmatprep.subr.mxu0 %v708
    %838 = vmatpush1.msra.mxu0 %v707
    %839 = vmatprep.subr.mxu0 %v712
    %840 = vmatpush1.msra.mxu0 %v711
    %841 = vmatprep.subr.mxu0 %v716
    %842 = vmatpush1.msra.mxu0 %v715
    %843 = vmatprep.subr.mxu0 %v720
    %844 = vmatpush1.msra.mxu0 %v719
    %845 = vmatprep.subr.mxu0 %v724
    %846 = vmatpush1.msra.mxu0 %v723
    %847 = vmatprep.subr.mxu0 %v728
    %848 = vmatpush1.msra.mxu0 %v727
    %849 = vmatprep.subr.mxu0 %v732
    %850 = vmatpush1.msra.mxu0 %v731
    %851 = vmatprep.subr.mxu0 %v736
    %852 = vmatpush1.msra.mxu0 %v735
    %853 = vmatprep.subr.mxu0 %v740
    %854 = vmatpush1.msra.mxu0 %v739
    %855 = vmatprep.subr.mxu0 %v744
    %856 = vmatpush1.msra.mxu0 %v743
    %857 = vmatprep.subr.mxu0 %v748
    %858 = vmatpush1.msra.mxu0 %v747
    %859 = vmatprep.subr.mxu0 %v752
    %860 = vmatpush1.msra.mxu0 %v751
    %861 = vmatprep.subr.mxu0 %v756
    %862 = vmatpush1.msra.mxu0 %v755
    %863 = vmatprep.subr.mxu0 %v760
    %864 = vmatpush1.msra.mxu0 %v759
    %865 = vmatprep.subr.mxu0 %v764
    %866 = vmatpush1.msra.mxu0 %v763
    %867 = vmatprep.subr.mxu0 0.0
    %868 = vmatpush1.msra.mxu0 0.0
    %869 = vmatprep.subr.mxu0 0.0
    %870 = vmatpush1.msra.mxu0 0.0
    %871 = vmatprep.subr.mxu0 0.0
    %872 = vmatpush1.msra.mxu0 0.0
    %873 = vmatprep.subr.mxu0 0.0
    %874 = vmatpush1.msra.mxu0 0.0
    %875 = vmatprep.subr.mxu0 0.0
    %876 = vmatpush1.msra.mxu0 0.0
    %877 = vmatprep.subr.mxu0 0.0
    %878 = vmatpush1.msra.mxu0 0.0
    %879 = vmatprep.subr.mxu0 0.0
    %880 = vmatpush1.msra.mxu0 0.0
    %881 = vmatprep.subr.mxu0 0.0
    %882 = vmatpush1.msra.mxu0 0.0
    %883 = vmatprep.subr.mxu0 0.0
    %884 = vmatpush1.msra.mxu0 0.0
    %885 = vmatprep.subr.mxu0 0.0
    %886 = vmatpush1.msra.mxu0 0.0
    %887 = vmatprep.subr.mxu0 0.0
    %888 = vmatpush1.msra.mxu0 0.0
    %889 = vmatprep.subr.mxu0 0.0
    %890 = vmatpush1.msra.mxu0 0.0
    %891 = vmatprep.subr.mxu0 0.0
    %892 = vmatpush1.msra.mxu0 0.0
    %893 = vmatprep.subr.mxu0 0.0
    %894 = vmatpush1.msra.mxu0 0.0
    %895 = vmatprep.subr.mxu0 0.0
    %896 = vmatpush1.msra.mxu0 0.0
    %897 = vmatprep.subr.mxu0 0.0
    %898 = vmatpush1.msra.mxu0 0.0
    %899 = vmatprep.mubr.f32.mxu0 0.0
    %900 = vmatmul.mubr.f32.gmra.mrb[0].mxu0 0.0
    %v901 = vpop.f32.mrb[0].mxu0
    %v902 = vadd.f32 0.0, %v901
    %v903 = vpop.f32.mrb[0].mxu0
    %v904 = vadd.f32 0.0, %v903
    %905 = vdwg.mxu0
    %906 = vmatprep.subr.mxu0 %v706
    %907 = vmatpush1.msra.mxu0 %v705
    %908 = vmatprep.subr.mxu0 %v710
    %909 = vmatpush1.msra.mxu0 %v709
    %910 = vmatprep.subr.mxu0 %v714
    %911 = vmatpush1.msra.mxu0 %v713
    %912 = vmatprep.subr.mxu0 %v718
    %913 = vmatpush1.msra.mxu0 %v717
    %914 = vmatprep.subr.mxu0 %v722
    %915 = vmatpush1.msra.mxu0 %v721
    %916 = vmatprep.subr.mxu0 %v726
    %917 = vmatpush1.msra.mxu0 %v725
    %918 = vmatprep.subr.mxu0 %v730
    %919 = vmatpush1.msra.mxu0 %v729
    %920 = vmatprep.subr.mxu0 %v734
    %921 = vmatpush1.msra.mxu0 %v733
    %922 = vmatprep.subr.mxu0 %v738
    %923 = vmatpush1.msra.mxu0 %v737
    %924 = vmatprep.subr.mxu0 %v742
    %925 = vmatpush1.msra.mxu0 %v741
    %926 = vmatprep.subr.mxu0 %v746
    %927 = vmatpush1.msra.mxu0 %v745
    %928 = vmatprep.subr.mxu0 %v750
    %929 = vmatpush1.msra.mxu0 %v749
    %930 = vmatprep.subr.mxu0 %v754
    %931 = vmatpush1.msra.mxu0 %v753
    %932 = vmatprep.subr.mxu0 %v758
    %933 = vmatpush1.msra.mxu0 %v757
    %934 = vmatprep.subr.mxu0 %v762
    %935 = vmatpush1.msra.mxu0 %v761
    %936 = vmatprep.subr.mxu0 %v766
    %937 = vmatpush1.msra.mxu0 %v765
    %938 = vmatprep.subr.mxu0 0.0
    %939 = vmatpush1.msra.mxu0 0.0
    %940 = vmatprep.subr.mxu0 0.0
    %941 = vmatpush1.msra.mxu0 0.0
    %942 = vmatprep.subr.mxu0 0.0
    %943 = vmatpush1.msra.mxu0 0.0
    %944 = vmatprep.subr.mxu0 0.0
    %945 = vmatpush1.msra.mxu0 0.0
    %946 = vmatprep.subr.mxu0 0.0
    %947 = vmatpush1.msra.mxu0 0.0
    %948 = vmatprep.subr.mxu0 0.0
    %949 = vmatpush1.msra.mxu0 0.0
    %950 = vmatprep.subr.mxu0 0.0
    %951 = vmatpush1.msra.mxu0 0.0
    %952 = vmatprep.subr.mxu0 0.0
    %953 = vmatpush1.msra.mxu0 0.0
    %954 = vmatprep.subr.mxu0 0.0
    %955 = vmatpush1.msra.mxu0 0.0
    %956 = vmatprep.subr.mxu0 0.0
    %957 = vmatpush1.msra.mxu0 0.0
    %958 = vmatprep.subr.mxu0 0.0
    %959 = vmatpush1.msra.mxu0 0.0
    %960 = vmatprep.subr.mxu0 0.0
    %961 = vmatpush1.msra.mxu0 0.0
    %962 = vmatprep.subr.mxu0 0.0
    %963 = vmatpush1.msra.mxu0 0.0
    %964 = vmatprep.subr.mxu0 0.0
    %965 = vmatpush1.msra.mxu0 0.0
    %966 = vmatprep.subr.mxu0 0.0
    %967 = vmatpush1.msra.mxu0 0.0
    %968 = vmatprep.subr.mxu0 0.0
    %969 = vmatpush1.msra.mxu0 0.0
    %970 = vmatprep.mubr.f32.mxu0 0.0
    %971 = vmatmul.mubr.f32.gmra.mrb[0].mxu0 0.0
    %v972 = vpop.f32.mrb[0].mxu0
    %v973 = vadd.f32 0.0, %v972
    %v974 = vpop.f32.mrb[0].mxu0
    %v975 = vadd.f32 0.0, %v974
    %976 = vdwg.mxu0
    %v977 = vadd.f32 %v831, %v902
    %v978 = vadd.f32 %v832, %v904
    %v979 = vadd.f32 %v833, %v973
    %v980 = vadd.f32 %v834, %v975
    %v981 = vsub.f32 0.0, %v977
    %v982 = vmul.f32 %v981, 1.442695
    %v983 = vpow.pop %v982
    %v984 = vadd.f32 %v983, 1.0
    %v985 = vrcp.pop %v984
    %v986 = vmul.f32 1.0, %v985
    %v987 = vsub.f32 0.0, %v978
    %v988 = vmul.f32 %v987, 1.442695
    %v989 = vpow.pop %v988
    %v990 = vadd.f32 %v989, 1.0
    %v991 = vrcp.pop %v990
    %v992 = vmul.f32 1.0, %v991
    %v993 = vtanh.pop %v979
    %v994 = vsub.f32 0.0, %v980
    %v995 = vmul.f32 %v994, 1.442695
    %v996 = vpow.pop %v995
    %v997 = vadd.f32 %v996, 1.0
    %v998 = vrcp.pop %v997
    %v999 = vmul.f32 1.0, %v998
    %v1000 = vmul.f32 %v992, 0.0
    %v1001 = vmul.f32 %v986, %v993
    %v1002 = vadd.f32 %v1000, %v1001
    %v1003 = vtanh.pop %v1002
    %v1004 = vmul.f32 %v999, %v1003
    %1005 = vst [vmem:[#allocation5] sm:$0x3] %v1004
    %v1006 = vld [vmem:[#allocation2] sm:$0xc]
    %v1007 = vld [vmem:[#allocation2 + $0x8] sm:$0xc]
    %v1008 = vld [vmem:[#allocation2 + $0x10] sm:$0xc]
    %v1009 = vld [vmem:[#allocation2 + $0x18] sm:$0xc]
    %1010 = vmatprep.subr.mxu0 %v704
    %1011 = vmatpush1.msra.mxu0 %v703
    %1012 = vmatprep.subr.mxu0 %v708
    %1013 = vmatpush1.msra.mxu0 %v707
    %1014 = vmatprep.subr.mxu0 %v712
    %1015 = vmatpush1.msra.mxu0 %v711
    %1016 = vmatprep.subr.mxu0 %v716
    %1017 = vmatpush1.msra.mxu0 %v715
    %1018 = vmatprep.subr.mxu0 %v720
    %1019 = vmatpush1.msra.mxu0 %v719
    %1020 = vmatprep.subr.mxu0 %v724
    %1021 = vmatpush1.msra.mxu0 %v723
    %1022 = vmatprep.subr.mxu0 %v728
    %1023 = vmatpush1.msra.mxu0 %v727
    %1024 = vmatprep.subr.mxu0 %v732
    %1025 = vmatpush1.msra.mxu0 %v731
    %1026 = vmatprep.subr.mxu0 %v736
    %1027 = vmatpush1.msra.mxu0 %v735
    %1028 = vmatprep.subr.mxu0 %v740
    %1029 = vmatpush1.msra.mxu0 %v739
    %1030 = vmatprep.subr.mxu0 %v744
    %1031 = vmatpush1.msra.mxu0 %v743
    %1032 = vmatprep.subr.mxu0 %v748
    %1033 = vmatpush1.msra.mxu0 %v747
    %1034 = vmatprep.subr.mxu0 %v752
    %1035 = vmatpush1.msra.mxu0 %v751
    %1036 = vmatprep.subr.mxu0 %v756
    %1037 = vmatpush1.msra.mxu0 %v755
    %1038 = vmatprep.subr.mxu0 %v760
    %1039 = vmatpush1.msra.mxu0 %v759
    %1040 = vmatprep.subr.mxu0 %v764
    %1041 = vmatpush1.msra.mxu0 %v763
    %1042 = vmatprep.subr.mxu0 0.0
    %1043 = vmatpush1.msra.mxu0 0.0
    %1044 = vmatprep.subr.mxu0 0.0
    %1045 = vmatpush1.msra.mxu0 0.0
    %1046 = vmatprep.subr.mxu0 0.0
    %1047 = vmatpush1.msra.mxu0 0.0
    %1048 = vmatprep.subr.mxu0 0.0
    %1049 = vmatpush1.msra.mxu0 0.0
    %1050 = vmatprep.subr.mxu0 0.0
    %1051 = vmatpush1.msra.mxu0 0.0
    %1052 = vmatprep.subr.mxu0 0.0
    %1053 = vmatpush1.msra.mxu0 0.0
    %1054 = vmatprep.subr.mxu0 0.0
    %1055 = vmatpush1.msra.mxu0 0.0
    %1056 = vmatprep.subr.mxu0 0.0
    %1057 = vmatpush1.msra.mxu0 0.0
    %1058 = vmatprep.subr.mxu0 0.0
    %1059 = vmatpush1.msra.mxu0 0.0
    %1060 = vmatprep.subr.mxu0 0.0
    %1061 = vmatpush1.msra.mxu0 0.0
    %1062 = vmatprep.subr.mxu0 0.0
    %1063 = vmatpush1.msra.mxu0 0.0
    %1064 = vmatprep.subr.mxu0 0.0
    %1065 = vmatpush1.msra.mxu0 0.0
    %1066 = vmatprep.subr.mxu0 0.0
    %1067 = vmatpush1.msra.mxu0 0.0
    %1068 = vmatprep.subr.mxu0 0.0
    %1069 = vmatpush1.msra.mxu0 0.0
    %1070 = vmatprep.subr.mxu0 0.0
    %1071 = vmatpush1.msra.mxu0 0.0
    %1072 = vmatprep.subr.mxu0 0.0
    %1073 = vmatpush1.msra.mxu0 0.0
    %1074 = vmatprep.mubr.f32.mxu0 0.0
    %1075 = vmatmul.mubr.f32.gmra.mrb[0].mxu0 %v1004
    %v1076 = vpop.f32.mrb[0].mxu0
    %v1077 = vadd.f32 0.0, %v1076
    %v1078 = vpop.f32.mrb[0].mxu0
    %v1079 = vadd.f32 0.0, %v1078
    %1080 = vdwg.mxu0
    %1081 = vmatprep.subr.mxu0 %v706
    %1082 = vmatpush1.msra.mxu0 %v705
    %1083 = vmatprep.subr.mxu0 %v710
    %1084 = vmatpush1.msra.mxu0 %v709
    %1085 = vmatprep.subr.mxu0 %v714
    %1086 = vmatpush1.msra.mxu0 %v713
    %1087 = vmatprep.subr.mxu0 %v718
    %1088 = vmatpush1.msra.mxu0 %v717
    %1089 = vmatprep.subr.mxu0 %v722
    %1090 = vmatpush1.msra.mxu0 %v721
    %1091 = vmatprep.subr.mxu0 %v726
    %1092 = vmatpush1.msra.mxu0 %v725
    %1093 = vmatprep.subr.mxu0 %v730
    %1094 = vmatpush1.msra.mxu0 %v729
    %1095 = vmatprep.subr.mxu0 %v734
    %1096 = vmatpush1.msra.mxu0 %v733
    %1097 = vmatprep.subr.mxu0 %v738
    %1098 = vmatpush1.msra.mxu0 %v737
    %1099 = vmatprep.subr.mxu0 %v742
    %1100 = vmatpush1.msra.mxu0 %v741
    %1101 = vmatprep.subr.mxu0 %v746
    %1102 = vmatpush1.msra.mxu0 %v745
    %1103 = vmatprep.subr.mxu0 %v750
    %1104 = vmatpush1.msra.mxu0 %v749
    %1105 = vmatprep.subr.mxu0 %v754
    %1106 = vmatpush1.msra.mxu0 %v753
    %1107 = vmatprep.subr.mxu0 %v758
    %1108 = vmatpush1.msra.mxu0 %v757
    %1109 = vmatprep.subr.mxu0 %v762
    %1110 = vmatpush1.msra.mxu0 %v761
    %1111 = vmatprep.subr.mxu0 %v766
    %1112 = vmatpush1.msra.mxu0 %v765
    %1113 = vmatprep.subr.mxu0 0.0
    %1114 = vmatpush1.msra.mxu0 0.0
    %1115 = vmatprep.subr.mxu0 0.0
    %1116 = vmatpush1.msra.mxu0 0.0
    %1117 = vmatprep.subr.mxu0 0.0
    %1118 = vmatpush1.msra.mxu0 0.0
    %1119 = vmatprep.subr.mxu0 0.0
    %1120 = vmatpush1.msra.mxu0 0.0
    %1121 = vmatprep.subr.mxu0 0.0
    %1122 = vmatpush1.msra.mxu0 0.0
    %1123 = vmatprep.subr.mxu0 0.0
    %1124 = vmatpush1.msra.mxu0 0.0
    %1125 = vmatprep.subr.mxu0 0.0
    %1126 = vmatpush1.msra.mxu0 0.0
    %1127 = vmatprep.subr.mxu0 0.0
    %1128 = vmatpush1.msra.mxu0 0.0
    %1129 = vmatprep.subr.mxu0 0.0
    %1130 = vmatpush1.msra.mxu0 0.0
    %1131 = vmatprep.subr.mxu0 0.0
    %1132 = vmatpush1.msra.mxu0 0.0
    %1133 = vmatprep.subr.mxu0 0.0
    %1134 = vmatpush1.msra.mxu0 0.0
    %1135 = vmatprep.subr.mxu0 0.0
    %1136 = vmatpush1.msra.mxu0 0.0
    %1137 = vmatprep.subr.mxu0 0.0
    %1138 = vmatpush1.msra.mxu0 0.0
    %1139 = vmatprep.subr.mxu0 0.0
    %1140 = vmatpush1.msra.mxu0 0.0
    %1141 = vmatprep.subr.mxu0 0.0
    %1142 = vmatpush1.msra.mxu0 0.0
    %1143 = vmatprep.subr.mxu0 0.0
    %1144 = vmatpush1.msra.mxu0 0.0
    %1145 = vmatprep.mubr.f32.mxu0 0.0
    %1146 = vmatmul.mubr.f32.gmra.mrb[0].mxu0 %v1004
    %v1147 = vpop.f32.mrb[0].mxu0
    %v1148 = vadd.f32 0.0, %v1147
    %v1149 = vpop.f32.mrb[0].mxu0
    %v1150 = vadd.f32 0.0, %v1149
    %1151 = vdwg.mxu0
    %v1156 = vrot.slane %v1077, 6
    %v1157 = vrot.slane %v1079, 6
    %v1158 = vrot.slane %v1148, 6
    %v1159 = vrot.slane %v1150, 6
    %v1164 = vadd.f32 %v1006, %v1156
    %v1165 = vadd.f32 %v1007, %v1157
    %v1166 = vadd.f32 %v1008, %v1158
    %v1167 = vadd.f32 %v1009, %v1159
    %v1168 = vsub.f32 0.0, %v1164
    %v1169 = vmul.f32 %v1168, 1.442695
    %v1170 = vpow.pop %v1169
    %v1171 = vadd.f32 %v1170, 1.0
    %v1172 = vrcp.pop %v1171
    %v1173 = vmul.f32 1.0, %v1172
    %v1174 = vsub.f32 0.0, %v1165
    %v1175 = vmul.f32 %v1174, 1.442695
    %v1176 = vpow.pop %v1175
    %v1177 = vadd.f32 %v1176, 1.0
    %v1178 = vrcp.pop %v1177
    %v1179 = vmul.f32 1.0, %v1178
    %v1180 = vtanh.pop %v1166
    %v1181 = vsub.f32 0.0, %v1167
    %v1182 = vmul.f32 %v1181, 1.442695
    %v1183 = vpow.pop %v1182
    %v1184 = vadd.f32 %v1183, 1.0
    %v1185 = vrcp.pop %v1184
    %v1186 = vmul.f32 1.0, %v1185
    %v1188 = vrot.slane %v1002, 6
    %v1190 = vmul.f32 %v1179, %v1188
    %v1191 = vmul.f32 %v1173, %v1180
    %v1192 = vadd.f32 %v1190, %v1191
    %v1193 = vtanh.pop %v1192
    %v1194 = vmul.f32 %v1186, %v1193
    %1195 = vst [vmem:[#allocation5] sm:$0xc] %v1194
    %v1196 = vld [vmem:[#allocation2] sm:$0x30]
    %v1197 = vld [vmem:[#allocation2 + $0x8] sm:$0x30]
    %v1198 = vld [vmem:[#allocation2 + $0x10] sm:$0x30]
    %v1199 = vld [vmem:[#allocation2 + $0x18] sm:$0x30]
    %v1201 = vrot.slane %v1194, 2
    %1203 = vmatprep.subr.mxu0 %v704
    %1204 = vmatpush1.msra.mxu0 %v703
    %1205 = vmatprep.subr.mxu0 %v708
    %1206 = vmatpush1.msra.mxu0 %v707
    %1207 = vmatprep.subr.mxu0 %v712
    %1208 = vmatpush1.msra.mxu0 %v711
    %1209 = vmatprep.subr.mxu0 %v716
    %1210 = vmatpush1.msra.mxu0 %v715
    %1211 = vmatprep.subr.mxu0 %v720
    %1212 = vmatpush1.msra.mxu0 %v719
    %1213 = vmatprep.subr.mxu0 %v724
    %1214 = vmatpush1.msra.mxu0 %v723
    %1215 = vmatprep.subr.mxu0 %v728
    %1216 = vmatpush1.msra.mxu0 %v727
    %1217 = vmatprep.subr.mxu0 %v732
    %1218 = vmatpush1.msra.mxu0 %v731
    %1219 = vmatprep.subr.mxu0 %v736
    %1220 = vmatpush1.msra.mxu0 %v735
    %1221 = vmatprep.subr.mxu0 %v740
    %1222 = vmatpush1.msra.mxu0 %v739
    %1223 = vmatprep.subr.mxu0 %v744
    %1224 = vmatpush1.msra.mxu0 %v743
    %1225 = vmatprep.subr.mxu0 %v748
    %1226 = vmatpush1.msra.mxu0 %v747
    %1227 = vmatprep.subr.mxu0 %v752
    %1228 = vmatpush1.msra.mxu0 %v751
    %1229 = vmatprep.subr.mxu0 %v756
    %1230 = vmatpush1.msra.mxu0 %v755
    %1231 = vmatprep.subr.mxu0 %v760
    %1232 = vmatpush1.msra.mxu0 %v759
    %1233 = vmatprep.subr.mxu0 %v764
    %1234 = vmatpush1.msra.mxu0 %v763
    %1235 = vmatprep.subr.mxu0 0.0
    %1236 = vmatpush1.msra.mxu0 0.0
    %1237 = vmatprep.subr.mxu0 0.0
    %1238 = vmatpush1.msra.mxu0 0.0
    %1239 = vmatprep.subr.mxu0 0.0
    %1240 = vmatpush1.msra.mxu0 0.0
    %1241 = vmatprep.subr.mxu0 0.0
    %1242 = vmatpush1.msra.mxu0 0.0
    %1243 = vmatprep.subr.mxu0 0.0
    %1244 = vmatpush1.msra.mxu0 0.0
    %1245 = vmatprep.subr.mxu0 0.0
    %1246 = vmatpush1.msra.mxu0 0.0
    %1247 = vmatprep.subr.mxu0 0.0
    %1248 = vmatpush1.msra.mxu0 0.0
    %1249 = vmatprep.subr.mxu0 0.0
    %1250 = vmatpush1.msra.mxu0 0.0
    %1251 = vmatprep.subr.mxu0 0.0
    %1252 = vmatpush1.msra.mxu0 0.0
    %1253 = vmatprep.subr.mxu0 0.0
    %1254 = vmatpush1.msra.mxu0 0.0
    %1255 = vmatprep.subr.mxu0 0.0
    %1256 = vmatpush1.msra.mxu0 0.0
    %1257 = vmatprep.subr.mxu0 0.0
    %1258 = vmatpush1.msra.mxu0 0.0
    %1259 = vmatprep.subr.mxu0 0.0
    %1260 = vmatpush1.msra.mxu0 0.0
    %1261 = vmatprep.subr.mxu0 0.0
    %1262 = vmatpush1.msra.mxu0 0.0
    %1263 = vmatprep.subr.mxu0 0.0
    %1264 = vmatpush1.msra.mxu0 0.0
    %1265 = vmatprep.subr.mxu0 0.0
    %1266 = vmatpush1.msra.mxu0 0.0
    %1267 = vmatprep.mubr.f32.mxu0 0.0
    %1268 = vmatmul.mubr.f32.gmra.mrb[0].mxu0 %v1201
    %v1269 = vpop.f32.mrb[0].mxu0
    %v1270 = vadd.f32 0.0, %v1269
    %v1271 = vpop.f32.mrb[0].mxu0
    %v1272 = vadd.f32 0.0, %v1271
    %1273 = vdwg.mxu0
    %1274 = vmatprep.subr.mxu0 %v706
    %1275 = vmatpush1.msra.mxu0 %v705
    %1276 = vmatprep.subr.mxu0 %v710
    %1277 = vmatpush1.msra.mxu0 %v709
    %1278 = vmatprep.subr.mxu0 %v714
    %1279 = vmatpush1.msra.mxu0 %v713
    %1280 = vmatprep.subr.mxu0 %v718
    %1281 = vmatpush1.msra.mxu0 %v717
    %1282 = vmatprep.subr.mxu0 %v722
    %1283 = vmatpush1.msra.mxu0 %v721
    %1284 = vmatprep.subr.mxu0 %v726
    %1285 = vmatpush1.msra.mxu0 %v725
    %1286 = vmatprep.subr.mxu0 %v730
    %1287 = vmatpush1.msra.mxu0 %v729
    %1288 = vmatprep.subr.mxu0 %v734
    %1289 = vmatpush1.msra.mxu0 %v733
    %1290 = vmatprep.subr.mxu0 %v738
    %1291 = vmatpush1.msra.mxu0 %v737
    %1292 = vmatprep.subr.mxu0 %v742
    %1293 = vmatpush1.msra.mxu0 %v741
    %1294 = vmatprep.subr.mxu0 %v746
    %1295 = vmatpush1.msra.mxu0 %v745
    %1296 = vmatprep.subr.mxu0 %v750
    %1297 = vmatpush1.msra.mxu0 %v749
    %1298 = vmatprep.subr.mxu0 %v754
    %1299 = vmatpush1.msra.mxu0 %v753
    %1300 = vmatprep.subr.mxu0 %v758
    %1301 = vmatpush1.msra.mxu0 %v757
    %1302 = vmatprep.subr.mxu0 %v762
    %1303 = vmatpush1.msra.mxu0 %v761
    %1304 = vmatprep.subr.mxu0 %v766
    %1305 = vmatpush1.msra.mxu0 %v765
    %1306 = vmatprep.subr.mxu0 0.0
    %1307 = vmatpush1.msra.mxu0 0.0
    %1308 = vmatprep.subr.mxu0 0.0
    %1309 = vmatpush1.msra.mxu0 0.0
    %1310 = vmatprep.subr.mxu0 0.0
    %1311 = vmatpush1.msra.mxu0 0.0
    %1312 = vmatprep.subr.mxu0 0.0
    %1313 = vmatpush1.msra.mxu0 0.0
    %1314 = vmatprep.subr.mxu0 0.0
    %1315 = vmatpush1.msra.mxu0 0.0
    %1316 = vmatprep.subr.mxu0 0.0
    %1317 = vmatpush1.msra.mxu0 0.0
    %1318 = vmatprep.subr.mxu0 0.0
    %1319 = vmatpush1.msra.mxu0 0.0
    %1320 = vmatprep.subr.mxu0 0.0
    %1321 = vmatpush1.msra.mxu0 0.0
    %1322 = vmatprep.subr.mxu0 0.0
    %1323 = vmatpush1.msra.mxu0 0.0
    %1324 = vmatprep.subr.mxu0 0.0
    %1325 = vmatpush1.msra.mxu0 0.0
    %1326 = vmatprep.subr.mxu0 0.0
    %1327 = vmatpush1.msra.mxu0 0.0
    %1328 = vmatprep.subr.mxu0 0.0
    %1329 = vmatpush1.msra.mxu0 0.0
    %1330 = vmatprep.subr.mxu0 0.0
    %1331 = vmatpush1.msra.mxu0 0.0
    %1332 = vmatprep.subr.mxu0 0.0
    %1333 = vmatpush1.msra.mxu0 0.0
    %1334 = vmatprep.subr.mxu0 0.0
    %1335 = vmatpush1.msra.mxu0 0.0
    %1336 = vmatprep.subr.mxu0 0.0
    %1337 = vmatpush1.msra.mxu0 0.0
    %1338 = vmatprep.mubr.f32.mxu0 0.0
    %1339 = vmatmul.mubr.f32.gmra.mrb[0].mxu0 %v1201
    %v1340 = vpop.f32.mrb[0].mxu0
    %v1341 = vadd.f32 0.0, %v1340
    %v1342 = vpop.f32.mrb[0].mxu0
    %v1343 = vadd.f32 0.0, %v1342
    %1344 = vdwg.mxu0
    %v1349 = vrot.slane %v1270, 4
    %v1350 = vrot.slane %v1272, 4
    %v1351 = vrot.slane %v1341, 4
    %v1352 = vrot.slane %v1343, 4
    %v1357 = vadd.f32 %v1196, %v1349
    %v1358 = vadd.f32 %v1197, %v1350
    %v1359 = vadd.f32 %v1198, %v1351
    %v1360 = vadd.f32 %v1199, %v1352
    %v1361 = vsub.f32 0.0, %v1357
    %v1362 = vmul.f32 %v1361, 1.442695
    %v1363 = vpow.pop %v1362
    %v1364 = vadd.f32 %v1363, 1.0
    %v1365 = vrcp.pop %v1364
    %v1366 = vmul.f32 1.0, %v1365
    %v1367 = vsub.f32 0.0, %v1358
    %v1368 = vmul.f32 %v1367, 1.442695
    %v1369 = vpow.pop %v1368
    %v1370 = vadd.f32 %v1369, 1.0
    %v1371 = vrcp.pop %v1370
    %v1372 = vmul.f32 1.0, %v1371
    %v1373 = vtanh.pop %v1359
    %v1374 = vsub.f32 0.0, %v1360
    %v1375 = vmul.f32 %v1374, 1.442695
    %v1376 = vpow.pop %v1375
    %v1377 = vadd.f32 %v1376, 1.0
    %v1378 = vrcp.pop %v1377
    %v1379 = vmul.f32 1.0, %v1378
    %v1381 = vrot.slane %v1192, 6
    %v1383 = vmul.f32 %v1372, %v1381
    %v1384 = vmul.f32 %v1366, %v1373
    %v1385 = vadd.f32 %v1383, %v1384
    %v1386 = vtanh.pop %v1385
    %v1387 = vmul.f32 %v1379, %v1386
    %1388 = vst [vmem:[#allocation5] sm:$0x30] %v1387
    %v1389 = vld [vmem:[#allocation2] sm:$0xc0]
    %v1390 = vld [vmem:[#allocation2 + $0x8] sm:$0xc0]
    %v1391 = vld [vmem:[#allocation2 + $0x10] sm:$0xc0]
    %v1392 = vld [vmem:[#allocation2 + $0x18] sm:$0xc0]
    %v1394 = vrot.slane %v1387, 4
    %1396 = vmatprep.subr.mxu0 %v704
    %1397 = vmatpush1.msra.mxu0 %v703
    %1398 = vmatprep.subr.mxu0 %v708
    %1399 = vmatpush1.msra.mxu0 %v707
    %1400 = vmatprep.subr.mxu0 %v712
    %1401 = vmatpush1.msra.mxu0 %v711
    %1402 = vmatprep.subr.mxu0 %v716
    %1403 = vmatpush1.msra.mxu0 %v715
    %1404 = vmatprep.subr.mxu0 %v720
    %1405 = vmatpush1.msra.mxu0 %v719
    %1406 = vmatprep.subr.mxu0 %v724
    %1407 = vmatpush1.msra.mxu0 %v723
    %1408 = vmatprep.subr.mxu0 %v728
    %1409 = vmatpush1.msra.mxu0 %v727
    %1410 = vmatprep.subr.mxu0 %v732
    %1411 = vmatpush1.msra.mxu0 %v731
    %1412 = vmatprep.subr.mxu0 %v736
    %1413 = vmatpush1.msra.mxu0 %v735
    %1414 = vmatprep.subr.mxu0 %v740
    %1415 = vmatpush1.msra.mxu0 %v739
    %1416 = vmatprep.subr.mxu0 %v744
    %1417 = vmatpush1.msra.mxu0 %v743
    %1418 = vmatprep.subr.mxu0 %v748
    %1419 = vmatpush1.msra.mxu0 %v747
    %1420 = vmatprep.subr.mxu0 %v752
    %1421 = vmatpush1.msra.mxu0 %v751
    %1422 = vmatprep.subr.mxu0 %v756
    %1423 = vmatpush1.msra.mxu0 %v755
    %1424 = vmatprep.subr.mxu0 %v760
    %1425 = vmatpush1.msra.mxu0 %v759
    %1426 = vmatprep.subr.mxu0 %v764
    %1427 = vmatpush1.msra.mxu0 %v763
    %1428 = vmatprep.subr.mxu0 0.0
    %1429 = vmatpush1.msra.mxu0 0.0
    %1430 = vmatprep.subr.mxu0 0.0
    %1431 = vmatpush1.msra.mxu0 0.0
    %1432 = vmatprep.subr.mxu0 0.0
    %1433 = vmatpush1.msra.mxu0 0.0
    %1434 = vmatprep.subr.mxu0 0.0
    %1435 = vmatpush1.msra.mxu0 0.0
    %1436 = vmatprep.subr.mxu0 0.0
    %1437 = vmatpush1.msra.mxu0 0.0
    %1438 = vmatprep.subr.mxu0 0.0
    %1439 = vmatpush1.msra.mxu0 0.0
    %1440 = vmatprep.subr.mxu0 0.0
    %1441 = vmatpush1.msra.mxu0 0.0
    %1442 = vmatprep.subr.mxu0 0.0
    %1443 = vmatpush1.msra.mxu0 0.0
    %1444 = vmatprep.subr.mxu0 0.0
    %1445 = vmatpush1.msra.mxu0 0.0
    %1446 = vmatprep.subr.mxu0 0.0
    %1447 = vmatpush1.msra.mxu0 0.0
    %1448 = vmatprep.subr.mxu0 0.0
    %1449 = vmatpush1.msra.mxu0 0.0
    %1450 = vmatprep.subr.mxu0 0.0
    %1451 = vmatpush1.msra.mxu0 0.0
    %1452 = vmatprep.subr.mxu0 0.0
    %1453 = vmatpush1.msra.mxu0 0.0
    %1454 = vmatprep.subr.mxu0 0.0
    %1455 = vmatpush1.msra.mxu0 0.0
    %1456 = vmatprep.subr.mxu0 0.0
    %1457 = vmatpush1.msra.mxu0 0.0
    %1458 = vmatprep.subr.mxu0 0.0
    %1459 = vmatpush1.msra.mxu0 0.0
    %1460 = vmatprep.mubr.f32.mxu0 0.0
    %1461 = vmatmul.mubr.f32.gmra.mrb[0].mxu0 %v1394
    %v1462 = vpop.f32.mrb[0].mxu0
    %v1463 = vadd.f32 0.0, %v1462
    %v1464 = vpop.f32.mrb[0].mxu0
    %v1465 = vadd.f32 0.0, %v1464
    %1466 = vdwg.mxu0
    %1467 = vmatprep.subr.mxu0 %v706
    %1468 = vmatpush1.msra.mxu0 %v705
    %1469 = vmatprep.subr.mxu0 %v710
    %1470 = vmatpush1.msra.mxu0 %v709
    %1471 = vmatprep.subr.mxu0 %v714
    %1472 = vmatpush1.msra.mxu0 %v713
    %1473 = vmatprep.subr.mxu0 %v718
    %1474 = vmatpush1.msra.mxu0 %v717
    %1475 = vmatprep.subr.mxu0 %v722
    %1476 = vmatpush1.msra.mxu0 %v721
    %1477 = vmatprep.subr.mxu0 %v726
    %1478 = vmatpush1.msra.mxu0 %v725
    %1479 = vmatprep.subr.mxu0 %v730
    %1480 = vmatpush1.msra.mxu0 %v729
    %1481 = vmatprep.subr.mxu0 %v734
    %1482 = vmatpush1.msra.mxu0 %v733
    %1483 = vmatprep.subr.mxu0 %v738
    %1484 = vmatpush1.msra.mxu0 %v737
    %1485 = vmatprep.subr.mxu0 %v742
    %1486 = vmatpush1.msra.mxu0 %v741
    %1487 = vmatprep.subr.mxu0 %v746
    %1488 = vmatpush1.msra.mxu0 %v745
    %1489 = vmatprep.subr.mxu0 %v750
    %1490 = vmatpush1.msra.mxu0 %v749
    %1491 = vmatprep.subr.mxu0 %v754
    %1492 = vmatpush1.msra.mxu0 %v753
    %1493 = vmatprep.subr.mxu0 %v758
    %1494 = vmatpush1.msra.mxu0 %v757
    %1495 = vmatprep.subr.mxu0 %v762
    %1496 = vmatpush1.msra.mxu0 %v761
    %1497 = vmatprep.subr.mxu0 %v766
    %1498 = vmatpush1.msra.mxu0 %v765
    %1499 = vmatprep.subr.mxu0 0.0
    %1500 = vmatpush1.msra.mxu0 0.0
    %1501 = vmatprep.subr.mxu0 0.0
    %1502 = vmatpush1.msra.mxu0 0.0
    %1503 = vmatprep.subr.mxu0 0.0
    %1504 = vmatpush1.msra.mxu0 0.0
    %1505 = vmatprep.subr.mxu0 0.0
    %1506 = vmatpush1.msra.mxu0 0.0
    %1507 = vmatprep.subr.mxu0 0.0
    %1508 = vmatpush1.msra.mxu0 0.0
    %1509 = vmatprep.subr.mxu0 0.0
    %1510 = vmatpush1.msra.mxu0 0.0
    %1511 = vmatprep.subr.mxu0 0.0
    %1512 = vmatpush1.msra.mxu0 0.0
    %1513 = vmatprep.subr.mxu0 0.0
    %1514 = vmatpush1.msra.mxu0 0.0
    %1515 = vmatprep.subr.mxu0 0.0
    %1516 = vmatpush1.msra.mxu0 0.0
    %1517 = vmatprep.subr.mxu0 0.0
    %1518 = vmatpush1.msra.mxu0 0.0
    %1519 = vmatprep.subr.mxu0 0.0
    %1520 = vmatpush1.msra.mxu0 0.0
    %1521 = vmatprep.subr.mxu0 0.0
    %1522 = vmatpush1.msra.mxu0 0.0
    %1523 = vmatprep.subr.mxu0 0.0
    %1524 = vmatpush1.msra.mxu0 0.0
    %1525 = vmatprep.subr.mxu0 0.0
    %1526 = vmatpush1.msra.mxu0 0.0
    %1527 = vmatprep.subr.mxu0 0.0
    %1528 = vmatpush1.msra.mxu0 0.0
    %1529 = vmatprep.subr.mxu0 0.0
    %1530 = vmatpush1.msra.mxu0 0.0
    %1531 = vmatprep.mubr.f32.mxu0 0.0
    %1532 = vmatmul.mubr.f32.gmra.mrb[0].mxu0 %v1394
    %v1533 = vpop.f32.mrb[0].mxu0
    %v1534 = vadd.f32 0.0, %v1533
    %v1535 = vpop.f32.mrb[0].mxu0
    %v1536 = vadd.f32 0.0, %v1535
    %1537 = vdwg.mxu0
    %v1542 = vrot.slane %v1463, 2
    %v1543 = vrot.slane %v1465, 2
    %v1544 = vrot.slane %v1534, 2
    %v1545 = vrot.slane %v1536, 2
    %v1550 = vadd.f32 %v1389, %v1542
    %v1551 = vadd.f32 %v1390, %v1543
    %v1552 = vadd.f32 %v1391, %v1544
    %v1553 = vadd.f32 %v1392, %v1545
    %v1554 = vsub.f32 0.0, %v1550
    %v1555 = vmul.f32 %v1554, 1.442695
    %v1556 = vpow.pop %v1555
    %v1557 = vadd.f32 %v1556, 1.0
    %v1558 = vrcp.pop %v1557
    %v1559 = vmul.f32 1.0, %v1558
    %v1560 = vsub.f32 0.0, %v1551
    %v1561 = vmul.f32 %v1560, 1.442695
    %v1562 = vpow.pop %v1561
    %v1563 = vadd.f32 %v1562, 1.0
    %v1564 = vrcp.pop %v1563
    %v1565 = vmul.f32 1.0, %v1564
    %v1566 = vtanh.pop %v1552
    %v1567 = vsub.f32 0.0, %v1553
    %v1568 = vmul.f32 %v1567, 1.442695
    %v1569 = vpow.pop %v1568
    %v1570 = vadd.f32 %v1569, 1.0
    %v1571 = vrcp.pop %v1570
    %v1572 = vmul.f32 1.0, %v1571
    %v1574 = vrot.slane %v1385, 6
    %v1576 = vmul.f32 %v1565, %v1574
    %v1577 = vmul.f32 %v1559, %v1566
    %v1578 = vadd.f32 %v1576, %v1577
    %v1579 = vtanh.pop %v1578
    %v1580 = vmul.f32 %v1572, %v1579
    %1581 = vst [vmem:[#allocation5] sm:$0xc0] %v1580
    %v1582 = vld [vmem:[#allocation2 + $0x20] sm:$0x3]
    %v1583 = vld [vmem:[#allocation2 + $0x28] sm:$0x3]
    %v1584 = vld [vmem:[#allocation2 + $0x30] sm:$0x3]
    %v1585 = vld [vmem:[#allocation2 + $0x38] sm:$0x3]
    %v1587 = vrot.slane %v1580, 6
    %1589 = vmatprep.subr.mxu0 %v704
    %1590 = vmatpush1.msra.mxu0 %v703
    %1591 = vmatprep.subr.mxu0 %v708
    %1592 = vmatpush1.msra.mxu0 %v707
    %1593 = vmatprep.subr.mxu0 %v712
    %1594 = vmatpush1.msra.mxu0 %v711
    %1595 = vmatprep.subr.mxu0 %v716
    %1596 = vmatpush1.msra.mxu0 %v715
    %1597 = vmatprep.subr.mxu0 %v720
    %1598 = vmatpush1.msra.mxu0 %v719
    %1599 = vmatprep.subr.mxu0 %v724
    %1600 = vmatpush1.msra.mxu0 %v723
    %1601 = vmatprep.subr.mxu0 %v728
    %1602 = vmatpush1.msra.mxu0 %v727
    %1603 = vmatprep.subr.mxu0 %v732
    %1604 = vmatpush1.msra.mxu0 %v731
    %1605 = vmatprep.subr.mxu0 %v736
    %1606 = vmatpush1.msra.mxu0 %v735
    %1607 = vmatprep.subr.mxu0 %v740
    %1608 = vmatpush1.msra.mxu0 %v739
    %1609 = vmatprep.subr.mxu0 %v744
    %1610 = vmatpush1.msra.mxu0 %v743
    %1611 = vmatprep.subr.mxu0 %v748
    %1612 = vmatpush1.msra.mxu0 %v747
    %1613 = vmatprep.subr.mxu0 %v752
    %1614 = vmatpush1.msra.mxu0 %v751
    %1615 = vmatprep.subr.mxu0 %v756
    %1616 = vmatpush1.msra.mxu0 %v755
    %1617 = vmatprep.subr.mxu0 %v760
    %1618 = vmatpush1.msra.mxu0 %v759
    %1619 = vmatprep.subr.mxu0 %v764
    %1620 = vmatpush1.msra.mxu0 %v763
    %1621 = vmatprep.subr.mxu0 0.0
    %1622 = vmatpush1.msra.mxu0 0.0
    %1623 = vmatprep.subr.mxu0 0.0
    %1624 = vmatpush1.msra.mxu0 0.0
    %1625 = vmatprep.subr.mxu0 0.0
    %1626 = vmatpush1.msra.mxu0 0.0
    %1627 = vmatprep.subr.mxu0 0.0
    %1628 = vmatpush1.msra.mxu0 0.0
    %1629 = vmatprep.subr.mxu0 0.0
    %1630 = vmatpush1.msra.mxu0 0.0
    %1631 = vmatprep.subr.mxu0 0.0
    %1632 = vmatpush1.msra.mxu0 0.0
    %1633 = vmatprep.subr.mxu0 0.0
    %1634 = vmatpush1.msra.mxu0 0.0
    %1635 = vmatprep.subr.mxu0 0.0
    %1636 = vmatpush1.msra.mxu0 0.0
    %1637 = vmatprep.subr.mxu0 0.0
    %1638 = vmatpush1.msra.mxu0 0.0
    %1639 = vmatprep.subr.mxu0 0.0
    %1640 = vmatpush1.msra.mxu0 0.0
    %1641 = vmatprep.subr.mxu0 0.0
    %1642 = vmatpush1.msra.mxu0 0.0
    %1643 = vmatprep.subr.mxu0 0.0
    %1644 = vmatpush1.msra.mxu0 0.0
    %1645 = vmatprep.subr.mxu0 0.0
    %1646 = vmatpush1.msra.mxu0 0.0
    %1647 = vmatprep.subr.mxu0 0.0
    %1648 = vmatpush1.msra.mxu0 0.0
    %1649 = vmatprep.subr.mxu0 0.0
    %1650 = vmatpush1.msra.mxu0 0.0
    %1651 = vmatprep.subr.mxu0 0.0
    %1652 = vmatpush1.msra.mxu0 0.0
    %1653 = vmatprep.mubr.f32.mxu0 0.0
    %1654 = vmatmul.mubr.f32.gmra.mrb[0].mxu0 %v1587
    %v1655 = vpop.f32.mrb[0].mxu0
    %v1656 = vadd.f32 0.0, %v1655
    %v1657 = vpop.f32.mrb[0].mxu0
    %v1658 = vadd.f32 0.0, %v1657
    %1659 = vdwg.mxu0
    %1660 = vmatprep.subr.mxu0 %v706
    %1661 = vmatpush1.msra.mxu0 %v705
    %1662 = vmatprep.subr.mxu0 %v710
    %1663 = vmatpush1.msra.mxu0 %v709
    %1664 = vmatprep.subr.mxu0 %v714
    %1665 = vmatpush1.msra.mxu0 %v713
    %1666 = vmatprep.subr.mxu0 %v718
    %1667 = vmatpush1.msra.mxu0 %v717
    %1668 = vmatprep.subr.mxu0 %v722
    %1669 = vmatpush1.msra.mxu0 %v721
    %1670 = vmatprep.subr.mxu0 %v726
    %1671 = vmatpush1.msra.mxu0 %v725
    %1672 = vmatprep.subr.mxu0 %v730
    %1673 = vmatpush1.msra.mxu0 %v729
    %1674 = vmatprep.subr.mxu0 %v734
    %1675 = vmatpush1.msra.mxu0 %v733
    %1676 = vmatprep.subr.mxu0 %v738
    %1677 = vmatpush1.msra.mxu0 %v737
    %1678 = vmatprep.subr.mxu0 %v742
    %1679 = vmatpush1.msra.mxu0 %v741
    %1680 = vmatprep.subr.mxu0 %v746
    %1681 = vmatpush1.msra.mxu0 %v745
    %1682 = vmatprep.subr.mxu0 %v750
    %1683 = vmatpush1.msra.mxu0 %v749
    %1684 = vmatprep.subr.mxu0 %v754
    %1685 = vmatpush1.msra.mxu0 %v753
    %1686 = vmatprep.subr.mxu0 %v758
    %1687 = vmatpush1.msra.mxu0 %v757
    %1688 = vmatprep.subr.mxu0 %v762
    %1689 = vmatpush1.msra.mxu0 %v761
    %1690 = vmatprep.subr.mxu0 %v766
    %1691 = vmatpush1.msra.mxu0 %v765
    %1692 = vmatprep.subr.mxu0 0.0
    %1693 = vmatpush1.msra.mxu0 0.0
    %1694 = vmatprep.subr.mxu0 0.0
    %1695 = vmatpush1.msra.mxu0 0.0
    %1696 = vmatprep.subr.mxu0 0.0
    %1697 = vmatpush1.msra.mxu0 0.0
    %1698 = vmatprep.subr.mxu0 0.0
    %1699 = vmatpush1.msra.mxu0 0.0
    %1700 = vmatprep.subr.mxu0 0.0
    %1701 = vmatpush1.msra.mxu0 0.0
    %1702 = vmatprep.subr.mxu0 0.0
    %1703 = vmatpush1.msra.mxu0 0.0
    %1704 = vmatprep.subr.mxu0 0.0
    %1705 = vmatpush1.msra.mxu0 0.0
    %1706 = vmatprep.subr.mxu0 0.0
    %1707 = vmatpush1.msra.mxu0 0.0
    %1708 = vmatprep.subr.mxu0 0.0
    %1709 = vmatpush1.msra.mxu0 0.0
    %1710 = vmatprep.subr.mxu0 0.0
    %1711 = vmatpush1.msra.mxu0 0.0
    %1712 = vmatprep.subr.mxu0 0.0
    %1713 = vmatpush1.msra.mxu0 0.0
    %1714 = vmatprep.subr.mxu0 0.0
    %1715 = vmatpush1.msra.mxu0 0.0
    %1716 = vmatprep.subr.mxu0 0.0
    %1717 = vmatpush1.msra.mxu0 0.0
    %1718 = vmatprep.subr.mxu0 0.0
    %1719 = vmatpush1.msra.mxu0 0.0
    %1720 = vmatprep.subr.mxu0 0.0
    %1721 = vmatpush1.msra.mxu0 0.0
    %1722 = vmatprep.subr.mxu0 0.0
    %1723 = vmatpush1.msra.mxu0 0.0
    %1724 = vmatprep.mubr.f32.mxu0 0.0
    %1725 = vmatmul.mubr.f32.gmra.mrb[0].mxu0 %v1587
    %v1726 = vpop.f32.mrb[0].mxu0
    %v1727 = vadd.f32 0.0, %v1726
    %v1728 = vpop.f32.mrb[0].mxu0
    %v1729 = vadd.f32 0.0, %v1728
    %1730 = vdwg.mxu0
    %v1731 = vadd.f32 %v1582, %v1656
    %v1732 = vadd.f32 %v1583, %v1658
    %v1733 = vadd.f32 %v1584, %v1727
    %v1734 = vadd.f32 %v1585, %v1729
    %v1735 = vsub.f32 0.0, %v1731
    %v1736 = vmul.f32 %v1735, 1.442695
    %v1737 = vpow.pop %v1736
    %v1738 = vadd.f32 %v1737, 1.0
    %v1739 = vrcp.pop %v1738
    %v1740 = vmul.f32 1.0, %v1739
    %v1741 = vsub.f32 0.0, %v1732
    %v1742 = vmul.f32 %v1741, 1.442695
    %v1743 = vpow.pop %v1742
    %v1744 = vadd.f32 %v1743, 1.0
    %v1745 = vrcp.pop %v1744
    %v1746 = vmul.f32 1.0, %v1745
    %v1747 = vtanh.pop %v1733
    %v1748 = vsub.f32 0.0, %v1734
    %v1749 = vmul.f32 %v1748, 1.442695
    %v1750 = vpow.pop %v1749
    %v1751 = vadd.f32 %v1750, 1.0
    %v1752 = vrcp.pop %v1751
    %v1753 = vmul.f32 1.0, %v1752
    %v1755 = vrot.slane %v1578, 6
    %v1757 = vmul.f32 %v1746, %v1755
    %v1758 = vmul.f32 %v1740, %v1747
    %v1759 = vadd.f32 %v1757, %v1758
    %v1760 = vtanh.pop %v1759
    %v1761 = vmul.f32 %v1753, %v1760
    %1762 = vst [vmem:[#allocation5 + $0x8] sm:$0x3] %v1761
    %v1763 = vld [vmem:[#allocation2 + $0x20] sm:$0xc]
    %v1764 = vld [vmem:[#allocation2 + $0x28] sm:$0xc]
    %v1765 = vld [vmem:[#allocation2 + $0x30] sm:$0xc]
    %v1766 = vld [vmem:[#allocation2 + $0x38] sm:$0xc]
    %1767 = vmatprep.subr.mxu0 %v704
    %1768 = vmatpush1.msra.mxu0 %v703
    %1769 = vmatprep.subr.mxu0 %v708
    %1770 = vmatpush1.msra.mxu0 %v707
    %1771 = vmatprep.subr.mxu0 %v712
    %1772 = vmatpush1.msra.mxu0 %v711
    %1773 = vmatprep.subr.mxu0 %v716
    %1774 = vmatpush1.msra.mxu0 %v715
    %1775 = vmatprep.subr.mxu0 %v720
    %1776 = vmatpush1.msra.mxu0 %v719
    %1777 = vmatprep.subr.mxu0 %v724
    %1778 = vmatpush1.msra.mxu0 %v723
    %1779 = vmatprep.subr.mxu0 %v728
    %1780 = vmatpush1.msra.mxu0 %v727
    %1781 = vmatprep.subr.mxu0 %v732
    %1782 = vmatpush1.msra.mxu0 %v731
    %1783 = vmatprep.subr.mxu0 %v736
    %1784 = vmatpush1.msra.mxu0 %v735
    %1785 = vmatprep.subr.mxu0 %v740
    %1786 = vmatpush1.msra.mxu0 %v739
    %1787 = vmatprep.subr.mxu0 %v744
    %1788 = vmatpush1.msra.mxu0 %v743
    %1789 = vmatprep.subr.mxu0 %v748
    %1790 = vmatpush1.msra.mxu0 %v747
    %1791 = vmatprep.subr.mxu0 %v752
    %1792 = vmatpush1.msra.mxu0 %v751
    %1793 = vmatprep.subr.mxu0 %v756
    %1794 = vmatpush1.msra.mxu0 %v755
    %1795 = vmatprep.subr.mxu0 %v760
    %1796 = vmatpush1.msra.mxu0 %v759
    %1797 = vmatprep.subr.mxu0 %v764
    %1798 = vmatpush1.msra.mxu0 %v763
    %1799 = vmatprep.subr.mxu0 0.0
    %1800 = vmatpush1.msra.mxu0 0.0
    %1801 = vmatprep.subr.mxu0 0.0
    %1802 = vmatpush1.msra.mxu0 0.0
    %1803 = vmatprep.subr.mxu0 0.0
    %1804 = vmatpush1.msra.mxu0 0.0
    %1805 = vmatprep.subr.mxu0 0.0
    %1806 = vmatpush1.msra.mxu0 0.0
    %1807 = vmatprep.subr.mxu0 0.0
    %1808 = vmatpush1.msra.mxu0 0.0
    %1809 = vmatprep.subr.mxu0 0.0
    %1810 = vmatpush1.msra.mxu0 0.0
    %1811 = vmatprep.subr.mxu0 0.0
    %1812 = vmatpush1.msra.mxu0 0.0
    %1813 = vmatprep.subr.mxu0 0.0
    %1814 = vmatpush1.msra.mxu0 0.0
    %1815 = vmatprep.subr.mxu0 0.0
    %1816 = vmatpush1.msra.mxu0 0.0
    %1817 = vmatprep.subr.mxu0 0.0
    %1818 = vmatpush1.msra.mxu0 0.0
    %1819 = vmatprep.subr.mxu0 0.0
    %1820 = vmatpush1.msra.mxu0 0.0
    %1821 = vmatprep.subr.mxu0 0.0
    %1822 = vmatpush1.msra.mxu0 0.0
    %1823 = vmatprep.subr.mxu0 0.0
    %1824 = vmatpush1.msra.mxu0 0.0
    %1825 = vmatprep.subr.mxu0 0.0
    %1826 = vmatpush1.msra.mxu0 0.0
    %1827 = vmatprep.subr.mxu0 0.0
    %1828 = vmatpush1.msra.mxu0 0.0
    %1829 = vmatprep.subr.mxu0 0.0
    %1830 = vmatpush1.msra.mxu0 0.0
    %1831 = vmatprep.mubr.f32.mxu0 0.0
    %1832 = vmatmul.mubr.f32.gmra.mrb[0].mxu0 %v1761
    %v1833 = vpop.f32.mrb[0].mxu0
    %v1834 = vadd.f32 0.0, %v1833
    %v1835 = vpop.f32.mrb[0].mxu0
    %v1836 = vadd.f32 0.0, %v1835
    %1837 = vdwg.mxu0
    %1838 = vmatprep.subr.mxu0 %v706
    %1839 = vmatpush1.msra.mxu0 %v705
    %1840 = vmatprep.subr.mxu0 %v710
    %1841 = vmatpush1.msra.mxu0 %v709
    %1842 = vmatprep.subr.mxu0 %v714
    %1843 = vmatpush1.msra.mxu0 %v713
    %1844 = vmatprep.subr.mxu0 %v718
    %1845 = vmatpush1.msra.mxu0 %v717
    %1846 = vmatprep.subr.mxu0 %v722
    %1847 = vmatpush1.msra.mxu0 %v721
    %1848 = vmatprep.subr.mxu0 %v726
    %1849 = vmatpush1.msra.mxu0 %v725
    %1850 = vmatprep.subr.mxu0 %v730
    %1851 = vmatpush1.msra.mxu0 %v729
    %1852 = vmatprep.subr.mxu0 %v734
    %1853 = vmatpush1.msra.mxu0 %v733
    %1854 = vmatprep.subr.mxu0 %v738
    %1855 = vmatpush1.msra.mxu0 %v737
    %1856 = vmatprep.subr.mxu0 %v742
    %1857 = vmatpush1.msra.mxu0 %v741
    %1858 = vmatprep.subr.mxu0 %v746
    %1859 = vmatpush1.msra.mxu0 %v745
    %1860 = vmatprep.subr.mxu0 %v750
    %1861 = vmatpush1.msra.mxu0 %v749
    %1862 = vmatprep.subr.mxu0 %v754
    %1863 = vmatpush1.msra.mxu0 %v753
    %1864 = vmatprep.subr.mxu0 %v758
    %1865 = vmatpush1.msra.mxu0 %v757
    %1866 = vmatprep.subr.mxu0 %v762
    %1867 = vmatpush1.msra.mxu0 %v761
    %1868 = vmatprep.subr.mxu0 %v766
    %1869 = vmatpush1.msra.mxu0 %v765
    %1870 = vmatprep.subr.mxu0 0.0
    %1871 = vmatpush1.msra.mxu0 0.0
    %1872 = vmatprep.subr.mxu0 0.0
    %1873 = vmatpush1.msra.mxu0 0.0
    %1874 = vmatprep.subr.mxu0 0.0
    %1875 = vmatpush1.msra.mxu0 0.0
    %1876 = vmatprep.subr.mxu0 0.0
    %1877 = vmatpush1.msra.mxu0 0.0
    %1878 = vmatprep.subr.mxu0 0.0
    %1879 = vmatpush1.msra.mxu0 0.0
    %1880 = vmatprep.subr.mxu0 0.0
    %1881 = vmatpush1.msra.mxu0 0.0
    %1882 = vmatprep.subr.mxu0 0.0
    %1883 = vmatpush1.msra.mxu0 0.0
    %1884 = vmatprep.subr.mxu0 0.0
    %1885 = vmatpush1.msra.mxu0 0.0
    %1886 = vmatprep.subr.mxu0 0.0
    %1887 = vmatpush1.msra.mxu0 0.0
    %1888 = vmatprep.subr.mxu0 0.0
    %1889 = vmatpush1.msra.mxu0 0.0
    %1890 = vmatprep.subr.mxu0 0.0
    %1891 = vmatpush1.msra.mxu0 0.0
    %1892 = vmatprep.subr.mxu0 0.0
    %1893 = vmatpush1.msra.mxu0 0.0
    %1894 = vmatprep.subr.mxu0 0.0
    %1895 = vmatpush1.msra.mxu0 0.0
    %1896 = vmatprep.subr.mxu0 0.0
    %1897 = vmatpush1.msra.mxu0 0.0
    %1898 = vmatprep.subr.mxu0 0.0
    %1899 = vmatpush1.msra.mxu0 0.0
    %1900 = vmatprep.subr.mxu0 0.0
    %1901 = vmatpush1.msra.mxu0 0.0
    %1902 = vmatprep.mubr.f32.mxu0 0.0
    %1903 = vmatmul.mubr.f32.gmra.mrb[0].mxu0 %v1761
    %v1904 = vpop.f32.mrb[0].mxu0
    %v1905 = vadd.f32 0.0, %v1904
    %v1906 = vpop.f32.mrb[0].mxu0
    %v1907 = vadd.f32 0.0, %v1906
    %1908 = vdwg.mxu0
    %v1913 = vrot.slane %v1834, 6
    %v1914 = vrot.slane %v1836, 6
    %v1915 = vrot.slane %v1905, 6
    %v1916 = vrot.slane %v1907, 6
    %v1921 = vadd.f32 %v1763, %v1913
    %v1922 = vadd.f32 %v1764, %v1914
    %v1923 = vadd.f32 %v1765, %v1915
    %v1924 = vadd.f32 %v1766, %v1916
    %v1925 = vsub.f32 0.0, %v1921
    %v1926 = vmul.f32 %v1925, 1.442695
    %v1927 = vpow.pop %v1926
    %v1928 = vadd.f32 %v1927, 1.0
    %v1929 = vrcp.pop %v1928
    %v1930 = vmul.f32 1.0, %v1929
    %v1931 = vsub.f32 0.0, %v1922
    %v1932 = vmul.f32 %v1931, 1.442695
    %v1933 = vpow.pop %v1932
    %v1934 = vadd.f32 %v1933, 1.0
    %v1935 = vrcp.pop %v1934
    %v1936 = vmul.f32 1.0, %v1935
    %v1937 = vtanh.pop %v1923
    %v1938 = vsub.f32 0.0, %v1924
    %v1939 = vmul.f32 %v1938, 1.442695
    %v1940 = vpow.pop %v1939
    %v1941 = vadd.f32 %v1940, 1.0
    %v1942 = vrcp.pop %v1941
    %v1943 = vmul.f32 1.0, %v1942
    %v1945 = vrot.slane %v1759, 6
    %v1947 = vmul.f32 %v1936, %v1945
    %v1948 = vmul.f32 %v1930, %v1937
    %v1949 = vadd.f32 %v1947, %v1948
    %v1950 = vtanh.pop %v1949
    %v1951 = vmul.f32 %v1943, %v1950
    %1952 = vst [vmem:[#allocation5 + $0x8] sm:$0xc] %v1951
    %v1953 = vld [vmem:[#allocation2 + $0x20] sm:$0x30]
    %v1954 = vld [vmem:[#allocation2 + $0x28] sm:$0x30]
    %v1955 = vld [vmem:[#allocation2 + $0x30] sm:$0x30]
    %v1956 = vld [vmem:[#allocation2 + $0x38] sm:$0x30]
    %v1958 = vrot.slane %v1951, 2
    %1960 = vmatprep.subr.mxu0 %v704
    %1961 = vmatpush1.msra.mxu0 %v703
    %1962 = vmatprep.subr.mxu0 %v708
    %1963 = vmatpush1.msra.mxu0 %v707
    %1964 = vmatprep.subr.mxu0 %v712
    %1965 = vmatpush1.msra.mxu0 %v711
    %1966 = vmatprep.subr.mxu0 %v716
    %1967 = vmatpush1.msra.mxu0 %v715
    %1968 = vmatprep.subr.mxu0 %v720
    %1969 = vmatpush1.msra.mxu0 %v719
    %1970 = vmatprep.subr.mxu0 %v724
    %1971 = vmatpush1.msra.mxu0 %v723
    %1972 = vmatprep.subr.mxu0 %v728
    %1973 = vmatpush1.msra.mxu0 %v727
    %1974 = vmatprep.subr.mxu0 %v732
    %1975 = vmatpush1.msra.mxu0 %v731
    %1976 = vmatprep.subr.mxu0 %v736
    %1977 = vmatpush1.msra.mxu0 %v735
    %1978 = vmatprep.subr.mxu0 %v740
    %1979 = vmatpush1.msra.mxu0 %v739
    %1980 = vmatprep.subr.mxu0 %v744
    %1981 = vmatpush1.msra.mxu0 %v743
    %1982 = vmatprep.subr.mxu0 %v748
    %1983 = vmatpush1.msra.mxu0 %v747
    %1984 = vmatprep.subr.mxu0 %v752
    %1985 = vmatpush1.msra.mxu0 %v751
    %1986 = vmatprep.subr.mxu0 %v756
    %1987 = vmatpush1.msra.mxu0 %v755
    %1988 = vmatprep.subr.mxu0 %v760
    %1989 = vmatpush1.msra.mxu0 %v759
    %1990 = vmatprep.subr.mxu0 %v764
    %1991 = vmatpush1.msra.mxu0 %v763
    %1992 = vmatprep.subr.mxu0 0.0
    %1993 = vmatpush1.msra.mxu0 0.0
    %1994 = vmatprep.subr.mxu0 0.0
    %1995 = vmatpush1.msra.mxu0 0.0
    %1996 = vmatprep.subr.mxu0 0.0
    %1997 = vmatpush1.msra.mxu0 0.0
    %1998 = vmatprep.subr.mxu0 0.0
    %1999 = vmatpush1.msra.mxu0 0.0
    %2000 = vmatprep.subr.mxu0 0.0
    %2001 = vmatpush1.msra.mxu0 0.0
    %2002 = vmatprep.subr.mxu0 0.0
    %2003 = vmatpush1.msra.mxu0 0.0
    %2004 = vmatprep.subr.mxu0 0.0
    %2005 = vmatpush1.msra.mxu0 0.0
    %2006 = vmatprep.subr.mxu0 0.0
    %2007 = vmatpush1.msra.mxu0 0.0
    %2008 = vmatprep.subr.mxu0 0.0
    %2009 = vmatpush1.msra.mxu0 0.0
    %2010 = vmatprep.subr.mxu0 0.0
    %2011 = vmatpush1.msra.mxu0 0.0
    %2012 = vmatprep.subr.mxu0 0.0
    %2013 = vmatpush1.msra.mxu0 0.0
    %2014 = vmatprep.subr.mxu0 0.0
    %2015 = vmatpush1.msra.mxu0 0.0
    %2016 = vmatprep.subr.mxu0 0.0
    %2017 = vmatpush1.msra.mxu0 0.0
    %2018 = vmatprep.subr.mxu0 0.0
    %2019 = vmatpush1.msra.mxu0 0.0
    %2020 = vmatprep.subr.mxu0 0.0
    %2021 = vmatpush1.msra.mxu0 0.0
    %2022 = vmatprep.subr.mxu0 0.0
    %2023 = vmatpush1.msra.mxu0 0.0
    %2024 = vmatprep.mubr.f32.mxu0 0.0
    %2025 = vmatmul.mubr.f32.gmra.mrb[0].mxu0 %v1958
    %v2026 = vpop.f32.mrb[0].mxu0
    %v2027 = vadd.f32 0.0, %v2026
    %v2028 = vpop.f32.mrb[0].mxu0
    %v2029 = vadd.f32 0.0, %v2028
    %2030 = vdwg.mxu0
    %2031 = vmatprep.subr.mxu0 %v706
    %2032 = vmatpush1.msra.mxu0 %v705
    %2033 = vmatprep.subr.mxu0 %v710
    %2034 = vmatpush1.msra.mxu0 %v709
    %2035 = vmatprep.subr.mxu0 %v714
    %2036 = vmatpush1.msra.mxu0 %v713
    %2037 = vmatprep.subr.mxu0 %v718
    %2038 = vmatpush1.msra.mxu0 %v717
    %2039 = vmatprep.subr.mxu0 %v722
    %2040 = vmatpush1.msra.mxu0 %v721
    %2041 = vmatprep.subr.mxu0 %v726
    %2042 = vmatpush1.msra.mxu0 %v725
    %2043 = vmatprep.subr.mxu0 %v730
    %2044 = vmatpush1.msra.mxu0 %v729
    %2045 = vmatprep.subr.mxu0 %v734
    %2046 = vmatpush1.msra.mxu0 %v733
    %2047 = vmatprep.subr.mxu0 %v738
    %2048 = vmatpush1.msra.mxu0 %v737
    %2049 = vmatprep.subr.mxu0 %v742
    %2050 = vmatpush1.msra.mxu0 %v741
    %2051 = vmatprep.subr.mxu0 %v746
    %2052 = vmatpush1.msra.mxu0 %v745
    %2053 = vmatprep.subr.mxu0 %v750
    %2054 = vmatpush1.msra.mxu0 %v749
    %2055 = vmatprep.subr.mxu0 %v754
    %2056 = vmatpush1.msra.mxu0 %v753
    %2057 = vmatprep.subr.mxu0 %v758
    %2058 = vmatpush1.msra.mxu0 %v757
    %2059 = vmatprep.subr.mxu0 %v762
    %2060 = vmatpush1.msra.mxu0 %v761
    %2061 = vmatprep.subr.mxu0 %v766
    %2062 = vmatpush1.msra.mxu0 %v765
    %2063 = vmatprep.subr.mxu0 0.0
    %2064 = vmatpush1.msra.mxu0 0.0
    %2065 = vmatprep.subr.mxu0 0.0
    %2066 = vmatpush1.msra.mxu0 0.0
    %2067 = vmatprep.subr.mxu0 0.0
    %2068 = vmatpush1.msra.mxu0 0.0
    %2069 = vmatprep.subr.mxu0 0.0
    %2070 = vmatpush1.msra.mxu0 0.0
    %2071 = vmatprep.subr.mxu0 0.0
    %2072 = vmatpush1.msra.mxu0 0.0
    %2073 = vmatprep.subr.mxu0 0.0
    %2074 = vmatpush1.msra.mxu0 0.0
    %2075 = vmatprep.subr.mxu0 0.0
    %2076 = vmatpush1.msra.mxu0 0.0
    %2077 = vmatprep.subr.mxu0 0.0
    %2078 = vmatpush1.msra.mxu0 0.0
    %2079 = vmatprep.subr.mxu0 0.0
    %2080 = vmatpush1.msra.mxu0 0.0
    %2081 = vmatprep.subr.mxu0 0.0
    %2082 = vmatpush1.msra.mxu0 0.0
    %2083 = vmatprep.subr.mxu0 0.0
    %2084 = vmatpush1.msra.mxu0 0.0
    %2085 = vmatprep.subr.mxu0 0.0
    %2086 = vmatpush1.msra.mxu0 0.0
    %2087 = vmatprep.subr.mxu0 0.0
    %2088 = vmatpush1.msra.mxu0 0.0
    %2089 = vmatprep.subr.mxu0 0.0
    %2090 = vmatpush1.msra.mxu0 0.0
    %2091 = vmatprep.subr.mxu0 0.0
    %2092 = vmatpush1.msra.mxu0 0.0
    %2093 = vmatprep.subr.mxu0 0.0
    %2094 = vmatpush1.msra.mxu0 0.0
    %2095 = vmatprep.mubr.f32.mxu0 0.0
    %2096 = vmatmul.mubr.f32.gmra.mrb[0].mxu0 %v1958
    %v2097 = vpop.f32.mrb[0].mxu0
    %v2098 = vadd.f32 0.0, %v2097
    %v2099 = vpop.f32.mrb[0].mxu0
    %v2100 = vadd.f32 0.0, %v2099
    %2101 = vdwg.mxu0
    %v2106 = vrot.slane %v2027, 4
    %v2107 = vrot.slane %v2029, 4
    %v2108 = vrot.slane %v2098, 4
    %v2109 = vrot.slane %v2100, 4
    %v2114 = vadd.f32 %v1953, %v2106
    %v2115 = vadd.f32 %v1954, %v2107
    %v2116 = vadd.f32 %v1955, %v2108
    %v2117 = vadd.f32 %v1956, %v2109
    %v2118 = vsub.f32 0.0, %v2114
    %v2119 = vmul.f32 %v2118, 1.442695
    %v2120 = vpow.pop %v2119
    %v2121 = vadd.f32 %v2120, 1.0
    %v2122 = vrcp.pop %v2121
    %v2123 = vmul.f32 1.0, %v2122
    %v2124 = vsub.f32 0.0, %v2115
    %v2125 = vmul.f32 %v2124, 1.442695
    %v2126 = vpow.pop %v2125
    %v2127 = vadd.f32 %v2126, 1.0
    %v2128 = vrcp.pop %v2127
    %v2129 = vmul.f32 1.0, %v2128
    %v2130 = vtanh.pop %v2116
    %v2131 = vsub.f32 0.0, %v2117
    %v2132 = vmul.f32 %v2131, 1.442695
    %v2133 = vpow.pop %v2132
    %v2134 = vadd.f32 %v2133, 1.0
    %v2135 = vrcp.pop %v2134
    %v2136 = vmul.f32 1.0, %v2135
    %v2138 = vrot.slane %v1949, 6
    %v2140 = vmul.f32 %v2129, %v2138
    %v2141 = vmul.f32 %v2123, %v2130
    %v2142 = vadd.f32 %v2140, %v2141
    %v2143 = vtanh.pop %v2142
    %v2144 = vmul.f32 %v2136, %v2143
    %2145 = vst [vmem:[#allocation5 + $0x8] sm:$0x30] %v2144
    %v2146 = vld [vmem:[#allocation2 + $0x20] sm:$0xc0]
    %v2147 = vld [vmem:[#allocation2 + $0x28] sm:$0xc0]
    %v2148 = vld [vmem:[#allocation2 + $0x30] sm:$0xc0]
    %v2149 = vld [vmem:[#allocation2 + $0x38] sm:$0xc0]
    %v2151 = vrot.slane %v2144, 4
    %2153 = vmatprep.subr.mxu0 %v704
    %2154 = vmatpush1.msra.mxu0 %v703
    %2155 = vmatprep.subr.mxu0 %v708
    %2156 = vmatpush1.msra.mxu0 %v707
    %2157 = vmatprep.subr.mxu0 %v712
    %2158 = vmatpush1.msra.mxu0 %v711
    %2159 = vmatprep.subr.mxu0 %v716
    %2160 = vmatpush1.msra.mxu0 %v715
    %2161 = vmatprep.subr.mxu0 %v720
    %2162 = vmatpush1.msra.mxu0 %v719
    %2163 = vmatprep.subr.mxu0 %v724
    %2164 = vmatpush1.msra.mxu0 %v723
    %2165 = vmatprep.subr.mxu0 %v728
    %2166 = vmatpush1.msra.mxu0 %v727
    %2167 = vmatprep.subr.mxu0 %v732
    %2168 = vmatpush1.msra.mxu0 %v731
    %2169 = vmatprep.subr.mxu0 %v736
    %2170 = vmatpush1.msra.mxu0 %v735
    %2171 = vmatprep.subr.mxu0 %v740
    %2172 = vmatpush1.msra.mxu0 %v739
    %2173 = vmatprep.subr.mxu0 %v744
    %2174 = vmatpush1.msra.mxu0 %v743
    %2175 = vmatprep.subr.mxu0 %v748
    %2176 = vmatpush1.msra.mxu0 %v747
    %2177 = vmatprep.subr.mxu0 %v752
    %2178 = vmatpush1.msra.mxu0 %v751
    %2179 = vmatprep.subr.mxu0 %v756
    %2180 = vmatpush1.msra.mxu0 %v755
    %2181 = vmatprep.subr.mxu0 %v760
    %2182 = vmatpush1.msra.mxu0 %v759
    %2183 = vmatprep.subr.mxu0 %v764
    %2184 = vmatpush1.msra.mxu0 %v763
    %2185 = vmatprep.subr.mxu0 0.0
    %2186 = vmatpush1.msra.mxu0 0.0
    %2187 = vmatprep.subr.mxu0 0.0
    %2188 = vmatpush1.msra.mxu0 0.0
    %2189 = vmatprep.subr.mxu0 0.0
    %2190 = vmatpush1.msra.mxu0 0.0
    %2191 = vmatprep.subr.mxu0 0.0
    %2192 = vmatpush1.msra.mxu0 0.0
    %2193 = vmatprep.subr.mxu0 0.0
    %2194 = vmatpush1.msra.mxu0 0.0
    %2195 = vmatprep.subr.mxu0 0.0
    %2196 = vmatpush1.msra.mxu0 0.0
    %2197 = vmatprep.subr.mxu0 0.0
    %2198 = vmatpush1.msra.mxu0 0.0
    %2199 = vmatprep.subr.mxu0 0.0
    %2200 = vmatpush1.msra.mxu0 0.0
    %2201 = vmatprep.subr.mxu0 0.0
    %2202 = vmatpush1.msra.mxu0 0.0
    %2203 = vmatprep.subr.mxu0 0.0
    %2204 = vmatpush1.msra.mxu0 0.0
    %2205 = vmatprep.subr.mxu0 0.0
    %2206 = vmatpush1.msra.mxu0 0.0
    %2207 = vmatprep.subr.mxu0 0.0
    %2208 = vmatpush1.msra.mxu0 0.0
    %2209 = vmatprep.subr.mxu0 0.0
    %2210 = vmatpush1.msra.mxu0 0.0
    %2211 = vmatprep.subr.mxu0 0.0
    %2212 = vmatpush1.msra.mxu0 0.0
    %2213 = vmatprep.subr.mxu0 0.0
    %2214 = vmatpush1.msra.mxu0 0.0
    %2215 = vmatprep.subr.mxu0 0.0
    %2216 = vmatpush1.msra.mxu0 0.0
    %2217 = vmatprep.mubr.f32.mxu0 0.0
    %2218 = vmatmul.mubr.f32.gmra.mrb[0].mxu0 %v2151
    %v2219 = vpop.f32.mrb[0].mxu0
    %v2220 = vadd.f32 0.0, %v2219
    %v2221 = vpop.f32.mrb[0].mxu0
    %v2222 = vadd.f32 0.0, %v2221
    %2223 = vdwg.mxu0
    %2224 = vmatprep.subr.mxu0 %v706
    %2225 = vmatpush1.msra.mxu0 %v705
    %2226 = vmatprep.subr.mxu0 %v710
    %2227 = vmatpush1.msra.mxu0 %v709
    %2228 = vmatprep.subr.mxu0 %v714
    %2229 = vmatpush1.msra.mxu0 %v713
    %2230 = vmatprep.subr.mxu0 %v718
    %2231 = vmatpush1.msra.mxu0 %v717
    %2232 = vmatprep.subr.mxu0 %v722
    %2233 = vmatpush1.msra.mxu0 %v721
    %2234 = vmatprep.subr.mxu0 %v726
    %2235 = vmatpush1.msra.mxu0 %v725
    %2236 = vmatprep.subr.mxu0 %v730
    %2237 = vmatpush1.msra.mxu0 %v729
    %2238 = vmatprep.subr.mxu0 %v734
    %2239 = vmatpush1.msra.mxu0 %v733
    %2240 = vmatprep.subr.mxu0 %v738
    %2241 = vmatpush1.msra.mxu0 %v737
    %2242 = vmatprep.subr.mxu0 %v742
    %2243 = vmatpush1.msra.mxu0 %v741
    %2244 = vmatprep.subr.mxu0 %v746
    %2245 = vmatpush1.msra.mxu0 %v745
    %2246 = vmatprep.subr.mxu0 %v750
    %2247 = vmatpush1.msra.mxu0 %v749
    %2248 = vmatprep.subr.mxu0 %v754
    %2249 = vmatpush1.msra.mxu0 %v753
    %2250 = vmatprep.subr.mxu0 %v758
    %2251 = vmatpush1.msra.mxu0 %v757
    %2252 = vmatprep.subr.mxu0 %v762
    %2253 = vmatpush1.msra.mxu0 %v761
    %2254 = vmatprep.subr.mxu0 %v766
    %2255 = vmatpush1.msra.mxu0 %v765
    %2256 = vmatprep.subr.mxu0 0.0
    %2257 = vmatpush1.msra.mxu0 0.0
    %2258 = vmatprep.subr.mxu0 0.0
    %2259 = vmatpush1.msra.mxu0 0.0
    %2260 = vmatprep.subr.mxu0 0.0
    %2261 = vmatpush1.msra.mxu0 0.0
    %2262 = vmatprep.subr.mxu0 0.0
    %2263 = vmatpush1.msra.mxu0 0.0
    %2264 = vmatprep.subr.mxu0 0.0
    %2265 = vmatpush1.msra.mxu0 0.0
    %2266 = vmatprep.subr.mxu0 0.0
    %2267 = vmatpush1.msra.mxu0 0.0
    %2268 = vmatprep.subr.mxu0 0.0
    %2269 = vmatpush1.msra.mxu0 0.0
    %2270 = vmatprep.subr.mxu0 0.0
    %2271 = vmatpush1.msra.mxu0 0.0
    %2272 = vmatprep.subr.mxu0 0.0
    %2273 = vmatpush1.msra.mxu0 0.0
    %2274 = vmatprep.subr.mxu0 0.0
    %2275 = vmatpush1.msra.mxu0 0.0
    %2276 = vmatprep.subr.mxu0 0.0
    %2277 = vmatpush1.msra.mxu0 0.0
    %2278 = vmatprep.subr.mxu0 0.0
    %2279 = vmatpush1.msra.mxu0 0.0
    %2280 = vmatprep.subr.mxu0 0.0
    %2281 = vmatpush1.msra.mxu0 0.0
    %2282 = vmatprep.subr.mxu0 0.0
    %2283 = vmatpush1.msra.mxu0 0.0
    %2284 = vmatprep.subr.mxu0 0.0
    %2285 = vmatpush1.msra.mxu0 0.0
    %2286 = vmatprep.subr.mxu0 0.0
    %2287 = vmatpush1.msra.mxu0 0.0
    %2288 = vmatprep.mubr.f32.mxu0 0.0
    %2289 = vmatmul.mubr.f32.gmra.mrb[0].mxu0 %v2151
    %v2290 = vpop.f32.mrb[0].mxu0
    %v2291 = vadd.f32 0.0, %v2290
    %v2292 = vpop.f32.mrb[0].mxu0
    %v2293 = vadd.f32 0.0, %v2292
    %2294 = vdwg.mxu0
    %v2299 = vrot.slane %v2220, 2
    %v2300 = vrot.slane %v2222, 2
    %v2301 = vrot.slane %v2291, 2
    %v2302 = vrot.slane %v2293, 2
    %v2307 = vadd.f32 %v2146, %v2299
    %v2308 = vadd.f32 %v2147, %v2300
    %v2309 = vadd.f32 %v2148, %v2301
    %v2310 = vadd.f32 %v2149, %v2302
    %v2311 = vsub.f32 0.0, %v2307
    %v2312 = vmul.f32 %v2311, 1.442695
    %v2313 = vpow.pop %v2312
    %v2314 = vadd.f32 %v2313, 1.0
    %v2315 = vrcp.pop %v2314
    %v2316 = vmul.f32 1.0, %v2315
    %v2317 = vsub.f32 0.0, %v2308
    %v2318 = vmul.f32 %v2317, 1.442695
    %v2319 = vpow.pop %v2318
    %v2320 = vadd.f32 %v2319, 1.0
    %v2321 = vrcp.pop %v2320
    %v2322 = vmul.f32 1.0, %v2321
    %v2323 = vtanh.pop %v2309
    %v2324 = vsub.f32 0.0, %v2310
    %v2325 = vmul.f32 %v2324, 1.442695
    %v2326 = vpow.pop %v2325
    %v2327 = vadd.f32 %v2326, 1.0
    %v2328 = vrcp.pop %v2327
    %v2329 = vmul.f32 1.0, %v2328
    %v2331 = vrot.slane %v2142, 6
    %v2333 = vmul.f32 %v2322, %v2331
    %v2334 = vmul.f32 %v2316, %v2323
    %v2335 = vadd.f32 %v2333, %v2334
    %v2336 = vtanh.pop %v2335
    %v2337 = vmul.f32 %v2329, %v2336
    %2338 = vst [vmem:[#allocation5 + $0x8] sm:$0xc0] %v2337
    %v2339 = vld [vmem:[#allocation3 + $0x20] sm:$0xc0]
    %v2340 = vld [vmem:[#allocation3 + $0x28] sm:$0xc0]
    %v2341 = vld [vmem:[#allocation3 + $0x30] sm:$0xc0]
    %v2342 = vld [vmem:[#allocation3 + $0x38] sm:$0xc0]
    %2343 = vmatprep.subr.mxu0 %v768
    %2344 = vmatpush1.msra.mxu0 %v767
    %2345 = vmatprep.subr.mxu0 %v772
    %2346 = vmatpush1.msra.mxu0 %v771
    %2347 = vmatprep.subr.mxu0 %v776
    %2348 = vmatpush1.msra.mxu0 %v775
    %2349 = vmatprep.subr.mxu0 %v780
    %2350 = vmatpush1.msra.mxu0 %v779
    %2351 = vmatprep.subr.mxu0 %v784
    %2352 = vmatpush1.msra.mxu0 %v783
    %2353 = vmatprep.subr.mxu0 %v788
    %2354 = vmatpush1.msra.mxu0 %v787
    %2355 = vmatprep.subr.mxu0 %v792
    %2356 = vmatpush1.msra.mxu0 %v791
    %2357 = vmatprep.subr.mxu0 %v796
    %2358 = vmatpush1.msra.mxu0 %v795
    %2359 = vmatprep.subr.mxu0 %v800
    %2360 = vmatpush1.msra.mxu0 %v799
    %2361 = vmatprep.subr.mxu0 %v804
    %2362 = vmatpush1.msra.mxu0 %v803
    %2363 = vmatprep.subr.mxu0 %v808
    %2364 = vmatpush1.msra.mxu0 %v807
    %2365 = vmatprep.subr.mxu0 %v812
    %2366 = vmatpush1.msra.mxu0 %v811
    %2367 = vmatprep.subr.mxu0 %v816
    %2368 = vmatpush1.msra.mxu0 %v815
    %2369 = vmatprep.subr.mxu0 %v820
    %2370 = vmatpush1.msra.mxu0 %v819
    %2371 = vmatprep.subr.mxu0 %v824
    %2372 = vmatpush1.msra.mxu0 %v823
    %2373 = vmatprep.subr.mxu0 %v828
    %2374 = vmatpush1.msra.mxu0 %v827
    %2375 = vmatprep.subr.mxu0 0.0
    %2376 = vmatpush1.msra.mxu0 0.0
    %2377 = vmatprep.subr.mxu0 0.0
    %2378 = vmatpush1.msra.mxu0 0.0
    %2379 = vmatprep.subr.mxu0 0.0
    %2380 = vmatpush1.msra.mxu0 0.0
    %2381 = vmatprep.subr.mxu0 0.0
    %2382 = vmatpush1.msra.mxu0 0.0
    %2383 = vmatprep.subr.mxu0 0.0
    %2384 = vmatpush1.msra.mxu0 0.0
    %2385 = vmatprep.subr.mxu0 0.0
    %2386 = vmatpush1.msra.mxu0 0.0
    %2387 = vmatprep.subr.mxu0 0.0
    %2388 = vmatpush1.msra.mxu0 0.0
    %2389 = vmatprep.subr.mxu0 0.0
    %2390 = vmatpush1.msra.mxu0 0.0
    %2391 = vmatprep.subr.mxu0 0.0
    %2392 = vmatpush1.msra.mxu0 0.0
    %2393 = vmatprep.subr.mxu0 0.0
    %2394 = vmatpush1.msra.mxu0 0.0
    %2395 = vmatprep.subr.mxu0 0.0
    %2396 = vmatpush1.msra.mxu0 0.0
    %2397 = vmatprep.subr.mxu0 0.0
    %2398 = vmatpush1.msra.mxu0 0.0
    %2399 = vmatprep.subr.mxu0 0.0
    %2400 = vmatpush1.msra.mxu0 0.0
    %2401 = vmatprep.subr.mxu0 0.0
    %2402 = vmatpush1.msra.mxu0 0.0
    %2403 = vmatprep.subr.mxu0 0.0
    %2404 = vmatpush1.msra.mxu0 0.0
    %2405 = vmatprep.subr.mxu0 0.0
    %2406 = vmatpush1.msra.mxu0 0.0
    %2407 = vmatprep.mubr.f32.mxu0 0.0
    %2408 = vmatmul.mubr.f32.gmra.mrb[0].mxu0 0.0
    %v2409 = vpop.f32.mrb[0].mxu0
    %v2410 = vadd.f32 0.0, %v2409
    %v2411 = vpop.f32.mrb[0].mxu0
    %v2412 = vadd.f32 0.0, %v2411
    %2413 = vdwg.mxu0
    %2414 = vmatprep.subr.mxu0 %v770
    %2415 = vmatpush1.msra.mxu0 %v769
    %2416 = vmatprep.subr.mxu0 %v774
    %2417 = vmatpush1.msra.mxu0 %v773
    %2418 = vmatprep.subr.mxu0 %v778
    %2419 = vmatpush1.msra.mxu0 %v777
    %2420 = vmatprep.subr.mxu0 %v782
    %2421 = vmatpush1.msra.mxu0 %v781
    %2422 = vmatprep.subr.mxu0 %v786
    %2423 = vmatpush1.msra.mxu0 %v785
    %2424 = vmatprep.subr.mxu0 %v790
    %2425 = vmatpush1.msra.mxu0 %v789
    %2426 = vmatprep.subr.mxu0 %v794
    %2427 = vmatpush1.msra.mxu0 %v793
    %2428 = vmatprep.subr.mxu0 %v798
    %2429 = vmatpush1.msra.mxu0 %v797
    %2430 = vmatprep.subr.mxu0 %v802
    %2431 = vmatpush1.msra.mxu0 %v801
    %2432 = vmatprep.subr.mxu0 %v806
    %2433 = vmatpush1.msra.mxu0 %v805
    %2434 = vmatprep.subr.mxu0 %v810
    %2435 = vmatpush1.msra.mxu0 %v809
    %2436 = vmatprep.subr.mxu0 %v814
    %2437 = vmatpush1.msra.mxu0 %v813
    %2438 = vmatprep.subr.mxu0 %v818
    %2439 = vmatpush1.msra.mxu0 %v817
    %2440 = vmatprep.subr.mxu0 %v822
    %2441 = vmatpush1.msra.mxu0 %v821
    %2442 = vmatprep.subr.mxu0 %v826
    %2443 = vmatpush1.msra.mxu0 %v825
    %2444 = vmatprep.subr.mxu0 %v830
    %2445 = vmatpush1.msra.mxu0 %v829
    %2446 = vmatprep.subr.mxu0 0.0
    %2447 = vmatpush1.msra.mxu0 0.0
    %2448 = vmatprep.subr.mxu0 0.0
    %2449 = vmatpush1.msra.mxu0 0.0
    %2450 = vmatprep.subr.mxu0 0.0
    %2451 = vmatpush1.msra.mxu0 0.0
    %2452 = vmatprep.subr.mxu0 0.0
    %2453 = vmatpush1.msra.mxu0 0.0
    %2454 = vmatprep.subr.mxu0 0.0
    %2455 = vmatpush1.msra.mxu0 0.0
    %2456 = vmatprep.subr.mxu0 0.0
    %2457 = vmatpush1.msra.mxu0 0.0
    %2458 = vmatprep.subr.mxu0 0.0
    %2459 = vmatpush1.msra.mxu0 0.0
    %2460 = vmatprep.subr.mxu0 0.0
    %2461 = vmatpush1.msra.mxu0 0.0
    %2462 = vmatprep.subr.mxu0 0.0
    %2463 = vmatpush1.msra.mxu0 0.0
    %2464 = vmatprep.subr.mxu0 0.0
    %2465 = vmatpush1.msra.mxu0 0.0
    %2466 = vmatprep.subr.mxu0 0.0
    %2467 = vmatpush1.msra.mxu0 0.0
    %2468 = vmatprep.subr.mxu0 0.0
    %2469 = vmatpush1.msra.mxu0 0.0
    %2470 = vmatprep.subr.mxu0 0.0
    %2471 = vmatpush1.msra.mxu0 0.0
    %2472 = vmatprep.subr.mxu0 0.0
    %2473 = vmatpush1.msra.mxu0 0.0
    %2474 = vmatprep.subr.mxu0 0.0
    %2475 = vmatpush1.msra.mxu0 0.0
    %2476 = vmatprep.subr.mxu0 0.0
    %2477 = vmatpush1.msra.mxu0 0.0
    %2478 = vmatprep.mubr.f32.mxu0 0.0
    %2479 = vmatmul.mubr.f32.gmra.mrb[0].mxu0 0.0
    %v2480 = vpop.f32.mrb[0].mxu0
    %v2481 = vadd.f32 0.0, %v2480
    %v2482 = vpop.f32.mrb[0].mxu0
    %v2483 = vadd.f32 0.0, %v2482
    %2484 = vdwg.mxu0
    %v2489 = vrot.slane %v2410, 2
    %v2490 = vrot.slane %v2412, 2
    %v2491 = vrot.slane %v2481, 2
    %v2492 = vrot.slane %v2483, 2
    %v2497 = vadd.f32 %v2339, %v2489
    %v2498 = vadd.f32 %v2340, %v2490
    %v2499 = vadd.f32 %v2341, %v2491
    %v2500 = vadd.f32 %v2342, %v2492
    %v2501 = vsub.f32 0.0, %v2497
    %v2502 = vmul.f32 %v2501, 1.442695
    %v2503 = vpow.pop %v2502
    %v2504 = vadd.f32 %v2503, 1.0
    %v2505 = vrcp.pop %v2504
    %v2506 = vmul.f32 1.0, %v2505
    %v2507 = vsub.f32 0.0, %v2498
    %v2508 = vmul.f32 %v2507, 1.442695
    %v2509 = vpow.pop %v2508
    %v2510 = vadd.f32 %v2509, 1.0
    %v2511 = vrcp.pop %v2510
    %v2512 = vmul.f32 1.0, %v2511
    %v2513 = vtanh.pop %v2499
    %v2514 = vsub.f32 0.0, %v2500
    %v2515 = vmul.f32 %v2514, 1.442695
    %v2516 = vpow.pop %v2515
    %v2517 = vadd.f32 %v2516, 1.0
    %v2518 = vrcp.pop %v2517
    %v2519 = vmul.f32 1.0, %v2518
    %v2520 = vmul.f32 %v2512, 0.0
    %v2521 = vmul.f32 %v2506, %v2513
    %v2522 = vadd.f32 %v2520, %v2521
    %v2523 = vtanh.pop %v2522
    %v2524 = vmul.f32 %v2519, %v2523
    %2525 = vst [vmem:[#allocation6 + $0x8] sm:$0xc0] %v2524
    %v2526 = vld [vmem:[#allocation3 + $0x20] sm:$0x30]
    %v2527 = vld [vmem:[#allocation3 + $0x28] sm:$0x30]
    %v2528 = vld [vmem:[#allocation3 + $0x30] sm:$0x30]
    %v2529 = vld [vmem:[#allocation3 + $0x38] sm:$0x30]
    %v2531 = vrot.slane %v2524, 6
    %2533 = vmatprep.subr.mxu0 %v768
    %2534 = vmatpush1.msra.mxu0 %v767
    %2535 = vmatprep.subr.mxu0 %v772
    %2536 = vmatpush1.msra.mxu0 %v771
    %2537 = vmatprep.subr.mxu0 %v776
    %2538 = vmatpush1.msra.mxu0 %v775
    %2539 = vmatprep.subr.mxu0 %v780
    %2540 = vmatpush1.msra.mxu0 %v779
    %2541 = vmatprep.subr.mxu0 %v784
    %2542 = vmatpush1.msra.mxu0 %v783
    %2543 = vmatprep.subr.mxu0 %v788
    %2544 = vmatpush1.msra.mxu0 %v787
    %2545 = vmatprep.subr.mxu0 %v792
    %2546 = vmatpush1.msra.mxu0 %v791
    %2547 = vmatprep.subr.mxu0 %v796
    %2548 = vmatpush1.msra.mxu0 %v795
    %2549 = vmatprep.subr.mxu0 %v800
    %2550 = vmatpush1.msra.mxu0 %v799
    %2551 = vmatprep.subr.mxu0 %v804
    %2552 = vmatpush1.msra.mxu0 %v803
    %2553 = vmatprep.subr.mxu0 %v808
    %2554 = vmatpush1.msra.mxu0 %v807
    %2555 = vmatprep.subr.mxu0 %v812
    %2556 = vmatpush1.msra.mxu0 %v811
    %2557 = vmatprep.subr.mxu0 %v816
    %2558 = vmatpush1.msra.mxu0 %v815
    %2559 = vmatprep.subr.mxu0 %v820
    %2560 = vmatpush1.msra.mxu0 %v819
    %2561 = vmatprep.subr.mxu0 %v824
    %2562 = vmatpush1.msra.mxu0 %v823
    %2563 = vmatprep.subr.mxu0 %v828
    %2564 = vmatpush1.msra.mxu0 %v827
    %2565 = vmatprep.subr.mxu0 0.0
    %2566 = vmatpush1.msra.mxu0 0.0
    %2567 = vmatprep.subr.mxu0 0.0
    %2568 = vmatpush1.msra.mxu0 0.0
    %2569 = vmatprep.subr.mxu0 0.0
    %2570 = vmatpush1.msra.mxu0 0.0
    %2571 = vmatprep.subr.mxu0 0.0
    %2572 = vmatpush1.msra.mxu0 0.0
    %2573 = vmatprep.subr.mxu0 0.0
    %2574 = vmatpush1.msra.mxu0 0.0
    %2575 = vmatprep.subr.mxu0 0.0
    %2576 = vmatpush1.msra.mxu0 0.0
    %2577 = vmatprep.subr.mxu0 0.0
    %2578 = vmatpush1.msra.mxu0 0.0
    %2579 = vmatprep.subr.mxu0 0.0
    %2580 = vmatpush1.msra.mxu0 0.0
    %2581 = vmatprep.subr.mxu0 0.0
    %2582 = vmatpush1.msra.mxu0 0.0
    %2583 = vmatprep.subr.mxu0 0.0
    %2584 = vmatpush1.msra.mxu0 0.0
    %2585 = vmatprep.subr.mxu0 0.0
    %2586 = vmatpush1.msra.mxu0 0.0
    %2587 = vmatprep.subr.mxu0 0.0
    %2588 = vmatpush1.msra.mxu0 0.0
    %2589 = vmatprep.subr.mxu0 0.0
    %2590 = vmatpush1.msra.mxu0 0.0
    %2591 = vmatprep.subr.mxu0 0.0
    %2592 = vmatpush1.msra.mxu0 0.0
    %2593 = vmatprep.subr.mxu0 0.0
    %2594 = vmatpush1.msra.mxu0 0.0
    %2595 = vmatprep.subr.mxu0 0.0
    %2596 = vmatpush1.msra.mxu0 0.0
    %2597 = vmatprep.mubr.f32.mxu0 0.0
    %2598 = vmatmul.mubr.f32.gmra.mrb[0].mxu0 %v2531
    %v2599 = vpop.f32.mrb[0].mxu0
    %v2600 = vadd.f32 0.0, %v2599
    %v2601 = vpop.f32.mrb[0].mxu0
    %v2602 = vadd.f32 0.0, %v2601
    %2603 = vdwg.mxu0
    %2604 = vmatprep.subr.mxu0 %v770
    %2605 = vmatpush1.msra.mxu0 %v769
    %2606 = vmatprep.subr.mxu0 %v774
    %2607 = vmatpush1.msra.mxu0 %v773
    %2608 = vmatprep.subr.mxu0 %v778
    %2609 = vmatpush1.msra.mxu0 %v777
    %2610 = vmatprep.subr.mxu0 %v782
    %2611 = vmatpush1.msra.mxu0 %v781
    %2612 = vmatprep.subr.mxu0 %v786
    %2613 = vmatpush1.msra.mxu0 %v785
    %2614 = vmatprep.subr.mxu0 %v790
    %2615 = vmatpush1.msra.mxu0 %v789
    %2616 = vmatprep.subr.mxu0 %v794
    %2617 = vmatpush1.msra.mxu0 %v793
    %2618 = vmatprep.subr.mxu0 %v798
    %2619 = vmatpush1.msra.mxu0 %v797
    %2620 = vmatprep.subr.mxu0 %v802
    %2621 = vmatpush1.msra.mxu0 %v801
    %2622 = vmatprep.subr.mxu0 %v806
    %2623 = vmatpush1.msra.mxu0 %v805
    %2624 = vmatprep.subr.mxu0 %v810
    %2625 = vmatpush1.msra.mxu0 %v809
    %2626 = vmatprep.subr.mxu0 %v814
    %2627 = vmatpush1.msra.mxu0 %v813
    %2628 = vmatprep.subr.mxu0 %v818
    %2629 = vmatpush1.msra.mxu0 %v817
    %2630 = vmatprep.subr.mxu0 %v822
    %2631 = vmatpush1.msra.mxu0 %v821
    %2632 = vmatprep.subr.mxu0 %v826
    %2633 = vmatpush1.msra.mxu0 %v825
    %2634 = vmatprep.subr.mxu0 %v830
    %2635 = vmatpush1.msra.mxu0 %v829
    %2636 = vmatprep.subr.mxu0 0.0
    %2637 = vmatpush1.msra.mxu0 0.0
    %2638 = vmatprep.subr.mxu0 0.0
    %2639 = vmatpush1.msra.mxu0 0.0
    %2640 = vmatprep.subr.mxu0 0.0
    %2641 = vmatpush1.msra.mxu0 0.0
    %2642 = vmatprep.subr.mxu0 0.0
    %2643 = vmatpush1.msra.mxu0 0.0
    %2644 = vmatprep.subr.mxu0 0.0
    %2645 = vmatpush1.msra.mxu0 0.0
    %2646 = vmatprep.subr.mxu0 0.0
    %2647 = vmatpush1.msra.mxu0 0.0
    %2648 = vmatprep.subr.mxu0 0.0
    %2649 = vmatpush1.msra.mxu0 0.0
    %2650 = vmatprep.subr.mxu0 0.0
    %2651 = vmatpush1.msra.mxu0 0.0
    %2652 = vmatprep.subr.mxu0 0.0
    %2653 = vmatpush1.msra.mxu0 0.0
    %2654 = vmatprep.subr.mxu0 0.0
    %2655 = vmatpush1.msra.mxu0 0.0
    %2656 = vmatprep.subr.mxu0 0.0
    %2657 = vmatpush1.msra.mxu0 0.0
    %2658 = vmatprep.subr.mxu0 0.0
    %2659 = vmatpush1.msra.mxu0 0.0
    %2660 = vmatprep.subr.mxu0 0.0
    %2661 = vmatpush1.msra.mxu0 0.0
    %2662 = vmatprep.subr.mxu0 0.0
    %2663 = vmatpush1.msra.mxu0 0.0
    %2664 = vmatprep.subr.mxu0 0.0
    %2665 = vmatpush1.msra.mxu0 0.0
    %2666 = vmatprep.subr.mxu0 0.0
    %2667 = vmatpush1.msra.mxu0 0.0
    %2668 = vmatprep.mubr.f32.mxu0 0.0
    %2669 = vmatmul.mubr.f32.gmra.mrb[0].mxu0 %v2531
    %v2670 = vpop.f32.mrb[0].mxu0
    %v2671 = vadd.f32 0.0, %v2670
    %v2672 = vpop.f32.mrb[0].mxu0
    %v2673 = vadd.f32 0.0, %v2672
    %2674 = vdwg.mxu0
    %v2679 = vrot.slane %v2600, 4
    %v2680 = vrot.slane %v2602, 4
    %v2681 = vrot.slane %v2671, 4
    %v2682 = vrot.slane %v2673, 4
    %v2687 = vadd.f32 %v2526, %v2679
    %v2688 = vadd.f32 %v2527, %v2680
    %v2689 = vadd.f32 %v2528, %v2681
    %v2690 = vadd.f32 %v2529, %v2682
    %v2691 = vsub.f32 0.0, %v2687
    %v2692 = vmul.f32 %v2691, 1.442695
    %v2693 = vpow.pop %v2692
    %v2694 = vadd.f32 %v2693, 1.0
    %v2695 = vrcp.pop %v2694
    %v2696 = vmul.f32 1.0, %v2695
    %v2697 = vsub.f32 0.0, %v2688
    %v2698 = vmul.f32 %v2697, 1.442695
    %v2699 = vpow.pop %v2698
    %v2700 = vadd.f32 %v2699, 1.0
    %v2701 = vrcp.pop %v2700
    %v2702 = vmul.f32 1.0, %v2701
    %v2703 = vtanh.pop %v2689
    %v2704 = vsub.f32 0.0, %v2690
    %v2705 = vmul.f32 %v2704, 1.442695
    %v2706 = vpow.pop %v2705
    %v2707 = vadd.f32 %v2706, 1.0
    %v2708 = vrcp.pop %v2707
    %v2709 = vmul.f32 1.0, %v2708
    %v2711 = vrot.slane %v2522, 2
    %v2713 = vmul.f32 %v2702, %v2711
    %v2714 = vmul.f32 %v2696, %v2703
    %v2715 = vadd.f32 %v2713, %v2714
    %v2716 = vtanh.pop %v2715
    %v2717 = vmul.f32 %v2709, %v2716
    %2718 = vst [vmem:[#allocation6 + $0x8] sm:$0x30] %v2717
    %v2719 = vld [vmem:[#allocation3 + $0x20] sm:$0xc]
    %v2720 = vld [vmem:[#allocation3 + $0x28] sm:$0xc]
    %v2721 = vld [vmem:[#allocation3 + $0x30] sm:$0xc]
    %v2722 = vld [vmem:[#allocation3 + $0x38] sm:$0xc]
    %v2724 = vrot.slane %v2717, 4
    %2726 = vmatprep.subr.mxu0 %v768
    %2727 = vmatpush1.msra.mxu0 %v767
    %2728 = vmatprep.subr.mxu0 %v772
    %2729 = vmatpush1.msra.mxu0 %v771
    %2730 = vmatprep.subr.mxu0 %v776
    %2731 = vmatpush1.msra.mxu0 %v775
    %2732 = vmatprep.subr.mxu0 %v780
    %2733 = vmatpush1.msra.mxu0 %v779
    %2734 = vmatprep.subr.mxu0 %v784
    %2735 = vmatpush1.msra.mxu0 %v783
    %2736 = vmatprep.subr.mxu0 %v788
    %2737 = vmatpush1.msra.mxu0 %v787
    %2738 = vmatprep.subr.mxu0 %v792
    %2739 = vmatpush1.msra.mxu0 %v791
    %2740 = vmatprep.subr.mxu0 %v796
    %2741 = vmatpush1.msra.mxu0 %v795
    %2742 = vmatprep.subr.mxu0 %v800
    %2743 = vmatpush1.msra.mxu0 %v799
    %2744 = vmatprep.subr.mxu0 %v804
    %2745 = vmatpush1.msra.mxu0 %v803
    %2746 = vmatprep.subr.mxu0 %v808
    %2747 = vmatpush1.msra.mxu0 %v807
    %2748 = vmatprep.subr.mxu0 %v812
    %2749 = vmatpush1.msra.mxu0 %v811
    %2750 = vmatprep.subr.mxu0 %v816
    %2751 = vmatpush1.msra.mxu0 %v815
    %2752 = vmatprep.subr.mxu0 %v820
    %2753 = vmatpush1.msra.mxu0 %v819
    %2754 = vmatprep.subr.mxu0 %v824
    %2755 = vmatpush1.msra.mxu0 %v823
    %2756 = vmatprep.subr.mxu0 %v828
    %2757 = vmatpush1.msra.mxu0 %v827
    %2758 = vmatprep.subr.mxu0 0.0
    %2759 = vmatpush1.msra.mxu0 0.0
    %2760 = vmatprep.subr.mxu0 0.0
    %2761 = vmatpush1.msra.mxu0 0.0
    %2762 = vmatprep.subr.mxu0 0.0
    %2763 = vmatpush1.msra.mxu0 0.0
    %2764 = vmatprep.subr.mxu0 0.0
    %2765 = vmatpush1.msra.mxu0 0.0
    %2766 = vmatprep.subr.mxu0 0.0
    %2767 = vmatpush1.msra.mxu0 0.0
    %2768 = vmatprep.subr.mxu0 0.0
    %2769 = vmatpush1.msra.mxu0 0.0
    %2770 = vmatprep.subr.mxu0 0.0
    %2771 = vmatpush1.msra.mxu0 0.0
    %2772 = vmatprep.subr.mxu0 0.0
    %2773 = vmatpush1.msra.mxu0 0.0
    %2774 = vmatprep.subr.mxu0 0.0
    %2775 = vmatpush1.msra.mxu0 0.0
    %2776 = vmatprep.subr.mxu0 0.0
    %2777 = vmatpush1.msra.mxu0 0.0
    %2778 = vmatprep.subr.mxu0 0.0
    %2779 = vmatpush1.msra.mxu0 0.0
    %2780 = vmatprep.subr.mxu0 0.0
    %2781 = vmatpush1.msra.mxu0 0.0
    %2782 = vmatprep.subr.mxu0 0.0
    %2783 = vmatpush1.msra.mxu0 0.0
    %2784 = vmatprep.subr.mxu0 0.0
    %2785 = vmatpush1.msra.mxu0 0.0
    %2786 = vmatprep.subr.mxu0 0.0
    %2787 = vmatpush1.msra.mxu0 0.0
    %2788 = vmatprep.subr.mxu0 0.0
    %2789 = vmatpush1.msra.mxu0 0.0
    %2790 = vmatprep.mubr.f32.mxu0 0.0
    %2791 = vmatmul.mubr.f32.gmra.mrb[0].mxu0 %v2724
    %v2792 = vpop.f32.mrb[0].mxu0
    %v2793 = vadd.f32 0.0, %v2792
    %v2794 = vpop.f32.mrb[0].mxu0
    %v2795 = vadd.f32 0.0, %v2794
    %2796 = vdwg.mxu0
    %2797 = vmatprep.subr.mxu0 %v770
    %2798 = vmatpush1.msra.mxu0 %v769
    %2799 = vmatprep.subr.mxu0 %v774
    %2800 = vmatpush1.msra.mxu0 %v773
    %2801 = vmatprep.subr.mxu0 %v778
    %2802 = vmatpush1.msra.mxu0 %v777
    %2803 = vmatprep.subr.mxu0 %v782
    %2804 = vmatpush1.msra.mxu0 %v781
    %2805 = vmatprep.subr.mxu0 %v786
    %2806 = vmatpush1.msra.mxu0 %v785
    %2807 = vmatprep.subr.mxu0 %v790
    %2808 = vmatpush1.msra.mxu0 %v789
    %2809 = vmatprep.subr.mxu0 %v794
    %2810 = vmatpush1.msra.mxu0 %v793
    %2811 = vmatprep.subr.mxu0 %v798
    %2812 = vmatpush1.msra.mxu0 %v797
    %2813 = vmatprep.subr.mxu0 %v802
    %2814 = vmatpush1.msra.mxu0 %v801
    %2815 = vmatprep.subr.mxu0 %v806
    %2816 = vmatpush1.msra.mxu0 %v805
    %2817 = vmatprep.subr.mxu0 %v810
    %2818 = vmatpush1.msra.mxu0 %v809
    %2819 = vmatprep.subr.mxu0 %v814
    %2820 = vmatpush1.msra.mxu0 %v813
    %2821 = vmatprep.subr.mxu0 %v818
    %2822 = vmatpush1.msra.mxu0 %v817
    %2823 = vmatprep.subr.mxu0 %v822
    %2824 = vmatpush1.msra.mxu0 %v821
    %2825 = vmatprep.subr.mxu0 %v826
    %2826 = vmatpush1.msra.mxu0 %v825
    %2827 = vmatprep.subr.mxu0 %v830
    %2828 = vmatpush1.msra.mxu0 %v829
    %2829 = vmatprep.subr.mxu0 0.0
    %2830 = vmatpush1.msra.mxu0 0.0
    %2831 = vmatprep.subr.mxu0 0.0
    %2832 = vmatpush1.msra.mxu0 0.0
    %2833 = vmatprep.subr.mxu0 0.0
    %2834 = vmatpush1.msra.mxu0 0.0
    %2835 = vmatprep.subr.mxu0 0.0
    %2836 = vmatpush1.msra.mxu0 0.0
    %2837 = vmatprep.subr.mxu0 0.0
    %2838 = vmatpush1.msra.mxu0 0.0
    %2839 = vmatprep.subr.mxu0 0.0
    %2840 = vmatpush1.msra.mxu0 0.0
    %2841 = vmatprep.subr.mxu0 0.0
    %2842 = vmatpush1.msra.mxu0 0.0
    %2843 = vmatprep.subr.mxu0 0.0
    %2844 = vmatpush1.msra.mxu0 0.0
    %2845 = vmatprep.subr.mxu0 0.0
    %2846 = vmatpush1.msra.mxu0 0.0
    %2847 = vmatprep.subr.mxu0 0.0
    %2848 = vmatpush1.msra.mxu0 0.0
    %2849 = vmatprep.subr.mxu0 0.0
    %2850 = vmatpush1.msra.mxu0 0.0
    %2851 = vmatprep.subr.mxu0 0.0
    %2852 = vmatpush1.msra.mxu0 0.0
    %2853 = vmatprep.subr.mxu0 0.0
    %2854 = vmatpush1.msra.mxu0 0.0
    %2855 = vmatprep.subr.mxu0 0.0
    %2856 = vmatpush1.msra.mxu0 0.0
    %2857 = vmatprep.subr.mxu0 0.0
    %2858 = vmatpush1.msra.mxu0 0.0
    %2859 = vmatprep.subr.mxu0 0.0
    %2860 = vmatpush1.msra.mxu0 0.0
    %2861 = vmatprep.mubr.f32.mxu0 0.0
    %2862 = vmatmul.mubr.f32.gmra.mrb[0].mxu0 %v2724
    %v2863 = vpop.f32.mrb[0].mxu0
    %v2864 = vadd.f32 0.0, %v2863
    %v2865 = vpop.f32.mrb[0].mxu0
    %v2866 = vadd.f32 0.0, %v2865
    %2867 = vdwg.mxu0
    %v2872 = vrot.slane %v2793, 6
    %v2873 = vrot.slane %v2795, 6
    %v2874 = vrot.slane %v2864, 6
    %v2875 = vrot.slane %v2866, 6
    %v2880 = vadd.f32 %v2719, %v2872
    %v2881 = vadd.f32 %v2720, %v2873
    %v2882 = vadd.f32 %v2721, %v2874
    %v2883 = vadd.f32 %v2722, %v2875
    %v2884 = vsub.f32 0.0, %v2880
    %v2885 = vmul.f32 %v2884, 1.442695
    %v2886 = vpow.pop %v2885
    %v2887 = vadd.f32 %v2886, 1.0
    %v2888 = vrcp.pop %v2887
    %v2889 = vmul.f32 1.0, %v2888
    %v2890 = vsub.f32 0.0, %v2881
    %v2891 = vmul.f32 %v2890, 1.442695
    %v2892 = vpow.pop %v2891
    %v2893 = vadd.f32 %v2892, 1.0
    %v2894 = vrcp.pop %v2893
    %v2895 = vmul.f32 1.0, %v2894
    %v2896 = vtanh.pop %v2882
    %v2897 = vsub.f32 0.0, %v2883
    %v2898 = vmul.f32 %v2897, 1.442695
    %v2899 = vpow.pop %v2898
    %v2900 = vadd.f32 %v2899, 1.0
    %v2901 = vrcp.pop %v2900
    %v2902 = vmul.f32 1.0, %v2901
    %v2904 = vrot.slane %v2715, 2
    %v2906 = vmul.f32 %v2895, %v2904
    %v2907 = vmul.f32 %v2889, %v2896
    %v2908 = vadd.f32 %v2906, %v2907
    %v2909 = vtanh.pop %v2908
    %v2910 = vmul.f32 %v2902, %v2909
    %2911 = vst [vmem:[#allocation6 + $0x8] sm:$0xc] %v2910
    %v2912 = vld [vmem:[#allocation3 + $0x20] sm:$0x3]
    %v2913 = vld [vmem:[#allocation3 + $0x28] sm:$0x3]
    %v2914 = vld [vmem:[#allocation3 + $0x30] sm:$0x3]
    %v2915 = vld [vmem:[#allocation3 + $0x38] sm:$0x3]
    %v2917 = vrot.slane %v2910, 2
    %2919 = vmatprep.subr.mxu0 %v768
    %2920 = vmatpush1.msra.mxu0 %v767
    %2921 = vmatprep.subr.mxu0 %v772
    %2922 = vmatpush1.msra.mxu0 %v771
    %2923 = vmatprep.subr.mxu0 %v776
    %2924 = vmatpush1.msra.mxu0 %v775
    %2925 = vmatprep.subr.mxu0 %v780
    %2926 = vmatpush1.msra.mxu0 %v779
    %2927 = vmatprep.subr.mxu0 %v784
    %2928 = vmatpush1.msra.mxu0 %v783
    %2929 = vmatprep.subr.mxu0 %v788
    %2930 = vmatpush1.msra.mxu0 %v787
    %2931 = vmatprep.subr.mxu0 %v792
    %2932 = vmatpush1.msra.mxu0 %v791
    %2933 = vmatprep.subr.mxu0 %v796
    %2934 = vmatpush1.msra.mxu0 %v795
    %2935 = vmatprep.subr.mxu0 %v800
    %2936 = vmatpush1.msra.mxu0 %v799
    %2937 = vmatprep.subr.mxu0 %v804
    %2938 = vmatpush1.msra.mxu0 %v803
    %2939 = vmatprep.subr.mxu0 %v808
    %2940 = vmatpush1.msra.mxu0 %v807
    %2941 = vmatprep.subr.mxu0 %v812
    %2942 = vmatpush1.msra.mxu0 %v811
    %2943 = vmatprep.subr.mxu0 %v816
    %2944 = vmatpush1.msra.mxu0 %v815
    %2945 = vmatprep.subr.mxu0 %v820
    %2946 = vmatpush1.msra.mxu0 %v819
    %2947 = vmatprep.subr.mxu0 %v824
    %2948 = vmatpush1.msra.mxu0 %v823
    %2949 = vmatprep.subr.mxu0 %v828
    %2950 = vmatpush1.msra.mxu0 %v827
    %2951 = vmatprep.subr.mxu0 0.0
    %2952 = vmatpush1.msra.mxu0 0.0
    %2953 = vmatprep.subr.mxu0 0.0
    %2954 = vmatpush1.msra.mxu0 0.0
    %2955 = vmatprep.subr.mxu0 0.0
    %2956 = vmatpush1.msra.mxu0 0.0
    %2957 = vmatprep.subr.mxu0 0.0
    %2958 = vmatpush1.msra.mxu0 0.0
    %2959 = vmatprep.subr.mxu0 0.0
    %2960 = vmatpush1.msra.mxu0 0.0
    %2961 = vmatprep.subr.mxu0 0.0
    %2962 = vmatpush1.msra.mxu0 0.0
    %2963 = vmatprep.subr.mxu0 0.0
    %2964 = vmatpush1.msra.mxu0 0.0
    %2965 = vmatprep.subr.mxu0 0.0
    %2966 = vmatpush1.msra.mxu0 0.0
    %2967 = vmatprep.subr.mxu0 0.0
    %2968 = vmatpush1.msra.mxu0 0.0
    %2969 = vmatprep.subr.mxu0 0.0
    %2970 = vmatpush1.msra.mxu0 0.0
    %2971 = vmatprep.subr.mxu0 0.0
    %2972 = vmatpush1.msra.mxu0 0.0
    %2973 = vmatprep.subr.mxu0 0.0
    %2974 = vmatpush1.msra.mxu0 0.0
    %2975 = vmatprep.subr.mxu0 0.0
    %2976 = vmatpush1.msra.mxu0 0.0
    %2977 = vmatprep.subr.mxu0 0.0
    %2978 = vmatpush1.msra.mxu0 0.0
    %2979 = vmatprep.subr.mxu0 0.0
    %2980 = vmatpush1.msra.mxu0 0.0
    %2981 = vmatprep.subr.mxu0 0.0
    %2982 = vmatpush1.msra.mxu0 0.0
    %2983 = vmatprep.mubr.f32.mxu0 0.0
    %2984 = vmatmul.mubr.f32.gmra.mrb[0].mxu0 %v2917
    %v2985 = vpop.f32.mrb[0].mxu0
    %v2986 = vadd.f32 0.0, %v2985
    %v2987 = vpop.f32.mrb[0].mxu0
    %v2988 = vadd.f32 0.0, %v2987
    %2989 = vdwg.mxu0
    %2990 = vmatprep.subr.mxu0 %v770
    %2991 = vmatpush1.msra.mxu0 %v769
    %2992 = vmatprep.subr.mxu0 %v774
    %2993 = vmatpush1.msra.mxu0 %v773
    %2994 = vmatprep.subr.mxu0 %v778
    %2995 = vmatpush1.msra.mxu0 %v777
    %2996 = vmatprep.subr.mxu0 %v782
    %2997 = vmatpush1.msra.mxu0 %v781
    %2998 = vmatprep.subr.mxu0 %v786
    %2999 = vmatpush1.msra.mxu0 %v785
    %3000 = vmatprep.subr.mxu0 %v790
    %3001 = vmatpush1.msra.mxu0 %v789
    %3002 = vmatprep.subr.mxu0 %v794
    %3003 = vmatpush1.msra.mxu0 %v793
    %3004 = vmatprep.subr.mxu0 %v798
    %3005 = vmatpush1.msra.mxu0 %v797
    %3006 = vmatprep.subr.mxu0 %v802
    %3007 = vmatpush1.msra.mxu0 %v801
    %3008 = vmatprep.subr.mxu0 %v806
    %3009 = vmatpush1.msra.mxu0 %v805
    %3010 = vmatprep.subr.mxu0 %v810
    %3011 = vmatpush1.msra.mxu0 %v809
    %3012 = vmatprep.subr.mxu0 %v814
    %3013 = vmatpush1.msra.mxu0 %v813
    %3014 = vmatprep.subr.mxu0 %v818
    %3015 = vmatpush1.msra.mxu0 %v817
    %3016 = vmatprep.subr.mxu0 %v822
    %3017 = vmatpush1.msra.mxu0 %v821
    %3018 = vmatprep.subr.mxu0 %v826
    %3019 = vmatpush1.msra.mxu0 %v825
    %3020 = vmatprep.subr.mxu0 %v830
    %3021 = vmatpush1.msra.mxu0 %v829
    %3022 = vmatprep.subr.mxu0 0.0
    %3023 = vmatpush1.msra.mxu0 0.0
    %3024 = vmatprep.subr.mxu0 0.0
    %3025 = vmatpush1.msra.mxu0 0.0
    %3026 = vmatprep.subr.mxu0 0.0
    %3027 = vmatpush1.msra.mxu0 0.0
    %3028 = vmatprep.subr.mxu0 0.0
    %3029 = vmatpush1.msra.mxu0 0.0
    %3030 = vmatprep.subr.mxu0 0.0
    %3031 = vmatpush1.msra.mxu0 0.0
    %3032 = vmatprep.subr.mxu0 0.0
    %3033 = vmatpush1.msra.mxu0 0.0
    %3034 = vmatprep.subr.mxu0 0.0
    %3035 = vmatpush1.msra.mxu0 0.0
    %3036 = vmatprep.subr.mxu0 0.0
    %3037 = vmatpush1.msra.mxu0 0.0
    %3038 = vmatprep.subr.mxu0 0.0
    %3039 = vmatpush1.msra.mxu0 0.0
    %3040 = vmatprep.subr.mxu0 0.0
    %3041 = vmatpush1.msra.mxu0 0.0
    %3042 = vmatprep.subr.mxu0 0.0
    %3043 = vmatpush1.msra.mxu0 0.0
    %3044 = vmatprep.subr.mxu0 0.0
    %3045 = vmatpush1.msra.mxu0 0.0
    %3046 = vmatprep.subr.mxu0 0.0
    %3047 = vmatpush1.msra.mxu0 0.0
    %3048 = vmatprep.subr.mxu0 0.0
    %3049 = vmatpush1.msra.mxu0 0.0
    %3050 = vmatprep.subr.mxu0 0.0
    %3051 = vmatpush1.msra.mxu0 0.0
    %3052 = vmatprep.subr.mxu0 0.0
    %3053 = vmatpush1.msra.mxu0 0.0
    %3054 = vmatprep.mubr.f32.mxu0 0.0
    %3055 = vmatmul.mubr.f32.gmra.mrb[0].mxu0 %v2917
    %v3056 = vpop.f32.mrb[0].mxu0
    %v3057 = vadd.f32 0.0, %v3056
    %v3058 = vpop.f32.mrb[0].mxu0
    %v3059 = vadd.f32 0.0, %v3058
    %3060 = vdwg.mxu0
    %v3061 = vadd.f32 %v2912, %v2986
    %v3062 = vadd.f32 %v2913, %v2988
    %v3063 = vadd.f32 %v2914, %v3057
    %v3064 = vadd.f32 %v2915, %v3059
    %v3065 = vsub.f32 0.0, %v3061
    %v3066 = vmul.f32 %v3065, 1.442695
    %v3067 = vpow.pop %v3066
    %v3068 = vadd.f32 %v3067, 1.0
    %v3069 = vrcp.pop %v3068
    %v3070 = vmul.f32 1.0, %v3069
    %v3071 = vsub.f32 0.0, %v3062
    %v3072 = vmul.f32 %v3071, 1.442695
    %v3073 = vpow.pop %v3072
    %v3074 = vadd.f32 %v3073, 1.0
    %v3075 = vrcp.pop %v3074
    %v3076 = vmul.f32 1.0, %v3075
    %v3077 = vtanh.pop %v3063
    %v3078 = vsub.f32 0.0, %v3064
    %v3079 = vmul.f32 %v3078, 1.442695
    %v3080 = vpow.pop %v3079
    %v3081 = vadd.f32 %v3080, 1.0
    %v3082 = vrcp.pop %v3081
    %v3083 = vmul.f32 1.0, %v3082
    %v3085 = vrot.slane %v2908, 2
    %v3087 = vmul.f32 %v3076, %v3085
    %v3088 = vmul.f32 %v3070, %v3077
    %v3089 = vadd.f32 %v3087, %v3088
    %v3090 = vtanh.pop %v3089
    %v3091 = vmul.f32 %v3083, %v3090
    %3092 = vst [vmem:[#allocation6 + $0x8] sm:$0x3] %v3091
    %v3093 = vld [vmem:[#allocation3] sm:$0xc0]
    %v3094 = vld [vmem:[#allocation3 + $0x8] sm:$0xc0]
    %v3095 = vld [vmem:[#allocation3 + $0x10] sm:$0xc0]
    %v3096 = vld [vmem:[#allocation3 + $0x18] sm:$0xc0]
    %3097 = vmatprep.subr.mxu0 %v768
    %3098 = vmatpush1.msra.mxu0 %v767
    %3099 = vmatprep.subr.mxu0 %v772
    %3100 = vmatpush1.msra.mxu0 %v771
    %3101 = vmatprep.subr.mxu0 %v776
    %3102 = vmatpush1.msra.mxu0 %v775
    %3103 = vmatprep.subr.mxu0 %v780
    %3104 = vmatpush1.msra.mxu0 %v779
    %3105 = vmatprep.subr.mxu0 %v784
    %3106 = vmatpush1.msra.mxu0 %v783
    %3107 = vmatprep.subr.mxu0 %v788
    %3108 = vmatpush1.msra.mxu0 %v787
    %3109 = vmatprep.subr.mxu0 %v792
    %3110 = vmatpush1.msra.mxu0 %v791
    %3111 = vmatprep.subr.mxu0 %v796
    %3112 = vmatpush1.msra.mxu0 %v795
    %3113 = vmatprep.subr.mxu0 %v800
    %3114 = vmatpush1.msra.mxu0 %v799
    %3115 = vmatprep.subr.mxu0 %v804
    %3116 = vmatpush1.msra.mxu0 %v803
    %3117 = vmatprep.subr.mxu0 %v808
    %3118 = vmatpush1.msra.mxu0 %v807
    %3119 = vmatprep.subr.mxu0 %v812
    %3120 = vmatpush1.msra.mxu0 %v811
    %3121 = vmatprep.subr.mxu0 %v816
    %3122 = vmatpush1.msra.mxu0 %v815
    %3123 = vmatprep.subr.mxu0 %v820
    %3124 = vmatpush1.msra.mxu0 %v819
    %3125 = vmatprep.subr.mxu0 %v824
    %3126 = vmatpush1.msra.mxu0 %v823
    %3127 = vmatprep.subr.mxu0 %v828
    %3128 = vmatpush1.msra.mxu0 %v827
    %3129 = vmatprep.subr.mxu0 0.0
    %3130 = vmatpush1.msra.mxu0 0.0
    %3131 = vmatprep.subr.mxu0 0.0
    %3132 = vmatpush1.msra.mxu0 0.0
    %3133 = vmatprep.subr.mxu0 0.0
    %3134 = vmatpush1.msra.mxu0 0.0
    %3135 = vmatprep.subr.mxu0 0.0
    %3136 = vmatpush1.msra.mxu0 0.0
    %3137 = vmatprep.subr.mxu0 0.0
    %3138 = vmatpush1.msra.mxu0 0.0
    %3139 = vmatprep.subr.mxu0 0.0
    %3140 = vmatpush1.msra.mxu0 0.0
    %3141 = vmatprep.subr.mxu0 0.0
    %3142 = vmatpush1.msra.mxu0 0.0
    %3143 = vmatprep.subr.mxu0 0.0
    %3144 = vmatpush1.msra.mxu0 0.0
    %3145 = vmatprep.subr.mxu0 0.0
    %3146 = vmatpush1.msra.mxu0 0.0
    %3147 = vmatprep.subr.mxu0 0.0
    %3148 = vmatpush1.msra.mxu0 0.0
    %3149 = vmatprep.subr.mxu0 0.0
    %3150 = vmatpush1.msra.mxu0 0.0
    %3151 = vmatprep.subr.mxu0 0.0
    %3152 = vmatpush1.msra.mxu0 0.0
    %3153 = vmatprep.subr.mxu0 0.0
    %3154 = vmatpush1.msra.mxu0 0.0
    %3155 = vmatprep.subr.mxu0 0.0
    %3156 = vmatpush1.msra.mxu0 0.0
    %3157 = vmatprep.subr.mxu0 0.0
    %3158 = vmatpush1.msra.mxu0 0.0
    %3159 = vmatprep.subr.mxu0 0.0
    %3160 = vmatpush1.msra.mxu0 0.0
    %3161 = vmatprep.mubr.f32.mxu0 0.0
    %3162 = vmatmul.mubr.f32.gmra.mrb[0].mxu0 %v3091
    %v3163 = vpop.f32.mrb[0].mxu0
    %v3164 = vadd.f32 0.0, %v3163
    %v3165 = vpop.f32.mrb[0].mxu0
    %v3166 = vadd.f32 0.0, %v3165
    %3167 = vdwg.mxu0
    %3168 = vmatprep.subr.mxu0 %v770
    %3169 = vmatpush1.msra.mxu0 %v769
    %3170 = vmatprep.subr.mxu0 %v774
    %3171 = vmatpush1.msra.mxu0 %v773
    %3172 = vmatprep.subr.mxu0 %v778
    %3173 = vmatpush1.msra.mxu0 %v777
    %3174 = vmatprep.subr.mxu0 %v782
    %3175 = vmatpush1.msra.mxu0 %v781
    %3176 = vmatprep.subr.mxu0 %v786
    %3177 = vmatpush1.msra.mxu0 %v785
    %3178 = vmatprep.subr.mxu0 %v790
    %3179 = vmatpush1.msra.mxu0 %v789
    %3180 = vmatprep.subr.mxu0 %v794
    %3181 = vmatpush1.msra.mxu0 %v793
    %3182 = vmatprep.subr.mxu0 %v798
    %3183 = vmatpush1.msra.mxu0 %v797
    %3184 = vmatprep.subr.mxu0 %v802
    %3185 = vmatpush1.msra.mxu0 %v801
    %3186 = vmatprep.subr.mxu0 %v806
    %3187 = vmatpush1.msra.mxu0 %v805
    %3188 = vmatprep.subr.mxu0 %v810
    %3189 = vmatpush1.msra.mxu0 %v809
    %3190 = vmatprep.subr.mxu0 %v814
    %3191 = vmatpush1.msra.mxu0 %v813
    %3192 = vmatprep.subr.mxu0 %v818
    %3193 = vmatpush1.msra.mxu0 %v817
    %3194 = vmatprep.subr.mxu0 %v822
    %3195 = vmatpush1.msra.mxu0 %v821
    %3196 = vmatprep.subr.mxu0 %v826
    %3197 = vmatpush1.msra.mxu0 %v825
    %3198 = vmatprep.subr.mxu0 %v830
    %3199 = vmatpush1.msra.mxu0 %v829
    %3200 = vmatprep.subr.mxu0 0.0
    %3201 = vmatpush1.msra.mxu0 0.0
    %3202 = vmatprep.subr.mxu0 0.0
    %3203 = vmatpush1.msra.mxu0 0.0
    %3204 = vmatprep.subr.mxu0 0.0
    %3205 = vmatpush1.msra.mxu0 0.0
    %3206 = vmatprep.subr.mxu0 0.0
    %3207 = vmatpush1.msra.mxu0 0.0
    %3208 = vmatprep.subr.mxu0 0.0
    %3209 = vmatpush1.msra.mxu0 0.0
    %3210 = vmatprep.subr.mxu0 0.0
    %3211 = vmatpush1.msra.mxu0 0.0
    %3212 = vmatprep.subr.mxu0 0.0
    %3213 = vmatpush1.msra.mxu0 0.0
    %3214 = vmatprep.subr.mxu0 0.0
    %3215 = vmatpush1.msra.mxu0 0.0
    %3216 = vmatprep.subr.mxu0 0.0
    %3217 = vmatpush1.msra.mxu0 0.0
    %3218 = vmatprep.subr.mxu0 0.0
    %3219 = vmatpush1.msra.mxu0 0.0
    %3220 = vmatprep.subr.mxu0 0.0
    %3221 = vmatpush1.msra.mxu0 0.0
    %3222 = vmatprep.subr.mxu0 0.0
    %3223 = vmatpush1.msra.mxu0 0.0
    %3224 = vmatprep.subr.mxu0 0.0
    %3225 = vmatpush1.msra.mxu0 0.0
    %3226 = vmatprep.subr.mxu0 0.0
    %3227 = vmatpush1.msra.mxu0 0.0
    %3228 = vmatprep.subr.mxu0 0.0
    %3229 = vmatpush1.msra.mxu0 0.0
    %3230 = vmatprep.subr.mxu0 0.0
    %3231 = vmatpush1.msra.mxu0 0.0
    %3232 = vmatprep.mubr.f32.mxu0 0.0
    %3233 = vmatmul.mubr.f32.gmra.mrb[0].mxu0 %v3091
    %v3234 = vpop.f32.mrb[0].mxu0
    %v3235 = vadd.f32 0.0, %v3234
    %v3236 = vpop.f32.mrb[0].mxu0
    %v3237 = vadd.f32 0.0, %v3236
    %3238 = vdwg.mxu0
    %v3243 = vrot.slane %v3164, 2
    %v3244 = vrot.slane %v3166, 2
    %v3245 = vrot.slane %v3235, 2
    %v3246 = vrot.slane %v3237, 2
    %v3251 = vadd.f32 %v3093, %v3243
    %v3252 = vadd.f32 %v3094, %v3244
    %v3253 = vadd.f32 %v3095, %v3245
    %v3254 = vadd.f32 %v3096, %v3246
    %v3255 = vsub.f32 0.0, %v3251
    %v3256 = vmul.f32 %v3255, 1.442695
    %v3257 = vpow.pop %v3256
    %v3258 = vadd.f32 %v3257, 1.0
    %v3259 = vrcp.pop %v3258
    %v3260 = vmul.f32 1.0, %v3259
    %v3261 = vsub.f32 0.0, %v3252
    %v3262 = vmul.f32 %v3261, 1.442695
    %v3263 = vpow.pop %v3262
    %v3264 = vadd.f32 %v3263, 1.0
    %v3265 = vrcp.pop %v3264
    %v3266 = vmul.f32 1.0, %v3265
    %v3267 = vtanh.pop %v3253
    %v3268 = vsub.f32 0.0, %v3254
    %v3269 = vmul.f32 %v3268, 1.442695
    %v3270 = vpow.pop %v3269
    %v3271 = vadd.f32 %v3270, 1.0
    %v3272 = vrcp.pop %v3271
    %v3273 = vmul.f32 1.0, %v3272
    %v3275 = vrot.slane %v3089, 2
    %v3277 = vmul.f32 %v3266, %v3275
    %v3278 = vmul.f32 %v3260, %v3267
    %v3279 = vadd.f32 %v3277, %v3278
    %v3280 = vtanh.pop %v3279
    %v3281 = vmul.f32 %v3273, %v3280
    %3282 = vst [vmem:[#allocation6] sm:$0xc0] %v3281
    %v3283 = vld [vmem:[#allocation3] sm:$0x30]
    %v3284 = vld [vmem:[#allocation3 + $0x8] sm:$0x30]
    %v3285 = vld [vmem:[#allocation3 + $0x10] sm:$0x30]
    %v3286 = vld [vmem:[#allocation3 + $0x18] sm:$0x30]
    %v3288 = vrot.slane %v3281, 6
    %3290 = vmatprep.subr.mxu0 %v768
    %3291 = vmatpush1.msra.mxu0 %v767
    %3292 = vmatprep.subr.mxu0 %v772
    %3293 = vmatpush1.msra.mxu0 %v771
    %3294 = vmatprep.subr.mxu0 %v776
    %3295 = vmatpush1.msra.mxu0 %v775
    %3296 = vmatprep.subr.mxu0 %v780
    %3297 = vmatpush1.msra.mxu0 %v779
    %3298 = vmatprep.subr.mxu0 %v784
    %3299 = vmatpush1.msra.mxu0 %v783
    %3300 = vmatprep.subr.mxu0 %v788
    %3301 = vmatpush1.msra.mxu0 %v787
    %3302 = vmatprep.subr.mxu0 %v792
    %3303 = vmatpush1.msra.mxu0 %v791
    %3304 = vmatprep.subr.mxu0 %v796
    %3305 = vmatpush1.msra.mxu0 %v795
    %3306 = vmatprep.subr.mxu0 %v800
    %3307 = vmatpush1.msra.mxu0 %v799
    %3308 = vmatprep.subr.mxu0 %v804
    %3309 = vmatpush1.msra.mxu0 %v803
    %3310 = vmatprep.subr.mxu0 %v808
    %3311 = vmatpush1.msra.mxu0 %v807
    %3312 = vmatprep.subr.mxu0 %v812
    %3313 = vmatpush1.msra.mxu0 %v811
    %3314 = vmatprep.subr.mxu0 %v816
    %3315 = vmatpush1.msra.mxu0 %v815
    %3316 = vmatprep.subr.mxu0 %v820
    %3317 = vmatpush1.msra.mxu0 %v819
    %3318 = vmatprep.subr.mxu0 %v824
    %3319 = vmatpush1.msra.mxu0 %v823
    %3320 = vmatprep.subr.mxu0 %v828
    %3321 = vmatpush1.msra.mxu0 %v827
    %3322 = vmatprep.subr.mxu0 0.0
    %3323 = vmatpush1.msra.mxu0 0.0
    %3324 = vmatprep.subr.mxu0 0.0
    %3325 = vmatpush1.msra.mxu0 0.0
    %3326 = vmatprep.subr.mxu0 0.0
    %3327 = vmatpush1.msra.mxu0 0.0
    %3328 = vmatprep.subr.mxu0 0.0
    %3329 = vmatpush1.msra.mxu0 0.0
    %3330 = vmatprep.subr.mxu0 0.0
    %3331 = vmatpush1.msra.mxu0 0.0
    %3332 = vmatprep.subr.mxu0 0.0
    %3333 = vmatpush1.msra.mxu0 0.0
    %3334 = vmatprep.subr.mxu0 0.0
    %3335 = vmatpush1.msra.mxu0 0.0
    %3336 = vmatprep.subr.mxu0 0.0
    %3337 = vmatpush1.msra.mxu0 0.0
    %3338 = vmatprep.subr.mxu0 0.0
    %3339 = vmatpush1.msra.mxu0 0.0
    %3340 = vmatprep.subr.mxu0 0.0
    %3341 = vmatpush1.msra.mxu0 0.0
    %3342 = vmatprep.subr.mxu0 0.0
    %3343 = vmatpush1.msra.mxu0 0.0
    %3344 = vmatprep.subr.mxu0 0.0
    %3345 = vmatpush1.msra.mxu0 0.0
    %3346 = vmatprep.subr.mxu0 0.0
    %3347 = vmatpush1.msra.mxu0 0.0
    %3348 = vmatprep.subr.mxu0 0.0
    %3349 = vmatpush1.msra.mxu0 0.0
    %3350 = vmatprep.subr.mxu0 0.0
    %3351 = vmatpush1.msra.mxu0 0.0
    %3352 = vmatprep.subr.mxu0 0.0
    %3353 = vmatpush1.msra.mxu0 0.0
    %3354 = vmatprep.mubr.f32.mxu0 0.0
    %3355 = vmatmul.mubr.f32.gmra.mrb[0].mxu0 %v3288
    %v3356 = vpop.f32.mrb[0].mxu0
    %v3357 = vadd.f32 0.0, %v3356
    %v3358 = vpop.f32.mrb[0].mxu0
    %v3359 = vadd.f32 0.0, %v3358
    %3360 = vdwg.mxu0
    %3361 = vmatprep.subr.mxu0 %v770
    %3362 = vmatpush1.msra.mxu0 %v769
    %3363 = vmatprep.subr.mxu0 %v774
    %3364 = vmatpush1.msra.mxu0 %v773
    %3365 = vmatprep.subr.mxu0 %v778
    %3366 = vmatpush1.msra.mxu0 %v777
    %3367 = vmatprep.subr.mxu0 %v782
    %3368 = vmatpush1.msra.mxu0 %v781
    %3369 = vmatprep.subr.mxu0 %v786
    %3370 = vmatpush1.msra.mxu0 %v785
    %3371 = vmatprep.subr.mxu0 %v790
    %3372 = vmatpush1.msra.mxu0 %v789
    %3373 = vmatprep.subr.mxu0 %v794
    %3374 = vmatpush1.msra.mxu0 %v793
    %3375 = vmatprep.subr.mxu0 %v798
    %3376 = vmatpush1.msra.mxu0 %v797
    %3377 = vmatprep.subr.mxu0 %v802
    %3378 = vmatpush1.msra.mxu0 %v801
    %3379 = vmatprep.subr.mxu0 %v806
    %3380 = vmatpush1.msra.mxu0 %v805
    %3381 = vmatprep.subr.mxu0 %v810
    %3382 = vmatpush1.msra.mxu0 %v809
    %3383 = vmatprep.subr.mxu0 %v814
    %3384 = vmatpush1.msra.mxu0 %v813
    %3385 = vmatprep.subr.mxu0 %v818
    %3386 = vmatpush1.msra.mxu0 %v817
    %3387 = vmatprep.subr.mxu0 %v822
    %3388 = vmatpush1.msra.mxu0 %v821
    %3389 = vmatprep.subr.mxu0 %v826
    %3390 = vmatpush1.msra.mxu0 %v825
    %3391 = vmatprep.subr.mxu0 %v830
    %3392 = vmatpush1.msra.mxu0 %v829
    %3393 = vmatprep.subr.mxu0 0.0
    %3394 = vmatpush1.msra.mxu0 0.0
    %3395 = vmatprep.subr.mxu0 0.0
    %3396 = vmatpush1.msra.mxu0 0.0
    %3397 = vmatprep.subr.mxu0 0.0
    %3398 = vmatpush1.msra.mxu0 0.0
    %3399 = vmatprep.subr.mxu0 0.0
    %3400 = vmatpush1.msra.mxu0 0.0
    %3401 = vmatprep.subr.mxu0 0.0
    %3402 = vmatpush1.msra.mxu0 0.0
    %3403 = vmatprep.subr.mxu0 0.0
    %3404 = vmatpush1.msra.mxu0 0.0
    %3405 = vmatprep.subr.mxu0 0.0
    %3406 = vmatpush1.msra.mxu0 0.0
    %3407 = vmatprep.subr.mxu0 0.0
    %3408 = vmatpush1.msra.mxu0 0.0
    %3409 = vmatprep.subr.mxu0 0.0
    %3410 = vmatpush1.msra.mxu0 0.0
    %3411 = vmatprep.subr.mxu0 0.0
    %3412 = vmatpush1.msra.mxu0 0.0
    %3413 = vmatprep.subr.mxu0 0.0
    %3414 = vmatpush1.msra.mxu0 0.0
    %3415 = vmatprep.subr.mxu0 0.0
    %3416 = vmatpush1.msra.mxu0 0.0
    %3417 = vmatprep.subr.mxu0 0.0
    %3418 = vmatpush1.msra.mxu0 0.0
    %3419 = vmatprep.subr.mxu0 0.0
    %3420 = vmatpush1.msra.mxu0 0.0
    %3421 = vmatprep.subr.mxu0 0.0
    %3422 = vmatpush1.msra.mxu0 0.0
    %3423 = vmatprep.subr.mxu0 0.0
    %3424 = vmatpush1.msra.mxu0 0.0
    %3425 = vmatprep.mubr.f32.mxu0 0.0
    %3426 = vmatmul.mubr.f32.gmra.mrb[0].mxu0 %v3288
    %v3427 = vpop.f32.mrb[0].mxu0
    %v3428 = vadd.f32 0.0, %v3427
    %v3429 = vpop.f32.mrb[0].mxu0
    %v3430 = vadd.f32 0.0, %v3429
    %3431 = vdwg.mxu0
    %v3436 = vrot.slane %v3357, 4
    %v3437 = vrot.slane %v3359, 4
    %v3438 = vrot.slane %v3428, 4
    %v3439 = vrot.slane %v3430, 4
    %v3444 = vadd.f32 %v3283, %v3436
    %v3445 = vadd.f32 %v3284, %v3437
    %v3446 = vadd.f32 %v3285, %v3438
    %v3447 = vadd.f32 %v3286, %v3439
    %v3448 = vsub.f32 0.0, %v3444
    %v3449 = vmul.f32 %v3448, 1.442695
    %v3450 = vpow.pop %v3449
    %v3451 = vadd.f32 %v3450, 1.0
    %v3452 = vrcp.pop %v3451
    %v3453 = vmul.f32 1.0, %v3452
    %v3454 = vsub.f32 0.0, %v3445
    %v3455 = vmul.f32 %v3454, 1.442695
    %v3456 = vpow.pop %v3455
    %v3457 = vadd.f32 %v3456, 1.0
    %v3458 = vrcp.pop %v3457
    %v3459 = vmul.f32 1.0, %v3458
    %v3460 = vtanh.pop %v3446
    %v3461 = vsub.f32 0.0, %v3447
    %v3462 = vmul.f32 %v3461, 1.442695
    %v3463 = vpow.pop %v3462
    %v3464 = vadd.f32 %v3463, 1.0
    %v3465 = vrcp.pop %v3464
    %v3466 = vmul.f32 1.0, %v3465
    %v3468 = vrot.slane %v3279, 2
    %v3470 = vmul.f32 %v3459, %v3468
    %v3471 = vmul.f32 %v3453, %v3460
    %v3472 = vadd.f32 %v3470, %v3471
    %v3473 = vtanh.pop %v3472
    %v3474 = vmul.f32 %v3466, %v3473
    %3475 = vst [vmem:[#allocation6] sm:$0x30] %v3474
    %v3476 = vld [vmem:[#allocation3] sm:$0xc]
    %v3477 = vld [vmem:[#allocation3 + $0x8] sm:$0xc]
    %v3478 = vld [vmem:[#allocation3 + $0x10] sm:$0xc]
    %v3479 = vld [vmem:[#allocation3 + $0x18] sm:$0xc]
    %v3481 = vrot.slane %v3474, 4
    %3483 = vmatprep.subr.mxu0 %v768
    %3484 = vmatpush1.msra.mxu0 %v767
    %3485 = vmatprep.subr.mxu0 %v772
    %3486 = vmatpush1.msra.mxu0 %v771
    %3487 = vmatprep.subr.mxu0 %v776
    %3488 = vmatpush1.msra.mxu0 %v775
    %3489 = vmatprep.subr.mxu0 %v780
    %3490 = vmatpush1.msra.mxu0 %v779
    %3491 = vmatprep.subr.mxu0 %v784
    %3492 = vmatpush1.msra.mxu0 %v783
    %3493 = vmatprep.subr.mxu0 %v788
    %3494 = vmatpush1.msra.mxu0 %v787
    %3495 = vmatprep.subr.mxu0 %v792
    %3496 = vmatpush1.msra.mxu0 %v791
    %3497 = vmatprep.subr.mxu0 %v796
    %3498 = vmatpush1.msra.mxu0 %v795
    %3499 = vmatprep.subr.mxu0 %v800
    %3500 = vmatpush1.msra.mxu0 %v799
    %3501 = vmatprep.subr.mxu0 %v804
    %3502 = vmatpush1.msra.mxu0 %v803
    %3503 = vmatprep.subr.mxu0 %v808
    %3504 = vmatpush1.msra.mxu0 %v807
    %3505 = vmatprep.subr.mxu0 %v812
    %3506 = vmatpush1.msra.mxu0 %v811
    %3507 = vmatprep.subr.mxu0 %v816
    %3508 = vmatpush1.msra.mxu0 %v815
    %3509 = vmatprep.subr.mxu0 %v820
    %3510 = vmatpush1.msra.mxu0 %v819
    %3511 = vmatprep.subr.mxu0 %v824
    %3512 = vmatpush1.msra.mxu0 %v823
    %3513 = vmatprep.subr.mxu0 %v828
    %3514 = vmatpush1.msra.mxu0 %v827
    %3515 = vmatprep.subr.mxu0 0.0
    %3516 = vmatpush1.msra.mxu0 0.0
    %3517 = vmatprep.subr.mxu0 0.0
    %3518 = vmatpush1.msra.mxu0 0.0
    %3519 = vmatprep.subr.mxu0 0.0
    %3520 = vmatpush1.msra.mxu0 0.0
    %3521 = vmatprep.subr.mxu0 0.0
    %3522 = vmatpush1.msra.mxu0 0.0
    %3523 = vmatprep.subr.mxu0 0.0
    %3524 = vmatpush1.msra.mxu0 0.0
    %3525 = vmatprep.subr.mxu0 0.0
    %3526 = vmatpush1.msra.mxu0 0.0
    %3527 = vmatprep.subr.mxu0 0.0
    %3528 = vmatpush1.msra.mxu0 0.0
    %3529 = vmatprep.subr.mxu0 0.0
    %3530 = vmatpush1.msra.mxu0 0.0
    %3531 = vmatprep.subr.mxu0 0.0
    %3532 = vmatpush1.msra.mxu0 0.0
    %3533 = vmatprep.subr.mxu0 0.0
    %3534 = vmatpush1.msra.mxu0 0.0
    %3535 = vmatprep.subr.mxu0 0.0
    %3536 = vmatpush1.msra.mxu0 0.0
    %3537 = vmatprep.subr.mxu0 0.0
    %3538 = vmatpush1.msra.mxu0 0.0
    %3539 = vmatprep.subr.mxu0 0.0
    %3540 = vmatpush1.msra.mxu0 0.0
    %3541 = vmatprep.subr.mxu0 0.0
    %3542 = vmatpush1.msra.mxu0 0.0
    %3543 = vmatprep.subr.mxu0 0.0
    %3544 = vmatpush1.msra.mxu0 0.0
    %3545 = vmatprep.subr.mxu0 0.0
    %3546 = vmatpush1.msra.mxu0 0.0
    %3547 = vmatprep.mubr.f32.mxu0 0.0
    %3548 = vmatmul.mubr.f32.gmra.mrb[0].mxu0 %v3481
    %v3549 = vpop.f32.mrb[0].mxu0
    %v3550 = vadd.f32 0.0, %v3549
    %v3551 = vpop.f32.mrb[0].mxu0
    %v3552 = vadd.f32 0.0, %v3551
    %3553 = vdwg.mxu0
    %3554 = vmatprep.subr.mxu0 %v770
    %3555 = vmatpush1.msra.mxu0 %v769
    %3556 = vmatprep.subr.mxu0 %v774
    %3557 = vmatpush1.msra.mxu0 %v773
    %3558 = vmatprep.subr.mxu0 %v778
    %3559 = vmatpush1.msra.mxu0 %v777
    %3560 = vmatprep.subr.mxu0 %v782
    %3561 = vmatpush1.msra.mxu0 %v781
    %3562 = vmatprep.subr.mxu0 %v786
    %3563 = vmatpush1.msra.mxu0 %v785
    %3564 = vmatprep.subr.mxu0 %v790
    %3565 = vmatpush1.msra.mxu0 %v789
    %3566 = vmatprep.subr.mxu0 %v794
    %3567 = vmatpush1.msra.mxu0 %v793
    %3568 = vmatprep.subr.mxu0 %v798
    %3569 = vmatpush1.msra.mxu0 %v797
    %3570 = vmatprep.subr.mxu0 %v802
    %3571 = vmatpush1.msra.mxu0 %v801
    %3572 = vmatprep.subr.mxu0 %v806
    %3573 = vmatpush1.msra.mxu0 %v805
    %3574 = vmatprep.subr.mxu0 %v810
    %3575 = vmatpush1.msra.mxu0 %v809
    %3576 = vmatprep.subr.mxu0 %v814
    %3577 = vmatpush1.msra.mxu0 %v813
    %3578 = vmatprep.subr.mxu0 %v818
    %3579 = vmatpush1.msra.mxu0 %v817
    %3580 = vmatprep.subr.mxu0 %v822
    %3581 = vmatpush1.msra.mxu0 %v821
    %3582 = vmatprep.subr.mxu0 %v826
    %3583 = vmatpush1.msra.mxu0 %v825
    %3584 = vmatprep.subr.mxu0 %v830
    %3585 = vmatpush1.msra.mxu0 %v829
    %3586 = vmatprep.subr.mxu0 0.0
    %3587 = vmatpush1.msra.mxu0 0.0
    %3588 = vmatprep.subr.mxu0 0.0
    %3589 = vmatpush1.msra.mxu0 0.0
    %3590 = vmatprep.subr.mxu0 0.0
    %3591 = vmatpush1.msra.mxu0 0.0
    %3592 = vmatprep.subr.mxu0 0.0
    %3593 = vmatpush1.msra.mxu0 0.0
    %3594 = vmatprep.subr.mxu0 0.0
    %3595 = vmatpush1.msra.mxu0 0.0
    %3596 = vmatprep.subr.mxu0 0.0
    %3597 = vmatpush1.msra.mxu0 0.0
    %3598 = vmatprep.subr.mxu0 0.0
    %3599 = vmatpush1.msra.mxu0 0.0
    %3600 = vmatprep.subr.mxu0 0.0
    %3601 = vmatpush1.msra.mxu0 0.0
    %3602 = vmatprep.subr.mxu0 0.0
    %3603 = vmatpush1.msra.mxu0 0.0
    %3604 = vmatprep.subr.mxu0 0.0
    %3605 = vmatpush1.msra.mxu0 0.0
    %3606 = vmatprep.subr.mxu0 0.0
    %3607 = vmatpush1.msra.mxu0 0.0
    %3608 = vmatprep.subr.mxu0 0.0
    %3609 = vmatpush1.msra.mxu0 0.0
    %3610 = vmatprep.subr.mxu0 0.0
    %3611 = vmatpush1.msra.mxu0 0.0
    %3612 = vmatprep.subr.mxu0 0.0
    %3613 = vmatpush1.msra.mxu0 0.0
    %3614 = vmatprep.subr.mxu0 0.0
    %3615 = vmatpush1.msra.mxu0 0.0
    %3616 = vmatprep.subr.mxu0 0.0
    %3617 = vmatpush1.msra.mxu0 0.0
    %3618 = vmatprep.mubr.f32.mxu0 0.0
    %3619 = vmatmul.mubr.f32.gmra.mrb[0].mxu0 %v3481
    %v3620 = vpop.f32.mrb[0].mxu0
    %v3621 = vadd.f32 0.0, %v3620
    %v3622 = vpop.f32.mrb[0].mxu0
    %v3623 = vadd.f32 0.0, %v3622
    %3624 = vdwg.mxu0
    %v3629 = vrot.slane %v3550, 6
    %v3630 = vrot.slane %v3552, 6
    %v3631 = vrot.slane %v3621, 6
    %v3632 = vrot.slane %v3623, 6
    %v3637 = vadd.f32 %v3476, %v3629
    %v3638 = vadd.f32 %v3477, %v3630
    %v3639 = vadd.f32 %v3478, %v3631
    %v3640 = vadd.f32 %v3479, %v3632
    %v3641 = vsub.f32 0.0, %v3637
    %v3642 = vmul.f32 %v3641, 1.442695
    %v3643 = vpow.pop %v3642
    %v3644 = vadd.f32 %v3643, 1.0
    %v3645 = vrcp.pop %v3644
    %v3646 = vmul.f32 1.0, %v3645
    %v3647 = vsub.f32 0.0, %v3638
    %v3648 = vmul.f32 %v3647, 1.442695
    %v3649 = vpow.pop %v3648
    %v3650 = vadd.f32 %v3649, 1.0
    %v3651 = vrcp.pop %v3650
    %v3652 = vmul.f32 1.0, %v3651
    %v3653 = vtanh.pop %v3639
    %v3654 = vsub.f32 0.0, %v3640
    %v3655 = vmul.f32 %v3654, 1.442695
    %v3656 = vpow.pop %v3655
    %v3657 = vadd.f32 %v3656, 1.0
    %v3658 = vrcp.pop %v3657
    %v3659 = vmul.f32 1.0, %v3658
    %v3661 = vrot.slane %v3472, 2
    %v3663 = vmul.f32 %v3652, %v3661
    %v3664 = vmul.f32 %v3646, %v3653
    %v3665 = vadd.f32 %v3663, %v3664
    %v3666 = vtanh.pop %v3665
    %v3667 = vmul.f32 %v3659, %v3666
    %3668 = vst [vmem:[#allocation6] sm:$0xc] %v3667
    %v3669 = vld [vmem:[#allocation3] sm:$0x3]
    %v3670 = vld [vmem:[#allocation3 + $0x8] sm:$0x3]
    %v3671 = vld [vmem:[#allocation3 + $0x10] sm:$0x3]
    %v3672 = vld [vmem:[#allocation3 + $0x18] sm:$0x3]
    %v3674 = vrot.slane %v3667, 2
    %3676 = vmatprep.subr.mxu0 %v768
    %3677 = vmatpush1.msra.mxu0 %v767
    %3678 = vmatprep.subr.mxu0 %v772
    %3679 = vmatpush1.msra.mxu0 %v771
    %3680 = vmatprep.subr.mxu0 %v776
    %3681 = vmatpush1.msra.mxu0 %v775
    %3682 = vmatprep.subr.mxu0 %v780
    %3683 = vmatpush1.msra.mxu0 %v779
    %3684 = vmatprep.subr.mxu0 %v784
    %3685 = vmatpush1.msra.mxu0 %v783
    %3686 = vmatprep.subr.mxu0 %v788
    %3687 = vmatpush1.msra.mxu0 %v787
    %3688 = vmatprep.subr.mxu0 %v792
    %3689 = vmatpush1.msra.mxu0 %v791
    %3690 = vmatprep.subr.mxu0 %v796
    %3691 = vmatpush1.msra.mxu0 %v795
    %3692 = vmatprep.subr.mxu0 %v800
    %3693 = vmatpush1.msra.mxu0 %v799
    %3694 = vmatprep.subr.mxu0 %v804
    %3695 = vmatpush1.msra.mxu0 %v803
    %3696 = vmatprep.subr.mxu0 %v808
    %3697 = vmatpush1.msra.mxu0 %v807
    %3698 = vmatprep.subr.mxu0 %v812
    %3699 = vmatpush1.msra.mxu0 %v811
    %3700 = vmatprep.subr.mxu0 %v816
    %3701 = vmatpush1.msra.mxu0 %v815
    %3702 = vmatprep.subr.mxu0 %v820
    %3703 = vmatpush1.msra.mxu0 %v819
    %3704 = vmatprep.subr.mxu0 %v824
    %3705 = vmatpush1.msra.mxu0 %v823
    %3706 = vmatprep.subr.mxu0 %v828
    %3707 = vmatpush1.msra.mxu0 %v827
    %3708 = vmatprep.subr.mxu0 0.0
    %3709 = vmatpush1.msra.mxu0 0.0
    %3710 = vmatprep.subr.mxu0 0.0
    %3711 = vmatpush1.msra.mxu0 0.0
    %3712 = vmatprep.subr.mxu0 0.0
    %3713 = vmatpush1.msra.mxu0 0.0
    %3714 = vmatprep.subr.mxu0 0.0
    %3715 = vmatpush1.msra.mxu0 0.0
    %3716 = vmatprep.subr.mxu0 0.0
    %3717 = vmatpush1.msra.mxu0 0.0
    %3718 = vmatprep.subr.mxu0 0.0
    %3719 = vmatpush1.msra.mxu0 0.0
    %3720 = vmatprep.subr.mxu0 0.0
    %3721 = vmatpush1.msra.mxu0 0.0
    %3722 = vmatprep.subr.mxu0 0.0
    %3723 = vmatpush1.msra.mxu0 0.0
    %3724 = vmatprep.subr.mxu0 0.0
    %3725 = vmatpush1.msra.mxu0 0.0
    %3726 = vmatprep.subr.mxu0 0.0
    %3727 = vmatpush1.msra.mxu0 0.0
    %3728 = vmatprep.subr.mxu0 0.0
    %3729 = vmatpush1.msra.mxu0 0.0
    %3730 = vmatprep.subr.mxu0 0.0
    %3731 = vmatpush1.msra.mxu0 0.0
    %3732 = vmatprep.subr.mxu0 0.0
    %3733 = vmatpush1.msra.mxu0 0.0
    %3734 = vmatprep.subr.mxu0 0.0
    %3735 = vmatpush1.msra.mxu0 0.0
    %3736 = vmatprep.subr.mxu0 0.0
    %3737 = vmatpush1.msra.mxu0 0.0
    %3738 = vmatprep.subr.mxu0 0.0
    %3739 = vmatpush1.msra.mxu0 0.0
    %3740 = vmatprep.mubr.f32.mxu0 0.0
    %3741 = vmatmul.mubr.f32.gmra.mrb[0].mxu0 %v3674
    %v3742 = vpop.f32.mrb[0].mxu0
    %v3743 = vadd.f32 0.0, %v3742
    %v3744 = vpop.f32.mrb[0].mxu0
    %v3745 = vadd.f32 0.0, %v3744
    %3746 = vdwg.mxu0
    %3747 = vmatprep.subr.mxu0 %v770
    %3748 = vmatpush1.msra.mxu0 %v769
    %3749 = vmatprep.subr.mxu0 %v774
    %3750 = vmatpush1.msra.mxu0 %v773
    %3751 = vmatprep.subr.mxu0 %v778
    %3752 = vmatpush1.msra.mxu0 %v777
    %3753 = vmatprep.subr.mxu0 %v782
    %3754 = vmatpush1.msra.mxu0 %v781
    %3755 = vmatprep.subr.mxu0 %v786
    %3756 = vmatpush1.msra.mxu0 %v785
    %3757 = vmatprep.subr.mxu0 %v790
    %3758 = vmatpush1.msra.mxu0 %v789
    %3759 = vmatprep.subr.mxu0 %v794
    %3760 = vmatpush1.msra.mxu0 %v793
    %3761 = vmatprep.subr.mxu0 %v798
    %3762 = vmatpush1.msra.mxu0 %v797
    %3763 = vmatprep.subr.mxu0 %v802
    %3764 = vmatpush1.msra.mxu0 %v801
    %3765 = vmatprep.subr.mxu0 %v806
    %3766 = vmatpush1.msra.mxu0 %v805
    %3767 = vmatprep.subr.mxu0 %v810
    %3768 = vmatpush1.msra.mxu0 %v809
    %3769 = vmatprep.subr.mxu0 %v814
    %3770 = vmatpush1.msra.mxu0 %v813
    %3771 = vmatprep.subr.mxu0 %v818
    %3772 = vmatpush1.msra.mxu0 %v817
    %3773 = vmatprep.subr.mxu0 %v822
    %3774 = vmatpush1.msra.mxu0 %v821
    %3775 = vmatprep.subr.mxu0 %v826
    %3776 = vmatpush1.msra.mxu0 %v825
    %3777 = vmatprep.subr.mxu0 %v830
    %3778 = vmatpush1.msra.mxu0 %v829
    %3779 = vmatprep.subr.mxu0 0.0
    %3780 = vmatpush1.msra.mxu0 0.0
    %3781 = vmatprep.subr.mxu0 0.0
    %3782 = vmatpush1.msra.mxu0 0.0
    %3783 = vmatprep.subr.mxu0 0.0
    %3784 = vmatpush1.msra.mxu0 0.0
    %3785 = vmatprep.subr.mxu0 0.0
    %3786 = vmatpush1.msra.mxu0 0.0
    %3787 = vmatprep.subr.mxu0 0.0
    %3788 = vmatpush1.msra.mxu0 0.0
    %3789 = vmatprep.subr.mxu0 0.0
    %3790 = vmatpush1.msra.mxu0 0.0
    %3791 = vmatprep.subr.mxu0 0.0
    %3792 = vmatpush1.msra.mxu0 0.0
    %3793 = vmatprep.subr.mxu0 0.0
    %3794 = vmatpush1.msra.mxu0 0.0
    %3795 = vmatprep.subr.mxu0 0.0
    %3796 = vmatpush1.msra.mxu0 0.0
    %3797 = vmatprep.subr.mxu0 0.0
    %3798 = vmatpush1.msra.mxu0 0.0
    %3799 = vmatprep.subr.mxu0 0.0
    %3800 = vmatpush1.msra.mxu0 0.0
    %3801 = vmatprep.subr.mxu0 0.0
    %3802 = vmatpush1.msra.mxu0 0.0
    %3803 = vmatprep.subr.mxu0 0.0
    %3804 = vmatpush1.msra.mxu0 0.0
    %3805 = vmatprep.subr.mxu0 0.0
    %3806 = vmatpush1.msra.mxu0 0.0
    %3807 = vmatprep.subr.mxu0 0.0
    %3808 = vmatpush1.msra.mxu0 0.0
    %3809 = vmatprep.subr.mxu0 0.0
    %3810 = vmatpush1.msra.mxu0 0.0
    %3811 = vmatprep.mubr.f32.mxu0 0.0
    %3812 = vmatmul.mubr.f32.gmra.mrb[0].mxu0 %v3674
    %v3813 = vpop.f32.mrb[0].mxu0
    %v3814 = vadd.f32 0.0, %v3813
    %v3815 = vpop.f32.mrb[0].mxu0
    %v3816 = vadd.f32 0.0, %v3815
    %3817 = vdwg.mxu0
    %v3818 = vadd.f32 %v3669, %v3743
    %v3819 = vadd.f32 %v3670, %v3745
    %v3820 = vadd.f32 %v3671, %v3814
    %v3821 = vadd.f32 %v3672, %v3816
    %v3822 = vsub.f32 0.0, %v3818
    %v3823 = vmul.f32 %v3822, 1.442695
    %v3824 = vpow.pop %v3823
    %v3825 = vadd.f32 %v3824, 1.0
    %v3826 = vrcp.pop %v3825
    %v3827 = vmul.f32 1.0, %v3826
    %v3828 = vsub.f32 0.0, %v3819
    %v3829 = vmul.f32 %v3828, 1.442695
    %v3830 = vpow.pop %v3829
    %v3831 = vadd.f32 %v3830, 1.0
    %v3832 = vrcp.pop %v3831
    %v3833 = vmul.f32 1.0, %v3832
    %v3834 = vtanh.pop %v3820
    %v3835 = vsub.f32 0.0, %v3821
    %v3836 = vmul.f32 %v3835, 1.442695
    %v3837 = vpow.pop %v3836
    %v3838 = vadd.f32 %v3837, 1.0
    %v3839 = vrcp.pop %v3838
    %v3840 = vmul.f32 1.0, %v3839
    %v3842 = vrot.slane %v3665, 2
    %v3844 = vmul.f32 %v3833, %v3842
    %v3845 = vmul.f32 %v3827, %v3834
    %v3846 = vadd.f32 %v3844, %v3845
    %v3847 = vtanh.pop %v3846
    %v3848 = vmul.f32 %v3840, %v3847
    %3849 = vst [vmem:[#allocation6] sm:$0x3] %v3848
    %v3850 = vld [vmem:[#allocation5] sm:$0xff]
    %v3851 = vld [vmem:[#allocation5 + $0x8] sm:$0xff]
    %v3852 = vld [vmem:[#allocation19] sm:$0xff]
    %v3853 = vld [vmem:[#allocation19 + $0x8] sm:$0xff]
    %v3854 = vld [vmem:[#allocation19 + $0x10] sm:$0xff]
    %v3855 = vld [vmem:[#allocation19 + $0x18] sm:$0xff]
    %v3856 = vld [vmem:[#allocation19 + $0x20] sm:$0xff]
    %v3857 = vld [vmem:[#allocation19 + $0x28] sm:$0xff]
    %v3858 = vld [vmem:[#allocation19 + $0x30] sm:$0xff]
    %v3859 = vld [vmem:[#allocation19 + $0x38] sm:$0xff]
    %v3860 = vld [vmem:[#allocation19 + $0x40] sm:$0xff]
    %v3861 = vld [vmem:[#allocation19 + $0x48] sm:$0xff]
    %v3862 = vld [vmem:[#allocation19 + $0x50] sm:$0xff]
    %v3863 = vld [vmem:[#allocation19 + $0x58] sm:$0xff]
    %v3864 = vld [vmem:[#allocation19 + $0x60] sm:$0xff]
    %v3865 = vld [vmem:[#allocation19 + $0x68] sm:$0xff]
    %v3866 = vld [vmem:[#allocation19 + $0x70] sm:$0xff]
    %v3867 = vld [vmem:[#allocation19 + $0x78] sm:$0xff]
    %v3868 = vld [vmem:[#allocation19 + $0x80] sm:$0xff]
    %v3869 = vld [vmem:[#allocation19 + $0x88] sm:$0xff]
    %v3870 = vld [vmem:[#allocation19 + $0x90] sm:$0xff]
    %v3871 = vld [vmem:[#allocation19 + $0x98] sm:$0xff]
    %v3872 = vld [vmem:[#allocation19 + $0xa0] sm:$0xff]
    %v3873 = vld [vmem:[#allocation19 + $0xa8] sm:$0xff]
    %v3874 = vld [vmem:[#allocation19 + $0xb0] sm:$0xff]
    %v3875 = vld [vmem:[#allocation19 + $0xb8] sm:$0xff]
    %v3876 = vld [vmem:[#allocation19 + $0xc0] sm:$0xff]
    %v3877 = vld [vmem:[#allocation19 + $0xc8] sm:$0xff]
    %v3878 = vld [vmem:[#allocation19 + $0xd0] sm:$0xff]
    %v3879 = vld [vmem:[#allocation19 + $0xd8] sm:$0xff]
    %v3880 = vld [vmem:[#allocation19 + $0xe0] sm:$0xff]
    %v3881 = vld [vmem:[#allocation19 + $0xe8] sm:$0xff]
    %v3882 = vld [vmem:[#allocation19 + $0xf0] sm:$0xff]
    %v3883 = vld [vmem:[#allocation19 + $0xf8] sm:$0xff]
    %v3884 = vld [vmem:[#allocation19 + $0x100] sm:$0xff]
    %v3885 = vld [vmem:[#allocation19 + $0x108] sm:$0xff]
    %v3886 = vld [vmem:[#allocation19 + $0x110] sm:$0xff]
    %v3887 = vld [vmem:[#allocation19 + $0x118] sm:$0xff]
    %v3888 = vld [vmem:[#allocation19 + $0x120] sm:$0xff]
    %v3889 = vld [vmem:[#allocation19 + $0x128] sm:$0xff]
    %v3890 = vld [vmem:[#allocation19 + $0x130] sm:$0xff]
    %v3891 = vld [vmem:[#allocation19 + $0x138] sm:$0xff]
    %v3892 = vld [vmem:[#allocation19 + $0x140] sm:$0xff]
    %v3893 = vld [vmem:[#allocation19 + $0x148] sm:$0xff]
    %v3894 = vld [vmem:[#allocation19 + $0x150] sm:$0xff]
    %v3895 = vld [vmem:[#allocation19 + $0x158] sm:$0xff]
    %v3896 = vld [vmem:[#allocation19 + $0x160] sm:$0xff]
    %v3897 = vld [vmem:[#allocation19 + $0x168] sm:$0xff]
    %v3898 = vld [vmem:[#allocation19 + $0x170] sm:$0xff]
    %v3899 = vld [vmem:[#allocation19 + $0x178] sm:$0xff]
    %v3900 = vld [vmem:[#allocation19 + $0x180] sm:$0xff]
    %v3901 = vld [vmem:[#allocation19 + $0x188] sm:$0xff]
    %v3902 = vld [vmem:[#allocation19 + $0x190] sm:$0xff]
    %v3903 = vld [vmem:[#allocation19 + $0x198] sm:$0xff]
    %v3904 = vld [vmem:[#allocation19 + $0x1a0] sm:$0xff]
    %v3905 = vld [vmem:[#allocation19 + $0x1a8] sm:$0xff]
    %v3906 = vld [vmem:[#allocation19 + $0x1b0] sm:$0xff]
    %v3907 = vld [vmem:[#allocation19 + $0x1b8] sm:$0xff]
    %v3908 = vld [vmem:[#allocation19 + $0x1c0] sm:$0xff]
    %v3909 = vld [vmem:[#allocation19 + $0x1c8] sm:$0xff]
    %v3910 = vld [vmem:[#allocation19 + $0x1d0] sm:$0xff]
    %v3911 = vld [vmem:[#allocation19 + $0x1d8] sm:$0xff]
    %v3912 = vld [vmem:[#allocation19 + $0x1e0] sm:$0xff]
    %v3913 = vld [vmem:[#allocation19 + $0x1e8] sm:$0xff]
    %v3914 = vld [vmem:[#allocation19 + $0x1f0] sm:$0xff]
    %v3915 = vld [vmem:[#allocation19 + $0x1f8] sm:$0xff]
    %v3916 = vld [vmem:[#allocation6] sm:$0xff]
    %v3917 = vld [vmem:[#allocation6 + $0x8] sm:$0xff]
    %v3918 = vld [vmem:[#allocation21] sm:$0xff]
    %v3919 = vld [vmem:[#allocation21 + $0x8] sm:$0xff]
    %v3920 = vld [vmem:[#allocation21 + $0x10] sm:$0xff]
    %v3921 = vld [vmem:[#allocation21 + $0x18] sm:$0xff]
    %v3922 = vld [vmem:[#allocation21 + $0x20] sm:$0xff]
    %v3923 = vld [vmem:[#allocation21 + $0x28] sm:$0xff]
    %v3924 = vld [vmem:[#allocation21 + $0x30] sm:$0xff]
    %v3925 = vld [vmem:[#allocation21 + $0x38] sm:$0xff]
    %v3926 = vld [vmem:[#allocation21 + $0x40] sm:$0xff]
    %v3927 = vld [vmem:[#allocation21 + $0x48] sm:$0xff]
    %v3928 = vld [vmem:[#allocation21 + $0x50] sm:$0xff]
    %v3929 = vld [vmem:[#allocation21 + $0x58] sm:$0xff]
    %v3930 = vld [vmem:[#allocation21 + $0x60] sm:$0xff]
    %v3931 = vld [vmem:[#allocation21 + $0x68] sm:$0xff]
    %v3932 = vld [vmem:[#allocation21 + $0x70] sm:$0xff]
    %v3933 = vld [vmem:[#allocation21 + $0x78] sm:$0xff]
    %v3934 = vld [vmem:[#allocation21 + $0x80] sm:$0xff]
    %v3935 = vld [vmem:[#allocation21 + $0x88] sm:$0xff]
    %v3936 = vld [vmem:[#allocation21 + $0x90] sm:$0xff]
    %v3937 = vld [vmem:[#allocation21 + $0x98] sm:$0xff]
    %v3938 = vld [vmem:[#allocation21 + $0xa0] sm:$0xff]
    %v3939 = vld [vmem:[#allocation21 + $0xa8] sm:$0xff]
    %v3940 = vld [vmem:[#allocation21 + $0xb0] sm:$0xff]
    %v3941 = vld [vmem:[#allocation21 + $0xb8] sm:$0xff]
    %v3942 = vld [vmem:[#allocation21 + $0xc0] sm:$0xff]
    %v3943 = vld [vmem:[#allocation21 + $0xc8] sm:$0xff]
    %v3944 = vld [vmem:[#allocation21 + $0xd0] sm:$0xff]
    %v3945 = vld [vmem:[#allocation21 + $0xd8] sm:$0xff]
    %v3946 = vld [vmem:[#allocation21 + $0xe0] sm:$0xff]
    %v3947 = vld [vmem:[#allocation21 + $0xe8] sm:$0xff]
    %v3948 = vld [vmem:[#allocation21 + $0xf0] sm:$0xff]
    %v3949 = vld [vmem:[#allocation21 + $0xf8] sm:$0xff]
    %v3950 = vld [vmem:[#allocation21 + $0x100] sm:$0xff]
    %v3951 = vld [vmem:[#allocation21 + $0x108] sm:$0xff]
    %v3952 = vld [vmem:[#allocation21 + $0x110] sm:$0xff]
    %v3953 = vld [vmem:[#allocation21 + $0x118] sm:$0xff]
    %v3954 = vld [vmem:[#allocation21 + $0x120] sm:$0xff]
    %v3955 = vld [vmem:[#allocation21 + $0x128] sm:$0xff]
    %v3956 = vld [vmem:[#allocation21 + $0x130] sm:$0xff]
    %v3957 = vld [vmem:[#allocation21 + $0x138] sm:$0xff]
    %v3958 = vld [vmem:[#allocation21 + $0x140] sm:$0xff]
    %v3959 = vld [vmem:[#allocation21 + $0x148] sm:$0xff]
    %v3960 = vld [vmem:[#allocation21 + $0x150] sm:$0xff]
    %v3961 = vld [vmem:[#allocation21 + $0x158] sm:$0xff]
    %v3962 = vld [vmem:[#allocation21 + $0x160] sm:$0xff]
    %v3963 = vld [vmem:[#allocation21 + $0x168] sm:$0xff]
    %v3964 = vld [vmem:[#allocation21 + $0x170] sm:$0xff]
    %v3965 = vld [vmem:[#allocation21 + $0x178] sm:$0xff]
    %v3966 = vld [vmem:[#allocation21 + $0x180] sm:$0xff]
    %v3967 = vld [vmem:[#allocation21 + $0x188] sm:$0xff]
    %v3968 = vld [vmem:[#allocation21 + $0x190] sm:$0xff]
    %v3969 = vld [vmem:[#allocation21 + $0x198] sm:$0xff]
    %v3970 = vld [vmem:[#allocation21 + $0x1a0] sm:$0xff]
    %v3971 = vld [vmem:[#allocation21 + $0x1a8] sm:$0xff]
    %v3972 = vld [vmem:[#allocation21 + $0x1b0] sm:$0xff]
    %v3973 = vld [vmem:[#allocation21 + $0x1b8] sm:$0xff]
    %v3974 = vld [vmem:[#allocation21 + $0x1c0] sm:$0xff]
    %v3975 = vld [vmem:[#allocation21 + $0x1c8] sm:$0xff]
    %v3976 = vld [vmem:[#allocation21 + $0x1d0] sm:$0xff]
    %v3977 = vld [vmem:[#allocation21 + $0x1d8] sm:$0xff]
    %v3978 = vld [vmem:[#allocation21 + $0x1e0] sm:$0xff]
    %v3979 = vld [vmem:[#allocation21 + $0x1e8] sm:$0xff]
    %v3980 = vld [vmem:[#allocation21 + $0x1f0] sm:$0xff]
    %v3981 = vld [vmem:[#allocation21 + $0x1f8] sm:$0xff]
    %3982 = vmatprep.subr.mxu0 %v3919
    %3983 = vmatpush1.msra.mxu0 %v3918
    %3984 = vmatprep.subr.mxu0 %v3923
    %3985 = vmatpush1.msra.mxu0 %v3922
    %3986 = vmatprep.subr.mxu0 %v3927
    %3987 = vmatpush1.msra.mxu0 %v3926
    %3988 = vmatprep.subr.mxu0 %v3931
    %3989 = vmatpush1.msra.mxu0 %v3930
    %3990 = vmatprep.subr.mxu0 %v3935
    %3991 = vmatpush1.msra.mxu0 %v3934
    %3992 = vmatprep.subr.mxu0 %v3939
    %3993 = vmatpush1.msra.mxu0 %v3938
    %3994 = vmatprep.subr.mxu0 %v3943
    %3995 = vmatpush1.msra.mxu0 %v3942
    %3996 = vmatprep.subr.mxu0 %v3947
    %3997 = vmatpush1.msra.mxu0 %v3946
    %3998 = vmatprep.subr.mxu0 %v3951
    %3999 = vmatpush1.msra.mxu0 %v3950
    %4000 = vmatprep.subr.mxu0 %v3955
    %4001 = vmatpush1.msra.mxu0 %v3954
    %4002 = vmatprep.subr.mxu0 %v3959
    %4003 = vmatpush1.msra.mxu0 %v3958
    %4004 = vmatprep.subr.mxu0 %v3963
    %4005 = vmatpush1.msra.mxu0 %v3962
    %4006 = vmatprep.subr.mxu0 %v3967
    %4007 = vmatpush1.msra.mxu0 %v3966
    %4008 = vmatprep.subr.mxu0 %v3971
    %4009 = vmatpush1.msra.mxu0 %v3970
    %4010 = vmatprep.subr.mxu0 %v3975
    %4011 = vmatpush1.msra.mxu0 %v3974
    %4012 = vmatprep.subr.mxu0 %v3979
    %4013 = vmatpush1.msra.mxu0 %v3978
    %4014 = vmatprep.subr.mxu0 0.0
    %4015 = vmatpush1.msra.mxu0 0.0
    %4016 = vmatprep.subr.mxu0 0.0
    %4017 = vmatpush1.msra.mxu0 0.0
    %4018 = vmatprep.subr.mxu0 0.0
    %4019 = vmatpush1.msra.mxu0 0.0
    %4020 = vmatprep.subr.mxu0 0.0
    %4021 = vmatpush1.msra.mxu0 0.0
    %4022 = vmatprep.subr.mxu0 0.0
    %4023 = vmatpush1.msra.mxu0 0.0
    %4024 = vmatprep.subr.mxu0 0.0
    %4025 = vmatpush1.msra.mxu0 0.0
    %4026 = vmatprep.subr.mxu0 0.0
    %4027 = vmatpush1.msra.mxu0 0.0
    %4028 = vmatprep.subr.mxu0 0.0
    %4029 = vmatpush1.msra.mxu0 0.0
    %4030 = vmatprep.subr.mxu0 0.0
    %4031 = vmatpush1.msra.mxu0 0.0
    %4032 = vmatprep.subr.mxu0 0.0
    %4033 = vmatpush1.msra.mxu0 0.0
    %4034 = vmatprep.subr.mxu0 0.0
    %4035 = vmatpush1.msra.mxu0 0.0
    %4036 = vmatprep.subr.mxu0 0.0
    %4037 = vmatpush1.msra.mxu0 0.0
    %4038 = vmatprep.subr.mxu0 0.0
    %4039 = vmatpush1.msra.mxu0 0.0
    %4040 = vmatprep.subr.mxu0 0.0
    %4041 = vmatpush1.msra.mxu0 0.0
    %4042 = vmatprep.subr.mxu0 0.0
    %4043 = vmatpush1.msra.mxu0 0.0
    %4044 = vmatprep.subr.mxu0 0.0
    %4045 = vmatpush1.msra.mxu0 0.0
    %4046 = vmatprep.mubr.f32.mxu0 0.0
    %4047 = vmatmul.mubr.f32.gmra.mrb[0].mxu0 %v3916
    %v4048 = vpop.f32.mrb[0].mxu0
    %v4049 = vadd.f32 0.0, %v4048
    %v4050 = vpop.f32.mrb[0].mxu0
    %v4051 = vadd.f32 0.0, %v4050
    %4052 = vmatprep.mubr.f32.mxu0 0.0
    %4053 = vmatmul.mubr.f32.gmra.mrb[0].mxu0 %v3917
    %v4054 = vpop.f32.mrb[0].mxu0
    %v4055 = vadd.f32 0.0, %v4054
    %v4056 = vpop.f32.mrb[0].mxu0
    %v4057 = vadd.f32 0.0, %v4056
    %4058 = vdwg.mxu0
    %4059 = vmatprep.subr.mxu0 %v3921
    %4060 = vmatpush1.msra.mxu0 %v3920
    %4061 = vmatprep.subr.mxu0 %v3925
    %4062 = vmatpush1.msra.mxu0 %v3924
    %4063 = vmatprep.subr.mxu0 %v3929
    %4064 = vmatpush1.msra.mxu0 %v3928
    %4065 = vmatprep.subr.mxu0 %v3933
    %4066 = vmatpush1.msra.mxu0 %v3932
    %4067 = vmatprep.subr.mxu0 %v3937
    %4068 = vmatpush1.msra.mxu0 %v3936
    %4069 = vmatprep.subr.mxu0 %v3941
    %4070 = vmatpush1.msra.mxu0 %v3940
    %4071 = vmatprep.subr.mxu0 %v3945
    %4072 = vmatpush1.msra.mxu0 %v3944
    %4073 = vmatprep.subr.mxu0 %v3949
    %4074 = vmatpush1.msra.mxu0 %v3948
    %4075 = vmatprep.subr.mxu0 %v3953
    %4076 = vmatpush1.msra.mxu0 %v3952
    %4077 = vmatprep.subr.mxu0 %v3957
    %4078 = vmatpush1.msra.mxu0 %v3956
    %4079 = vmatprep.subr.mxu0 %v3961
    %4080 = vmatpush1.msra.mxu0 %v3960
    %4081 = vmatprep.subr.mxu0 %v3965
    %4082 = vmatpush1.msra.mxu0 %v3964
    %4083 = vmatprep.subr.mxu0 %v3969
    %4084 = vmatpush1.msra.mxu0 %v3968
    %4085 = vmatprep.subr.mxu0 %v3973
    %4086 = vmatpush1.msra.mxu0 %v3972
    %4087 = vmatprep.subr.mxu0 %v3977
    %4088 = vmatpush1.msra.mxu0 %v3976
    %4089 = vmatprep.subr.mxu0 %v3981
    %4090 = vmatpush1.msra.mxu0 %v3980
    %4091 = vmatprep.subr.mxu0 0.0
    %4092 = vmatpush1.msra.mxu0 0.0
    %4093 = vmatprep.subr.mxu0 0.0
    %4094 = vmatpush1.msra.mxu0 0.0
    %4095 = vmatprep.subr.mxu0 0.0
    %4096 = vmatpush1.msra.mxu0 0.0
    %4097 = vmatprep.subr.mxu0 0.0
    %4098 = vmatpush1.msra.mxu0 0.0
    %4099 = vmatprep.subr.mxu0 0.0
    %4100 = vmatpush1.msra.mxu0 0.0
    %4101 = vmatprep.subr.mxu0 0.0
    %4102 = vmatpush1.msra.mxu0 0.0
    %4103 = vmatprep.subr.mxu0 0.0
    %4104 = vmatpush1.msra.mxu0 0.0
    %4105 = vmatprep.subr.mxu0 0.0
    %4106 = vmatpush1.msra.mxu0 0.0
    %4107 = vmatprep.subr.mxu0 0.0
    %4108 = vmatpush1.msra.mxu0 0.0
    %4109 = vmatprep.subr.mxu0 0.0
    %4110 = vmatpush1.msra.mxu0 0.0
    %4111 = vmatprep.subr.mxu0 0.0
    %4112 = vmatpush1.msra.mxu0 0.0
    %4113 = vmatprep.subr.mxu0 0.0
    %4114 = vmatpush1.msra.mxu0 0.0
    %4115 = vmatprep.subr.mxu0 0.0
    %4116 = vmatpush1.msra.mxu0 0.0
    %4117 = vmatprep.subr.mxu0 0.0
    %4118 = vmatpush1.msra.mxu0 0.0
    %4119 = vmatprep.subr.mxu0 0.0
    %4120 = vmatpush1.msra.mxu0 0.0
    %4121 = vmatprep.subr.mxu0 0.0
    %4122 = vmatpush1.msra.mxu0 0.0
    %4123 = vmatprep.mubr.f32.mxu0 0.0
    %4124 = vmatmul.mubr.f32.gmra.mrb[0].mxu0 %v3916
    %v4125 = vpop.f32.mrb[0].mxu0
    %v4126 = vadd.f32 0.0, %v4125
    %v4127 = vpop.f32.mrb[0].mxu0
    %v4128 = vadd.f32 0.0, %v4127
    %4129 = vmatprep.mubr.f32.mxu0 0.0
    %4130 = vmatmul.mubr.f32.gmra.mrb[0].mxu0 %v3917
    %v4131 = vpop.f32.mrb[0].mxu0
    %v4132 = vadd.f32 0.0, %v4131
    %v4133 = vpop.f32.mrb[0].mxu0
    %v4134 = vadd.f32 0.0, %v4133
    %4135 = vdwg.mxu0
    %4136 = vmatprep.subr.mxu0 %v3853
    %4137 = vmatpush1.msra.mxu0 %v3852
    %4138 = vmatprep.subr.mxu0 %v3857
    %4139 = vmatpush1.msra.mxu0 %v3856
    %4140 = vmatprep.subr.mxu0 %v3861
    %4141 = vmatpush1.msra.mxu0 %v3860
    %4142 = vmatprep.subr.mxu0 %v3865
    %4143 = vmatpush1.msra.mxu0 %v3864
    %4144 = vmatprep.subr.mxu0 %v3869
    %4145 = vmatpush1.msra.mxu0 %v3868
    %4146 = vmatprep.subr.mxu0 %v3873
    %4147 = vmatpush1.msra.mxu0 %v3872
    %4148 = vmatprep.subr.mxu0 %v3877
    %4149 = vmatpush1.msra.mxu0 %v3876
    %4150 = vmatprep.subr.mxu0 %v3881
    %4151 = vmatpush1.msra.mxu0 %v3880
    %4152 = vmatprep.subr.mxu0 %v3885
    %4153 = vmatpush1.msra.mxu0 %v3884
    %4154 = vmatprep.subr.mxu0 %v3889
    %4155 = vmatpush1.msra.mxu0 %v3888
    %4156 = vmatprep.subr.mxu0 %v3893
    %4157 = vmatpush1.msra.mxu0 %v3892
    %4158 = vmatprep.subr.mxu0 %v3897
    %4159 = vmatpush1.msra.mxu0 %v3896
    %4160 = vmatprep.subr.mxu0 %v3901
    %4161 = vmatpush1.msra.mxu0 %v3900
    %4162 = vmatprep.subr.mxu0 %v3905
    %4163 = vmatpush1.msra.mxu0 %v3904
    %4164 = vmatprep.subr.mxu0 %v3909
    %4165 = vmatpush1.msra.mxu0 %v3908
    %4166 = vmatprep.subr.mxu0 %v3913
    %4167 = vmatpush1.msra.mxu0 %v3912
    %4168 = vmatprep.subr.mxu0 0.0
    %4169 = vmatpush1.msra.mxu0 0.0
    %4170 = vmatprep.subr.mxu0 0.0
    %4171 = vmatpush1.msra.mxu0 0.0
    %4172 = vmatprep.subr.mxu0 0.0
    %4173 = vmatpush1.msra.mxu0 0.0
    %4174 = vmatprep.subr.mxu0 0.0
    %4175 = vmatpush1.msra.mxu0 0.0
    %4176 = vmatprep.subr.mxu0 0.0
    %4177 = vmatpush1.msra.mxu0 0.0
    %4178 = vmatprep.subr.mxu0 0.0
    %4179 = vmatpush1.msra.mxu0 0.0
    %4180 = vmatprep.subr.mxu0 0.0
    %4181 = vmatpush1.msra.mxu0 0.0
    %4182 = vmatprep.subr.mxu0 0.0
    %4183 = vmatpush1.msra.mxu0 0.0
    %4184 = vmatprep.subr.mxu0 0.0
    %4185 = vmatpush1.msra.mxu0 0.0
    %4186 = vmatprep.subr.mxu0 0.0
    %4187 = vmatpush1.msra.mxu0 0.0
    %4188 = vmatprep.subr.mxu0 0.0
    %4189 = vmatpush1.msra.mxu0 0.0
    %4190 = vmatprep.subr.mxu0 0.0
    %4191 = vmatpush1.msra.mxu0 0.0
    %4192 = vmatprep.subr.mxu0 0.0
    %4193 = vmatpush1.msra.mxu0 0.0
    %4194 = vmatprep.subr.mxu0 0.0
    %4195 = vmatpush1.msra.mxu0 0.0
    %4196 = vmatprep.subr.mxu0 0.0
    %4197 = vmatpush1.msra.mxu0 0.0
    %4198 = vmatprep.subr.mxu0 0.0
    %4199 = vmatpush1.msra.mxu0 0.0
    %4200 = vmatprep.mubr.f32.mxu0 0.0
    %4201 = vmatmul.mubr.f32.gmra.mrb[0].mxu0 %v3850
    %v4202 = vpop.f32.mrb[0].mxu0
    %v4203 = vadd.f32 %v4049, %v4202
    %v4204 = vpop.f32.mrb[0].mxu0
    %v4205 = vadd.f32 %v4051, %v4204
    %4206 = vmatprep.mubr.f32.mxu0 0.0
    %4207 = vmatmul.mubr.f32.gmra.mrb[0].mxu0 %v3851
    %v4208 = vpop.f32.mrb[0].mxu0
    %v4209 = vadd.f32 %v4055, %v4208
    %v4210 = vpop.f32.mrb[0].mxu0
    %v4211 = vadd.f32 %v4057, %v4210
    %4212 = vdwg.mxu0
    %4213 = vmatprep.subr.mxu0 %v3855
    %4214 = vmatpush1.msra.mxu0 %v3854
    %4215 = vmatprep.subr.mxu0 %v3859
    %4216 = vmatpush1.msra.mxu0 %v3858
    %4217 = vmatprep.subr.mxu0 %v3863
    %4218 = vmatpush1.msra.mxu0 %v3862
    %4219 = vmatprep.subr.mxu0 %v3867
    %4220 = vmatpush1.msra.mxu0 %v3866
    %4221 = vmatprep.subr.mxu0 %v3871
    %4222 = vmatpush1.msra.mxu0 %v3870
    %4223 = vmatprep.subr.mxu0 %v3875
    %4224 = vmatpush1.msra.mxu0 %v3874
    %4225 = vmatprep.subr.mxu0 %v3879
    %4226 = vmatpush1.msra.mxu0 %v3878
    %4227 = vmatprep.subr.mxu0 %v3883
    %4228 = vmatpush1.msra.mxu0 %v3882
    %4229 = vmatprep.subr.mxu0 %v3887
    %4230 = vmatpush1.msra.mxu0 %v3886
    %4231 = vmatprep.subr.mxu0 %v3891
    %4232 = vmatpush1.msra.mxu0 %v3890
    %4233 = vmatprep.subr.mxu0 %v3895
    %4234 = vmatpush1.msra.mxu0 %v3894
    %4235 = vmatprep.subr.mxu0 %v3899
    %4236 = vmatpush1.msra.mxu0 %v3898
    %4237 = vmatprep.subr.mxu0 %v3903
    %4238 = vmatpush1.msra.mxu0 %v3902
    %4239 = vmatprep.subr.mxu0 %v3907
    %4240 = vmatpush1.msra.mxu0 %v3906
    %4241 = vmatprep.subr.mxu0 %v3911
    %4242 = vmatpush1.msra.mxu0 %v3910
    %4243 = vmatprep.subr.mxu0 %v3915
    %4244 = vmatpush1.msra.mxu0 %v3914
    %4245 = vmatprep.subr.mxu0 0.0
    %4246 = vmatpush1.msra.mxu0 0.0
    %4247 = vmatprep.subr.mxu0 0.0
    %4248 = vmatpush1.msra.mxu0 0.0
    %4249 = vmatprep.subr.mxu0 0.0
    %4250 = vmatpush1.msra.mxu0 0.0
    %4251 = vmatprep.subr.mxu0 0.0
    %4252 = vmatpush1.msra.mxu0 0.0
    %4253 = vmatprep.subr.mxu0 0.0
    %4254 = vmatpush1.msra.mxu0 0.0
    %4255 = vmatprep.subr.mxu0 0.0
    %4256 = vmatpush1.msra.mxu0 0.0
    %4257 = vmatprep.subr.mxu0 0.0
    %4258 = vmatpush1.msra.mxu0 0.0
    %4259 = vmatprep.subr.mxu0 0.0
    %4260 = vmatpush1.msra.mxu0 0.0
    %4261 = vmatprep.subr.mxu0 0.0
    %4262 = vmatpush1.msra.mxu0 0.0
    %4263 = vmatprep.subr.mxu0 0.0
    %4264 = vmatpush1.msra.mxu0 0.0
    %4265 = vmatprep.subr.mxu0 0.0
    %4266 = vmatpush1.msra.mxu0 0.0
    %4267 = vmatprep.subr.mxu0 0.0
    %4268 = vmatpush1.msra.mxu0 0.0
    %4269 = vmatprep.subr.mxu0 0.0
    %4270 = vmatpush1.msra.mxu0 0.0
    %4271 = vmatprep.subr.mxu0 0.0
    %4272 = vmatpush1.msra.mxu0 0.0
    %4273 = vmatprep.subr.mxu0 0.0
    %4274 = vmatpush1.msra.mxu0 0.0
    %4275 = vmatprep.subr.mxu0 0.0
    %4276 = vmatpush1.msra.mxu0 0.0
    %4277 = vmatprep.mubr.f32.mxu0 0.0
    %4278 = vmatmul.mubr.f32.gmra.mrb[0].mxu0 %v3850
    %v4279 = vpop.f32.mrb[0].mxu0
    %v4280 = vadd.f32 %v4126, %v4279
    %v4281 = vpop.f32.mrb[0].mxu0
    %v4282 = vadd.f32 %v4128, %v4281
    %4283 = vmatprep.mubr.f32.mxu0 0.0
    %4284 = vmatmul.mubr.f32.gmra.mrb[0].mxu0 %v3851
    %v4285 = vpop.f32.mrb[0].mxu0
    %v4286 = vadd.f32 %v4132, %v4285
    %v4287 = vpop.f32.mrb[0].mxu0
    %v4288 = vadd.f32 %v4134, %v4287
    %4289 = vdwg.mxu0
    %v4290 = vld [vmem:[#allocation24] sm:$0xf]
    %v4292 = vlaneseq
    %v4293 = vshrl.u32 %v4292, 7
    %v4294 = vsub.s32 0, %v4293
    %v4295 = vrot.slane %v4290, %v4294
    %v4296 = vlaneseq
    %v4297 = vshrl.u32 %v4296, 7
    %v4298 = vsub.s32 1, %v4297
    %v4299 = vrot.slane %v4290, %v4298
    %v4300 = vlaneseq
    %v4301 = vshrl.u32 %v4300, 7
    %v4302 = vsub.s32 2, %v4301
    %v4303 = vrot.slane %v4290, %v4302
    %v4304 = vlaneseq
    %v4305 = vshrl.u32 %v4304, 7
    %v4306 = vsub.s32 3, %v4305
    %v4307 = vrot.slane %v4290, %v4306
    %v4312 = vadd.f32 %v4203, %v4295
    %v4313 = vadd.f32 %v4205, %v4299
    %v4314 = vadd.f32 %v4280, %v4303
    %v4315 = vadd.f32 %v4282, %v4307
    %v4316 = vadd.f32 %v4209, %v4295
    %v4317 = vadd.f32 %v4211, %v4299
    %v4318 = vadd.f32 %v4286, %v4303
    %v4319 = vadd.f32 %v4288, %v4307
    %4320 = vst [vmem:[#allocation4] sm:$0xff] %v4312
    %4321 = vst [vmem:[#allocation4 + $0x8] sm:$0xff] %v4313
    %4322 = vst [vmem:[#allocation4 + $0x10] sm:$0xff] %v4314
    %4323 = vst [vmem:[#allocation4 + $0x18] sm:$0xff] %v4315
    %4324 = vst [vmem:[#allocation4 + $0x20] sm:$0xff] %v4316
    %4325 = vst [vmem:[#allocation4 + $0x28] sm:$0xff] %v4317
    %4326 = vst [vmem:[#allocation4 + $0x30] sm:$0xff] %v4318
    %4327 = vst [vmem:[#allocation4 + $0x38] sm:$0xff] %v4319
    %v4328 = vld [vmem:[#allocation22] sm:$0xff]
    %v4329 = vld [vmem:[#allocation22 + $0x8] sm:$0xff]
    %v4330 = vld [vmem:[#allocation22 + $0x10] sm:$0xff]
    %v4331 = vld [vmem:[#allocation22 + $0x18] sm:$0xff]
    %v4332 = vld [vmem:[#allocation22 + $0x20] sm:$0xff]
    %v4333 = vld [vmem:[#allocation22 + $0x28] sm:$0xff]
    %v4334 = vld [vmem:[#allocation22 + $0x30] sm:$0xff]
    %v4335 = vld [vmem:[#allocation22 + $0x38] sm:$0xff]
    %v4336 = vld [vmem:[#allocation22 + $0x40] sm:$0xff]
    %v4337 = vld [vmem:[#allocation22 + $0x48] sm:$0xff]
    %v4338 = vld [vmem:[#allocation22 + $0x50] sm:$0xff]
    %v4339 = vld [vmem:[#allocation22 + $0x58] sm:$0xff]
    %v4340 = vld [vmem:[#allocation22 + $0x60] sm:$0xff]
    %v4341 = vld [vmem:[#allocation22 + $0x68] sm:$0xff]
    %v4342 = vld [vmem:[#allocation22 + $0x70] sm:$0xff]
    %v4343 = vld [vmem:[#allocation22 + $0x78] sm:$0xff]
    %v4344 = vld [vmem:[#allocation22 + $0x80] sm:$0xff]
    %v4345 = vld [vmem:[#allocation22 + $0x88] sm:$0xff]
    %v4346 = vld [vmem:[#allocation22 + $0x90] sm:$0xff]
    %v4347 = vld [vmem:[#allocation22 + $0x98] sm:$0xff]
    %v4348 = vld [vmem:[#allocation22 + $0xa0] sm:$0xff]
    %v4349 = vld [vmem:[#allocation22 + $0xa8] sm:$0xff]
    %v4350 = vld [vmem:[#allocation22 + $0xb0] sm:$0xff]
    %v4351 = vld [vmem:[#allocation22 + $0xb8] sm:$0xff]
    %v4352 = vld [vmem:[#allocation22 + $0xc0] sm:$0xff]
    %v4353 = vld [vmem:[#allocation22 + $0xc8] sm:$0xff]
    %v4354 = vld [vmem:[#allocation22 + $0xd0] sm:$0xff]
    %v4355 = vld [vmem:[#allocation22 + $0xd8] sm:$0xff]
    %v4356 = vld [vmem:[#allocation22 + $0xe0] sm:$0xff]
    %v4357 = vld [vmem:[#allocation22 + $0xe8] sm:$0xff]
    %v4358 = vld [vmem:[#allocation22 + $0xf0] sm:$0xff]
    %v4359 = vld [vmem:[#allocation22 + $0xf8] sm:$0xff]
    %v4360 = vld [vmem:[#allocation22 + $0x100] sm:$0xff]
    %v4361 = vld [vmem:[#allocation22 + $0x108] sm:$0xff]
    %v4362 = vld [vmem:[#allocation22 + $0x110] sm:$0xff]
    %v4363 = vld [vmem:[#allocation22 + $0x118] sm:$0xff]
    %v4364 = vld [vmem:[#allocation22 + $0x120] sm:$0xff]
    %v4365 = vld [vmem:[#allocation22 + $0x128] sm:$0xff]
    %v4366 = vld [vmem:[#allocation22 + $0x130] sm:$0xff]
    %v4367 = vld [vmem:[#allocation22 + $0x138] sm:$0xff]
    %v4368 = vld [vmem:[#allocation22 + $0x140] sm:$0xff]
    %v4369 = vld [vmem:[#allocation22 + $0x148] sm:$0xff]
    %v4370 = vld [vmem:[#allocation22 + $0x150] sm:$0xff]
    %v4371 = vld [vmem:[#allocation22 + $0x158] sm:$0xff]
    %v4372 = vld [vmem:[#allocation22 + $0x160] sm:$0xff]
    %v4373 = vld [vmem:[#allocation22 + $0x168] sm:$0xff]
    %v4374 = vld [vmem:[#allocation22 + $0x170] sm:$0xff]
    %v4375 = vld [vmem:[#allocation22 + $0x178] sm:$0xff]
    %v4376 = vld [vmem:[#allocation22 + $0x180] sm:$0xff]
    %v4377 = vld [vmem:[#allocation22 + $0x188] sm:$0xff]
    %v4378 = vld [vmem:[#allocation22 + $0x190] sm:$0xff]
    %v4379 = vld [vmem:[#allocation22 + $0x198] sm:$0xff]
    %v4380 = vld [vmem:[#allocation22 + $0x1a0] sm:$0xff]
    %v4381 = vld [vmem:[#allocation22 + $0x1a8] sm:$0xff]
    %v4382 = vld [vmem:[#allocation22 + $0x1b0] sm:$0xff]
    %v4383 = vld [vmem:[#allocation22 + $0x1b8] sm:$0xff]
    %v4384 = vld [vmem:[#allocation22 + $0x1c0] sm:$0xff]
    %v4385 = vld [vmem:[#allocation22 + $0x1c8] sm:$0xff]
    %v4386 = vld [vmem:[#allocation22 + $0x1d0] sm:$0xff]
    %v4387 = vld [vmem:[#allocation22 + $0x1d8] sm:$0xff]
    %v4388 = vld [vmem:[#allocation22 + $0x1e0] sm:$0xff]
    %v4389 = vld [vmem:[#allocation22 + $0x1e8] sm:$0xff]
    %v4390 = vld [vmem:[#allocation22 + $0x1f0] sm:$0xff]
    %v4391 = vld [vmem:[#allocation22 + $0x1f8] sm:$0xff]
    %v4392 = vld [vmem:[#allocation4] sm:$0x3]
    %v4393 = vld [vmem:[#allocation4 + $0x8] sm:$0x3]
    %v4394 = vld [vmem:[#allocation4 + $0x10] sm:$0x3]
    %v4395 = vld [vmem:[#allocation4 + $0x18] sm:$0x3]
    %4396 = vmatprep.subr.mxu0 %v4329
    %4397 = vmatpush1.msra.mxu0 %v4328
    %4398 = vmatprep.subr.mxu0 %v4333
    %4399 = vmatpush1.msra.mxu0 %v4332
    %4400 = vmatprep.subr.mxu0 %v4337
    %4401 = vmatpush1.msra.mxu0 %v4336
    %4402 = vmatprep.subr.mxu0 %v4341
    %4403 = vmatpush1.msra.mxu0 %v4340
    %4404 = vmatprep.subr.mxu0 %v4345
    %4405 = vmatpush1.msra.mxu0 %v4344
    %4406 = vmatprep.subr.mxu0 %v4349
    %4407 = vmatpush1.msra.mxu0 %v4348
    %4408 = vmatprep.subr.mxu0 %v4353
    %4409 = vmatpush1.msra.mxu0 %v4352
    %4410 = vmatprep.subr.mxu0 %v4357
    %4411 = vmatpush1.msra.mxu0 %v4356
    %4412 = vmatprep.subr.mxu0 %v4361
    %4413 = vmatpush1.msra.mxu0 %v4360
    %4414 = vmatprep.subr.mxu0 %v4365
    %4415 = vmatpush1.msra.mxu0 %v4364
    %4416 = vmatprep.subr.mxu0 %v4369
    %4417 = vmatpush1.msra.mxu0 %v4368
    %4418 = vmatprep.subr.mxu0 %v4373
    %4419 = vmatpush1.msra.mxu0 %v4372
    %4420 = vmatprep.subr.mxu0 %v4377
    %4421 = vmatpush1.msra.mxu0 %v4376
    %4422 = vmatprep.subr.mxu0 %v4381
    %4423 = vmatpush1.msra.mxu0 %v4380
    %4424 = vmatprep.subr.mxu0 %v4385
    %4425 = vmatpush1.msra.mxu0 %v4384
    %4426 = vmatprep.subr.mxu0 %v4389
    %4427 = vmatpush1.msra.mxu0 %v4388
    %4428 = vmatprep.subr.mxu0 0.0
    %4429 = vmatpush1.msra.mxu0 0.0
    %4430 = vmatprep.subr.mxu0 0.0
    %4431 = vmatpush1.msra.mxu0 0.0
    %4432 = vmatprep.subr.mxu0 0.0
    %4433 = vmatpush1.msra.mxu0 0.0
    %4434 = vmatprep.subr.mxu0 0.0
    %4435 = vmatpush1.msra.mxu0 0.0
    %4436 = vmatprep.subr.mxu0 0.0
    %4437 = vmatpush1.msra.mxu0 0.0
    %4438 = vmatprep.subr.mxu0 0.0
    %4439 = vmatpush1.msra.mxu0 0.0
    %4440 = vmatprep.subr.mxu0 0.0
    %4441 = vmatpush1.msra.mxu0 0.0
    %4442 = vmatprep.subr.mxu0 0.0
    %4443 = vmatpush1.msra.mxu0 0.0
    %4444 = vmatprep.subr.mxu0 0.0
    %4445 = vmatpush1.msra.mxu0 0.0
    %4446 = vmatprep.subr.mxu0 0.0
    %4447 = vmatpush1.msra.mxu0 0.0
    %4448 = vmatprep.subr.mxu0 0.0
    %4449 = vmatpush1.msra.mxu0 0.0
    %4450 = vmatprep.subr.mxu0 0.0
    %4451 = vmatpush1.msra.mxu0 0.0
    %4452 = vmatprep.subr.mxu0 0.0
    %4453 = vmatpush1.msra.mxu0 0.0
    %4454 = vmatprep.subr.mxu0 0.0
    %4455 = vmatpush1.msra.mxu0 0.0
    %4456 = vmatprep.subr.mxu0 0.0
    %4457 = vmatpush1.msra.mxu0 0.0
    %4458 = vmatprep.subr.mxu0 0.0
    %4459 = vmatpush1.msra.mxu0 0.0
    %4460 = vmatprep.mubr.f32.mxu0 0.0
    %4461 = vmatmul.mubr.f32.gmra.mrb[0].mxu0 0.0
    %v4462 = vpop.f32.mrb[0].mxu0
    %v4463 = vadd.f32 0.0, %v4462
    %v4464 = vpop.f32.mrb[0].mxu0
    %v4465 = vadd.f32 0.0, %v4464
    %4466 = vdwg.mxu0
    %4467 = vmatprep.subr.mxu0 %v4331
    %4468 = vmatpush1.msra.mxu0 %v4330
    %4469 = vmatprep.subr.mxu0 %v4335
    %4470 = vmatpush1.msra.mxu0 %v4334
    %4471 = vmatprep.subr.mxu0 %v4339
    %4472 = vmatpush1.msra.mxu0 %v4338
    %4473 = vmatprep.subr.mxu0 %v4343
    %4474 = vmatpush1.msra.mxu0 %v4342
    %4475 = vmatprep.subr.mxu0 %v4347
    %4476 = vmatpush1.msra.mxu0 %v4346
    %4477 = vmatprep.subr.mxu0 %v4351
    %4478 = vmatpush1.msra.mxu0 %v4350
    %4479 = vmatprep.subr.mxu0 %v4355
    %4480 = vmatpush1.msra.mxu0 %v4354
    %4481 = vmatprep.subr.mxu0 %v4359
    %4482 = vmatpush1.msra.mxu0 %v4358
    %4483 = vmatprep.subr.mxu0 %v4363
    %4484 = vmatpush1.msra.mxu0 %v4362
    %4485 = vmatprep.subr.mxu0 %v4367
    %4486 = vmatpush1.msra.mxu0 %v4366
    %4487 = vmatprep.subr.mxu0 %v4371
    %4488 = vmatpush1.msra.mxu0 %v4370
    %4489 = vmatprep.subr.mxu0 %v4375
    %4490 = vmatpush1.msra.mxu0 %v4374
    %4491 = vmatprep.subr.mxu0 %v4379
    %4492 = vmatpush1.msra.mxu0 %v4378
    %4493 = vmatprep.subr.mxu0 %v4383
    %4494 = vmatpush1.msra.mxu0 %v4382
    %4495 = vmatprep.subr.mxu0 %v4387
    %4496 = vmatpush1.msra.mxu0 %v4386
    %4497 = vmatprep.subr.mxu0 %v4391
    %4498 = vmatpush1.msra.mxu0 %v4390
    %4499 = vmatprep.subr.mxu0 0.0
    %4500 = vmatpush1.msra.mxu0 0.0
    %4501 = vmatprep.subr.mxu0 0.0
    %4502 = vmatpush1.msra.mxu0 0.0
    %4503 = vmatprep.subr.mxu0 0.0
    %4504 = vmatpush1.msra.mxu0 0.0
    %4505 = vmatprep.subr.mxu0 0.0
    %4506 = vmatpush1.msra.mxu0 0.0
    %4507 = vmatprep.subr.mxu0 0.0
    %4508 = vmatpush1.msra.mxu0 0.0
    %4509 = vmatprep.subr.mxu0 0.0
    %4510 = vmatpush1.msra.mxu0 0.0
    %4511 = vmatprep.subr.mxu0 0.0
    %4512 = vmatpush1.msra.mxu0 0.0
    %4513 = vmatprep.subr.mxu0 0.0
    %4514 = vmatpush1.msra.mxu0 0.0
    %4515 = vmatprep.subr.mxu0 0.0
    %4516 = vmatpush1.msra.mxu0 0.0
    %4517 = vmatprep.subr.mxu0 0.0
    %4518 = vmatpush1.msra.mxu0 0.0
    %4519 = vmatprep.subr.mxu0 0.0
    %4520 = vmatpush1.msra.mxu0 0.0
    %4521 = vmatprep.subr.mxu0 0.0
    %4522 = vmatpush1.msra.mxu0 0.0
    %4523 = vmatprep.subr.mxu0 0.0
    %4524 = vmatpush1.msra.mxu0 0.0
    %4525 = vmatprep.subr.mxu0 0.0
    %4526 = vmatpush1.msra.mxu0 0.0
    %4527 = vmatprep.subr.mxu0 0.0
    %4528 = vmatpush1.msra.mxu0 0.0
    %4529 = vmatprep.subr.mxu0 0.0
    %4530 = vmatpush1.msra.mxu0 0.0
    %4531 = vmatprep.mubr.f32.mxu0 0.0
    %4532 = vmatmul.mubr.f32.gmra.mrb[0].mxu0 0.0
    %v4533 = vpop.f32.mrb[0].mxu0
    %v4534 = vadd.f32 0.0, %v4533
    %v4535 = vpop.f32.mrb[0].mxu0
    %v4536 = vadd.f32 0.0, %v4535
    %4537 = vdwg.mxu0
    %v4538 = vadd.f32 %v4392, %v4463
    %v4539 = vadd.f32 %v4393, %v4465
    %v4540 = vadd.f32 %v4394, %v4534
    %v4541 = vadd.f32 %v4395, %v4536
    %v4542 = vsub.f32 0.0, %v4538
    %v4543 = vmul.f32 %v4542, 1.442695
    %v4544 = vpow.pop %v4543
    %v4545 = vadd.f32 %v4544, 1.0
    %v4546 = vrcp.pop %v4545
    %v4547 = vmul.f32 1.0, %v4546
    %v4548 = vsub.f32 0.0, %v4539
    %v4549 = vmul.f32 %v4548, 1.442695
    %v4550 = vpow.pop %v4549
    %v4551 = vadd.f32 %v4550, 1.0
    %v4552 = vrcp.pop %v4551
    %v4553 = vmul.f32 1.0, %v4552
    %v4554 = vtanh.pop %v4540
    %v4555 = vsub.f32 0.0, %v4541
    %v4556 = vmul.f32 %v4555, 1.442695
    %v4557 = vpow.pop %v4556
    %v4558 = vadd.f32 %v4557, 1.0
    %v4559 = vrcp.pop %v4558
    %v4560 = vmul.f32 1.0, %v4559
    %v4561 = vmul.f32 %v4553, 0.0
    %v4562 = vmul.f32 %v4547, %v4554
    %v4563 = vadd.f32 %v4561, %v4562
    %v4564 = vtanh.pop %v4563
    %v4565 = vmul.f32 %v4560, %v4564
    %v4566 = vld [vmem:[#allocation4] sm:$0xc]
    %v4567 = vld [vmem:[#allocation4 + $0x8] sm:$0xc]
    %v4568 = vld [vmem:[#allocation4 + $0x10] sm:$0xc]
    %v4569 = vld [vmem:[#allocation4 + $0x18] sm:$0xc]
    %4570 = vmatprep.subr.mxu0 %v4329
    %4571 = vmatpush1.msra.mxu0 %v4328
    %4572 = vmatprep.subr.mxu0 %v4333
    %4573 = vmatpush1.msra.mxu0 %v4332
    %4574 = vmatprep.subr.mxu0 %v4337
    %4575 = vmatpush1.msra.mxu0 %v4336
    %4576 = vmatprep.subr.mxu0 %v4341
    %4577 = vmatpush1.msra.mxu0 %v4340
    %4578 = vmatprep.subr.mxu0 %v4345
    %4579 = vmatpush1.msra.mxu0 %v4344
    %4580 = vmatprep.subr.mxu0 %v4349
    %4581 = vmatpush1.msra.mxu0 %v4348
    %4582 = vmatprep.subr.mxu0 %v4353
    %4583 = vmatpush1.msra.mxu0 %v4352
    %4584 = vmatprep.subr.mxu0 %v4357
    %4585 = vmatpush1.msra.mxu0 %v4356
    %4586 = vmatprep.subr.mxu0 %v4361
    %4587 = vmatpush1.msra.mxu0 %v4360
    %4588 = vmatprep.subr.mxu0 %v4365
    %4589 = vmatpush1.msra.mxu0 %v4364
    %4590 = vmatprep.subr.mxu0 %v4369
    %4591 = vmatpush1.msra.mxu0 %v4368
    %4592 = vmatprep.subr.mxu0 %v4373
    %4593 = vmatpush1.msra.mxu0 %v4372
    %4594 = vmatprep.subr.mxu0 %v4377
    %4595 = vmatpush1.msra.mxu0 %v4376
    %4596 = vmatprep.subr.mxu0 %v4381
    %4597 = vmatpush1.msra.mxu0 %v4380
    %4598 = vmatprep.subr.mxu0 %v4385
    %4599 = vmatpush1.msra.mxu0 %v4384
    %4600 = vmatprep.subr.mxu0 %v4389
    %4601 = vmatpush1.msra.mxu0 %v4388
    %4602 = vmatprep.subr.mxu0 0.0
    %4603 = vmatpush1.msra.mxu0 0.0
    %4604 = vmatprep.subr.mxu0 0.0
    %4605 = vmatpush1.msra.mxu0 0.0
    %4606 = vmatprep.subr.mxu0 0.0
    %4607 = vmatpush1.msra.mxu0 0.0
    %4608 = vmatprep.subr.mxu0 0.0
    %4609 = vmatpush1.msra.mxu0 0.0
    %4610 = vmatprep.subr.mxu0 0.0
    %4611 = vmatpush1.msra.mxu0 0.0
    %4612 = vmatprep.subr.mxu0 0.0
    %4613 = vmatpush1.msra.mxu0 0.0
    %4614 = vmatprep.subr.mxu0 0.0
    %4615 = vmatpush1.msra.mxu0 0.0
    %4616 = vmatprep.subr.mxu0 0.0
    %4617 = vmatpush1.msra.mxu0 0.0
    %4618 = vmatprep.subr.mxu0 0.0
    %4619 = vmatpush1.msra.mxu0 0.0
    %4620 = vmatprep.subr.mxu0 0.0
    %4621 = vmatpush1.msra.mxu0 0.0
    %4622 = vmatprep.subr.mxu0 0.0
    %4623 = vmatpush1.msra.mxu0 0.0
    %4624 = vmatprep.subr.mxu0 0.0
    %4625 = vmatpush1.msra.mxu0 0.0
    %4626 = vmatprep.subr.mxu0 0.0
    %4627 = vmatpush1.msra.mxu0 0.0
    %4628 = vmatprep.subr.mxu0 0.0
    %4629 = vmatpush1.msra.mxu0 0.0
    %4630 = vmatprep.subr.mxu0 0.0
    %4631 = vmatpush1.msra.mxu0 0.0
    %4632 = vmatprep.subr.mxu0 0.0
    %4633 = vmatpush1.msra.mxu0 0.0
    %4634 = vmatprep.mubr.f32.mxu0 0.0
    %4635 = vmatmul.mubr.f32.gmra.mrb[0].mxu0 %v4565
    %v4636 = vpop.f32.mrb[0].mxu0
    %v4637 = vadd.f32 0.0, %v4636
    %v4638 = vpop.f32.mrb[0].mxu0
    %v4639 = vadd.f32 0.0, %v4638
    %4640 = vdwg.mxu0
    %4641 = vmatprep.subr.mxu0 %v4331
    %4642 = vmatpush1.msra.mxu0 %v4330
    %4643 = vmatprep.subr.mxu0 %v4335
    %4644 = vmatpush1.msra.mxu0 %v4334
    %4645 = vmatprep.subr.mxu0 %v4339
    %4646 = vmatpush1.msra.mxu0 %v4338
    %4647 = vmatprep.subr.mxu0 %v4343
    %4648 = vmatpush1.msra.mxu0 %v4342
    %4649 = vmatprep.subr.mxu0 %v4347
    %4650 = vmatpush1.msra.mxu0 %v4346
    %4651 = vmatprep.subr.mxu0 %v4351
    %4652 = vmatpush1.msra.mxu0 %v4350
    %4653 = vmatprep.subr.mxu0 %v4355
    %4654 = vmatpush1.msra.mxu0 %v4354
    %4655 = vmatprep.subr.mxu0 %v4359
    %4656 = vmatpush1.msra.mxu0 %v4358
    %4657 = vmatprep.subr.mxu0 %v4363
    %4658 = vmatpush1.msra.mxu0 %v4362
    %4659 = vmatprep.subr.mxu0 %v4367
    %4660 = vmatpush1.msra.mxu0 %v4366
    %4661 = vmatprep.subr.mxu0 %v4371
    %4662 = vmatpush1.msra.mxu0 %v4370
    %4663 = vmatprep.subr.mxu0 %v4375
    %4664 = vmatpush1.msra.mxu0 %v4374
    %4665 = vmatprep.subr.mxu0 %v4379
    %4666 = vmatpush1.msra.mxu0 %v4378
    %4667 = vmatprep.subr.mxu0 %v4383
    %4668 = vmatpush1.msra.mxu0 %v4382
    %4669 = vmatprep.subr.mxu0 %v4387
    %4670 = vmatpush1.msra.mxu0 %v4386
    %4671 = vmatprep.subr.mxu0 %v4391
    %4672 = vmatpush1.msra.mxu0 %v4390
    %4673 = vmatprep.subr.mxu0 0.0
    %4674 = vmatpush1.msra.mxu0 0.0
    %4675 = vmatprep.subr.mxu0 0.0
    %4676 = vmatpush1.msra.mxu0 0.0
    %4677 = vmatprep.subr.mxu0 0.0
    %4678 = vmatpush1.msra.mxu0 0.0
    %4679 = vmatprep.subr.mxu0 0.0
    %4680 = vmatpush1.msra.mxu0 0.0
    %4681 = vmatprep.subr.mxu0 0.0
    %4682 = vmatpush1.msra.mxu0 0.0
    %4683 = vmatprep.subr.mxu0 0.0
    %4684 = vmatpush1.msra.mxu0 0.0
    %4685 = vmatprep.subr.mxu0 0.0
    %4686 = vmatpush1.msra.mxu0 0.0
    %4687 = vmatprep.subr.mxu0 0.0
    %4688 = vmatpush1.msra.mxu0 0.0
    %4689 = vmatprep.subr.mxu0 0.0
    %4690 = vmatpush1.msra.mxu0 0.0
    %4691 = vmatprep.subr.mxu0 0.0
    %4692 = vmatpush1.msra.mxu0 0.0
    %4693 = vmatprep.subr.mxu0 0.0
    %4694 = vmatpush1.msra.mxu0 0.0
    %4695 = vmatprep.subr.mxu0 0.0
    %4696 = vmatpush1.msra.mxu0 0.0
    %4697 = vmatprep.subr.mxu0 0.0
    %4698 = vmatpush1.msra.mxu0 0.0
    %4699 = vmatprep.subr.mxu0 0.0
    %4700 = vmatpush1.msra.mxu0 0.0
    %4701 = vmatprep.subr.mxu0 0.0
    %4702 = vmatpush1.msra.mxu0 0.0
    %4703 = vmatprep.subr.mxu0 0.0
    %4704 = vmatpush1.msra.mxu0 0.0
    %4705 = vmatprep.mubr.f32.mxu0 0.0
    %4706 = vmatmul.mubr.f32.gmra.mrb[0].mxu0 %v4565
    %v4707 = vpop.f32.mrb[0].mxu0
    %v4708 = vadd.f32 0.0, %v4707
    %v4709 = vpop.f32.mrb[0].mxu0
    %v4710 = vadd.f32 0.0, %v4709
    %4711 = vdwg.mxu0
    %v4716 = vrot.slane %v4637, 6
    %v4717 = vrot.slane %v4639, 6
    %v4718 = vrot.slane %v4708, 6
    %v4719 = vrot.slane %v4710, 6
    %v4724 = vadd.f32 %v4566, %v4716
    %v4725 = vadd.f32 %v4567, %v4717
    %v4726 = vadd.f32 %v4568, %v4718
    %v4727 = vadd.f32 %v4569, %v4719
    %v4728 = vsub.f32 0.0, %v4724
    %v4729 = vmul.f32 %v4728, 1.442695
    %v4730 = vpow.pop %v4729
    %v4731 = vadd.f32 %v4730, 1.0
    %v4732 = vrcp.pop %v4731
    %v4733 = vmul.f32 1.0, %v4732
    %v4734 = vsub.f32 0.0, %v4725
    %v4735 = vmul.f32 %v4734, 1.442695
    %v4736 = vpow.pop %v4735
    %v4737 = vadd.f32 %v4736, 1.0
    %v4738 = vrcp.pop %v4737
    %v4739 = vmul.f32 1.0, %v4738
    %v4740 = vtanh.pop %v4726
    %v4741 = vsub.f32 0.0, %v4727
    %v4742 = vmul.f32 %v4741, 1.442695
    %v4743 = vpow.pop %v4742
    %v4744 = vadd.f32 %v4743, 1.0
    %v4745 = vrcp.pop %v4744
    %v4746 = vmul.f32 1.0, %v4745
    %v4748 = vrot.slane %v4563, 6
    %v4750 = vmul.f32 %v4739, %v4748
    %v4751 = vmul.f32 %v4733, %v4740
    %v4752 = vadd.f32 %v4750, %v4751
    %v4753 = vtanh.pop %v4752
    %v4754 = vmul.f32 %v4746, %v4753
    %v4755 = vld [vmem:[#allocation4] sm:$0x30]
    %v4756 = vld [vmem:[#allocation4 + $0x8] sm:$0x30]
    %v4757 = vld [vmem:[#allocation4 + $0x10] sm:$0x30]
    %v4758 = vld [vmem:[#allocation4 + $0x18] sm:$0x30]
    %v4760 = vrot.slane %v4754, 2
    %4762 = vmatprep.subr.mxu0 %v4329
    %4763 = vmatpush1.msra.mxu0 %v4328
    %4764 = vmatprep.subr.mxu0 %v4333
    %4765 = vmatpush1.msra.mxu0 %v4332
    %4766 = vmatprep.subr.mxu0 %v4337
    %4767 = vmatpush1.msra.mxu0 %v4336
    %4768 = vmatprep.subr.mxu0 %v4341
    %4769 = vmatpush1.msra.mxu0 %v4340
    %4770 = vmatprep.subr.mxu0 %v4345
    %4771 = vmatpush1.msra.mxu0 %v4344
    %4772 = vmatprep.subr.mxu0 %v4349
    %4773 = vmatpush1.msra.mxu0 %v4348
    %4774 = vmatprep.subr.mxu0 %v4353
    %4775 = vmatpush1.msra.mxu0 %v4352
    %4776 = vmatprep.subr.mxu0 %v4357
    %4777 = vmatpush1.msra.mxu0 %v4356
    %4778 = vmatprep.subr.mxu0 %v4361
    %4779 = vmatpush1.msra.mxu0 %v4360
    %4780 = vmatprep.subr.mxu0 %v4365
    %4781 = vmatpush1.msra.mxu0 %v4364
    %4782 = vmatprep.subr.mxu0 %v4369
    %4783 = vmatpush1.msra.mxu0 %v4368
    %4784 = vmatprep.subr.mxu0 %v4373
    %4785 = vmatpush1.msra.mxu0 %v4372
    %4786 = vmatprep.subr.mxu0 %v4377
    %4787 = vmatpush1.msra.mxu0 %v4376
    %4788 = vmatprep.subr.mxu0 %v4381
    %4789 = vmatpush1.msra.mxu0 %v4380
    %4790 = vmatprep.subr.mxu0 %v4385
    %4791 = vmatpush1.msra.mxu0 %v4384
    %4792 = vmatprep.subr.mxu0 %v4389
    %4793 = vmatpush1.msra.mxu0 %v4388
    %4794 = vmatprep.subr.mxu0 0.0
    %4795 = vmatpush1.msra.mxu0 0.0
    %4796 = vmatprep.subr.mxu0 0.0
    %4797 = vmatpush1.msra.mxu0 0.0
    %4798 = vmatprep.subr.mxu0 0.0
    %4799 = vmatpush1.msra.mxu0 0.0
    %4800 = vmatprep.subr.mxu0 0.0
    %4801 = vmatpush1.msra.mxu0 0.0
    %4802 = vmatprep.subr.mxu0 0.0
    %4803 = vmatpush1.msra.mxu0 0.0
    %4804 = vmatprep.subr.mxu0 0.0
    %4805 = vmatpush1.msra.mxu0 0.0
    %4806 = vmatprep.subr.mxu0 0.0
    %4807 = vmatpush1.msra.mxu0 0.0
    %4808 = vmatprep.subr.mxu0 0.0
    %4809 = vmatpush1.msra.mxu0 0.0
    %4810 = vmatprep.subr.mxu0 0.0
    %4811 = vmatpush1.msra.mxu0 0.0
    %4812 = vmatprep.subr.mxu0 0.0
    %4813 = vmatpush1.msra.mxu0 0.0
    %4814 = vmatprep.subr.mxu0 0.0
    %4815 = vmatpush1.msra.mxu0 0.0
    %4816 = vmatprep.subr.mxu0 0.0
    %4817 = vmatpush1.msra.mxu0 0.0
    %4818 = vmatprep.subr.mxu0 0.0
    %4819 = vmatpush1.msra.mxu0 0.0
    %4820 = vmatprep.subr.mxu0 0.0
    %4821 = vmatpush1.msra.mxu0 0.0
    %4822 = vmatprep.subr.mxu0 0.0
    %4823 = vmatpush1.msra.mxu0 0.0
    %4824 = vmatprep.subr.mxu0 0.0
    %4825 = vmatpush1.msra.mxu0 0.0
    %4826 = vmatprep.mubr.f32.mxu0 0.0
    %4827 = vmatmul.mubr.f32.gmra.mrb[0].mxu0 %v4760
    %v4828 = vpop.f32.mrb[0].mxu0
    %v4829 = vadd.f32 0.0, %v4828
    %v4830 = vpop.f32.mrb[0].mxu0
    %v4831 = vadd.f32 0.0, %v4830
    %4832 = vdwg.mxu0
    %4833 = vmatprep.subr.mxu0 %v4331
    %4834 = vmatpush1.msra.mxu0 %v4330
    %4835 = vmatprep.subr.mxu0 %v4335
    %4836 = vmatpush1.msra.mxu0 %v4334
    %4837 = vmatprep.subr.mxu0 %v4339
    %4838 = vmatpush1.msra.mxu0 %v4338
    %4839 = vmatprep.subr.mxu0 %v4343
    %4840 = vmatpush1.msra.mxu0 %v4342
    %4841 = vmatprep.subr.mxu0 %v4347
    %4842 = vmatpush1.msra.mxu0 %v4346
    %4843 = vmatprep.subr.mxu0 %v4351
    %4844 = vmatpush1.msra.mxu0 %v4350
    %4845 = vmatprep.subr.mxu0 %v4355
    %4846 = vmatpush1.msra.mxu0 %v4354
    %4847 = vmatprep.subr.mxu0 %v4359
    %4848 = vmatpush1.msra.mxu0 %v4358
    %4849 = vmatprep.subr.mxu0 %v4363
    %4850 = vmatpush1.msra.mxu0 %v4362
    %4851 = vmatprep.subr.mxu0 %v4367
    %4852 = vmatpush1.msra.mxu0 %v4366
    %4853 = vmatprep.subr.mxu0 %v4371
    %4854 = vmatpush1.msra.mxu0 %v4370
    %4855 = vmatprep.subr.mxu0 %v4375
    %4856 = vmatpush1.msra.mxu0 %v4374
    %4857 = vmatprep.subr.mxu0 %v4379
    %4858 = vmatpush1.msra.mxu0 %v4378
    %4859 = vmatprep.subr.mxu0 %v4383
    %4860 = vmatpush1.msra.mxu0 %v4382
    %4861 = vmatprep.subr.mxu0 %v4387
    %4862 = vmatpush1.msra.mxu0 %v4386
    %4863 = vmatprep.subr.mxu0 %v4391
    %4864 = vmatpush1.msra.mxu0 %v4390
    %4865 = vmatprep.subr.mxu0 0.0
    %4866 = vmatpush1.msra.mxu0 0.0
    %4867 = vmatprep.subr.mxu0 0.0
    %4868 = vmatpush1.msra.mxu0 0.0
    %4869 = vmatprep.subr.mxu0 0.0
    %4870 = vmatpush1.msra.mxu0 0.0
    %4871 = vmatprep.subr.mxu0 0.0
    %4872 = vmatpush1.msra.mxu0 0.0
    %4873 = vmatprep.subr.mxu0 0.0
    %4874 = vmatpush1.msra.mxu0 0.0
    %4875 = vmatprep.subr.mxu0 0.0
    %4876 = vmatpush1.msra.mxu0 0.0
    %4877 = vmatprep.subr.mxu0 0.0
    %4878 = vmatpush1.msra.mxu0 0.0
    %4879 = vmatprep.subr.mxu0 0.0
    %4880 = vmatpush1.msra.mxu0 0.0
    %4881 = vmatprep.subr.mxu0 0.0
    %4882 = vmatpush1.msra.mxu0 0.0
    %4883 = vmatprep.subr.mxu0 0.0
    %4884 = vmatpush1.msra.mxu0 0.0
    %4885 = vmatprep.subr.mxu0 0.0
    %4886 = vmatpush1.msra.mxu0 0.0
    %4887 = vmatprep.subr.mxu0 0.0
    %4888 = vmatpush1.msra.mxu0 0.0
    %4889 = vmatprep.subr.mxu0 0.0
    %4890 = vmatpush1.msra.mxu0 0.0
    %4891 = vmatprep.subr.mxu0 0.0
    %4892 = vmatpush1.msra.mxu0 0.0
    %4893 = vmatprep.subr.mxu0 0.0
    %4894 = vmatpush1.msra.mxu0 0.0
    %4895 = vmatprep.subr.mxu0 0.0
    %4896 = vmatpush1.msra.mxu0 0.0
    %4897 = vmatprep.mubr.f32.mxu0 0.0
    %4898 = vmatmul.mubr.f32.gmra.mrb[0].mxu0 %v4760
    %v4899 = vpop.f32.mrb[0].mxu0
    %v4900 = vadd.f32 0.0, %v4899
    %v4901 = vpop.f32.mrb[0].mxu0
    %v4902 = vadd.f32 0.0, %v4901
    %4903 = vdwg.mxu0
    %v4908 = vrot.slane %v4829, 4
    %v4909 = vrot.slane %v4831, 4
    %v4910 = vrot.slane %v4900, 4
    %v4911 = vrot.slane %v4902, 4
    %v4916 = vadd.f32 %v4755, %v4908
    %v4917 = vadd.f32 %v4756, %v4909
    %v4918 = vadd.f32 %v4757, %v4910
    %v4919 = vadd.f32 %v4758, %v4911
    %v4920 = vsub.f32 0.0, %v4916
    %v4921 = vmul.f32 %v4920, 1.442695
    %v4922 = vpow.pop %v4921
    %v4923 = vadd.f32 %v4922, 1.0
    %v4924 = vrcp.pop %v4923
    %v4925 = vmul.f32 1.0, %v4924
    %v4926 = vsub.f32 0.0, %v4917
    %v4927 = vmul.f32 %v4926, 1.442695
    %v4928 = vpow.pop %v4927
    %v4929 = vadd.f32 %v4928, 1.0
    %v4930 = vrcp.pop %v4929
    %v4931 = vmul.f32 1.0, %v4930
    %v4932 = vtanh.pop %v4918
    %v4933 = vsub.f32 0.0, %v4919
    %v4934 = vmul.f32 %v4933, 1.442695
    %v4935 = vpow.pop %v4934
    %v4936 = vadd.f32 %v4935, 1.0
    %v4937 = vrcp.pop %v4936
    %v4938 = vmul.f32 1.0, %v4937
    %v4940 = vrot.slane %v4752, 6
    %v4942 = vmul.f32 %v4931, %v4940
    %v4943 = vmul.f32 %v4925, %v4932
    %v4944 = vadd.f32 %v4942, %v4943
    %v4945 = vtanh.pop %v4944
    %v4946 = vmul.f32 %v4938, %v4945
    %v4947 = vld [vmem:[#allocation4] sm:$0xc0]
    %v4948 = vld [vmem:[#allocation4 + $0x8] sm:$0xc0]
    %v4949 = vld [vmem:[#allocation4 + $0x10] sm:$0xc0]
    %v4950 = vld [vmem:[#allocation4 + $0x18] sm:$0xc0]
    %v4952 = vrot.slane %v4946, 4
    %4954 = vmatprep.subr.mxu0 %v4329
    %4955 = vmatpush1.msra.mxu0 %v4328
    %4956 = vmatprep.subr.mxu0 %v4333
    %4957 = vmatpush1.msra.mxu0 %v4332
    %4958 = vmatprep.subr.mxu0 %v4337
    %4959 = vmatpush1.msra.mxu0 %v4336
    %4960 = vmatprep.subr.mxu0 %v4341
    %4961 = vmatpush1.msra.mxu0 %v4340
    %4962 = vmatprep.subr.mxu0 %v4345
    %4963 = vmatpush1.msra.mxu0 %v4344
    %4964 = vmatprep.subr.mxu0 %v4349
    %4965 = vmatpush1.msra.mxu0 %v4348
    %4966 = vmatprep.subr.mxu0 %v4353
    %4967 = vmatpush1.msra.mxu0 %v4352
    %4968 = vmatprep.subr.mxu0 %v4357
    %4969 = vmatpush1.msra.mxu0 %v4356
    %4970 = vmatprep.subr.mxu0 %v4361
    %4971 = vmatpush1.msra.mxu0 %v4360
    %4972 = vmatprep.subr.mxu0 %v4365
    %4973 = vmatpush1.msra.mxu0 %v4364
    %4974 = vmatprep.subr.mxu0 %v4369
    %4975 = vmatpush1.msra.mxu0 %v4368
    %4976 = vmatprep.subr.mxu0 %v4373
    %4977 = vmatpush1.msra.mxu0 %v4372
    %4978 = vmatprep.subr.mxu0 %v4377
    %4979 = vmatpush1.msra.mxu0 %v4376
    %4980 = vmatprep.subr.mxu0 %v4381
    %4981 = vmatpush1.msra.mxu0 %v4380
    %4982 = vmatprep.subr.mxu0 %v4385
    %4983 = vmatpush1.msra.mxu0 %v4384
    %4984 = vmatprep.subr.mxu0 %v4389
    %4985 = vmatpush1.msra.mxu0 %v4388
    %4986 = vmatprep.subr.mxu0 0.0
    %4987 = vmatpush1.msra.mxu0 0.0
    %4988 = vmatprep.subr.mxu0 0.0
    %4989 = vmatpush1.msra.mxu0 0.0
    %4990 = vmatprep.subr.mxu0 0.0
    %4991 = vmatpush1.msra.mxu0 0.0
    %4992 = vmatprep.subr.mxu0 0.0
    %4993 = vmatpush1.msra.mxu0 0.0
    %4994 = vmatprep.subr.mxu0 0.0
    %4995 = vmatpush1.msra.mxu0 0.0
    %4996 = vmatprep.subr.mxu0 0.0
    %4997 = vmatpush1.msra.mxu0 0.0
    %4998 = vmatprep.subr.mxu0 0.0
    %4999 = vmatpush1.msra.mxu0 0.0
    %5000 = vmatprep.subr.mxu0 0.0
    %5001 = vmatpush1.msra.mxu0 0.0
    %5002 = vmatprep.subr.mxu0 0.0
    %5003 = vmatpush1.msra.mxu0 0.0
    %5004 = vmatprep.subr.mxu0 0.0
    %5005 = vmatpush1.msra.mxu0 0.0
    %5006 = vmatprep.subr.mxu0 0.0
    %5007 = vmatpush1.msra.mxu0 0.0
    %5008 = vmatprep.subr.mxu0 0.0
    %5009 = vmatpush1.msra.mxu0 0.0
    %5010 = vmatprep.subr.mxu0 0.0
    %5011 = vmatpush1.msra.mxu0 0.0
    %5012 = vmatprep.subr.mxu0 0.0
    %5013 = vmatpush1.msra.mxu0 0.0
    %5014 = vmatprep.subr.mxu0 0.0
    %5015 = vmatpush1.msra.mxu0 0.0
    %5016 = vmatprep.subr.mxu0 0.0
    %5017 = vmatpush1.msra.mxu0 0.0
    %5018 = vmatprep.mubr.f32.mxu0 0.0
    %5019 = vmatmul.mubr.f32.gmra.mrb[0].mxu0 %v4952
    %v5020 = vpop.f32.mrb[0].mxu0
    %v5021 = vadd.f32 0.0, %v5020
    %v5022 = vpop.f32.mrb[0].mxu0
    %v5023 = vadd.f32 0.0, %v5022
    %5024 = vdwg.mxu0
    %5025 = vmatprep.subr.mxu0 %v4331
    %5026 = vmatpush1.msra.mxu0 %v4330
    %5027 = vmatprep.subr.mxu0 %v4335
    %5028 = vmatpush1.msra.mxu0 %v4334
    %5029 = vmatprep.subr.mxu0 %v4339
    %5030 = vmatpush1.msra.mxu0 %v4338
    %5031 = vmatprep.subr.mxu0 %v4343
    %5032 = vmatpush1.msra.mxu0 %v4342
    %5033 = vmatprep.subr.mxu0 %v4347
    %5034 = vmatpush1.msra.mxu0 %v4346
    %5035 = vmatprep.subr.mxu0 %v4351
    %5036 = vmatpush1.msra.mxu0 %v4350
    %5037 = vmatprep.subr.mxu0 %v4355
    %5038 = vmatpush1.msra.mxu0 %v4354
    %5039 = vmatprep.subr.mxu0 %v4359
    %5040 = vmatpush1.msra.mxu0 %v4358
    %5041 = vmatprep.subr.mxu0 %v4363
    %5042 = vmatpush1.msra.mxu0 %v4362
    %5043 = vmatprep.subr.mxu0 %v4367
    %5044 = vmatpush1.msra.mxu0 %v4366
    %5045 = vmatprep.subr.mxu0 %v4371
    %5046 = vmatpush1.msra.mxu0 %v4370
    %5047 = vmatprep.subr.mxu0 %v4375
    %5048 = vmatpush1.msra.mxu0 %v4374
    %5049 = vmatprep.subr.mxu0 %v4379
    %5050 = vmatpush1.msra.mxu0 %v4378
    %5051 = vmatprep.subr.mxu0 %v4383
    %5052 = vmatpush1.msra.mxu0 %v4382
    %5053 = vmatprep.subr.mxu0 %v4387
    %5054 = vmatpush1.msra.mxu0 %v4386
    %5055 = vmatprep.subr.mxu0 %v4391
    %5056 = vmatpush1.msra.mxu0 %v4390
    %5057 = vmatprep.subr.mxu0 0.0
    %5058 = vmatpush1.msra.mxu0 0.0
    %5059 = vmatprep.subr.mxu0 0.0
    %5060 = vmatpush1.msra.mxu0 0.0
    %5061 = vmatprep.subr.mxu0 0.0
    %5062 = vmatpush1.msra.mxu0 0.0
    %5063 = vmatprep.subr.mxu0 0.0
    %5064 = vmatpush1.msra.mxu0 0.0
    %5065 = vmatprep.subr.mxu0 0.0
    %5066 = vmatpush1.msra.mxu0 0.0
    %5067 = vmatprep.subr.mxu0 0.0
    %5068 = vmatpush1.msra.mxu0 0.0
    %5069 = vmatprep.subr.mxu0 0.0
    %5070 = vmatpush1.msra.mxu0 0.0
    %5071 = vmatprep.subr.mxu0 0.0
    %5072 = vmatpush1.msra.mxu0 0.0
    %5073 = vmatprep.subr.mxu0 0.0
    %5074 = vmatpush1.msra.mxu0 0.0
    %5075 = vmatprep.subr.mxu0 0.0
    %5076 = vmatpush1.msra.mxu0 0.0
    %5077 = vmatprep.subr.mxu0 0.0
    %5078 = vmatpush1.msra.mxu0 0.0
    %5079 = vmatprep.subr.mxu0 0.0
    %5080 = vmatpush1.msra.mxu0 0.0
    %5081 = vmatprep.subr.mxu0 0.0
    %5082 = vmatpush1.msra.mxu0 0.0
    %5083 = vmatprep.subr.mxu0 0.0
    %5084 = vmatpush1.msra.mxu0 0.0
    %5085 = vmatprep.subr.mxu0 0.0
    %5086 = vmatpush1.msra.mxu0 0.0
    %5087 = vmatprep.subr.mxu0 0.0
    %5088 = vmatpush1.msra.mxu0 0.0
    %5089 = vmatprep.mubr.f32.mxu0 0.0
    %5090 = vmatmul.mubr.f32.gmra.mrb[0].mxu0 %v4952
    %v5091 = vpop.f32.mrb[0].mxu0
    %v5092 = vadd.f32 0.0, %v5091
    %v5093 = vpop.f32.mrb[0].mxu0
    %v5094 = vadd.f32 0.0, %v5093
    %5095 = vdwg.mxu0
    %v5100 = vrot.slane %v5021, 2
    %v5101 = vrot.slane %v5023, 2
    %v5102 = vrot.slane %v5092, 2
    %v5103 = vrot.slane %v5094, 2
    %v5108 = vadd.f32 %v4947, %v5100
    %v5109 = vadd.f32 %v4948, %v5101
    %v5110 = vadd.f32 %v4949, %v5102
    %v5111 = vadd.f32 %v4950, %v5103
    %v5112 = vsub.f32 0.0, %v5108
    %v5113 = vmul.f32 %v5112, 1.442695
    %v5114 = vpow.pop %v5113
    %v5115 = vadd.f32 %v5114, 1.0
    %v5116 = vrcp.pop %v5115
    %v5117 = vmul.f32 1.0, %v5116
    %v5118 = vsub.f32 0.0, %v5109
    %v5119 = vmul.f32 %v5118, 1.442695
    %v5120 = vpow.pop %v5119
    %v5121 = vadd.f32 %v5120, 1.0
    %v5122 = vrcp.pop %v5121
    %v5123 = vmul.f32 1.0, %v5122
    %v5124 = vtanh.pop %v5110
    %v5125 = vsub.f32 0.0, %v5111
    %v5126 = vmul.f32 %v5125, 1.442695
    %v5127 = vpow.pop %v5126
    %v5128 = vadd.f32 %v5127, 1.0
    %v5129 = vrcp.pop %v5128
    %v5130 = vmul.f32 1.0, %v5129
    %v5132 = vrot.slane %v4944, 6
    %v5134 = vmul.f32 %v5123, %v5132
    %v5135 = vmul.f32 %v5117, %v5124
    %v5136 = vadd.f32 %v5134, %v5135
    %v5137 = vtanh.pop %v5136
    %v5138 = vmul.f32 %v5130, %v5137
    %v5139 = vld [vmem:[#allocation4 + $0x20] sm:$0x3]
    %v5140 = vld [vmem:[#allocation4 + $0x28] sm:$0x3]
    %v5141 = vld [vmem:[#allocation4 + $0x30] sm:$0x3]
    %v5142 = vld [vmem:[#allocation4 + $0x38] sm:$0x3]
    %v5144 = vrot.slane %v5138, 6
    %5146 = vmatprep.subr.mxu0 %v4329
    %5147 = vmatpush1.msra.mxu0 %v4328
    %5148 = vmatprep.subr.mxu0 %v4333
    %5149 = vmatpush1.msra.mxu0 %v4332
    %5150 = vmatprep.subr.mxu0 %v4337
    %5151 = vmatpush1.msra.mxu0 %v4336
    %5152 = vmatprep.subr.mxu0 %v4341
    %5153 = vmatpush1.msra.mxu0 %v4340
    %5154 = vmatprep.subr.mxu0 %v4345
    %5155 = vmatpush1.msra.mxu0 %v4344
    %5156 = vmatprep.subr.mxu0 %v4349
    %5157 = vmatpush1.msra.mxu0 %v4348
    %5158 = vmatprep.subr.mxu0 %v4353
    %5159 = vmatpush1.msra.mxu0 %v4352
    %5160 = vmatprep.subr.mxu0 %v4357
    %5161 = vmatpush1.msra.mxu0 %v4356
    %5162 = vmatprep.subr.mxu0 %v4361
    %5163 = vmatpush1.msra.mxu0 %v4360
    %5164 = vmatprep.subr.mxu0 %v4365
    %5165 = vmatpush1.msra.mxu0 %v4364
    %5166 = vmatprep.subr.mxu0 %v4369
    %5167 = vmatpush1.msra.mxu0 %v4368
    %5168 = vmatprep.subr.mxu0 %v4373
    %5169 = vmatpush1.msra.mxu0 %v4372
    %5170 = vmatprep.subr.mxu0 %v4377
    %5171 = vmatpush1.msra.mxu0 %v4376
    %5172 = vmatprep.subr.mxu0 %v4381
    %5173 = vmatpush1.msra.mxu0 %v4380
    %5174 = vmatprep.subr.mxu0 %v4385
    %5175 = vmatpush1.msra.mxu0 %v4384
    %5176 = vmatprep.subr.mxu0 %v4389
    %5177 = vmatpush1.msra.mxu0 %v4388
    %5178 = vmatprep.subr.mxu0 0.0
    %5179 = vmatpush1.msra.mxu0 0.0
    %5180 = vmatprep.subr.mxu0 0.0
    %5181 = vmatpush1.msra.mxu0 0.0
    %5182 = vmatprep.subr.mxu0 0.0
    %5183 = vmatpush1.msra.mxu0 0.0
    %5184 = vmatprep.subr.mxu0 0.0
    %5185 = vmatpush1.msra.mxu0 0.0
    %5186 = vmatprep.subr.mxu0 0.0
    %5187 = vmatpush1.msra.mxu0 0.0
    %5188 = vmatprep.subr.mxu0 0.0
    %5189 = vmatpush1.msra.mxu0 0.0
    %5190 = vmatprep.subr.mxu0 0.0
    %5191 = vmatpush1.msra.mxu0 0.0
    %5192 = vmatprep.subr.mxu0 0.0
    %5193 = vmatpush1.msra.mxu0 0.0
    %5194 = vmatprep.subr.mxu0 0.0
    %5195 = vmatpush1.msra.mxu0 0.0
    %5196 = vmatprep.subr.mxu0 0.0
    %5197 = vmatpush1.msra.mxu0 0.0
    %5198 = vmatprep.subr.mxu0 0.0
    %5199 = vmatpush1.msra.mxu0 0.0
    %5200 = vmatprep.subr.mxu0 0.0
    %5201 = vmatpush1.msra.mxu0 0.0
    %5202 = vmatprep.subr.mxu0 0.0
    %5203 = vmatpush1.msra.mxu0 0.0
    %5204 = vmatprep.subr.mxu0 0.0
    %5205 = vmatpush1.msra.mxu0 0.0
    %5206 = vmatprep.subr.mxu0 0.0
    %5207 = vmatpush1.msra.mxu0 0.0
    %5208 = vmatprep.subr.mxu0 0.0
    %5209 = vmatpush1.msra.mxu0 0.0
    %5210 = vmatprep.mubr.f32.mxu0 0.0
    %5211 = vmatmul.mubr.f32.gmra.mrb[0].mxu0 %v5144
    %v5212 = vpop.f32.mrb[0].mxu0
    %v5213 = vadd.f32 0.0, %v5212
    %v5214 = vpop.f32.mrb[0].mxu0
    %v5215 = vadd.f32 0.0, %v5214
    %5216 = vdwg.mxu0
    %5217 = vmatprep.subr.mxu0 %v4331
    %5218 = vmatpush1.msra.mxu0 %v4330
    %5219 = vmatprep.subr.mxu0 %v4335
    %5220 = vmatpush1.msra.mxu0 %v4334
    %5221 = vmatprep.subr.mxu0 %v4339
    %5222 = vmatpush1.msra.mxu0 %v4338
    %5223 = vmatprep.subr.mxu0 %v4343
    %5224 = vmatpush1.msra.mxu0 %v4342
    %5225 = vmatprep.subr.mxu0 %v4347
    %5226 = vmatpush1.msra.mxu0 %v4346
    %5227 = vmatprep.subr.mxu0 %v4351
    %5228 = vmatpush1.msra.mxu0 %v4350
    %5229 = vmatprep.subr.mxu0 %v4355
    %5230 = vmatpush1.msra.mxu0 %v4354
    %5231 = vmatprep.subr.mxu0 %v4359
    %5232 = vmatpush1.msra.mxu0 %v4358
    %5233 = vmatprep.subr.mxu0 %v4363
    %5234 = vmatpush1.msra.mxu0 %v4362
    %5235 = vmatprep.subr.mxu0 %v4367
    %5236 = vmatpush1.msra.mxu0 %v4366
    %5237 = vmatprep.subr.mxu0 %v4371
    %5238 = vmatpush1.msra.mxu0 %v4370
    %5239 = vmatprep.subr.mxu0 %v4375
    %5240 = vmatpush1.msra.mxu0 %v4374
    %5241 = vmatprep.subr.mxu0 %v4379
    %5242 = vmatpush1.msra.mxu0 %v4378
    %5243 = vmatprep.subr.mxu0 %v4383
    %5244 = vmatpush1.msra.mxu0 %v4382
    %5245 = vmatprep.subr.mxu0 %v4387
    %5246 = vmatpush1.msra.mxu0 %v4386
    %5247 = vmatprep.subr.mxu0 %v4391
    %5248 = vmatpush1.msra.mxu0 %v4390
    %5249 = vmatprep.subr.mxu0 0.0
    %5250 = vmatpush1.msra.mxu0 0.0
    %5251 = vmatprep.subr.mxu0 0.0
    %5252 = vmatpush1.msra.mxu0 0.0
    %5253 = vmatprep.subr.mxu0 0.0
    %5254 = vmatpush1.msra.mxu0 0.0
    %5255 = vmatprep.subr.mxu0 0.0
    %5256 = vmatpush1.msra.mxu0 0.0
    %5257 = vmatprep.subr.mxu0 0.0
    %5258 = vmatpush1.msra.mxu0 0.0
    %5259 = vmatprep.subr.mxu0 0.0
    %5260 = vmatpush1.msra.mxu0 0.0
    %5261 = vmatprep.subr.mxu0 0.0
    %5262 = vmatpush1.msra.mxu0 0.0
    %5263 = vmatprep.subr.mxu0 0.0
    %5264 = vmatpush1.msra.mxu0 0.0
    %5265 = vmatprep.subr.mxu0 0.0
    %5266 = vmatpush1.msra.mxu0 0.0
    %5267 = vmatprep.subr.mxu0 0.0
    %5268 = vmatpush1.msra.mxu0 0.0
    %5269 = vmatprep.subr.mxu0 0.0
    %5270 = vmatpush1.msra.mxu0 0.0
    %5271 = vmatprep.subr.mxu0 0.0
    %5272 = vmatpush1.msra.mxu0 0.0
    %5273 = vmatprep.subr.mxu0 0.0
    %5274 = vmatpush1.msra.mxu0 0.0
    %5275 = vmatprep.subr.mxu0 0.0
    %5276 = vmatpush1.msra.mxu0 0.0
    %5277 = vmatprep.subr.mxu0 0.0
    %5278 = vmatpush1.msra.mxu0 0.0
    %5279 = vmatprep.subr.mxu0 0.0
    %5280 = vmatpush1.msra.mxu0 0.0
    %5281 = vmatprep.mubr.f32.mxu0 0.0
    %5282 = vmatmul.mubr.f32.gmra.mrb[0].mxu0 %v5144
    %v5283 = vpop.f32.mrb[0].mxu0
    %v5284 = vadd.f32 0.0, %v5283
    %v5285 = vpop.f32.mrb[0].mxu0
    %v5286 = vadd.f32 0.0, %v5285
    %5287 = vdwg.mxu0
    %v5288 = vadd.f32 %v5139, %v5213
    %v5289 = vadd.f32 %v5140, %v5215
    %v5290 = vadd.f32 %v5141, %v5284
    %v5291 = vadd.f32 %v5142, %v5286
    %v5292 = vsub.f32 0.0, %v5288
    %v5293 = vmul.f32 %v5292, 1.442695
    %v5294 = vpow.pop %v5293
    %v5295 = vadd.f32 %v5294, 1.0
    %v5296 = vrcp.pop %v5295
    %v5297 = vmul.f32 1.0, %v5296
    %v5298 = vsub.f32 0.0, %v5289
    %v5299 = vmul.f32 %v5298, 1.442695
    %v5300 = vpow.pop %v5299
    %v5301 = vadd.f32 %v5300, 1.0
    %v5302 = vrcp.pop %v5301
    %v5303 = vmul.f32 1.0, %v5302
    %v5304 = vtanh.pop %v5290
    %v5305 = vsub.f32 0.0, %v5291
    %v5306 = vmul.f32 %v5305, 1.442695
    %v5307 = vpow.pop %v5306
    %v5308 = vadd.f32 %v5307, 1.0
    %v5309 = vrcp.pop %v5308
    %v5310 = vmul.f32 1.0, %v5309
    %v5312 = vrot.slane %v5136, 6
    %v5314 = vmul.f32 %v5303, %v5312
    %v5315 = vmul.f32 %v5297, %v5304
    %v5316 = vadd.f32 %v5314, %v5315
    %v5317 = vtanh.pop %v5316
    %v5318 = vmul.f32 %v5310, %v5317
    %v5319 = vld [vmem:[#allocation4 + $0x20] sm:$0xc]
    %v5320 = vld [vmem:[#allocation4 + $0x28] sm:$0xc]
    %v5321 = vld [vmem:[#allocation4 + $0x30] sm:$0xc]
    %v5322 = vld [vmem:[#allocation4 + $0x38] sm:$0xc]
    %5323 = vmatprep.subr.mxu0 %v4329
    %5324 = vmatpush1.msra.mxu0 %v4328
    %5325 = vmatprep.subr.mxu0 %v4333
    %5326 = vmatpush1.msra.mxu0 %v4332
    %5327 = vmatprep.subr.mxu0 %v4337
    %5328 = vmatpush1.msra.mxu0 %v4336
    %5329 = vmatprep.subr.mxu0 %v4341
    %5330 = vmatpush1.msra.mxu0 %v4340
    %5331 = vmatprep.subr.mxu0 %v4345
    %5332 = vmatpush1.msra.mxu0 %v4344
    %5333 = vmatprep.subr.mxu0 %v4349
    %5334 = vmatpush1.msra.mxu0 %v4348
    %5335 = vmatprep.subr.mxu0 %v4353
    %5336 = vmatpush1.msra.mxu0 %v4352
    %5337 = vmatprep.subr.mxu0 %v4357
    %5338 = vmatpush1.msra.mxu0 %v4356
    %5339 = vmatprep.subr.mxu0 %v4361
    %5340 = vmatpush1.msra.mxu0 %v4360
    %5341 = vmatprep.subr.mxu0 %v4365
    %5342 = vmatpush1.msra.mxu0 %v4364
    %5343 = vmatprep.subr.mxu0 %v4369
    %5344 = vmatpush1.msra.mxu0 %v4368
    %5345 = vmatprep.subr.mxu0 %v4373
    %5346 = vmatpush1.msra.mxu0 %v4372
    %5347 = vmatprep.subr.mxu0 %v4377
    %5348 = vmatpush1.msra.mxu0 %v4376
    %5349 = vmatprep.subr.mxu0 %v4381
    %5350 = vmatpush1.msra.mxu0 %v4380
    %5351 = vmatprep.subr.mxu0 %v4385
    %5352 = vmatpush1.msra.mxu0 %v4384
    %5353 = vmatprep.subr.mxu0 %v4389
    %5354 = vmatpush1.msra.mxu0 %v4388
    %5355 = vmatprep.subr.mxu0 0.0
    %5356 = vmatpush1.msra.mxu0 0.0
    %5357 = vmatprep.subr.mxu0 0.0
    %5358 = vmatpush1.msra.mxu0 0.0
    %5359 = vmatprep.subr.mxu0 0.0
    %5360 = vmatpush1.msra.mxu0 0.0
    %5361 = vmatprep.subr.mxu0 0.0
    %5362 = vmatpush1.msra.mxu0 0.0
    %5363 = vmatprep.subr.mxu0 0.0
    %5364 = vmatpush1.msra.mxu0 0.0
    %5365 = vmatprep.subr.mxu0 0.0
    %5366 = vmatpush1.msra.mxu0 0.0
    %5367 = vmatprep.subr.mxu0 0.0
    %5368 = vmatpush1.msra.mxu0 0.0
    %5369 = vmatprep.subr.mxu0 0.0
    %5370 = vmatpush1.msra.mxu0 0.0
    %5371 = vmatprep.subr.mxu0 0.0
    %5372 = vmatpush1.msra.mxu0 0.0
    %5373 = vmatprep.subr.mxu0 0.0
    %5374 = vmatpush1.msra.mxu0 0.0
    %5375 = vmatprep.subr.mxu0 0.0
    %5376 = vmatpush1.msra.mxu0 0.0
    %5377 = vmatprep.subr.mxu0 0.0
    %5378 = vmatpush1.msra.mxu0 0.0
    %5379 = vmatprep.subr.mxu0 0.0
    %5380 = vmatpush1.msra.mxu0 0.0
    %5381 = vmatprep.subr.mxu0 0.0
    %5382 = vmatpush1.msra.mxu0 0.0
    %5383 = vmatprep.subr.mxu0 0.0
    %5384 = vmatpush1.msra.mxu0 0.0
    %5385 = vmatprep.subr.mxu0 0.0
    %5386 = vmatpush1.msra.mxu0 0.0
    %5387 = vmatprep.mubr.f32.mxu0 0.0
    %5388 = vmatmul.mubr.f32.gmra.mrb[0].mxu0 %v5318
    %v5389 = vpop.f32.mrb[0].mxu0
    %v5390 = vadd.f32 0.0, %v5389
    %v5391 = vpop.f32.mrb[0].mxu0
    %v5392 = vadd.f32 0.0, %v5391
    %5393 = vdwg.mxu0
    %5394 = vmatprep.subr.mxu0 %v4331
    %5395 = vmatpush1.msra.mxu0 %v4330
    %5396 = vmatprep.subr.mxu0 %v4335
    %5397 = vmatpush1.msra.mxu0 %v4334
    %5398 = vmatprep.subr.mxu0 %v4339
    %5399 = vmatpush1.msra.mxu0 %v4338
    %5400 = vmatprep.subr.mxu0 %v4343
    %5401 = vmatpush1.msra.mxu0 %v4342
    %5402 = vmatprep.subr.mxu0 %v4347
    %5403 = vmatpush1.msra.mxu0 %v4346
    %5404 = vmatprep.subr.mxu0 %v4351
    %5405 = vmatpush1.msra.mxu0 %v4350
    %5406 = vmatprep.subr.mxu0 %v4355
    %5407 = vmatpush1.msra.mxu0 %v4354
    %5408 = vmatprep.subr.mxu0 %v4359
    %5409 = vmatpush1.msra.mxu0 %v4358
    %5410 = vmatprep.subr.mxu0 %v4363
    %5411 = vmatpush1.msra.mxu0 %v4362
    %5412 = vmatprep.subr.mxu0 %v4367
    %5413 = vmatpush1.msra.mxu0 %v4366
    %5414 = vmatprep.subr.mxu0 %v4371
    %5415 = vmatpush1.msra.mxu0 %v4370
    %5416 = vmatprep.subr.mxu0 %v4375
    %5417 = vmatpush1.msra.mxu0 %v4374
    %5418 = vmatprep.subr.mxu0 %v4379
    %5419 = vmatpush1.msra.mxu0 %v4378
    %5420 = vmatprep.subr.mxu0 %v4383
    %5421 = vmatpush1.msra.mxu0 %v4382
    %5422 = vmatprep.subr.mxu0 %v4387
    %5423 = vmatpush1.msra.mxu0 %v4386
    %5424 = vmatprep.subr.mxu0 %v4391
    %5425 = vmatpush1.msra.mxu0 %v4390
    %5426 = vmatprep.subr.mxu0 0.0
    %5427 = vmatpush1.msra.mxu0 0.0
    %5428 = vmatprep.subr.mxu0 0.0
    %5429 = vmatpush1.msra.mxu0 0.0
    %5430 = vmatprep.subr.mxu0 0.0
    %5431 = vmatpush1.msra.mxu0 0.0
    %5432 = vmatprep.subr.mxu0 0.0
    %5433 = vmatpush1.msra.mxu0 0.0
    %5434 = vmatprep.subr.mxu0 0.0
    %5435 = vmatpush1.msra.mxu0 0.0
    %5436 = vmatprep.subr.mxu0 0.0
    %5437 = vmatpush1.msra.mxu0 0.0
    %5438 = vmatprep.subr.mxu0 0.0
    %5439 = vmatpush1.msra.mxu0 0.0
    %5440 = vmatprep.subr.mxu0 0.0
    %5441 = vmatpush1.msra.mxu0 0.0
    %5442 = vmatprep.subr.mxu0 0.0
    %5443 = vmatpush1.msra.mxu0 0.0
    %5444 = vmatprep.subr.mxu0 0.0
    %5445 = vmatpush1.msra.mxu0 0.0
    %5446 = vmatprep.subr.mxu0 0.0
    %5447 = vmatpush1.msra.mxu0 0.0
    %5448 = vmatprep.subr.mxu0 0.0
    %5449 = vmatpush1.msra.mxu0 0.0
    %5450 = vmatprep.subr.mxu0 0.0
    %5451 = vmatpush1.msra.mxu0 0.0
    %5452 = vmatprep.subr.mxu0 0.0
    %5453 = vmatpush1.msra.mxu0 0.0
    %5454 = vmatprep.subr.mxu0 0.0
    %5455 = vmatpush1.msra.mxu0 0.0
    %5456 = vmatprep.subr.mxu0 0.0
    %5457 = vmatpush1.msra.mxu0 0.0
    %5458 = vmatprep.mubr.f32.mxu0 0.0
    %5459 = vmatmul.mubr.f32.gmra.mrb[0].mxu0 %v5318
    %v5460 = vpop.f32.mrb[0].mxu0
    %v5461 = vadd.f32 0.0, %v5460
    %v5462 = vpop.f32.mrb[0].mxu0
    %v5463 = vadd.f32 0.0, %v5462
    %5464 = vdwg.mxu0
    %v5469 = vrot.slane %v5390, 6
    %v5470 = vrot.slane %v5392, 6
    %v5471 = vrot.slane %v5461, 6
    %v5472 = vrot.slane %v5463, 6
    %v5477 = vadd.f32 %v5319, %v5469
    %v5478 = vadd.f32 %v5320, %v5470
    %v5479 = vadd.f32 %v5321, %v5471
    %v5480 = vadd.f32 %v5322, %v5472
    %v5481 = vsub.f32 0.0, %v5477
    %v5482 = vmul.f32 %v5481, 1.442695
    %v5483 = vpow.pop %v5482
    %v5484 = vadd.f32 %v5483, 1.0
    %v5485 = vrcp.pop %v5484
    %v5486 = vmul.f32 1.0, %v5485
    %v5487 = vsub.f32 0.0, %v5478
    %v5488 = vmul.f32 %v5487, 1.442695
    %v5489 = vpow.pop %v5488
    %v5490 = vadd.f32 %v5489, 1.0
    %v5491 = vrcp.pop %v5490
    %v5492 = vmul.f32 1.0, %v5491
    %v5493 = vtanh.pop %v5479
    %v5494 = vsub.f32 0.0, %v5480
    %v5495 = vmul.f32 %v5494, 1.442695
    %v5496 = vpow.pop %v5495
    %v5497 = vadd.f32 %v5496, 1.0
    %v5498 = vrcp.pop %v5497
    %v5499 = vmul.f32 1.0, %v5498
    %v5501 = vrot.slane %v5316, 6
    %v5503 = vmul.f32 %v5492, %v5501
    %v5504 = vmul.f32 %v5486, %v5493
    %v5505 = vadd.f32 %v5503, %v5504
    %v5506 = vtanh.pop %v5505
    %v5507 = vmul.f32 %v5499, %v5506
    %v5508 = vld [vmem:[#allocation4 + $0x20] sm:$0x30]
    %v5509 = vld [vmem:[#allocation4 + $0x28] sm:$0x30]
    %v5510 = vld [vmem:[#allocation4 + $0x30] sm:$0x30]
    %v5511 = vld [vmem:[#allocation4 + $0x38] sm:$0x30]
    %v5513 = vrot.slane %v5507, 2
    %5515 = vmatprep.subr.mxu0 %v4329
    %5516 = vmatpush1.msra.mxu0 %v4328
    %5517 = vmatprep.subr.mxu0 %v4333
    %5518 = vmatpush1.msra.mxu0 %v4332
    %5519 = vmatprep.subr.mxu0 %v4337
    %5520 = vmatpush1.msra.mxu0 %v4336
    %5521 = vmatprep.subr.mxu0 %v4341
    %5522 = vmatpush1.msra.mxu0 %v4340
    %5523 = vmatprep.subr.mxu0 %v4345
    %5524 = vmatpush1.msra.mxu0 %v4344
    %5525 = vmatprep.subr.mxu0 %v4349
    %5526 = vmatpush1.msra.mxu0 %v4348
    %5527 = vmatprep.subr.mxu0 %v4353
    %5528 = vmatpush1.msra.mxu0 %v4352
    %5529 = vmatprep.subr.mxu0 %v4357
    %5530 = vmatpush1.msra.mxu0 %v4356
    %5531 = vmatprep.subr.mxu0 %v4361
    %5532 = vmatpush1.msra.mxu0 %v4360
    %5533 = vmatprep.subr.mxu0 %v4365
    %5534 = vmatpush1.msra.mxu0 %v4364
    %5535 = vmatprep.subr.mxu0 %v4369
    %5536 = vmatpush1.msra.mxu0 %v4368
    %5537 = vmatprep.subr.mxu0 %v4373
    %5538 = vmatpush1.msra.mxu0 %v4372
    %5539 = vmatprep.subr.mxu0 %v4377
    %5540 = vmatpush1.msra.mxu0 %v4376
    %5541 = vmatprep.subr.mxu0 %v4381
    %5542 = vmatpush1.msra.mxu0 %v4380
    %5543 = vmatprep.subr.mxu0 %v4385
    %5544 = vmatpush1.msra.mxu0 %v4384
    %5545 = vmatprep.subr.mxu0 %v4389
    %5546 = vmatpush1.msra.mxu0 %v4388
    %5547 = vmatprep.subr.mxu0 0.0
    %5548 = vmatpush1.msra.mxu0 0.0
    %5549 = vmatprep.subr.mxu0 0.0
    %5550 = vmatpush1.msra.mxu0 0.0
    %5551 = vmatprep.subr.mxu0 0.0
    %5552 = vmatpush1.msra.mxu0 0.0
    %5553 = vmatprep.subr.mxu0 0.0
    %5554 = vmatpush1.msra.mxu0 0.0
    %5555 = vmatprep.subr.mxu0 0.0
    %5556 = vmatpush1.msra.mxu0 0.0
    %5557 = vmatprep.subr.mxu0 0.0
    %5558 = vmatpush1.msra.mxu0 0.0
    %5559 = vmatprep.subr.mxu0 0.0
    %5560 = vmatpush1.msra.mxu0 0.0
    %5561 = vmatprep.subr.mxu0 0.0
    %5562 = vmatpush1.msra.mxu0 0.0
    %5563 = vmatprep.subr.mxu0 0.0
    %5564 = vmatpush1.msra.mxu0 0.0
    %5565 = vmatprep.subr.mxu0 0.0
    %5566 = vmatpush1.msra.mxu0 0.0
    %5567 = vmatprep.subr.mxu0 0.0
    %5568 = vmatpush1.msra.mxu0 0.0
    %5569 = vmatprep.subr.mxu0 0.0
    %5570 = vmatpush1.msra.mxu0 0.0
    %5571 = vmatprep.subr.mxu0 0.0
    %5572 = vmatpush1.msra.mxu0 0.0
    %5573 = vmatprep.subr.mxu0 0.0
    %5574 = vmatpush1.msra.mxu0 0.0
    %5575 = vmatprep.subr.mxu0 0.0
    %5576 = vmatpush1.msra.mxu0 0.0
    %5577 = vmatprep.subr.mxu0 0.0
    %5578 = vmatpush1.msra.mxu0 0.0
    %5579 = vmatprep.mubr.f32.mxu0 0.0
    %5580 = vmatmul.mubr.f32.gmra.mrb[0].mxu0 %v5513
    %v5581 = vpop.f32.mrb[0].mxu0
    %v5582 = vadd.f32 0.0, %v5581
    %v5583 = vpop.f32.mrb[0].mxu0
    %v5584 = vadd.f32 0.0, %v5583
    %5585 = vdwg.mxu0
    %5586 = vmatprep.subr.mxu0 %v4331
    %5587 = vmatpush1.msra.mxu0 %v4330
    %5588 = vmatprep.subr.mxu0 %v4335
    %5589 = vmatpush1.msra.mxu0 %v4334
    %5590 = vmatprep.subr.mxu0 %v4339
    %5591 = vmatpush1.msra.mxu0 %v4338
    %5592 = vmatprep.subr.mxu0 %v4343
    %5593 = vmatpush1.msra.mxu0 %v4342
    %5594 = vmatprep.subr.mxu0 %v4347
    %5595 = vmatpush1.msra.mxu0 %v4346
    %5596 = vmatprep.subr.mxu0 %v4351
    %5597 = vmatpush1.msra.mxu0 %v4350
    %5598 = vmatprep.subr.mxu0 %v4355
    %5599 = vmatpush1.msra.mxu0 %v4354
    %5600 = vmatprep.subr.mxu0 %v4359
    %5601 = vmatpush1.msra.mxu0 %v4358
    %5602 = vmatprep.subr.mxu0 %v4363
    %5603 = vmatpush1.msra.mxu0 %v4362
    %5604 = vmatprep.subr.mxu0 %v4367
    %5605 = vmatpush1.msra.mxu0 %v4366
    %5606 = vmatprep.subr.mxu0 %v4371
    %5607 = vmatpush1.msra.mxu0 %v4370
    %5608 = vmatprep.subr.mxu0 %v4375
    %5609 = vmatpush1.msra.mxu0 %v4374
    %5610 = vmatprep.subr.mxu0 %v4379
    %5611 = vmatpush1.msra.mxu0 %v4378
    %5612 = vmatprep.subr.mxu0 %v4383
    %5613 = vmatpush1.msra.mxu0 %v4382
    %5614 = vmatprep.subr.mxu0 %v4387
    %5615 = vmatpush1.msra.mxu0 %v4386
    %5616 = vmatprep.subr.mxu0 %v4391
    %5617 = vmatpush1.msra.mxu0 %v4390
    %5618 = vmatprep.subr.mxu0 0.0
    %5619 = vmatpush1.msra.mxu0 0.0
    %5620 = vmatprep.subr.mxu0 0.0
    %5621 = vmatpush1.msra.mxu0 0.0
    %5622 = vmatprep.subr.mxu0 0.0
    %5623 = vmatpush1.msra.mxu0 0.0
    %5624 = vmatprep.subr.mxu0 0.0
    %5625 = vmatpush1.msra.mxu0 0.0
    %5626 = vmatprep.subr.mxu0 0.0
    %5627 = vmatpush1.msra.mxu0 0.0
    %5628 = vmatprep.subr.mxu0 0.0
    %5629 = vmatpush1.msra.mxu0 0.0
    %5630 = vmatprep.subr.mxu0 0.0
    %5631 = vmatpush1.msra.mxu0 0.0
    %5632 = vmatprep.subr.mxu0 0.0
    %5633 = vmatpush1.msra.mxu0 0.0
    %5634 = vmatprep.subr.mxu0 0.0
    %5635 = vmatpush1.msra.mxu0 0.0
    %5636 = vmatprep.subr.mxu0 0.0
    %5637 = vmatpush1.msra.mxu0 0.0
    %5638 = vmatprep.subr.mxu0 0.0
    %5639 = vmatpush1.msra.mxu0 0.0
    %5640 = vmatprep.subr.mxu0 0.0
    %5641 = vmatpush1.msra.mxu0 0.0
    %5642 = vmatprep.subr.mxu0 0.0
    %5643 = vmatpush1.msra.mxu0 0.0
    %5644 = vmatprep.subr.mxu0 0.0
    %5645 = vmatpush1.msra.mxu0 0.0
    %5646 = vmatprep.subr.mxu0 0.0
    %5647 = vmatpush1.msra.mxu0 0.0
    %5648 = vmatprep.subr.mxu0 0.0
    %5649 = vmatpush1.msra.mxu0 0.0
    %5650 = vmatprep.mubr.f32.mxu0 0.0
    %5651 = vmatmul.mubr.f32.gmra.mrb[0].mxu0 %v5513
    %v5652 = vpop.f32.mrb[0].mxu0
    %v5653 = vadd.f32 0.0, %v5652
    %v5654 = vpop.f32.mrb[0].mxu0
    %v5655 = vadd.f32 0.0, %v5654
    %5656 = vdwg.mxu0
    %v5661 = vrot.slane %v5582, 4
    %v5662 = vrot.slane %v5584, 4
    %v5663 = vrot.slane %v5653, 4
    %v5664 = vrot.slane %v5655, 4
    %v5669 = vadd.f32 %v5508, %v5661
    %v5670 = vadd.f32 %v5509, %v5662
    %v5671 = vadd.f32 %v5510, %v5663
    %v5672 = vadd.f32 %v5511, %v5664
    %v5673 = vsub.f32 0.0, %v5669
    %v5674 = vmul.f32 %v5673, 1.442695
    %v5675 = vpow.pop %v5674
    %v5676 = vadd.f32 %v5675, 1.0
    %v5677 = vrcp.pop %v5676
    %v5678 = vmul.f32 1.0, %v5677
    %v5679 = vsub.f32 0.0, %v5670
    %v5680 = vmul.f32 %v5679, 1.442695
    %v5681 = vpow.pop %v5680
    %v5682 = vadd.f32 %v5681, 1.0
    %v5683 = vrcp.pop %v5682
    %v5684 = vmul.f32 1.0, %v5683
    %v5685 = vtanh.pop %v5671
    %v5686 = vsub.f32 0.0, %v5672
    %v5687 = vmul.f32 %v5686, 1.442695
    %v5688 = vpow.pop %v5687
    %v5689 = vadd.f32 %v5688, 1.0
    %v5690 = vrcp.pop %v5689
    %v5691 = vmul.f32 1.0, %v5690
    %v5693 = vrot.slane %v5505, 6
    %v5695 = vmul.f32 %v5684, %v5693
    %v5696 = vmul.f32 %v5678, %v5685
    %v5697 = vadd.f32 %v5695, %v5696
    %v5698 = vtanh.pop %v5697
    %v5699 = vmul.f32 %v5691, %v5698
    %v5700 = vld [vmem:[#allocation4 + $0x20] sm:$0xc0]
    %v5701 = vld [vmem:[#allocation4 + $0x28] sm:$0xc0]
    %v5702 = vld [vmem:[#allocation4 + $0x30] sm:$0xc0]
    %v5703 = vld [vmem:[#allocation4 + $0x38] sm:$0xc0]
    %v5705 = vrot.slane %v5699, 4
    %5707 = vmatprep.subr.mxu0 %v4329
    %5708 = vmatpush1.msra.mxu0 %v4328
    %5709 = vmatprep.subr.mxu0 %v4333
    %5710 = vmatpush1.msra.mxu0 %v4332
    %5711 = vmatprep.subr.mxu0 %v4337
    %5712 = vmatpush1.msra.mxu0 %v4336
    %5713 = vmatprep.subr.mxu0 %v4341
    %5714 = vmatpush1.msra.mxu0 %v4340
    %5715 = vmatprep.subr.mxu0 %v4345
    %5716 = vmatpush1.msra.mxu0 %v4344
    %5717 = vmatprep.subr.mxu0 %v4349
    %5718 = vmatpush1.msra.mxu0 %v4348
    %5719 = vmatprep.subr.mxu0 %v4353
    %5720 = vmatpush1.msra.mxu0 %v4352
    %5721 = vmatprep.subr.mxu0 %v4357
    %5722 = vmatpush1.msra.mxu0 %v4356
    %5723 = vmatprep.subr.mxu0 %v4361
    %5724 = vmatpush1.msra.mxu0 %v4360
    %5725 = vmatprep.subr.mxu0 %v4365
    %5726 = vmatpush1.msra.mxu0 %v4364
    %5727 = vmatprep.subr.mxu0 %v4369
    %5728 = vmatpush1.msra.mxu0 %v4368
    %5729 = vmatprep.subr.mxu0 %v4373
    %5730 = vmatpush1.msra.mxu0 %v4372
    %5731 = vmatprep.subr.mxu0 %v4377
    %5732 = vmatpush1.msra.mxu0 %v4376
    %5733 = vmatprep.subr.mxu0 %v4381
    %5734 = vmatpush1.msra.mxu0 %v4380
    %5735 = vmatprep.subr.mxu0 %v4385
    %5736 = vmatpush1.msra.mxu0 %v4384
    %5737 = vmatprep.subr.mxu0 %v4389
    %5738 = vmatpush1.msra.mxu0 %v4388
    %5739 = vmatprep.subr.mxu0 0.0
    %5740 = vmatpush1.msra.mxu0 0.0
    %5741 = vmatprep.subr.mxu0 0.0
    %5742 = vmatpush1.msra.mxu0 0.0
    %5743 = vmatprep.subr.mxu0 0.0
    %5744 = vmatpush1.msra.mxu0 0.0
    %5745 = vmatprep.subr.mxu0 0.0
    %5746 = vmatpush1.msra.mxu0 0.0
    %5747 = vmatprep.subr.mxu0 0.0
    %5748 = vmatpush1.msra.mxu0 0.0
    %5749 = vmatprep.subr.mxu0 0.0
    %5750 = vmatpush1.msra.mxu0 0.0
    %5751 = vmatprep.subr.mxu0 0.0
    %5752 = vmatpush1.msra.mxu0 0.0
    %5753 = vmatprep.subr.mxu0 0.0
    %5754 = vmatpush1.msra.mxu0 0.0
    %5755 = vmatprep.subr.mxu0 0.0
    %5756 = vmatpush1.msra.mxu0 0.0
    %5757 = vmatprep.subr.mxu0 0.0
    %5758 = vmatpush1.msra.mxu0 0.0
    %5759 = vmatprep.subr.mxu0 0.0
    %5760 = vmatpush1.msra.mxu0 0.0
    %5761 = vmatprep.subr.mxu0 0.0
    %5762 = vmatpush1.msra.mxu0 0.0
    %5763 = vmatprep.subr.mxu0 0.0
    %5764 = vmatpush1.msra.mxu0 0.0
    %5765 = vmatprep.subr.mxu0 0.0
    %5766 = vmatpush1.msra.mxu0 0.0
    %5767 = vmatprep.subr.mxu0 0.0
    %5768 = vmatpush1.msra.mxu0 0.0
    %5769 = vmatprep.subr.mxu0 0.0
    %5770 = vmatpush1.msra.mxu0 0.0
    %5771 = vmatprep.mubr.f32.mxu0 0.0
    %5772 = vmatmul.mubr.f32.gmra.mrb[0].mxu0 %v5705
    %v5773 = vpop.f32.mrb[0].mxu0
    %v5774 = vadd.f32 0.0, %v5773
    %v5775 = vpop.f32.mrb[0].mxu0
    %v5776 = vadd.f32 0.0, %v5775
    %5777 = vdwg.mxu0
    %5778 = vmatprep.subr.mxu0 %v4331
    %5779 = vmatpush1.msra.mxu0 %v4330
    %5780 = vmatprep.subr.mxu0 %v4335
    %5781 = vmatpush1.msra.mxu0 %v4334
    %5782 = vmatprep.subr.mxu0 %v4339
    %5783 = vmatpush1.msra.mxu0 %v4338
    %5784 = vmatprep.subr.mxu0 %v4343
    %5785 = vmatpush1.msra.mxu0 %v4342
    %5786 = vmatprep.subr.mxu0 %v4347
    %5787 = vmatpush1.msra.mxu0 %v4346
    %5788 = vmatprep.subr.mxu0 %v4351
    %5789 = vmatpush1.msra.mxu0 %v4350
    %5790 = vmatprep.subr.mxu0 %v4355
    %5791 = vmatpush1.msra.mxu0 %v4354
    %5792 = vmatprep.subr.mxu0 %v4359
    %5793 = vmatpush1.msra.mxu0 %v4358
    %5794 = vmatprep.subr.mxu0 %v4363
    %5795 = vmatpush1.msra.mxu0 %v4362
    %5796 = vmatprep.subr.mxu0 %v4367
    %5797 = vmatpush1.msra.mxu0 %v4366
    %5798 = vmatprep.subr.mxu0 %v4371
    %5799 = vmatpush1.msra.mxu0 %v4370
    %5800 = vmatprep.subr.mxu0 %v4375
    %5801 = vmatpush1.msra.mxu0 %v4374
    %5802 = vmatprep.subr.mxu0 %v4379
    %5803 = vmatpush1.msra.mxu0 %v4378
    %5804 = vmatprep.subr.mxu0 %v4383
    %5805 = vmatpush1.msra.mxu0 %v4382
    %5806 = vmatprep.subr.mxu0 %v4387
    %5807 = vmatpush1.msra.mxu0 %v4386
    %5808 = vmatprep.subr.mxu0 %v4391
    %5809 = vmatpush1.msra.mxu0 %v4390
    %5810 = vmatprep.subr.mxu0 0.0
    %5811 = vmatpush1.msra.mxu0 0.0
    %5812 = vmatprep.subr.mxu0 0.0
    %5813 = vmatpush1.msra.mxu0 0.0
    %5814 = vmatprep.subr.mxu0 0.0
    %5815 = vmatpush1.msra.mxu0 0.0
    %5816 = vmatprep.subr.mxu0 0.0
    %5817 = vmatpush1.msra.mxu0 0.0
    %5818 = vmatprep.subr.mxu0 0.0
    %5819 = vmatpush1.msra.mxu0 0.0
    %5820 = vmatprep.subr.mxu0 0.0
    %5821 = vmatpush1.msra.mxu0 0.0
    %5822 = vmatprep.subr.mxu0 0.0
    %5823 = vmatpush1.msra.mxu0 0.0
    %5824 = vmatprep.subr.mxu0 0.0
    %5825 = vmatpush1.msra.mxu0 0.0
    %5826 = vmatprep.subr.mxu0 0.0
    %5827 = vmatpush1.msra.mxu0 0.0
    %5828 = vmatprep.subr.mxu0 0.0
    %5829 = vmatpush1.msra.mxu0 0.0
    %5830 = vmatprep.subr.mxu0 0.0
    %5831 = vmatpush1.msra.mxu0 0.0
    %5832 = vmatprep.subr.mxu0 0.0
    %5833 = vmatpush1.msra.mxu0 0.0
    %5834 = vmatprep.subr.mxu0 0.0
    %5835 = vmatpush1.msra.mxu0 0.0
    %5836 = vmatprep.subr.mxu0 0.0
    %5837 = vmatpush1.msra.mxu0 0.0
    %5838 = vmatprep.subr.mxu0 0.0
    %5839 = vmatpush1.msra.mxu0 0.0
    %5840 = vmatprep.subr.mxu0 0.0
    %5841 = vmatpush1.msra.mxu0 0.0
    %5842 = vmatprep.mubr.f32.mxu0 0.0
    %5843 = vmatmul.mubr.f32.gmra.mrb[0].mxu0 %v5705
    %v5844 = vpop.f32.mrb[0].mxu0
    %v5845 = vadd.f32 0.0, %v5844
    %v5846 = vpop.f32.mrb[0].mxu0
    %v5847 = vadd.f32 0.0, %v5846
    %5848 = vdwg.mxu0
    %v5853 = vrot.slane %v5774, 2
    %v5854 = vrot.slane %v5776, 2
    %v5855 = vrot.slane %v5845, 2
    %v5856 = vrot.slane %v5847, 2
    %v5861 = vadd.f32 %v5700, %v5853
    %v5862 = vadd.f32 %v5701, %v5854
    %v5863 = vadd.f32 %v5702, %v5855
    %v5864 = vadd.f32 %v5703, %v5856
    %v5865 = vsub.f32 0.0, %v5861
    %v5866 = vmul.f32 %v5865, 1.442695
    %v5867 = vpow.pop %v5866
    %v5868 = vadd.f32 %v5867, 1.0
    %v5869 = vrcp.pop %v5868
    %v5870 = vmul.f32 1.0, %v5869
    %v5871 = vsub.f32 0.0, %v5862
    %v5872 = vmul.f32 %v5871, 1.442695
    %v5873 = vpow.pop %v5872
    %v5874 = vadd.f32 %v5873, 1.0
    %v5875 = vrcp.pop %v5874
    %v5876 = vmul.f32 1.0, %v5875
    %v5877 = vtanh.pop %v5863
    %v5878 = vsub.f32 0.0, %v5864
    %v5879 = vmul.f32 %v5878, 1.442695
    %v5880 = vpow.pop %v5879
    %v5881 = vadd.f32 %v5880, 1.0
    %v5882 = vrcp.pop %v5881
    %v5883 = vmul.f32 1.0, %v5882
    %v5885 = vrot.slane %v5697, 6
    %v5887 = vmul.f32 %v5876, %v5885
    %v5888 = vmul.f32 %v5870, %v5877
    %v5889 = vadd.f32 %v5887, %v5888
    %v5890 = vtanh.pop %v5889
    %v5891 = vmul.f32 %v5883, %v5890
    %v5892 = vld [vmem:[#allocation25] sm:$0xff]
    %v5893 = vld [vmem:[#allocation25 + $0x8] sm:$0xff]
    %v5894 = vld [vmem:[#allocation25 + $0x10] sm:$0xff]
    %v5895 = vld [vmem:[#allocation25 + $0x18] sm:$0xff]
    %v5896 = vld [vmem:[#allocation25 + $0x20] sm:$0xff]
    %v5897 = vld [vmem:[#allocation25 + $0x28] sm:$0xff]
    %v5898 = vld [vmem:[#allocation25 + $0x30] sm:$0xff]
    %v5899 = vld [vmem:[#allocation25 + $0x38] sm:$0xff]
    %v5900 = vld [vmem:[#allocation25 + $0x40] sm:$0xff]
    %v5901 = vld [vmem:[#allocation25 + $0x48] sm:$0xff]
    %v5902 = vld [vmem:[#allocation25 + $0x50] sm:$0xff]
    %v5903 = vld [vmem:[#allocation25 + $0x58] sm:$0xff]
    %v5904 = vld [vmem:[#allocation25 + $0x60] sm:$0xff]
    %v5905 = vld [vmem:[#allocation25 + $0x68] sm:$0xff]
    %v5906 = vld [vmem:[#allocation25 + $0x70] sm:$0xff]
    %v5907 = vld [vmem:[#allocation25 + $0x78] sm:$0xff]
    %v5908 = vld [vmem:[#allocation25 + $0x80] sm:$0xff]
    %v5909 = vld [vmem:[#allocation25 + $0x88] sm:$0xff]
    %v5910 = vld [vmem:[#allocation25 + $0x90] sm:$0xff]
    %v5911 = vld [vmem:[#allocation25 + $0x98] sm:$0xff]
    %v5912 = vld [vmem:[#allocation25 + $0xa0] sm:$0xff]
    %v5913 = vld [vmem:[#allocation25 + $0xa8] sm:$0xff]
    %v5914 = vld [vmem:[#allocation25 + $0xb0] sm:$0xff]
    %v5915 = vld [vmem:[#allocation25 + $0xb8] sm:$0xff]
    %v5916 = vld [vmem:[#allocation25 + $0xc0] sm:$0xff]
    %v5917 = vld [vmem:[#allocation25 + $0xc8] sm:$0xff]
    %v5918 = vld [vmem:[#allocation25 + $0xd0] sm:$0xff]
    %v5919 = vld [vmem:[#allocation25 + $0xd8] sm:$0xff]
    %v5920 = vld [vmem:[#allocation25 + $0xe0] sm:$0xff]
    %v5921 = vld [vmem:[#allocation25 + $0xe8] sm:$0xff]
    %v5922 = vld [vmem:[#allocation25 + $0xf0] sm:$0xff]
    %v5923 = vld [vmem:[#allocation25 + $0xf8] sm:$0xff]
    %v5924 = vld [vmem:[#allocation25 + $0x100] sm:$0xff]
    %v5925 = vld [vmem:[#allocation25 + $0x108] sm:$0xff]
    %v5926 = vld [vmem:[#allocation25 + $0x110] sm:$0xff]
    %v5927 = vld [vmem:[#allocation25 + $0x118] sm:$0xff]
    %v5928 = vld [vmem:[#allocation25 + $0x120] sm:$0xff]
    %v5929 = vld [vmem:[#allocation25 + $0x128] sm:$0xff]
    %v5930 = vld [vmem:[#allocation25 + $0x130] sm:$0xff]
    %v5931 = vld [vmem:[#allocation25 + $0x138] sm:$0xff]
    %v5932 = vld [vmem:[#allocation25 + $0x140] sm:$0xff]
    %v5933 = vld [vmem:[#allocation25 + $0x148] sm:$0xff]
    %v5934 = vld [vmem:[#allocation25 + $0x150] sm:$0xff]
    %v5935 = vld [vmem:[#allocation25 + $0x158] sm:$0xff]
    %v5936 = vld [vmem:[#allocation25 + $0x160] sm:$0xff]
    %v5937 = vld [vmem:[#allocation25 + $0x168] sm:$0xff]
    %v5938 = vld [vmem:[#allocation25 + $0x170] sm:$0xff]
    %v5939 = vld [vmem:[#allocation25 + $0x178] sm:$0xff]
    %v5940 = vld [vmem:[#allocation25 + $0x180] sm:$0xff]
    %v5941 = vld [vmem:[#allocation25 + $0x188] sm:$0xff]
    %v5942 = vld [vmem:[#allocation25 + $0x190] sm:$0xff]
    %v5943 = vld [vmem:[#allocation25 + $0x198] sm:$0xff]
    %v5944 = vld [vmem:[#allocation25 + $0x1a0] sm:$0xff]
    %v5945 = vld [vmem:[#allocation25 + $0x1a8] sm:$0xff]
    %v5946 = vld [vmem:[#allocation25 + $0x1b0] sm:$0xff]
    %v5947 = vld [vmem:[#allocation25 + $0x1b8] sm:$0xff]
    %v5948 = vld [vmem:[#allocation25 + $0x1c0] sm:$0xff]
    %v5949 = vld [vmem:[#allocation25 + $0x1c8] sm:$0xff]
    %v5950 = vld [vmem:[#allocation25 + $0x1d0] sm:$0xff]
    %v5951 = vld [vmem:[#allocation25 + $0x1d8] sm:$0xff]
    %v5952 = vld [vmem:[#allocation25 + $0x1e0] sm:$0xff]
    %v5953 = vld [vmem:[#allocation25 + $0x1e8] sm:$0xff]
    %v5954 = vld [vmem:[#allocation25 + $0x1f0] sm:$0xff]
    %v5955 = vld [vmem:[#allocation25 + $0x1f8] sm:$0xff]
    %v5956 = vld [vmem:[#allocation27] sm:$0xff]
    %v5957 = vld [vmem:[#allocation27 + $0x8] sm:$0xff]
    %v5958 = vld [vmem:[#allocation27 + $0x10] sm:$0xff]
    %v5959 = vld [vmem:[#allocation27 + $0x18] sm:$0xff]
    %v5960 = vld [vmem:[#allocation27 + $0x20] sm:$0xff]
    %v5961 = vld [vmem:[#allocation27 + $0x28] sm:$0xff]
    %v5962 = vld [vmem:[#allocation27 + $0x30] sm:$0xff]
    %v5963 = vld [vmem:[#allocation27 + $0x38] sm:$0xff]
    %v5964 = vld [vmem:[#allocation27 + $0x40] sm:$0xff]
    %v5965 = vld [vmem:[#allocation27 + $0x48] sm:$0xff]
    %v5966 = vld [vmem:[#allocation27 + $0x50] sm:$0xff]
    %v5967 = vld [vmem:[#allocation27 + $0x58] sm:$0xff]
    %v5968 = vld [vmem:[#allocation27 + $0x60] sm:$0xff]
    %v5969 = vld [vmem:[#allocation27 + $0x68] sm:$0xff]
    %v5970 = vld [vmem:[#allocation27 + $0x70] sm:$0xff]
    %v5971 = vld [vmem:[#allocation27 + $0x78] sm:$0xff]
    %v5972 = vld [vmem:[#allocation27 + $0x80] sm:$0xff]
    %v5973 = vld [vmem:[#allocation27 + $0x88] sm:$0xff]
    %v5974 = vld [vmem:[#allocation27 + $0x90] sm:$0xff]
    %v5975 = vld [vmem:[#allocation27 + $0x98] sm:$0xff]
    %v5976 = vld [vmem:[#allocation27 + $0xa0] sm:$0xff]
    %v5977 = vld [vmem:[#allocation27 + $0xa8] sm:$0xff]
    %v5978 = vld [vmem:[#allocation27 + $0xb0] sm:$0xff]
    %v5979 = vld [vmem:[#allocation27 + $0xb8] sm:$0xff]
    %v5980 = vld [vmem:[#allocation27 + $0xc0] sm:$0xff]
    %v5981 = vld [vmem:[#allocation27 + $0xc8] sm:$0xff]
    %v5982 = vld [vmem:[#allocation27 + $0xd0] sm:$0xff]
    %v5983 = vld [vmem:[#allocation27 + $0xd8] sm:$0xff]
    %v5984 = vld [vmem:[#allocation27 + $0xe0] sm:$0xff]
    %v5985 = vld [vmem:[#allocation27 + $0xe8] sm:$0xff]
    %v5986 = vld [vmem:[#allocation27 + $0xf0] sm:$0xff]
    %v5987 = vld [vmem:[#allocation27 + $0xf8] sm:$0xff]
    %v5988 = vld [vmem:[#allocation27 + $0x100] sm:$0xff]
    %v5989 = vld [vmem:[#allocation27 + $0x108] sm:$0xff]
    %v5990 = vld [vmem:[#allocation27 + $0x110] sm:$0xff]
    %v5991 = vld [vmem:[#allocation27 + $0x118] sm:$0xff]
    %v5992 = vld [vmem:[#allocation27 + $0x120] sm:$0xff]
    %v5993 = vld [vmem:[#allocation27 + $0x128] sm:$0xff]
    %v5994 = vld [vmem:[#allocation27 + $0x130] sm:$0xff]
    %v5995 = vld [vmem:[#allocation27 + $0x138] sm:$0xff]
    %v5996 = vld [vmem:[#allocation27 + $0x140] sm:$0xff]
    %v5997 = vld [vmem:[#allocation27 + $0x148] sm:$0xff]
    %v5998 = vld [vmem:[#allocation27 + $0x150] sm:$0xff]
    %v5999 = vld [vmem:[#allocation27 + $0x158] sm:$0xff]
    %v6000 = vld [vmem:[#allocation27 + $0x160] sm:$0xff]
    %v6001 = vld [vmem:[#allocation27 + $0x168] sm:$0xff]
    %v6002 = vld [vmem:[#allocation27 + $0x170] sm:$0xff]
    %v6003 = vld [vmem:[#allocation27 + $0x178] sm:$0xff]
    %v6004 = vld [vmem:[#allocation27 + $0x180] sm:$0xff]
    %v6005 = vld [vmem:[#allocation27 + $0x188] sm:$0xff]
    %v6006 = vld [vmem:[#allocation27 + $0x190] sm:$0xff]
    %v6007 = vld [vmem:[#allocation27 + $0x198] sm:$0xff]
    %v6008 = vld [vmem:[#allocation27 + $0x1a0] sm:$0xff]
    %v6009 = vld [vmem:[#allocation27 + $0x1a8] sm:$0xff]
    %v6010 = vld [vmem:[#allocation27 + $0x1b0] sm:$0xff]
    %v6011 = vld [vmem:[#allocation27 + $0x1b8] sm:$0xff]
    %v6012 = vld [vmem:[#allocation27 + $0x1c0] sm:$0xff]
    %v6013 = vld [vmem:[#allocation27 + $0x1c8] sm:$0xff]
    %v6014 = vld [vmem:[#allocation27 + $0x1d0] sm:$0xff]
    %v6015 = vld [vmem:[#allocation27 + $0x1d8] sm:$0xff]
    %v6016 = vld [vmem:[#allocation27 + $0x1e0] sm:$0xff]
    %v6017 = vld [vmem:[#allocation27 + $0x1e8] sm:$0xff]
    %v6018 = vld [vmem:[#allocation27 + $0x1f0] sm:$0xff]
    %v6019 = vld [vmem:[#allocation27 + $0x1f8] sm:$0xff]
    %6020 = vmatprep.subr.mxu0 %v5957
    %6021 = vmatpush1.msra.mxu0 %v5956
    %6022 = vmatprep.subr.mxu0 %v5961
    %6023 = vmatpush1.msra.mxu0 %v5960
    %6024 = vmatprep.subr.mxu0 %v5965
    %6025 = vmatpush1.msra.mxu0 %v5964
    %6026 = vmatprep.subr.mxu0 %v5969
    %6027 = vmatpush1.msra.mxu0 %v5968
    %6028 = vmatprep.subr.mxu0 %v5973
    %6029 = vmatpush1.msra.mxu0 %v5972
    %6030 = vmatprep.subr.mxu0 %v5977
    %6031 = vmatpush1.msra.mxu0 %v5976
    %6032 = vmatprep.subr.mxu0 %v5981
    %6033 = vmatpush1.msra.mxu0 %v5980
    %6034 = vmatprep.subr.mxu0 %v5985
    %6035 = vmatpush1.msra.mxu0 %v5984
    %6036 = vmatprep.subr.mxu0 %v5989
    %6037 = vmatpush1.msra.mxu0 %v5988
    %6038 = vmatprep.subr.mxu0 %v5993
    %6039 = vmatpush1.msra.mxu0 %v5992
    %6040 = vmatprep.subr.mxu0 %v5997
    %6041 = vmatpush1.msra.mxu0 %v5996
    %6042 = vmatprep.subr.mxu0 %v6001
    %6043 = vmatpush1.msra.mxu0 %v6000
    %6044 = vmatprep.subr.mxu0 %v6005
    %6045 = vmatpush1.msra.mxu0 %v6004
    %6046 = vmatprep.subr.mxu0 %v6009
    %6047 = vmatpush1.msra.mxu0 %v6008
    %6048 = vmatprep.subr.mxu0 %v6013
    %6049 = vmatpush1.msra.mxu0 %v6012
    %6050 = vmatprep.subr.mxu0 %v6017
    %6051 = vmatpush1.msra.mxu0 %v6016
    %6052 = vmatprep.subr.mxu0 0.0
    %6053 = vmatpush1.msra.mxu0 0.0
    %6054 = vmatprep.subr.mxu0 0.0
    %6055 = vmatpush1.msra.mxu0 0.0
    %6056 = vmatprep.subr.mxu0 0.0
    %6057 = vmatpush1.msra.mxu0 0.0
    %6058 = vmatprep.subr.mxu0 0.0
    %6059 = vmatpush1.msra.mxu0 0.0
    %6060 = vmatprep.subr.mxu0 0.0
    %6061 = vmatpush1.msra.mxu0 0.0
    %6062 = vmatprep.subr.mxu0 0.0
    %6063 = vmatpush1.msra.mxu0 0.0
    %6064 = vmatprep.subr.mxu0 0.0
    %6065 = vmatpush1.msra.mxu0 0.0
    %6066 = vmatprep.subr.mxu0 0.0
    %6067 = vmatpush1.msra.mxu0 0.0
    %6068 = vmatprep.subr.mxu0 0.0
    %6069 = vmatpush1.msra.mxu0 0.0
    %6070 = vmatprep.subr.mxu0 0.0
    %6071 = vmatpush1.msra.mxu0 0.0
    %6072 = vmatprep.subr.mxu0 0.0
    %6073 = vmatpush1.msra.mxu0 0.0
    %6074 = vmatprep.subr.mxu0 0.0
    %6075 = vmatpush1.msra.mxu0 0.0
    %6076 = vmatprep.subr.mxu0 0.0
    %6077 = vmatpush1.msra.mxu0 0.0
    %6078 = vmatprep.subr.mxu0 0.0
    %6079 = vmatpush1.msra.mxu0 0.0
    %6080 = vmatprep.subr.mxu0 0.0
    %6081 = vmatpush1.msra.mxu0 0.0
    %6082 = vmatprep.subr.mxu0 0.0
    %6083 = vmatpush1.msra.mxu0 0.0
    %6084 = vmatprep.mubr.f32.mxu0 0.0
    %6085 = vmatmul.mubr.f32.gmra.mrb[0].mxu0 %v2531
    %v6086 = vpop.f32.mrb[0].mxu0
    %v6087 = vadd.f32 0.0, %v6086
    %v6088 = vpop.f32.mrb[0].mxu0
    %v6089 = vadd.f32 0.0, %v6088
    %6090 = vdwg.mxu0
    %6091 = vmatprep.subr.mxu0 %v5959
    %6092 = vmatpush1.msra.mxu0 %v5958
    %6093 = vmatprep.subr.mxu0 %v5963
    %6094 = vmatpush1.msra.mxu0 %v5962
    %6095 = vmatprep.subr.mxu0 %v5967
    %6096 = vmatpush1.msra.mxu0 %v5966
    %6097 = vmatprep.subr.mxu0 %v5971
    %6098 = vmatpush1.msra.mxu0 %v5970
    %6099 = vmatprep.subr.mxu0 %v5975
    %6100 = vmatpush1.msra.mxu0 %v5974
    %6101 = vmatprep.subr.mxu0 %v5979
    %6102 = vmatpush1.msra.mxu0 %v5978
    %6103 = vmatprep.subr.mxu0 %v5983
    %6104 = vmatpush1.msra.mxu0 %v5982
    %6105 = vmatprep.subr.mxu0 %v5987
    %6106 = vmatpush1.msra.mxu0 %v5986
    %6107 = vmatprep.subr.mxu0 %v5991
    %6108 = vmatpush1.msra.mxu0 %v5990
    %6109 = vmatprep.subr.mxu0 %v5995
    %6110 = vmatpush1.msra.mxu0 %v5994
    %6111 = vmatprep.subr.mxu0 %v5999
    %6112 = vmatpush1.msra.mxu0 %v5998
    %6113 = vmatprep.subr.mxu0 %v6003
    %6114 = vmatpush1.msra.mxu0 %v6002
    %6115 = vmatprep.subr.mxu0 %v6007
    %6116 = vmatpush1.msra.mxu0 %v6006
    %6117 = vmatprep.subr.mxu0 %v6011
    %6118 = vmatpush1.msra.mxu0 %v6010
    %6119 = vmatprep.subr.mxu0 %v6015
    %6120 = vmatpush1.msra.mxu0 %v6014
    %6121 = vmatprep.subr.mxu0 %v6019
    %6122 = vmatpush1.msra.mxu0 %v6018
    %6123 = vmatprep.subr.mxu0 0.0
    %6124 = vmatpush1.msra.mxu0 0.0
    %6125 = vmatprep.subr.mxu0 0.0
    %6126 = vmatpush1.msra.mxu0 0.0
    %6127 = vmatprep.subr.mxu0 0.0
    %6128 = vmatpush1.msra.mxu0 0.0
    %6129 = vmatprep.subr.mxu0 0.0
    %6130 = vmatpush1.msra.mxu0 0.0
    %6131 = vmatprep.subr.mxu0 0.0
    %6132 = vmatpush1.msra.mxu0 0.0
    %6133 = vmatprep.subr.mxu0 0.0
    %6134 = vmatpush1.msra.mxu0 0.0
    %6135 = vmatprep.subr.mxu0 0.0
    %6136 = vmatpush1.msra.mxu0 0.0
    %6137 = vmatprep.subr.mxu0 0.0
    %6138 = vmatpush1.msra.mxu0 0.0
    %6139 = vmatprep.subr.mxu0 0.0
    %6140 = vmatpush1.msra.mxu0 0.0
    %6141 = vmatprep.subr.mxu0 0.0
    %6142 = vmatpush1.msra.mxu0 0.0
    %6143 = vmatprep.subr.mxu0 0.0
    %6144 = vmatpush1.msra.mxu0 0.0
    %6145 = vmatprep.subr.mxu0 0.0
    %6146 = vmatpush1.msra.mxu0 0.0
    %6147 = vmatprep.subr.mxu0 0.0
    %6148 = vmatpush1.msra.mxu0 0.0
    %6149 = vmatprep.subr.mxu0 0.0
    %6150 = vmatpush1.msra.mxu0 0.0
    %6151 = vmatprep.subr.mxu0 0.0
    %6152 = vmatpush1.msra.mxu0 0.0
    %6153 = vmatprep.subr.mxu0 0.0
    %6154 = vmatpush1.msra.mxu0 0.0
    %6155 = vmatprep.mubr.f32.mxu0 0.0
    %6156 = vmatmul.mubr.f32.gmra.mrb[0].mxu0 %v2531
    %v6157 = vpop.f32.mrb[0].mxu0
    %v6158 = vadd.f32 0.0, %v6157
    %v6159 = vpop.f32.mrb[0].mxu0
    %v6160 = vadd.f32 0.0, %v6159
    %6161 = vdwg.mxu0
    %v6163 = vrot.slane %v2337, 6
    %6165 = vmatprep.subr.mxu0 %v5893
    %6166 = vmatpush1.msra.mxu0 %v5892
    %6167 = vmatprep.subr.mxu0 %v5897
    %6168 = vmatpush1.msra.mxu0 %v5896
    %6169 = vmatprep.subr.mxu0 %v5901
    %6170 = vmatpush1.msra.mxu0 %v5900
    %6171 = vmatprep.subr.mxu0 %v5905
    %6172 = vmatpush1.msra.mxu0 %v5904
    %6173 = vmatprep.subr.mxu0 %v5909
    %6174 = vmatpush1.msra.mxu0 %v5908
    %6175 = vmatprep.subr.mxu0 %v5913
    %6176 = vmatpush1.msra.mxu0 %v5912
    %6177 = vmatprep.subr.mxu0 %v5917
    %6178 = vmatpush1.msra.mxu0 %v5916
    %6179 = vmatprep.subr.mxu0 %v5921
    %6180 = vmatpush1.msra.mxu0 %v5920
    %6181 = vmatprep.subr.mxu0 %v5925
    %6182 = vmatpush1.msra.mxu0 %v5924
    %6183 = vmatprep.subr.mxu0 %v5929
    %6184 = vmatpush1.msra.mxu0 %v5928
    %6185 = vmatprep.subr.mxu0 %v5933
    %6186 = vmatpush1.msra.mxu0 %v5932
    %6187 = vmatprep.subr.mxu0 %v5937
    %6188 = vmatpush1.msra.mxu0 %v5936
    %6189 = vmatprep.subr.mxu0 %v5941
    %6190 = vmatpush1.msra.mxu0 %v5940
    %6191 = vmatprep.subr.mxu0 %v5945
    %6192 = vmatpush1.msra.mxu0 %v5944
    %6193 = vmatprep.subr.mxu0 %v5949
    %6194 = vmatpush1.msra.mxu0 %v5948
    %6195 = vmatprep.subr.mxu0 %v5953
    %6196 = vmatpush1.msra.mxu0 %v5952
    %6197 = vmatprep.subr.mxu0 0.0
    %6198 = vmatpush1.msra.mxu0 0.0
    %6199 = vmatprep.subr.mxu0 0.0
    %6200 = vmatpush1.msra.mxu0 0.0
    %6201 = vmatprep.subr.mxu0 0.0
    %6202 = vmatpush1.msra.mxu0 0.0
    %6203 = vmatprep.subr.mxu0 0.0
    %6204 = vmatpush1.msra.mxu0 0.0
    %6205 = vmatprep.subr.mxu0 0.0
    %6206 = vmatpush1.msra.mxu0 0.0
    %6207 = vmatprep.subr.mxu0 0.0
    %6208 = vmatpush1.msra.mxu0 0.0
    %6209 = vmatprep.subr.mxu0 0.0
    %6210 = vmatpush1.msra.mxu0 0.0
    %6211 = vmatprep.subr.mxu0 0.0
    %6212 = vmatpush1.msra.mxu0 0.0
    %6213 = vmatprep.subr.mxu0 0.0
    %6214 = vmatpush1.msra.mxu0 0.0
    %6215 = vmatprep.subr.mxu0 0.0
    %6216 = vmatpush1.msra.mxu0 0.0
    %6217 = vmatprep.subr.mxu0 0.0
    %6218 = vmatpush1.msra.mxu0 0.0
    %6219 = vmatprep.subr.mxu0 0.0
    %6220 = vmatpush1.msra.mxu0 0.0
    %6221 = vmatprep.subr.mxu0 0.0
    %6222 = vmatpush1.msra.mxu0 0.0
    %6223 = vmatprep.subr.mxu0 0.0
    %6224 = vmatpush1.msra.mxu0 0.0
    %6225 = vmatprep.subr.mxu0 0.0
    %6226 = vmatpush1.msra.mxu0 0.0
    %6227 = vmatprep.subr.mxu0 0.0
    %6228 = vmatpush1.msra.mxu0 0.0
    %6229 = vmatprep.mubr.f32.mxu0 0.0
    %6230 = vmatmul.mubr.f32.gmra.mrb[0].mxu0 %v6163
    %v6231 = vpop.f32.mrb[0].mxu0
    %v6232 = vadd.f32 %v6087, %v6231
    %v6233 = vpop.f32.mrb[0].mxu0
    %v6234 = vadd.f32 %v6089, %v6233
    %6235 = vdwg.mxu0
    %6236 = vmatprep.subr.mxu0 %v5895
    %6237 = vmatpush1.msra.mxu0 %v5894
    %6238 = vmatprep.subr.mxu0 %v5899
    %6239 = vmatpush1.msra.mxu0 %v5898
    %6240 = vmatprep.subr.mxu0 %v5903
    %6241 = vmatpush1.msra.mxu0 %v5902
    %6242 = vmatprep.subr.mxu0 %v5907
    %6243 = vmatpush1.msra.mxu0 %v5906
    %6244 = vmatprep.subr.mxu0 %v5911
    %6245 = vmatpush1.msra.mxu0 %v5910
    %6246 = vmatprep.subr.mxu0 %v5915
    %6247 = vmatpush1.msra.mxu0 %v5914
    %6248 = vmatprep.subr.mxu0 %v5919
    %6249 = vmatpush1.msra.mxu0 %v5918
    %6250 = vmatprep.subr.mxu0 %v5923
    %6251 = vmatpush1.msra.mxu0 %v5922
    %6252 = vmatprep.subr.mxu0 %v5927
    %6253 = vmatpush1.msra.mxu0 %v5926
    %6254 = vmatprep.subr.mxu0 %v5931
    %6255 = vmatpush1.msra.mxu0 %v5930
    %6256 = vmatprep.subr.mxu0 %v5935
    %6257 = vmatpush1.msra.mxu0 %v5934
    %6258 = vmatprep.subr.mxu0 %v5939
    %6259 = vmatpush1.msra.mxu0 %v5938
    %6260 = vmatprep.subr.mxu0 %v5943
    %6261 = vmatpush1.msra.mxu0 %v5942
    %6262 = vmatprep.subr.mxu0 %v5947
    %6263 = vmatpush1.msra.mxu0 %v5946
    %6264 = vmatprep.subr.mxu0 %v5951
    %6265 = vmatpush1.msra.mxu0 %v5950
    %6266 = vmatprep.subr.mxu0 %v5955
    %6267 = vmatpush1.msra.mxu0 %v5954
    %6268 = vmatprep.subr.mxu0 0.0
    %6269 = vmatpush1.msra.mxu0 0.0
    %6270 = vmatprep.subr.mxu0 0.0
    %6271 = vmatpush1.msra.mxu0 0.0
    %6272 = vmatprep.subr.mxu0 0.0
    %6273 = vmatpush1.msra.mxu0 0.0
    %6274 = vmatprep.subr.mxu0 0.0
    %6275 = vmatpush1.msra.mxu0 0.0
    %6276 = vmatprep.subr.mxu0 0.0
    %6277 = vmatpush1.msra.mxu0 0.0
    %6278 = vmatprep.subr.mxu0 0.0
    %6279 = vmatpush1.msra.mxu0 0.0
    %6280 = vmatprep.subr.mxu0 0.0
    %6281 = vmatpush1.msra.mxu0 0.0
    %6282 = vmatprep.subr.mxu0 0.0
    %6283 = vmatpush1.msra.mxu0 0.0
    %6284 = vmatprep.subr.mxu0 0.0
    %6285 = vmatpush1.msra.mxu0 0.0
    %6286 = vmatprep.subr.mxu0 0.0
    %6287 = vmatpush1.msra.mxu0 0.0
    %6288 = vmatprep.subr.mxu0 0.0
    %6289 = vmatpush1.msra.mxu0 0.0
    %6290 = vmatprep.subr.mxu0 0.0
    %6291 = vmatpush1.msra.mxu0 0.0
    %6292 = vmatprep.subr.mxu0 0.0
    %6293 = vmatpush1.msra.mxu0 0.0
    %6294 = vmatprep.subr.mxu0 0.0
    %6295 = vmatpush1.msra.mxu0 0.0
    %6296 = vmatprep.subr.mxu0 0.0
    %6297 = vmatpush1.msra.mxu0 0.0
    %6298 = vmatprep.subr.mxu0 0.0
    %6299 = vmatpush1.msra.mxu0 0.0
    %6300 = vmatprep.mubr.f32.mxu0 0.0
    %6301 = vmatmul.mubr.f32.gmra.mrb[0].mxu0 %v6163
    %v6302 = vpop.f32.mrb[0].mxu0
    %v6303 = vadd.f32 %v6158, %v6302
    %v6304 = vpop.f32.mrb[0].mxu0
    %v6305 = vadd.f32 %v6160, %v6304
    %6306 = vdwg.mxu0
    %v6307 = vld [vmem:[#allocation28] sm:$0xf]
    %v6309 = vlaneseq
    %v6310 = vshrl.u32 %v6309, 7
    %v6311 = vsub.s32 0, %v6310
    %v6312 = vrot.slane %v6307, %v6311
    %v6313 = vlaneseq
    %v6314 = vshrl.u32 %v6313, 7
    %v6315 = vsub.s32 1, %v6314
    %v6316 = vrot.slane %v6307, %v6315
    %v6317 = vlaneseq
    %v6318 = vshrl.u32 %v6317, 7
    %v6319 = vsub.s32 2, %v6318
    %v6320 = vrot.slane %v6307, %v6319
    %v6321 = vlaneseq
    %v6322 = vshrl.u32 %v6321, 7
    %v6323 = vsub.s32 3, %v6322
    %v6324 = vrot.slane %v6307, %v6323
    %v6329 = vadd.f32 %v6232, %v6312
    %v6330 = vadd.f32 %v6234, %v6316
    %v6331 = vadd.f32 %v6303, %v6320
    %v6332 = vadd.f32 %v6305, %v6324
    %v6333 = vsub.f32 0.0, %v6329
    %v6334 = vmul.f32 %v6333, 1.442695
    %v6335 = vpow.pop %v6334
    %v6336 = vadd.f32 %v6335, 1.0
    %v6337 = vrcp.pop %v6336
    %v6338 = vmul.f32 1.0, %v6337
    %v6339 = vsub.f32 0.0, %v6330
    %v6340 = vmul.f32 %v6339, 1.442695
    %v6341 = vpow.pop %v6340
    %v6342 = vadd.f32 %v6341, 1.0
    %v6343 = vrcp.pop %v6342
    %v6344 = vmul.f32 1.0, %v6343
    %v6345 = vtanh.pop %v6331
    %v6346 = vsub.f32 0.0, %v6332
    %v6347 = vmul.f32 %v6346, 1.442695
    %v6348 = vpow.pop %v6347
    %v6349 = vadd.f32 %v6348, 1.0
    %v6350 = vrcp.pop %v6349
    %v6351 = vmul.f32 1.0, %v6350
    %v6352 = vmul.f32 %v6344, 0.0
    %v6353 = vmul.f32 %v6338, %v6345
    %v6354 = vadd.f32 %v6352, %v6353
    %v6355 = vtanh.pop %v6354
    %v6356 = vmul.f32 %v6351, %v6355
    %v6357 = vld [vmem:[#allocation30] sm:$0xff]
    %v6358 = vld [vmem:[#allocation30 + $0x8] sm:$0xff]
    %v6359 = vld [vmem:[#allocation30 + $0x10] sm:$0xff]
    %v6360 = vld [vmem:[#allocation30 + $0x18] sm:$0xff]
    %v6361 = vld [vmem:[#allocation30 + $0x20] sm:$0xff]
    %v6362 = vld [vmem:[#allocation30 + $0x28] sm:$0xff]
    %v6363 = vld [vmem:[#allocation30 + $0x30] sm:$0xff]
    %v6364 = vld [vmem:[#allocation30 + $0x38] sm:$0xff]
    %v6365 = vld [vmem:[#allocation30 + $0x40] sm:$0xff]
    %v6366 = vld [vmem:[#allocation30 + $0x48] sm:$0xff]
    %v6367 = vld [vmem:[#allocation30 + $0x50] sm:$0xff]
    %v6368 = vld [vmem:[#allocation30 + $0x58] sm:$0xff]
    %v6369 = vld [vmem:[#allocation30 + $0x60] sm:$0xff]
    %v6370 = vld [vmem:[#allocation30 + $0x68] sm:$0xff]
    %v6371 = vld [vmem:[#allocation30 + $0x70] sm:$0xff]
    %v6372 = vld [vmem:[#allocation30 + $0x78] sm:$0xff]
    %v6373 = vld [vmem:[#allocation31] sm:$0xff]
    %v6374 = vld [vmem:[#allocation31 + $0x8] sm:$0xff]
    %v6375 = vld [vmem:[#allocation31 + $0x10] sm:$0xff]
    %v6376 = vld [vmem:[#allocation31 + $0x18] sm:$0xff]
    %v6377 = vld [vmem:[#allocation31 + $0x20] sm:$0xff]
    %v6378 = vld [vmem:[#allocation31 + $0x28] sm:$0xff]
    %v6379 = vld [vmem:[#allocation31 + $0x30] sm:$0xff]
    %v6380 = vld [vmem:[#allocation31 + $0x38] sm:$0xff]
    %v6381 = vld [vmem:[#allocation31 + $0x40] sm:$0xff]
    %v6382 = vld [vmem:[#allocation31 + $0x48] sm:$0xff]
    %v6383 = vld [vmem:[#allocation31 + $0x50] sm:$0xff]
    %v6384 = vld [vmem:[#allocation31 + $0x58] sm:$0xff]
    %v6385 = vld [vmem:[#allocation31 + $0x60] sm:$0xff]
    %v6386 = vld [vmem:[#allocation31 + $0x68] sm:$0xff]
    %v6387 = vld [vmem:[#allocation31 + $0x70] sm:$0xff]
    %v6388 = vld [vmem:[#allocation31 + $0x78] sm:$0xff]
    %6389 = vmatprep.subr.mxu0 0.0
    %6390 = vmatpush1.msra.mxu0 %v6373
    %6391 = vmatprep.subr.mxu0 0.0
    %6392 = vmatpush1.msra.mxu0 %v6374
    %6393 = vmatprep.subr.mxu0 0.0
    %6394 = vmatpush1.msra.mxu0 %v6375
    %6395 = vmatprep.subr.mxu0 0.0
    %6396 = vmatpush1.msra.mxu0 %v6376
    %6397 = vmatprep.subr.mxu0 0.0
    %6398 = vmatpush1.msra.mxu0 %v6377
    %6399 = vmatprep.subr.mxu0 0.0
    %6400 = vmatpush1.msra.mxu0 %v6378
    %6401 = vmatprep.subr.mxu0 0.0
    %6402 = vmatpush1.msra.mxu0 %v6379
    %6403 = vmatprep.subr.mxu0 0.0
    %6404 = vmatpush1.msra.mxu0 %v6380
    %6405 = vmatprep.subr.mxu0 0.0
    %6406 = vmatpush1.msra.mxu0 %v6381
    %6407 = vmatprep.subr.mxu0 0.0
    %6408 = vmatpush1.msra.mxu0 %v6382
    %6409 = vmatprep.subr.mxu0 0.0
    %6410 = vmatpush1.msra.mxu0 %v6383
    %6411 = vmatprep.subr.mxu0 0.0
    %6412 = vmatpush1.msra.mxu0 %v6384
    %6413 = vmatprep.subr.mxu0 0.0
    %6414 = vmatpush1.msra.mxu0 %v6385
    %6415 = vmatprep.subr.mxu0 0.0
    %6416 = vmatpush1.msra.mxu0 %v6386
    %6417 = vmatprep.subr.mxu0 0.0
    %6418 = vmatpush1.msra.mxu0 %v6387
    %6419 = vmatprep.subr.mxu0 0.0
    %6420 = vmatpush1.msra.mxu0 %v6388
    %6421 = vmatprep.subr.mxu0 0.0
    %6422 = vmatpush1.msra.mxu0 0.0
    %6423 = vmatprep.subr.mxu0 0.0
    %6424 = vmatpush1.msra.mxu0 0.0
    %6425 = vmatprep.subr.mxu0 0.0
    %6426 = vmatpush1.msra.mxu0 0.0
    %6427 = vmatprep.subr.mxu0 0.0
    %6428 = vmatpush1.msra.mxu0 0.0
    %6429 = vmatprep.subr.mxu0 0.0
    %6430 = vmatpush1.msra.mxu0 0.0
    %6431 = vmatprep.subr.mxu0 0.0
    %6432 = vmatpush1.msra.mxu0 0.0
    %6433 = vmatprep.subr.mxu0 0.0
    %6434 = vmatpush1.msra.mxu0 0.0
    %6435 = vmatprep.subr.mxu0 0.0
    %6436 = vmatpush1.msra.mxu0 0.0
    %6437 = vmatprep.subr.mxu0 0.0
    %6438 = vmatpush1.msra.mxu0 0.0
    %6439 = vmatprep.subr.mxu0 0.0
    %6440 = vmatpush1.msra.mxu0 0.0
    %6441 = vmatprep.subr.mxu0 0.0
    %6442 = vmatpush1.msra.mxu0 0.0
    %6443 = vmatprep.subr.mxu0 0.0
    %6444 = vmatpush1.msra.mxu0 0.0
    %6445 = vmatprep.subr.mxu0 0.0
    %6446 = vmatpush1.msra.mxu0 0.0
    %6447 = vmatprep.subr.mxu0 0.0
    %6448 = vmatpush1.msra.mxu0 0.0
    %6449 = vmatprep.subr.mxu0 0.0
    %6450 = vmatpush1.msra.mxu0 0.0
    %6451 = vmatprep.subr.mxu0 0.0
    %6452 = vmatpush1.msra.mxu0 0.0
    %6453 = vmatprep.mubr.f32.mxu0 0.0
    %6454 = vmatmul.mubr.f32.gmra.mrb[0].mxu0 %v6356
    %v6455 = vpop.f32.mrb[0].mxu0
    %v6456 = vadd.f32 0.0, %v6455
    %v6457 = vpop.f32.mrb[0].mxu0
    %6458 = vdwg.mxu0
    %v6460 = vrot.slane %v5891, 6
    %6462 = vmatprep.subr.mxu0 0.0
    %6463 = vmatpush1.msra.mxu0 %v6357
    %6464 = vmatprep.subr.mxu0 0.0
    %6465 = vmatpush1.msra.mxu0 %v6358
    %6466 = vmatprep.subr.mxu0 0.0
    %6467 = vmatpush1.msra.mxu0 %v6359
    %6468 = vmatprep.subr.mxu0 0.0
    %6469 = vmatpush1.msra.mxu0 %v6360
    %6470 = vmatprep.subr.mxu0 0.0
    %6471 = vmatpush1.msra.mxu0 %v6361
    %6472 = vmatprep.subr.mxu0 0.0
    %6473 = vmatpush1.msra.mxu0 %v6362
    %6474 = vmatprep.subr.mxu0 0.0
    %6475 = vmatpush1.msra.mxu0 %v6363
    %6476 = vmatprep.subr.mxu0 0.0
    %6477 = vmatpush1.msra.mxu0 %v6364
    %6478 = vmatprep.subr.mxu0 0.0
    %6479 = vmatpush1.msra.mxu0 %v6365
    %6480 = vmatprep.subr.mxu0 0.0
    %6481 = vmatpush1.msra.mxu0 %v6366
    %6482 = vmatprep.subr.mxu0 0.0
    %6483 = vmatpush1.msra.mxu0 %v6367
    %6484 = vmatprep.subr.mxu0 0.0
    %6485 = vmatpush1.msra.mxu0 %v6368
    %6486 = vmatprep.subr.mxu0 0.0
    %6487 = vmatpush1.msra.mxu0 %v6369
    %6488 = vmatprep.subr.mxu0 0.0
    %6489 = vmatpush1.msra.mxu0 %v6370
    %6490 = vmatprep.subr.mxu0 0.0
    %6491 = vmatpush1.msra.mxu0 %v6371
    %6492 = vmatprep.subr.mxu0 0.0
    %6493 = vmatpush1.msra.mxu0 %v6372
    %6494 = vmatprep.subr.mxu0 0.0
    %6495 = vmatpush1.msra.mxu0 0.0
    %6496 = vmatprep.subr.mxu0 0.0
    %6497 = vmatpush1.msra.mxu0 0.0
    %6498 = vmatprep.subr.mxu0 0.0
    %6499 = vmatpush1.msra.mxu0 0.0
    %6500 = vmatprep.subr.mxu0 0.0
    %6501 = vmatpush1.msra.mxu0 0.0
    %6502 = vmatprep.subr.mxu0 0.0
    %6503 = vmatpush1.msra.mxu0 0.0
    %6504 = vmatprep.subr.mxu0 0.0
    %6505 = vmatpush1.msra.mxu0 0.0
    %6506 = vmatprep.subr.mxu0 0.0
    %6507 = vmatpush1.msra.mxu0 0.0
    %6508 = vmatprep.subr.mxu0 0.0
    %6509 = vmatpush1.msra.mxu0 0.0
    %6510 = vmatprep.subr.mxu0 0.0
    %6511 = vmatpush1.msra.mxu0 0.0
    %6512 = vmatprep.subr.mxu0 0.0
    %6513 = vmatpush1.msra.mxu0 0.0
    %6514 = vmatprep.subr.mxu0 0.0
    %6515 = vmatpush1.msra.mxu0 0.0
    %6516 = vmatprep.subr.mxu0 0.0
    %6517 = vmatpush1.msra.mxu0 0.0
    %6518 = vmatprep.subr.mxu0 0.0
    %6519 = vmatpush1.msra.mxu0 0.0
    %6520 = vmatprep.subr.mxu0 0.0
    %6521 = vmatpush1.msra.mxu0 0.0
    %6522 = vmatprep.subr.mxu0 0.0
    %6523 = vmatpush1.msra.mxu0 0.0
    %6524 = vmatprep.subr.mxu0 0.0
    %6525 = vmatpush1.msra.mxu0 0.0
    %6526 = vmatprep.mubr.f32.mxu0 0.0
    %6527 = vmatmul.mubr.f32.gmra.mrb[0].mxu0 %v6460
    %v6528 = vpop.f32.mrb[0].mxu0
    %v6529 = vadd.f32 %v6456, %v6528
    %v6530 = vpop.f32.mrb[0].mxu0
    %6531 = vdwg.mxu0
    %v6532 = vld [vmem:[#allocation33] sm:$0x1]
    %v6534 = vlaneseq
    %v6535 = vshrl.u32 %v6534, 7
    %v6536 = vsub.s32 0, %v6535
    %v6537 = vrot.slane %v6532, %v6536
    %v6539 = vadd.f32 %v6529, %v6537
    %v6540 = vlaneseq
    %v6541 = vand.u32 %v6540, 127
    %vm6542 = vcmp.lt.s32.totalorder %v6541, 64
    %v6543 = vmax.f32 %v6539, 0.0
    %v6544 = vand.u32 2147483647, %v6539
    %v6545 = vsub.f32 0.0, %v6544
    %v6546 = vmul.f32 %v6545, 1.442695
    %v6547 = vpow.pop %v6546
    %v6548 = vadd.f32 %v6547, 1.0
    %v6549 = vlog2.pop %v6548
    %v6550 = vmul.f32 %v6549, 0.6931472
    %v6551 = vmul.f32 -0.5, %v6547
    %v6552 = vadd.f32 %v6551, 1.0
    %v6553 = vmul.f32 %v6552, %v6547
    %v6554 = vand.u32 2147483647, %v6547
    %vm6555 = vcmp.lt.f32.partialorder %v6554, 0.0004427343
    %v6556 = vsel %vm6555, %v6553, %v6550
    %v6557 = vadd.f32 %v6543, %v6556
    %v6558 = vsel %vm6542, %v6539, %v6557
    %6559 = vst [vmem:[#allocation34] sm:$0x3] %v6558
    // Predicated region
    $region138: #{plan_recognition_forward.1} parent=1 // pred_check
      _
    $region139: #{plan_recognition_forward.1} parent=1 // pred_check_branch
      %6561 = sbr.rel (0) target = $region141
    $region140: #{plan_recognition_forward.1} parent=1 // pred_region
      %s6563 = ssub.s32 32, 32
      %6564 = vsyncadd [#allocation9], %s6563
      %s6566 = sshll.u32 [#allocation34], 4
      %s6567 = int_to_ptr.vmem [resolvable:$true] %s6566
      %6569 = dma.vmem_to_hbm [thread:$0]  %s6567, 32, %s17, [#allocation9]
    $region141: #{plan_recognition_forward.1} parent=1 // pred_fallthru
      _
    // Predicated region
    $region142: #{plan_recognition_forward.1} parent=1 // pred_check
      _
    $region143: #{plan_recognition_forward.1} parent=1 // pred_check_branch
      %6571 = sbr.rel (0) target = $region145
    $region144: #{plan_recognition_forward.1} parent=1 // pred_region
      %6572 = dma.done [#allocation9], 32
    $region145: #{plan_recognition_forward.1} parent=1 // pred_fallthru
      _
    %6573 = vsyncpa [#allocation8], 1
    %6574 = vsyncpa [#allocation11], 1
    %6575 = vsyncpa [#allocation14], 1
    %6576 = vsyncpa [#allocation17], 1
    %6577 = vsyncpa [#allocation20], 1
    %6578 = vsyncpa [#allocation23], 1
    %6579 = vsyncpa [#allocation26], 1
    %6580 = vsyncpa [#allocation29], 1
    %6581 = vsyncpa [#allocation32], 1
    %6582 = vsyncpa [#allocation9], 1

</llo_original>
